<compile_context>
chip_gen: v6e
topology: v6e:2x2x1
jax: 0.10.0
libtpu: 0.0.40
codegen_flags: <defaults>
</compile_context>

<pallas_src>
import jax
import jax.numpy as jnp
import numpy as np
from jax.experimental import pallas as pl
from jax.experimental.pallas import tpu as pltpu


# ------------------------------- fused kernel -------------------------------


def _cnn_kernel(x_ref, w1_ref, b1_ref, w2_ref, b2_ref, w3_ref, b3_ref,
                sel1_ref, sel2_ref, wfc1_ref, bfc1_ref, wfc2_ref, bfc2_ref,
                o_ref, p1_ref, p2_ref, p3_ref, flat_ref):
    """One CIFAR-10 image end-to-end, fully VMEM resident.

    Activation layout: (channels, H*W) with spatial flattened on lanes at the
    *input* width; conv outputs carry wrap-around "garbage" at lanes with
    w >= Wo, which are never selected downstream (pool selection matrices and
    the zero-padded fc1 weight skip them).
    """

    def conv3x3(x, width, ho, wo, w_ref, b_ref, patch_ref, relu):
        # Build the (9*Cin, Lout) im2col matrix in a VMEM scratch (one lane
        # shift per tap), then ONE bf16 MXU matmul with K = 9*Cin.
        cin = x.shape[0]
        lout = (ho - 1) * width + wo
        for kh in range(3):
            for kw in range(3):
                t = kh * 3 + kw
                s = kh * width + kw
                patch_ref[t * cin:(t + 1) * cin, :] = (
                    x[:, s:s + lout].astype(patch_ref.dtype))
        y = jnp.dot(w_ref[...], patch_ref[...].astype(jnp.bfloat16),
                    preferred_element_type=jnp.float32)
        y = y + b_ref[...]                       # (Cout,1) lane-broadcast, f32
        return jnp.maximum(y, 0.0) if relu else y

    def maxpool2x2(y, width, hp, wp, sel_ref, chunk):
        # 2x2 stride-2 max pool + downsample/re-flatten.  The 4-way shifted
        # max is done per lane chunk (bounds vreg pressure) and each chunk
        # feeds the matching bf16 K-slice of the 0/1 selection matmul.
        lm = 2 * (hp - 1) * width + 2 * (wp - 1) + 1
        acc = None
        for c0 in range(0, lm, chunk):
            c1 = min(c0 + chunk, lm)
            m = jnp.maximum(
                jnp.maximum(y[:, c0:c1], y[:, c0 + 1:c1 + 1]),
                jnp.maximum(y[:, c0 + width:c1 + width],
                            y[:, c0 + width + 1:c1 + width + 1]))
            part = jnp.dot(m.astype(jnp.bfloat16), sel_ref[c0:c1, :],
                           preferred_element_type=jnp.float32)
            acc = part if acc is None else acc + part
        return acc

    x = x_ref[0]                                                   # (3, 1024) f32
    y = conv3x3(x, 32, 30, 30, w1_ref, b1_ref, p1_ref, True)       # (32, 958)
    y = maxpool2x2(y, 32, 15, 15, sel1_ref, 256)                   # (32, 225)
    # TODO(synk): dropout(p=0.2) is identity (eval mode).
    y = conv3x3(y, 15, 13, 13, w2_ref, b2_ref, p2_ref, True)       # (64, 193)
    y = maxpool2x2(y, 15, 6, 6, sel2_ref, 256)                     # (64, 36)
    y = conv3x3(y, 6, 4, 4, w3_ref, b3_ref, p3_ref, False)         # (64, 22)

    # In-kernel NCHW flatten: 64 static lane-offset stores into a (1,1408)
    # VMEM row.  Garbage lanes (w >= 4) hit zero rows of the expanded fc1
    # weight, so no crop matmul / reshape relayout is needed.
    for c in range(64):
        flat_ref[:, c * 22:(c + 1) * 22] = y[c:c + 1, :]

    h = jnp.dot(flat_ref[...].astype(jnp.bfloat16), wfc1_ref[...],
                preferred_element_type=jnp.float32) + bfc1_ref[...]
    h = jnp.maximum(h, 0.0)
    logits = (jnp.dot(h.astype(jnp.bfloat16), wfc2_ref[...],
                      preferred_element_type=jnp.float32) + bfc2_ref[...])
    o_ref[0] = logits                                              # (1, 10)


# ------------------------------ pallas wrapper ------------------------------


def forward(params, x_nchw):
    """x_nchw: (B, 3, 32, 32) -> logits (B, 10)."""
    p = params
    B = x_nchw.shape[0]
    x = x_nchw.reshape(B, 3, 32 * 32).astype(jnp.float32)

    out = pl.pallas_call(
        _cnn_kernel,
        out_shape=jax.ShapeDtypeStruct((B, 1, 10), jnp.float32),
        grid=(B,),
        in_specs=[
            pl.BlockSpec((1, 3, 1024), lambda b: (b, 0, 0)),
            pl.BlockSpec(p["w1"].shape, lambda b: (0, 0)),
            pl.BlockSpec(p["b1"].shape, lambda b: (0, 0)),
            pl.BlockSpec(p["w2"].shape, lambda b: (0, 0)),
            pl.BlockSpec(p["b2"].shape, lambda b: (0, 0)),
            pl.BlockSpec(p["w3"].shape, lambda b: (0, 0)),
            pl.BlockSpec(p["b3"].shape, lambda b: (0, 0)),
            pl.BlockSpec(p["sel1"].shape, lambda b: (0, 0)),
            pl.BlockSpec(p["sel2"].shape, lambda b: (0, 0)),
            pl.BlockSpec(p["wfc1"].shape, lambda b: (0, 0)),
            pl.BlockSpec(p["bfc1"].shape, lambda b: (0, 0)),
            pl.BlockSpec(p["wfc2"].shape, lambda b: (0, 0)),
            pl.BlockSpec(p["bfc2"].shape, lambda b: (0, 0)),
        ],
        out_specs=pl.BlockSpec((1, 1, 10), lambda b: (b, 0, 0)),
        scratch_shapes=[
            pltpu.VMEM((27, 958), jnp.float32),     # conv1 im2col (Cin=3 -> f32)
            pltpu.VMEM((288, 193), jnp.bfloat16),   # conv2 im2col
            pltpu.VMEM((576, 22), jnp.bfloat16),    # conv3 im2col
            pltpu.VMEM((1, 1408), jnp.float32),     # NCHW-flatten row for fc1
        ],
        compiler_params=pltpu.CompilerParams(
            dimension_semantics=("parallel",)),
    )(x, p["w1"], p["b1"], p["w2"], p["b2"], p["w3"], p["b3"],
      p["sel1"], p["sel2"], p["wfc1"], p["bfc1"], p["wfc2"], p["bfc2"])
    return out.reshape(B, 10)


# ------------------------ structural constants / params ---------------------


def _pool_select(width, hp, wp):
    """(Lm, hp*wp) 0/1 matrix: lane 2*i*width + 2*j -> lane i*wp + j."""
    lm = 2 * (hp - 1) * width + 2 * (wp - 1) + 1
    cols = np.arange(hp * wp)
    src = 2 * (cols // wp) * width + 2 * (cols % wp)
    sel = np.zeros((lm, hp * wp), np.float32)
    sel[src, cols] = 1.0
    return sel


def init_params(key):
    """Synthetic parameters, pre-converted to kernel-friendly layouts.

    Mapping from the PyTorch module:
      convN : w = weight.permute(0,2,3,1).reshape(Cout, 9*Cin)  (col = tap*Cin+c),
              b = bias[:, None]; stored bf16 / f32.
      fc1   : fc1.weight.T (1024, 64) rows re-scattered from NCHW index
              c*16 + 4*h + w to the kernel's width-6 flatten index
              c*22 + 6*h + w; all other rows zero (garbage lanes).  bf16.
      fc2   : fc2.weight.T (64, 10), bf16.
    sel1/sel2 are structural 0/1 pool-downsample matrices (exact in bf16).
    """
    def uinit(k, shape, fan_in):
        bound = 1.0 / np.sqrt(fan_in)
        return jax.random.uniform(k, shape, jnp.float32, -bound, bound)

    ks = jax.random.split(key, 10)
    w1 = uinit(ks[0], (32, 3, 3, 3), 27)        # torch conv1.weight
    b1 = uinit(ks[1], (32,), 27)
    w2 = uinit(ks[2], (64, 32, 3, 3), 288)
    b2 = uinit(ks[3], (64,), 288)
    w3 = uinit(ks[4], (64, 64, 3, 3), 576)
    b3 = uinit(ks[5], (64,), 576)
    wfc1 = uinit(ks[6], (64, 1024), 1024)       # torch fc1.weight
    bfc1 = uinit(ks[7], (64,), 1024)
    wfc2 = uinit(ks[8], (10, 64), 64)           # torch fc2.weight
    bfc2 = uinit(ks[9], (10,), 64)

    def conv_flat(w):   # (Cout,Cin,3,3) -> (Cout, 9*Cin), col = (kh*3+kw)*Cin + c
        co, ci = w.shape[0], w.shape[1]
        return jnp.transpose(w, (0, 2, 3, 1)).reshape(co, 9 * ci).astype(jnp.bfloat16)

    # Expanded fc1 weight: (64*22, 64) with zero rows at garbage lanes.
    dst = np.array([c * 22 + h * 6 + w
                    for c in range(64) for h in range(4) for w in range(4)])
    wfc1e = np.zeros((64 * 22, 64), np.float32)
    wfc1e[dst] = np.asarray(wfc1).T             # source order c*16+4h+w == dst order

    return dict(
        w1=conv_flat(w1), b1=b1.reshape(32, 1),
        w2=conv_flat(w2), b2=b2.reshape(64, 1),
        w3=conv_flat(w3), b3=b3.reshape(64, 1),
        sel1=jnp.asarray(_pool_select(32, 15, 15), jnp.bfloat16),   # (925, 225)
        sel2=jnp.asarray(_pool_select(15, 6, 6), jnp.bfloat16),     # (161, 36)
        wfc1=jnp.asarray(wfc1e, jnp.bfloat16),                      # (1408, 64)
        bfc1=bfc1.reshape(1, 64),
        wfc2=jnp.transpose(wfc2).astype(jnp.bfloat16),              # (64, 10)
        bfc2=bfc2.reshape(1, 10),
    )


if __name__ == "__main__":
    key = jax.random.PRNGKey(0)
    kx, kp = jax.random.split(key)
    # fc1 = Linear(4*4*64, 64) pins the input to CIFAR-10's 3x32x32; batch=2.
    x = jax.random.normal(kx, (2, 3, 32, 32), dtype=jnp.float32)
    params = init_params(kp)

    out = jax.jit(forward)(params, x)
    out = jax.block_until_ready(out)
    assert out.shape == (2, 10) and out.dtype == jnp.float32
    print("KERNEL_OK")
</pallas_src>

<mosaic_0001>
module attributes {stable_mosaic.version = 11 : i64} {
  func.func @_cnn_kernel(%arg0: i32, %arg1: memref<1x3x1024xf32, #tpu.memory_space<vmem>>, %arg2: memref<32x27xbf16, #tpu.memory_space<vmem>>, %arg3: memref<32x1xf32, #tpu.memory_space<vmem>>, %arg4: memref<64x288xbf16, #tpu.memory_space<vmem>>, %arg5: memref<64x1xf32, #tpu.memory_space<vmem>>, %arg6: memref<64x576xbf16, #tpu.memory_space<vmem>>, %arg7: memref<64x1xf32, #tpu.memory_space<vmem>>, %arg8: memref<925x225xbf16, #tpu.memory_space<vmem>>, %arg9: memref<161x36xbf16, #tpu.memory_space<vmem>>, %arg10: memref<1408x64xbf16, #tpu.memory_space<vmem>>, %arg11: memref<1x64xf32, #tpu.memory_space<vmem>>, %arg12: memref<64x10xbf16, #tpu.memory_space<vmem>>, %arg13: memref<1x10xf32, #tpu.memory_space<vmem>>, %arg14: memref<1x1x10xf32, #tpu.memory_space<vmem>>, %arg15: memref<27x958xf32, #tpu.memory_space<vmem>>, %arg16: memref<288x193xbf16, #tpu.memory_space<vmem>>, %arg17: memref<576x22xbf16, #tpu.memory_space<vmem>>, %arg18: memref<1x1408xf32, #tpu.memory_space<vmem>>) attributes {dimension_semantics = [#tpu.dimension_semantics<parallel>], iteration_bounds = array<i64: 2>, scalar_prefetch = 0 : i64, scratch_operands = 4 : i64, tpu.core_type = #tpu.core_type<tc>, window_params = [{transform_indices = @transform_0, window_bounds = array<i64: 1, 3, 1024>}, {pipeline_mode = #tpu.pipeline_mode<synchronous>, transform_indices = @transform_1, window_bounds = array<i64: 32, 27>}, {pipeline_mode = #tpu.pipeline_mode<synchronous>, transform_indices = @transform_2, window_bounds = array<i64: 32, 1>}, {pipeline_mode = #tpu.pipeline_mode<synchronous>, transform_indices = @transform_3, window_bounds = array<i64: 64, 288>}, {pipeline_mode = #tpu.pipeline_mode<synchronous>, transform_indices = @transform_4, window_bounds = array<i64: 64, 1>}, {pipeline_mode = #tpu.pipeline_mode<synchronous>, transform_indices = @transform_5, window_bounds = array<i64: 64, 576>}, {pipeline_mode = #tpu.pipeline_mode<synchronous>, transform_indices = @transform_6, window_bounds = array<i64: 64, 1>}, {pipeline_mode = #tpu.pipeline_mode<synchronous>, transform_indices = @transform_7, window_bounds = array<i64: 925, 225>}, {pipeline_mode = #tpu.pipeline_mode<synchronous>, transform_indices = @transform_8, window_bounds = array<i64: 161, 36>}, {pipeline_mode = #tpu.pipeline_mode<synchronous>, transform_indices = @transform_9, window_bounds = array<i64: 1408, 64>}, {pipeline_mode = #tpu.pipeline_mode<synchronous>, transform_indices = @transform_10, window_bounds = array<i64: 1, 64>}, {pipeline_mode = #tpu.pipeline_mode<synchronous>, transform_indices = @transform_11, window_bounds = array<i64: 64, 10>}, {pipeline_mode = #tpu.pipeline_mode<synchronous>, transform_indices = @transform_12, window_bounds = array<i64: 1, 10>}, {transform_indices = @transform_13, window_bounds = array<i64: 1, 1, 10>}]} {
    %c0 = arith.constant 0 : index
    %c0_0 = arith.constant 0 : index
    %c0_1 = arith.constant 0 : index
    %0 = vector.load %arg1[%c0, %c0_0, %c0_1] : memref<1x3x1024xf32, #tpu.memory_space<vmem>>, vector<1x3x1024xf32>
    %1 = vector.shape_cast %0 : vector<1x3x1024xf32> to vector<3x1024xf32>
    %2 = vector.extract_strided_slice %1 {offsets = [0, 0], sizes = [3, 958], strides = [1, 1]} : vector<3x1024xf32> to vector<3x958xf32>
    %c0_2 = arith.constant 0 : index
    %c0_3 = arith.constant 0 : index
    %3 = vector.load %arg15[%c0_2, %c0_3] : memref<27x958xf32, #tpu.memory_space<vmem>>, vector<3x958xf32>
    tpu.vector_store %arg15[%c0_2, %c0_3], %2 {strides = array<i32>} : memref<27x958xf32, #tpu.memory_space<vmem>>, vector<3x958xf32>,
    %4 = vector.extract_strided_slice %1 {offsets = [0, 1], sizes = [3, 958], strides = [1, 1]} : vector<3x1024xf32> to vector<3x958xf32>
    %c3 = arith.constant 3 : index
    %c0_4 = arith.constant 0 : index
    %5 = vector.load %arg15[%c3, %c0_4] : memref<27x958xf32, #tpu.memory_space<vmem>>, vector<3x958xf32>
    tpu.vector_store %arg15[%c3, %c0_4], %4 {strides = array<i32>} : memref<27x958xf32, #tpu.memory_space<vmem>>, vector<3x958xf32>,
    %6 = vector.extract_strided_slice %1 {offsets = [0, 2], sizes = [3, 958], strides = [1, 1]} : vector<3x1024xf32> to vector<3x958xf32>
    %c6 = arith.constant 6 : index
    %c0_5 = arith.constant 0 : index
    %7 = vector.load %arg15[%c6, %c0_5] : memref<27x958xf32, #tpu.memory_space<vmem>>, vector<3x958xf32>
    tpu.vector_store %arg15[%c6, %c0_5], %6 {strides = array<i32>} : memref<27x958xf32, #tpu.memory_space<vmem>>, vector<3x958xf32>,
    %8 = vector.extract_strided_slice %1 {offsets = [0, 32], sizes = [3, 958], strides = [1, 1]} : vector<3x1024xf32> to vector<3x958xf32>
    %c9 = arith.constant 9 : index
    %c0_6 = arith.constant 0 : index
    %9 = vector.load %arg15[%c9, %c0_6] : memref<27x958xf32, #tpu.memory_space<vmem>>, vector<3x958xf32>
    tpu.vector_store %arg15[%c9, %c0_6], %8 {strides = array<i32>} : memref<27x958xf32, #tpu.memory_space<vmem>>, vector<3x958xf32>,
    %10 = vector.extract_strided_slice %1 {offsets = [0, 33], sizes = [3, 958], strides = [1, 1]} : vector<3x1024xf32> to vector<3x958xf32>
    %c12 = arith.constant 12 : index
    %c0_7 = arith.constant 0 : index
    %11 = vector.load %arg15[%c12, %c0_7] : memref<27x958xf32, #tpu.memory_space<vmem>>, vector<3x958xf32>
    tpu.vector_store %arg15[%c12, %c0_7], %10 {strides = array<i32>} : memref<27x958xf32, #tpu.memory_space<vmem>>, vector<3x958xf32>,
    %12 = vector.extract_strided_slice %1 {offsets = [0, 34], sizes = [3, 958], strides = [1, 1]} : vector<3x1024xf32> to vector<3x958xf32>
    %c15 = arith.constant 15 : index
    %c0_8 = arith.constant 0 : index
    %13 = vector.load %arg15[%c15, %c0_8] : memref<27x958xf32, #tpu.memory_space<vmem>>, vector<3x958xf32>
    tpu.vector_store %arg15[%c15, %c0_8], %12 {strides = array<i32>} : memref<27x958xf32, #tpu.memory_space<vmem>>, vector<3x958xf32>,
    %14 = vector.extract_strided_slice %1 {offsets = [0, 64], sizes = [3, 958], strides = [1, 1]} : vector<3x1024xf32> to vector<3x958xf32>
    %c18 = arith.constant 18 : index
    %c0_9 = arith.constant 0 : index
    %15 = vector.load %arg15[%c18, %c0_9] : memref<27x958xf32, #tpu.memory_space<vmem>>, vector<3x958xf32>
    tpu.vector_store %arg15[%c18, %c0_9], %14 {strides = array<i32>} : memref<27x958xf32, #tpu.memory_space<vmem>>, vector<3x958xf32>,
    %16 = vector.extract_strided_slice %1 {offsets = [0, 65], sizes = [3, 958], strides = [1, 1]} : vector<3x1024xf32> to vector<3x958xf32>
    %c21 = arith.constant 21 : index
    %c0_10 = arith.constant 0 : index
    %17 = vector.load %arg15[%c21, %c0_10] : memref<27x958xf32, #tpu.memory_space<vmem>>, vector<3x958xf32>
    tpu.vector_store %arg15[%c21, %c0_10], %16 {strides = array<i32>} : memref<27x958xf32, #tpu.memory_space<vmem>>, vector<3x958xf32>,
    %18 = vector.extract_strided_slice %1 {offsets = [0, 66], sizes = [3, 958], strides = [1, 1]} : vector<3x1024xf32> to vector<3x958xf32>
    %c24 = arith.constant 24 : index
    %c0_11 = arith.constant 0 : index
    %19 = vector.load %arg15[%c24, %c0_11] : memref<27x958xf32, #tpu.memory_space<vmem>>, vector<3x958xf32>
    tpu.vector_store %arg15[%c24, %c0_11], %18 {strides = array<i32>} : memref<27x958xf32, #tpu.memory_space<vmem>>, vector<3x958xf32>,
    %c0_12 = arith.constant 0 : index
    %c0_13 = arith.constant 0 : index
    %20 = vector.load %arg2[%c0_12, %c0_13] : memref<32x27xbf16, #tpu.memory_space<vmem>>, vector<32x27xbf16>
    %c0_14 = arith.constant 0 : index
    %c0_15 = arith.constant 0 : index
    %21 = vector.load %arg15[%c0_14, %c0_15] : memref<27x958xf32, #tpu.memory_space<vmem>>, vector<27x958xf32>
    %22 = arith.truncf %21 : vector<27x958xf32> to vector<27x958xbf16>
    %cst = arith.constant dense<0.000000e+00> : vector<32x958xf32>
    %23 = tpu.matmul %20, %22, %cst {dimension_numbers = #tpu.dot_dimension_numbers<[1], [0], [0], [1], [0, 0, 1, 1], [], []>} : vector<32x27xbf16>, vector<27x958xbf16>, vector<32x958xf32> -> vector<32x958xf32>
    %c0_16 = arith.constant 0 : index
    %c0_17 = arith.constant 0 : index
    %24 = vector.load %arg3[%c0_16, %c0_17] : memref<32x1xf32, #tpu.memory_space<vmem>>, vector<32x1xf32>
    %25 = vector.broadcast %24 : vector<32x1xf32> to vector<32x958xf32>
    %26 = arith.addf %23, %25 : vector<32x958xf32>
    %cst_18 = arith.constant 0.000000e+00 : f32
    %27 = vector.broadcast %cst_18 : f32 to vector<32x958xf32>
    %28 = arith.maximumf %26, %27 : vector<32x958xf32>
    %29 = vector.extract_strided_slice %28 {offsets = [0, 0], sizes = [32, 256], strides = [1, 1]} : vector<32x958xf32> to vector<32x256xf32>
    %30 = vector.extract_strided_slice %28 {offsets = [0, 1], sizes = [32, 256], strides = [1, 1]} : vector<32x958xf32> to vector<32x256xf32>
    %31 = arith.maximumf %29, %30 : vector<32x256xf32>
    %32 = vector.extract_strided_slice %28 {offsets = [0, 32], sizes = [32, 256], strides = [1, 1]} : vector<32x958xf32> to vector<32x256xf32>
    %33 = vector.extract_strided_slice %28 {offsets = [0, 33], sizes = [32, 256], strides = [1, 1]} : vector<32x958xf32> to vector<32x256xf32>
    %34 = arith.maximumf %32, %33 : vector<32x256xf32>
    %35 = arith.maximumf %31, %34 : vector<32x256xf32>
    %36 = arith.truncf %35 : vector<32x256xf32> to vector<32x256xbf16>
    %c0_19 = arith.constant 0 : index
    %c0_20 = arith.constant 0 : index
    %37 = vector.load %arg8[%c0_19, %c0_20] : memref<925x225xbf16, #tpu.memory_space<vmem>>, vector<256x225xbf16>
    %cst_21 = arith.constant dense<0.000000e+00> : vector<32x225xf32>
    %38 = tpu.matmul %36, %37, %cst_21 {dimension_numbers = #tpu.dot_dimension_numbers<[1], [0], [0], [1], [0, 0, 1, 1], [], []>} : vector<32x256xbf16>, vector<256x225xbf16>, vector<32x225xf32> -> vector<32x225xf32>
    %39 = vector.extract_strided_slice %28 {offsets = [0, 256], sizes = [32, 256], strides = [1, 1]} : vector<32x958xf32> to vector<32x256xf32>
    %40 = vector.extract_strided_slice %28 {offsets = [0, 257], sizes = [32, 256], strides = [1, 1]} : vector<32x958xf32> to vector<32x256xf32>
    %41 = arith.maximumf %39, %40 : vector<32x256xf32>
    %42 = vector.extract_strided_slice %28 {offsets = [0, 288], sizes = [32, 256], strides = [1, 1]} : vector<32x958xf32> to vector<32x256xf32>
    %43 = vector.extract_strided_slice %28 {offsets = [0, 289], sizes = [32, 256], strides = [1, 1]} : vector<32x958xf32> to vector<32x256xf32>
    %44 = arith.maximumf %42, %43 : vector<32x256xf32>
    %45 = arith.maximumf %41, %44 : vector<32x256xf32>
    %46 = arith.truncf %45 : vector<32x256xf32> to vector<32x256xbf16>
    %c256 = arith.constant 256 : index
    %c0_22 = arith.constant 0 : index
    %47 = vector.load %arg8[%c256, %c0_22] : memref<925x225xbf16, #tpu.memory_space<vmem>>, vector<256x225xbf16>
    %cst_23 = arith.constant dense<0.000000e+00> : vector<32x225xf32>
    %48 = tpu.matmul %46, %47, %cst_23 {dimension_numbers = #tpu.dot_dimension_numbers<[1], [0], [0], [1], [0, 0, 1, 1], [], []>} : vector<32x256xbf16>, vector<256x225xbf16>, vector<32x225xf32> -> vector<32x225xf32>
    %49 = arith.addf %38, %48 : vector<32x225xf32>
    %50 = vector.extract_strided_slice %28 {offsets = [0, 512], sizes = [32, 256], strides = [1, 1]} : vector<32x958xf32> to vector<32x256xf32>
    %51 = vector.extract_strided_slice %28 {offsets = [0, 513], sizes = [32, 256], strides = [1, 1]} : vector<32x958xf32> to vector<32x256xf32>
    %52 = arith.maximumf %50, %51 : vector<32x256xf32>
    %53 = vector.extract_strided_slice %28 {offsets = [0, 544], sizes = [32, 256], strides = [1, 1]} : vector<32x958xf32> to vector<32x256xf32>
    %54 = vector.extract_strided_slice %28 {offsets = [0, 545], sizes = [32, 256], strides = [1, 1]} : vector<32x958xf32> to vector<32x256xf32>
    %55 = arith.maximumf %53, %54 : vector<32x256xf32>
    %56 = arith.maximumf %52, %55 : vector<32x256xf32>
    %57 = arith.truncf %56 : vector<32x256xf32> to vector<32x256xbf16>
    %c512 = arith.constant 512 : index
    %c0_24 = arith.constant 0 : index
    %58 = vector.load %arg8[%c512, %c0_24] : memref<925x225xbf16, #tpu.memory_space<vmem>>, vector<256x225xbf16>
    %cst_25 = arith.constant dense<0.000000e+00> : vector<32x225xf32>
    %59 = tpu.matmul %57, %58, %cst_25 {dimension_numbers = #tpu.dot_dimension_numbers<[1], [0], [0], [1], [0, 0, 1, 1], [], []>} : vector<32x256xbf16>, vector<256x225xbf16>, vector<32x225xf32> -> vector<32x225xf32>
    %60 = arith.addf %49, %59 : vector<32x225xf32>
    %61 = vector.extract_strided_slice %28 {offsets = [0, 768], sizes = [32, 157], strides = [1, 1]} : vector<32x958xf32> to vector<32x157xf32>
    %62 = vector.extract_strided_slice %28 {offsets = [0, 769], sizes = [32, 157], strides = [1, 1]} : vector<32x958xf32> to vector<32x157xf32>
    %63 = arith.maximumf %61, %62 : vector<32x157xf32>
    %64 = vector.extract_strided_slice %28 {offsets = [0, 800], sizes = [32, 157], strides = [1, 1]} : vector<32x958xf32> to vector<32x157xf32>
    %65 = vector.extract_strided_slice %28 {offsets = [0, 801], sizes = [32, 157], strides = [1, 1]} : vector<32x958xf32> to vector<32x157xf32>
    %66 = arith.maximumf %64, %65 : vector<32x157xf32>
    %67 = arith.maximumf %63, %66 : vector<32x157xf32>
    %68 = arith.truncf %67 : vector<32x157xf32> to vector<32x157xbf16>
    %c768 = arith.constant 768 : index
    %c0_26 = arith.constant 0 : index
    %69 = vector.load %arg8[%c768, %c0_26] : memref<925x225xbf16, #tpu.memory_space<vmem>>, vector<157x225xbf16>
    %cst_27 = arith.constant dense<0.000000e+00> : vector<32x225xf32>
    %70 = tpu.matmul %68, %69, %cst_27 {dimension_numbers = #tpu.dot_dimension_numbers<[1], [0], [0], [1], [0, 0, 1, 1], [], []>} : vector<32x157xbf16>, vector<157x225xbf16>, vector<32x225xf32> -> vector<32x225xf32>
    %71 = arith.addf %60, %70 : vector<32x225xf32>
    %72 = vector.extract_strided_slice %71 {offsets = [0, 0], sizes = [32, 193], strides = [1, 1]} : vector<32x225xf32> to vector<32x193xf32>
    %73 = arith.truncf %72 : vector<32x193xf32> to vector<32x193xbf16>
    %c0_28 = arith.constant 0 : index
    %c0_29 = arith.constant 0 : index
    %74 = vector.load %arg16[%c0_28, %c0_29] : memref<288x193xbf16, #tpu.memory_space<vmem>>, vector<32x193xbf16>
    tpu.vector_store %arg16[%c0_28, %c0_29], %73 {strides = array<i32>} : memref<288x193xbf16, #tpu.memory_space<vmem>>, vector<32x193xbf16>,
    %75 = vector.extract_strided_slice %71 {offsets = [0, 1], sizes = [32, 193], strides = [1, 1]} : vector<32x225xf32> to vector<32x193xf32>
    %76 = arith.truncf %75 : vector<32x193xf32> to vector<32x193xbf16>
    %c32 = arith.constant 32 : index
    %c0_30 = arith.constant 0 : index
    %77 = vector.load %arg16[%c32, %c0_30] : memref<288x193xbf16, #tpu.memory_space<vmem>>, vector<32x193xbf16>
    tpu.vector_store %arg16[%c32, %c0_30], %76 {strides = array<i32>} : memref<288x193xbf16, #tpu.memory_space<vmem>>, vector<32x193xbf16>,
    %78 = vector.extract_strided_slice %71 {offsets = [0, 2], sizes = [32, 193], strides = [1, 1]} : vector<32x225xf32> to vector<32x193xf32>
    %79 = arith.truncf %78 : vector<32x193xf32> to vector<32x193xbf16>
    %c64 = arith.constant 64 : index
    %c0_31 = arith.constant 0 : index
    %80 = vector.load %arg16[%c64, %c0_31] : memref<288x193xbf16, #tpu.memory_space<vmem>>, vector<32x193xbf16>
    tpu.vector_store %arg16[%c64, %c0_31], %79 {strides = array<i32>} : memref<288x193xbf16, #tpu.memory_space<vmem>>, vector<32x193xbf16>,
    %81 = vector.extract_strided_slice %71 {offsets = [0, 15], sizes = [32, 193], strides = [1, 1]} : vector<32x225xf32> to vector<32x193xf32>
    %82 = arith.truncf %81 : vector<32x193xf32> to vector<32x193xbf16>
    %c96 = arith.constant 96 : index
    %c0_32 = arith.constant 0 : index
    %83 = vector.load %arg16[%c96, %c0_32] : memref<288x193xbf16, #tpu.memory_space<vmem>>, vector<32x193xbf16>
    tpu.vector_store %arg16[%c96, %c0_32], %82 {strides = array<i32>} : memref<288x193xbf16, #tpu.memory_space<vmem>>, vector<32x193xbf16>,
    %84 = vector.extract_strided_slice %71 {offsets = [0, 16], sizes = [32, 193], strides = [1, 1]} : vector<32x225xf32> to vector<32x193xf32>
    %85 = arith.truncf %84 : vector<32x193xf32> to vector<32x193xbf16>
    %c128 = arith.constant 128 : index
    %c0_33 = arith.constant 0 : index
    %86 = vector.load %arg16[%c128, %c0_33] : memref<288x193xbf16, #tpu.memory_space<vmem>>, vector<32x193xbf16>
    tpu.vector_store %arg16[%c128, %c0_33], %85 {strides = array<i32>} : memref<288x193xbf16, #tpu.memory_space<vmem>>, vector<32x193xbf16>,
    %87 = vector.extract_strided_slice %71 {offsets = [0, 17], sizes = [32, 193], strides = [1, 1]} : vector<32x225xf32> to vector<32x193xf32>
    %88 = arith.truncf %87 : vector<32x193xf32> to vector<32x193xbf16>
    %c160 = arith.constant 160 : index
    %c0_34 = arith.constant 0 : index
    %89 = vector.load %arg16[%c160, %c0_34] : memref<288x193xbf16, #tpu.memory_space<vmem>>, vector<32x193xbf16>
    tpu.vector_store %arg16[%c160, %c0_34], %88 {strides = array<i32>} : memref<288x193xbf16, #tpu.memory_space<vmem>>, vector<32x193xbf16>,
    %90 = vector.extract_strided_slice %71 {offsets = [0, 30], sizes = [32, 193], strides = [1, 1]} : vector<32x225xf32> to vector<32x193xf32>
    %91 = arith.truncf %90 : vector<32x193xf32> to vector<32x193xbf16>
    %c192 = arith.constant 192 : index
    %c0_35 = arith.constant 0 : index
    %92 = vector.load %arg16[%c192, %c0_35] : memref<288x193xbf16, #tpu.memory_space<vmem>>, vector<32x193xbf16>
    tpu.vector_store %arg16[%c192, %c0_35], %91 {strides = array<i32>} : memref<288x193xbf16, #tpu.memory_space<vmem>>, vector<32x193xbf16>,
    %93 = vector.extract_strided_slice %71 {offsets = [0, 31], sizes = [32, 193], strides = [1, 1]} : vector<32x225xf32> to vector<32x193xf32>
    %94 = arith.truncf %93 : vector<32x193xf32> to vector<32x193xbf16>
    %c224 = arith.constant 224 : index
    %c0_36 = arith.constant 0 : index
    %95 = vector.load %arg16[%c224, %c0_36] : memref<288x193xbf16, #tpu.memory_space<vmem>>, vector<32x193xbf16>
    tpu.vector_store %arg16[%c224, %c0_36], %94 {strides = array<i32>} : memref<288x193xbf16, #tpu.memory_space<vmem>>, vector<32x193xbf16>,
    %96 = vector.extract_strided_slice %71 {offsets = [0, 32], sizes = [32, 193], strides = [1, 1]} : vector<32x225xf32> to vector<32x193xf32>
    %97 = arith.truncf %96 : vector<32x193xf32> to vector<32x193xbf16>
    %c256_37 = arith.constant 256 : index
    %c0_38 = arith.constant 0 : index
    %98 = vector.load %arg16[%c256_37, %c0_38] : memref<288x193xbf16, #tpu.memory_space<vmem>>, vector<32x193xbf16>
    tpu.vector_store %arg16[%c256_37, %c0_38], %97 {strides = array<i32>} : memref<288x193xbf16, #tpu.memory_space<vmem>>, vector<32x193xbf16>,
    %c0_39 = arith.constant 0 : index
    %c0_40 = arith.constant 0 : index
    %99 = vector.load %arg4[%c0_39, %c0_40] : memref<64x288xbf16, #tpu.memory_space<vmem>>, vector<64x288xbf16>
    %c0_41 = arith.constant 0 : index
    %c0_42 = arith.constant 0 : index
    %100 = vector.load %arg16[%c0_41, %c0_42] : memref<288x193xbf16, #tpu.memory_space<vmem>>, vector<288x193xbf16>
    %cst_43 = arith.constant dense<0.000000e+00> : vector<64x193xf32>
    %101 = tpu.matmul %99, %100, %cst_43 {dimension_numbers = #tpu.dot_dimension_numbers<[1], [0], [0], [1], [0, 0, 1, 1], [], []>} : vector<64x288xbf16>, vector<288x193xbf16>, vector<64x193xf32> -> vector<64x193xf32>
    %c0_44 = arith.constant 0 : index
    %c0_45 = arith.constant 0 : index
    %102 = vector.load %arg5[%c0_44, %c0_45] : memref<64x1xf32, #tpu.memory_space<vmem>>, vector<64x1xf32>
    %103 = vector.broadcast %102 : vector<64x1xf32> to vector<64x193xf32>
    %104 = arith.addf %101, %103 : vector<64x193xf32>
    %cst_46 = arith.constant 0.000000e+00 : f32
    %105 = vector.broadcast %cst_46 : f32 to vector<64x193xf32>
    %106 = arith.maximumf %104, %105 : vector<64x193xf32>
    %107 = vector.extract_strided_slice %106 {offsets = [0, 0], sizes = [64, 161], strides = [1, 1]} : vector<64x193xf32> to vector<64x161xf32>
    %108 = vector.extract_strided_slice %106 {offsets = [0, 1], sizes = [64, 161], strides = [1, 1]} : vector<64x193xf32> to vector<64x161xf32>
    %109 = arith.maximumf %107, %108 : vector<64x161xf32>
    %110 = vector.extract_strided_slice %106 {offsets = [0, 15], sizes = [64, 161], strides = [1, 1]} : vector<64x193xf32> to vector<64x161xf32>
    %111 = vector.extract_strided_slice %106 {offsets = [0, 16], sizes = [64, 161], strides = [1, 1]} : vector<64x193xf32> to vector<64x161xf32>
    %112 = arith.maximumf %110, %111 : vector<64x161xf32>
    %113 = arith.maximumf %109, %112 : vector<64x161xf32>
    %114 = arith.truncf %113 : vector<64x161xf32> to vector<64x161xbf16>
    %c0_47 = arith.constant 0 : index
    %c0_48 = arith.constant 0 : index
    %115 = vector.load %arg9[%c0_47, %c0_48] : memref<161x36xbf16, #tpu.memory_space<vmem>>, vector<161x36xbf16>
    %cst_49 = arith.constant dense<0.000000e+00> : vector<64x36xf32>
    %116 = tpu.matmul %114, %115, %cst_49 {dimension_numbers = #tpu.dot_dimension_numbers<[1], [0], [0], [1], [0, 0, 1, 1], [], []>} : vector<64x161xbf16>, vector<161x36xbf16>, vector<64x36xf32> -> vector<64x36xf32>
    %117 = vector.extract_strided_slice %116 {offsets = [0, 0], sizes = [64, 22], strides = [1, 1]} : vector<64x36xf32> to vector<64x22xf32>
    %118 = arith.truncf %117 : vector<64x22xf32> to vector<64x22xbf16>
    %c0_50 = arith.constant 0 : index
    %c0_51 = arith.constant 0 : index
    %119 = vector.load %arg17[%c0_50, %c0_51] : memref<576x22xbf16, #tpu.memory_space<vmem>>, vector<64x22xbf16>
    tpu.vector_store %arg17[%c0_50, %c0_51], %118 {strides = array<i32>} : memref<576x22xbf16, #tpu.memory_space<vmem>>, vector<64x22xbf16>,
    %120 = vector.extract_strided_slice %116 {offsets = [0, 1], sizes = [64, 22], strides = [1, 1]} : vector<64x36xf32> to vector<64x22xf32>
    %121 = arith.truncf %120 : vector<64x22xf32> to vector<64x22xbf16>
    %c64_52 = arith.constant 64 : index
    %c0_53 = arith.constant 0 : index
    %122 = vector.load %arg17[%c64_52, %c0_53] : memref<576x22xbf16, #tpu.memory_space<vmem>>, vector<64x22xbf16>
    tpu.vector_store %arg17[%c64_52, %c0_53], %121 {strides = array<i32>} : memref<576x22xbf16, #tpu.memory_space<vmem>>, vector<64x22xbf16>,
    %123 = vector.extract_strided_slice %116 {offsets = [0, 2], sizes = [64, 22], strides = [1, 1]} : vector<64x36xf32> to vector<64x22xf32>
    %124 = arith.truncf %123 : vector<64x22xf32> to vector<64x22xbf16>
    %c128_54 = arith.constant 128 : index
    %c0_55 = arith.constant 0 : index
    %125 = vector.load %arg17[%c128_54, %c0_55] : memref<576x22xbf16, #tpu.memory_space<vmem>>, vector<64x22xbf16>
    tpu.vector_store %arg17[%c128_54, %c0_55], %124 {strides = array<i32>} : memref<576x22xbf16, #tpu.memory_space<vmem>>, vector<64x22xbf16>,
    %126 = vector.extract_strided_slice %116 {offsets = [0, 6], sizes = [64, 22], strides = [1, 1]} : vector<64x36xf32> to vector<64x22xf32>
    %127 = arith.truncf %126 : vector<64x22xf32> to vector<64x22xbf16>
    %c192_56 = arith.constant 192 : index
    %c0_57 = arith.constant 0 : index
    %128 = vector.load %arg17[%c192_56, %c0_57] : memref<576x22xbf16, #tpu.memory_space<vmem>>, vector<64x22xbf16>
    tpu.vector_store %arg17[%c192_56, %c0_57], %127 {strides = array<i32>} : memref<576x22xbf16, #tpu.memory_space<vmem>>, vector<64x22xbf16>,
    %129 = vector.extract_strided_slice %116 {offsets = [0, 7], sizes = [64, 22], strides = [1, 1]} : vector<64x36xf32> to vector<64x22xf32>
    %130 = arith.truncf %129 : vector<64x22xf32> to vector<64x22xbf16>
    %c256_58 = arith.constant 256 : index
    %c0_59 = arith.constant 0 : index
    %131 = vector.load %arg17[%c256_58, %c0_59] : memref<576x22xbf16, #tpu.memory_space<vmem>>, vector<64x22xbf16>
    tpu.vector_store %arg17[%c256_58, %c0_59], %130 {strides = array<i32>} : memref<576x22xbf16, #tpu.memory_space<vmem>>, vector<64x22xbf16>,
    %132 = vector.extract_strided_slice %116 {offsets = [0, 8], sizes = [64, 22], strides = [1, 1]} : vector<64x36xf32> to vector<64x22xf32>
    %133 = arith.truncf %132 : vector<64x22xf32> to vector<64x22xbf16>
    %c320 = arith.constant 320 : index
    %c0_60 = arith.constant 0 : index
    %134 = vector.load %arg17[%c320, %c0_60] : memref<576x22xbf16, #tpu.memory_space<vmem>>, vector<64x22xbf16>
    tpu.vector_store %arg17[%c320, %c0_60], %133 {strides = array<i32>} : memref<576x22xbf16, #tpu.memory_space<vmem>>, vector<64x22xbf16>,
    %135 = vector.extract_strided_slice %116 {offsets = [0, 12], sizes = [64, 22], strides = [1, 1]} : vector<64x36xf32> to vector<64x22xf32>
    %136 = arith.truncf %135 : vector<64x22xf32> to vector<64x22xbf16>
    %c384 = arith.constant 384 : index
    %c0_61 = arith.constant 0 : index
    %137 = vector.load %arg17[%c384, %c0_61] : memref<576x22xbf16, #tpu.memory_space<vmem>>, vector<64x22xbf16>
    tpu.vector_store %arg17[%c384, %c0_61], %136 {strides = array<i32>} : memref<576x22xbf16, #tpu.memory_space<vmem>>, vector<64x22xbf16>,
    %138 = vector.extract_strided_slice %116 {offsets = [0, 13], sizes = [64, 22], strides = [1, 1]} : vector<64x36xf32> to vector<64x22xf32>
    %139 = arith.truncf %138 : vector<64x22xf32> to vector<64x22xbf16>
    %c448 = arith.constant 448 : index
    %c0_62 = arith.constant 0 : index
    %140 = vector.load %arg17[%c448, %c0_62] : memref<576x22xbf16, #tpu.memory_space<vmem>>, vector<64x22xbf16>
    tpu.vector_store %arg17[%c448, %c0_62], %139 {strides = array<i32>} : memref<576x22xbf16, #tpu.memory_space<vmem>>, vector<64x22xbf16>,
    %141 = vector.extract_strided_slice %116 {offsets = [0, 14], sizes = [64, 22], strides = [1, 1]} : vector<64x36xf32> to vector<64x22xf32>
    %142 = arith.truncf %141 : vector<64x22xf32> to vector<64x22xbf16>
    %c512_63 = arith.constant 512 : index
    %c0_64 = arith.constant 0 : index
    %143 = vector.load %arg17[%c512_63, %c0_64] : memref<576x22xbf16, #tpu.memory_space<vmem>>, vector<64x22xbf16>
    tpu.vector_store %arg17[%c512_63, %c0_64], %142 {strides = array<i32>} : memref<576x22xbf16, #tpu.memory_space<vmem>>, vector<64x22xbf16>,
    %c0_65 = arith.constant 0 : index
    %c0_66 = arith.constant 0 : index
    %144 = vector.load %arg6[%c0_65, %c0_66] : memref<64x576xbf16, #tpu.memory_space<vmem>>, vector<64x576xbf16>
    %c0_67 = arith.constant 0 : index
    %c0_68 = arith.constant 0 : index
    %145 = vector.load %arg17[%c0_67, %c0_68] : memref<576x22xbf16, #tpu.memory_space<vmem>>, vector<576x22xbf16>
    %cst_69 = arith.constant dense<0.000000e+00> : vector<64x22xf32>
    %146 = tpu.matmul %144, %145, %cst_69 {dimension_numbers = #tpu.dot_dimension_numbers<[1], [0], [0], [1], [0, 0, 1, 1], [], []>} : vector<64x576xbf16>, vector<576x22xbf16>, vector<64x22xf32> -> vector<64x22xf32>
    %c0_70 = arith.constant 0 : index
    %c0_71 = arith.constant 0 : index
    %147 = vector.load %arg7[%c0_70, %c0_71] : memref<64x1xf32, #tpu.memory_space<vmem>>, vector<64x1xf32>
    %148 = vector.broadcast %147 : vector<64x1xf32> to vector<64x22xf32>
    %149 = arith.addf %146, %148 : vector<64x22xf32>
    %150 = vector.extract_strided_slice %149 {offsets = [0, 0], sizes = [1, 22], strides = [1, 1]} : vector<64x22xf32> to vector<1x22xf32>
    %c0_72 = arith.constant 0 : index
    %c0_73 = arith.constant 0 : index
    %151 = vector.load %arg18[%c0_72, %c0_73] : memref<1x1408xf32, #tpu.memory_space<vmem>>, vector<1x22xf32>
    tpu.vector_store %arg18[%c0_72, %c0_73], %150 {strides = array<i32>} : memref<1x1408xf32, #tpu.memory_space<vmem>>, vector<1x22xf32>,
    %152 = vector.extract_strided_slice %149 {offsets = [1, 0], sizes = [1, 22], strides = [1, 1]} : vector<64x22xf32> to vector<1x22xf32>
    %c0_74 = arith.constant 0 : index
    %c22 = arith.constant 22 : index
    %153 = vector.load %arg18[%c0_74, %c22] : memref<1x1408xf32, #tpu.memory_space<vmem>>, vector<1x22xf32>
    tpu.vector_store %arg18[%c0_74, %c22], %152 {strides = array<i32>} : memref<1x1408xf32, #tpu.memory_space<vmem>>, vector<1x22xf32>,
    %154 = vector.extract_strided_slice %149 {offsets = [2, 0], sizes = [1, 22], strides = [1, 1]} : vector<64x22xf32> to vector<1x22xf32>
    %c0_75 = arith.constant 0 : index
    %c44 = arith.constant 44 : index
    %155 = vector.load %arg18[%c0_75, %c44] : memref<1x1408xf32, #tpu.memory_space<vmem>>, vector<1x22xf32>
    tpu.vector_store %arg18[%c0_75, %c44], %154 {strides = array<i32>} : memref<1x1408xf32, #tpu.memory_space<vmem>>, vector<1x22xf32>,
    %156 = vector.extract_strided_slice %149 {offsets = [3, 0], sizes = [1, 22], strides = [1, 1]} : vector<64x22xf32> to vector<1x22xf32>
    %c0_76 = arith.constant 0 : index
    %c66 = arith.constant 66 : index
    %157 = vector.load %arg18[%c0_76, %c66] : memref<1x1408xf32, #tpu.memory_space<vmem>>, vector<1x22xf32>
    tpu.vector_store %arg18[%c0_76, %c66], %156 {strides = array<i32>} : memref<1x1408xf32, #tpu.memory_space<vmem>>, vector<1x22xf32>,
    %158 = vector.extract_strided_slice %149 {offsets = [4, 0], sizes = [1, 22], strides = [1, 1]} : vector<64x22xf32> to vector<1x22xf32>
    %c0_77 = arith.constant 0 : index
    %c88 = arith.constant 88 : index
    %159 = vector.load %arg18[%c0_77, %c88] : memref<1x1408xf32, #tpu.memory_space<vmem>>, vector<1x22xf32>
    tpu.vector_store %arg18[%c0_77, %c88], %158 {strides = array<i32>} : memref<1x1408xf32, #tpu.memory_space<vmem>>, vector<1x22xf32>,
    %160 = vector.extract_strided_slice %149 {offsets = [5, 0], sizes = [1, 22], strides = [1, 1]} : vector<64x22xf32> to vector<1x22xf32>
    %c0_78 = arith.constant 0 : index
    %c110 = arith.constant 110 : index
    %161 = vector.load %arg18[%c0_78, %c110] : memref<1x1408xf32, #tpu.memory_space<vmem>>, vector<1x22xf32>
    tpu.vector_store %arg18[%c0_78, %c110], %160 {strides = array<i32>} : memref<1x1408xf32, #tpu.memory_space<vmem>>, vector<1x22xf32>,
    %162 = vector.extract_strided_slice %149 {offsets = [6, 0], sizes = [1, 22], strides = [1, 1]} : vector<64x22xf32> to vector<1x22xf32>
    %c0_79 = arith.constant 0 : index
    %c132 = arith.constant 132 : index
    %163 = vector.load %arg18[%c0_79, %c132] : memref<1x1408xf32, #tpu.memory_space<vmem>>, vector<1x22xf32>
    tpu.vector_store %arg18[%c0_79, %c132], %162 {strides = array<i32>} : memref<1x1408xf32, #tpu.memory_space<vmem>>, vector<1x22xf32>,
    %164 = vector.extract_strided_slice %149 {offsets = [7, 0], sizes = [1, 22], strides = [1, 1]} : vector<64x22xf32> to vector<1x22xf32>
    %c0_80 = arith.constant 0 : index
    %c154 = arith.constant 154 : index
    %165 = vector.load %arg18[%c0_80, %c154] : memref<1x1408xf32, #tpu.memory_space<vmem>>, vector<1x22xf32>
    tpu.vector_store %arg18[%c0_80, %c154], %164 {strides = array<i32>} : memref<1x1408xf32, #tpu.memory_space<vmem>>, vector<1x22xf32>,
    %166 = vector.extract_strided_slice %149 {offsets = [8, 0], sizes = [1, 22], strides = [1, 1]} : vector<64x22xf32> to vector<1x22xf32>
    %c0_81 = arith.constant 0 : index
    %c176 = arith.constant 176 : index
    %167 = vector.load %arg18[%c0_81, %c176] : memref<1x1408xf32, #tpu.memory_space<vmem>>, vector<1x22xf32>
    tpu.vector_store %arg18[%c0_81, %c176], %166 {strides = array<i32>} : memref<1x1408xf32, #tpu.memory_space<vmem>>, vector<1x22xf32>,
    %168 = vector.extract_strided_slice %149 {offsets = [9, 0], sizes = [1, 22], strides = [1, 1]} : vector<64x22xf32> to vector<1x22xf32>
    %c0_82 = arith.constant 0 : index
    %c198 = arith.constant 198 : index
    %169 = vector.load %arg18[%c0_82, %c198] : memref<1x1408xf32, #tpu.memory_space<vmem>>, vector<1x22xf32>
    tpu.vector_store %arg18[%c0_82, %c198], %168 {strides = array<i32>} : memref<1x1408xf32, #tpu.memory_space<vmem>>, vector<1x22xf32>,
    %170 = vector.extract_strided_slice %149 {offsets = [10, 0], sizes = [1, 22], strides = [1, 1]} : vector<64x22xf32> to vector<1x22xf32>
    %c0_83 = arith.constant 0 : index
    %c220 = arith.constant 220 : index
    %171 = vector.load %arg18[%c0_83, %c220] : memref<1x1408xf32, #tpu.memory_space<vmem>>, vector<1x22xf32>
    tpu.vector_store %arg18[%c0_83, %c220], %170 {strides = array<i32>} : memref<1x1408xf32, #tpu.memory_space<vmem>>, vector<1x22xf32>,
    %172 = vector.extract_strided_slice %149 {offsets = [11, 0], sizes = [1, 22], strides = [1, 1]} : vector<64x22xf32> to vector<1x22xf32>
    %c0_84 = arith.constant 0 : index
    %c242 = arith.constant 242 : index
    %173 = vector.load %arg18[%c0_84, %c242] : memref<1x1408xf32, #tpu.memory_space<vmem>>, vector<1x22xf32>
    tpu.vector_store %arg18[%c0_84, %c242], %172 {strides = array<i32>} : memref<1x1408xf32, #tpu.memory_space<vmem>>, vector<1x22xf32>,
    %174 = vector.extract_strided_slice %149 {offsets = [12, 0], sizes = [1, 22], strides = [1, 1]} : vector<64x22xf32> to vector<1x22xf32>
    %c0_85 = arith.constant 0 : index
    %c264 = arith.constant 264 : index
    %175 = vector.load %arg18[%c0_85, %c264] : memref<1x1408xf32, #tpu.memory_space<vmem>>, vector<1x22xf32>
    tpu.vector_store %arg18[%c0_85, %c264], %174 {strides = array<i32>} : memref<1x1408xf32, #tpu.memory_space<vmem>>, vector<1x22xf32>,
    %176 = vector.extract_strided_slice %149 {offsets = [13, 0], sizes = [1, 22], strides = [1, 1]} : vector<64x22xf32> to vector<1x22xf32>
    %c0_86 = arith.constant 0 : index
    %c286 = arith.constant 286 : index
    %177 = vector.load %arg18[%c0_86, %c286] : memref<1x1408xf32, #tpu.memory_space<vmem>>, vector<1x22xf32>
    tpu.vector_store %arg18[%c0_86, %c286], %176 {strides = array<i32>} : memref<1x1408xf32, #tpu.memory_space<vmem>>, vector<1x22xf32>,
    %178 = vector.extract_strided_slice %149 {offsets = [14, 0], sizes = [1, 22], strides = [1, 1]} : vector<64x22xf32> to vector<1x22xf32>
    %c0_87 = arith.constant 0 : index
    %c308 = arith.constant 308 : index
    %179 = vector.load %arg18[%c0_87, %c308] : memref<1x1408xf32, #tpu.memory_space<vmem>>, vector<1x22xf32>
    tpu.vector_store %arg18[%c0_87, %c308], %178 {strides = array<i32>} : memref<1x1408xf32, #tpu.memory_space<vmem>>, vector<1x22xf32>,
    %180 = vector.extract_strided_slice %149 {offsets = [15, 0], sizes = [1, 22], strides = [1, 1]} : vector<64x22xf32> to vector<1x22xf32>
    %c0_88 = arith.constant 0 : index
    %c330 = arith.constant 330 : index
    %181 = vector.load %arg18[%c0_88, %c330] : memref<1x1408xf32, #tpu.memory_space<vmem>>, vector<1x22xf32>
    tpu.vector_store %arg18[%c0_88, %c330], %180 {strides = array<i32>} : memref<1x1408xf32, #tpu.memory_space<vmem>>, vector<1x22xf32>,
    %182 = vector.extract_strided_slice %149 {offsets = [16, 0], sizes = [1, 22], strides = [1, 1]} : vector<64x22xf32> to vector<1x22xf32>
    %c0_89 = arith.constant 0 : index
    %c352 = arith.constant 352 : index
    %183 = vector.load %arg18[%c0_89, %c352] : memref<1x1408xf32, #tpu.memory_space<vmem>>, vector<1x22xf32>
    tpu.vector_store %arg18[%c0_89, %c352], %182 {strides = array<i32>} : memref<1x1408xf32, #tpu.memory_space<vmem>>, vector<1x22xf32>,
    %184 = vector.extract_strided_slice %149 {offsets = [17, 0], sizes = [1, 22], strides = [1, 1]} : vector<64x22xf32> to vector<1x22xf32>
    %c0_90 = arith.constant 0 : index
    %c374 = arith.constant 374 : index
    %185 = vector.load %arg18[%c0_90, %c374] : memref<1x1408xf32, #tpu.memory_space<vmem>>, vector<1x22xf32>
    tpu.vector_store %arg18[%c0_90, %c374], %184 {strides = array<i32>} : memref<1x1408xf32, #tpu.memory_space<vmem>>, vector<1x22xf32>,
    %186 = vector.extract_strided_slice %149 {offsets = [18, 0], sizes = [1, 22], strides = [1, 1]} : vector<64x22xf32> to vector<1x22xf32>
    %c0_91 = arith.constant 0 : index
    %c396 = arith.constant 396 : index
    %187 = vector.load %arg18[%c0_91, %c396] : memref<1x1408xf32, #tpu.memory_space<vmem>>, vector<1x22xf32>
    tpu.vector_store %arg18[%c0_91, %c396], %186 {strides = array<i32>} : memref<1x1408xf32, #tpu.memory_space<vmem>>, vector<1x22xf32>,
    %188 = vector.extract_strided_slice %149 {offsets = [19, 0], sizes = [1, 22], strides = [1, 1]} : vector<64x22xf32> to vector<1x22xf32>
    %c0_92 = arith.constant 0 : index
    %c418 = arith.constant 418 : index
    %189 = vector.load %arg18[%c0_92, %c418] : memref<1x1408xf32, #tpu.memory_space<vmem>>, vector<1x22xf32>
    tpu.vector_store %arg18[%c0_92, %c418], %188 {strides = array<i32>} : memref<1x1408xf32, #tpu.memory_space<vmem>>, vector<1x22xf32>,
    %190 = vector.extract_strided_slice %149 {offsets = [20, 0], sizes = [1, 22], strides = [1, 1]} : vector<64x22xf32> to vector<1x22xf32>
    %c0_93 = arith.constant 0 : index
    %c440 = arith.constant 440 : index
    %191 = vector.load %arg18[%c0_93, %c440] : memref<1x1408xf32, #tpu.memory_space<vmem>>, vector<1x22xf32>
    tpu.vector_store %arg18[%c0_93, %c440], %190 {strides = array<i32>} : memref<1x1408xf32, #tpu.memory_space<vmem>>, vector<1x22xf32>,
    %192 = vector.extract_strided_slice %149 {offsets = [21, 0], sizes = [1, 22], strides = [1, 1]} : vector<64x22xf32> to vector<1x22xf32>
    %c0_94 = arith.constant 0 : index
    %c462 = arith.constant 462 : index
    %193 = vector.load %arg18[%c0_94, %c462] : memref<1x1408xf32, #tpu.memory_space<vmem>>, vector<1x22xf32>
    tpu.vector_store %arg18[%c0_94, %c462], %192 {strides = array<i32>} : memref<1x1408xf32, #tpu.memory_space<vmem>>, vector<1x22xf32>,
    %194 = vector.extract_strided_slice %149 {offsets = [22, 0], sizes = [1, 22], strides = [1, 1]} : vector<64x22xf32> to vector<1x22xf32>
    %c0_95 = arith.constant 0 : index
    %c484 = arith.constant 484 : index
    %195 = vector.load %arg18[%c0_95, %c484] : memref<1x1408xf32, #tpu.memory_space<vmem>>, vector<1x22xf32>
    tpu.vector_store %arg18[%c0_95, %c484], %194 {strides = array<i32>} : memref<1x1408xf32, #tpu.memory_space<vmem>>, vector<1x22xf32>,
    %196 = vector.extract_strided_slice %149 {offsets = [23, 0], sizes = [1, 22], strides = [1, 1]} : vector<64x22xf32> to vector<1x22xf32>
    %c0_96 = arith.constant 0 : index
    %c506 = arith.constant 506 : index
    %197 = vector.load %arg18[%c0_96, %c506] : memref<1x1408xf32, #tpu.memory_space<vmem>>, vector<1x22xf32>
    tpu.vector_store %arg18[%c0_96, %c506], %196 {strides = array<i32>} : memref<1x1408xf32, #tpu.memory_space<vmem>>, vector<1x22xf32>,
    %198 = vector.extract_strided_slice %149 {offsets = [24, 0], sizes = [1, 22], strides = [1, 1]} : vector<64x22xf32> to vector<1x22xf32>
    %c0_97 = arith.constant 0 : index
    %c528 = arith.constant 528 : index
    %199 = vector.load %arg18[%c0_97, %c528] : memref<1x1408xf32, #tpu.memory_space<vmem>>, vector<1x22xf32>
    tpu.vector_store %arg18[%c0_97, %c528], %198 {strides = array<i32>} : memref<1x1408xf32, #tpu.memory_space<vmem>>, vector<1x22xf32>,
    %200 = vector.extract_strided_slice %149 {offsets = [25, 0], sizes = [1, 22], strides = [1, 1]} : vector<64x22xf32> to vector<1x22xf32>
    %c0_98 = arith.constant 0 : index
    %c550 = arith.constant 550 : index
    %201 = vector.load %arg18[%c0_98, %c550] : memref<1x1408xf32, #tpu.memory_space<vmem>>, vector<1x22xf32>
    tpu.vector_store %arg18[%c0_98, %c550], %200 {strides = array<i32>} : memref<1x1408xf32, #tpu.memory_space<vmem>>, vector<1x22xf32>,
    %202 = vector.extract_strided_slice %149 {offsets = [26, 0], sizes = [1, 22], strides = [1, 1]} : vector<64x22xf32> to vector<1x22xf32>
    %c0_99 = arith.constant 0 : index
    %c572 = arith.constant 572 : index
    %203 = vector.load %arg18[%c0_99, %c572] : memref<1x1408xf32, #tpu.memory_space<vmem>>, vector<1x22xf32>
    tpu.vector_store %arg18[%c0_99, %c572], %202 {strides = array<i32>} : memref<1x1408xf32, #tpu.memory_space<vmem>>, vector<1x22xf32>,
    %204 = vector.extract_strided_slice %149 {offsets = [27, 0], sizes = [1, 22], strides = [1, 1]} : vector<64x22xf32> to vector<1x22xf32>
    %c0_100 = arith.constant 0 : index
    %c594 = arith.constant 594 : index
    %205 = vector.load %arg18[%c0_100, %c594] : memref<1x1408xf32, #tpu.memory_space<vmem>>, vector<1x22xf32>
    tpu.vector_store %arg18[%c0_100, %c594], %204 {strides = array<i32>} : memref<1x1408xf32, #tpu.memory_space<vmem>>, vector<1x22xf32>,
    %206 = vector.extract_strided_slice %149 {offsets = [28, 0], sizes = [1, 22], strides = [1, 1]} : vector<64x22xf32> to vector<1x22xf32>
    %c0_101 = arith.constant 0 : index
    %c616 = arith.constant 616 : index
    %207 = vector.load %arg18[%c0_101, %c616] : memref<1x1408xf32, #tpu.memory_space<vmem>>, vector<1x22xf32>
    tpu.vector_store %arg18[%c0_101, %c616], %206 {strides = array<i32>} : memref<1x1408xf32, #tpu.memory_space<vmem>>, vector<1x22xf32>,
    %208 = vector.extract_strided_slice %149 {offsets = [29, 0], sizes = [1, 22], strides = [1, 1]} : vector<64x22xf32> to vector<1x22xf32>
    %c0_102 = arith.constant 0 : index
    %c638 = arith.constant 638 : index
    %209 = vector.load %arg18[%c0_102, %c638] : memref<1x1408xf32, #tpu.memory_space<vmem>>, vector<1x22xf32>
    tpu.vector_store %arg18[%c0_102, %c638], %208 {strides = array<i32>} : memref<1x1408xf32, #tpu.memory_space<vmem>>, vector<1x22xf32>,
    %210 = vector.extract_strided_slice %149 {offsets = [30, 0], sizes = [1, 22], strides = [1, 1]} : vector<64x22xf32> to vector<1x22xf32>
    %c0_103 = arith.constant 0 : index
    %c660 = arith.constant 660 : index
    %211 = vector.load %arg18[%c0_103, %c660] : memref<1x1408xf32, #tpu.memory_space<vmem>>, vector<1x22xf32>
    tpu.vector_store %arg18[%c0_103, %c660], %210 {strides = array<i32>} : memref<1x1408xf32, #tpu.memory_space<vmem>>, vector<1x22xf32>,
    %212 = vector.extract_strided_slice %149 {offsets = [31, 0], sizes = [1, 22], strides = [1, 1]} : vector<64x22xf32> to vector<1x22xf32>
    %c0_104 = arith.constant 0 : index
    %c682 = arith.constant 682 : index
    %213 = vector.load %arg18[%c0_104, %c682] : memref<1x1408xf32, #tpu.memory_space<vmem>>, vector<1x22xf32>
    tpu.vector_store %arg18[%c0_104, %c682], %212 {strides = array<i32>} : memref<1x1408xf32, #tpu.memory_space<vmem>>, vector<1x22xf32>,
    %214 = vector.extract_strided_slice %149 {offsets = [32, 0], sizes = [1, 22], strides = [1, 1]} : vector<64x22xf32> to vector<1x22xf32>
    %c0_105 = arith.constant 0 : index
    %c704 = arith.constant 704 : index
    %215 = vector.load %arg18[%c0_105, %c704] : memref<1x1408xf32, #tpu.memory_space<vmem>>, vector<1x22xf32>
    tpu.vector_store %arg18[%c0_105, %c704], %214 {strides = array<i32>} : memref<1x1408xf32, #tpu.memory_space<vmem>>, vector<1x22xf32>,
    %216 = vector.extract_strided_slice %149 {offsets = [33, 0], sizes = [1, 22], strides = [1, 1]} : vector<64x22xf32> to vector<1x22xf32>
    %c0_106 = arith.constant 0 : index
    %c726 = arith.constant 726 : index
    %217 = vector.load %arg18[%c0_106, %c726] : memref<1x1408xf32, #tpu.memory_space<vmem>>, vector<1x22xf32>
    tpu.vector_store %arg18[%c0_106, %c726], %216 {strides = array<i32>} : memref<1x1408xf32, #tpu.memory_space<vmem>>, vector<1x22xf32>,
    %218 = vector.extract_strided_slice %149 {offsets = [34, 0], sizes = [1, 22], strides = [1, 1]} : vector<64x22xf32> to vector<1x22xf32>
    %c0_107 = arith.constant 0 : index
    %c748 = arith.constant 748 : index
    %219 = vector.load %arg18[%c0_107, %c748] : memref<1x1408xf32, #tpu.memory_space<vmem>>, vector<1x22xf32>
    tpu.vector_store %arg18[%c0_107, %c748], %218 {strides = array<i32>} : memref<1x1408xf32, #tpu.memory_space<vmem>>, vector<1x22xf32>,
    %220 = vector.extract_strided_slice %149 {offsets = [35, 0], sizes = [1, 22], strides = [1, 1]} : vector<64x22xf32> to vector<1x22xf32>
    %c0_108 = arith.constant 0 : index
    %c770 = arith.constant 770 : index
    %221 = vector.load %arg18[%c0_108, %c770] : memref<1x1408xf32, #tpu.memory_space<vmem>>, vector<1x22xf32>
    tpu.vector_store %arg18[%c0_108, %c770], %220 {strides = array<i32>} : memref<1x1408xf32, #tpu.memory_space<vmem>>, vector<1x22xf32>,
    %222 = vector.extract_strided_slice %149 {offsets = [36, 0], sizes = [1, 22], strides = [1, 1]} : vector<64x22xf32> to vector<1x22xf32>
    %c0_109 = arith.constant 0 : index
    %c792 = arith.constant 792 : index
    %223 = vector.load %arg18[%c0_109, %c792] : memref<1x1408xf32, #tpu.memory_space<vmem>>, vector<1x22xf32>
    tpu.vector_store %arg18[%c0_109, %c792], %222 {strides = array<i32>} : memref<1x1408xf32, #tpu.memory_space<vmem>>, vector<1x22xf32>,
    %224 = vector.extract_strided_slice %149 {offsets = [37, 0], sizes = [1, 22], strides = [1, 1]} : vector<64x22xf32> to vector<1x22xf32>
    %c0_110 = arith.constant 0 : index
    %c814 = arith.constant 814 : index
    %225 = vector.load %arg18[%c0_110, %c814] : memref<1x1408xf32, #tpu.memory_space<vmem>>, vector<1x22xf32>
    tpu.vector_store %arg18[%c0_110, %c814], %224 {strides = array<i32>} : memref<1x1408xf32, #tpu.memory_space<vmem>>, vector<1x22xf32>,
    %226 = vector.extract_strided_slice %149 {offsets = [38, 0], sizes = [1, 22], strides = [1, 1]} : vector<64x22xf32> to vector<1x22xf32>
    %c0_111 = arith.constant 0 : index
    %c836 = arith.constant 836 : index
    %227 = vector.load %arg18[%c0_111, %c836] : memref<1x1408xf32, #tpu.memory_space<vmem>>, vector<1x22xf32>
    tpu.vector_store %arg18[%c0_111, %c836], %226 {strides = array<i32>} : memref<1x1408xf32, #tpu.memory_space<vmem>>, vector<1x22xf32>,
    %228 = vector.extract_strided_slice %149 {offsets = [39, 0], sizes = [1, 22], strides = [1, 1]} : vector<64x22xf32> to vector<1x22xf32>
    %c0_112 = arith.constant 0 : index
    %c858 = arith.constant 858 : index
    %229 = vector.load %arg18[%c0_112, %c858] : memref<1x1408xf32, #tpu.memory_space<vmem>>, vector<1x22xf32>
    tpu.vector_store %arg18[%c0_112, %c858], %228 {strides = array<i32>} : memref<1x1408xf32, #tpu.memory_space<vmem>>, vector<1x22xf32>,
    %230 = vector.extract_strided_slice %149 {offsets = [40, 0], sizes = [1, 22], strides = [1, 1]} : vector<64x22xf32> to vector<1x22xf32>
    %c0_113 = arith.constant 0 : index
    %c880 = arith.constant 880 : index
    %231 = vector.load %arg18[%c0_113, %c880] : memref<1x1408xf32, #tpu.memory_space<vmem>>, vector<1x22xf32>
    tpu.vector_store %arg18[%c0_113, %c880], %230 {strides = array<i32>} : memref<1x1408xf32, #tpu.memory_space<vmem>>, vector<1x22xf32>,
    %232 = vector.extract_strided_slice %149 {offsets = [41, 0], sizes = [1, 22], strides = [1, 1]} : vector<64x22xf32> to vector<1x22xf32>
    %c0_114 = arith.constant 0 : index
    %c902 = arith.constant 902 : index
    %233 = vector.load %arg18[%c0_114, %c902] : memref<1x1408xf32, #tpu.memory_space<vmem>>, vector<1x22xf32>
    tpu.vector_store %arg18[%c0_114, %c902], %232 {strides = array<i32>} : memref<1x1408xf32, #tpu.memory_space<vmem>>, vector<1x22xf32>,
    %234 = vector.extract_strided_slice %149 {offsets = [42, 0], sizes = [1, 22], strides = [1, 1]} : vector<64x22xf32> to vector<1x22xf32>
    %c0_115 = arith.constant 0 : index
    %c924 = arith.constant 924 : index
    %235 = vector.load %arg18[%c0_115, %c924] : memref<1x1408xf32, #tpu.memory_space<vmem>>, vector<1x22xf32>
    tpu.vector_store %arg18[%c0_115, %c924], %234 {strides = array<i32>} : memref<1x1408xf32, #tpu.memory_space<vmem>>, vector<1x22xf32>,
    %236 = vector.extract_strided_slice %149 {offsets = [43, 0], sizes = [1, 22], strides = [1, 1]} : vector<64x22xf32> to vector<1x22xf32>
    %c0_116 = arith.constant 0 : index
    %c946 = arith.constant 946 : index
    %237 = vector.load %arg18[%c0_116, %c946] : memref<1x1408xf32, #tpu.memory_space<vmem>>, vector<1x22xf32>
    tpu.vector_store %arg18[%c0_116, %c946], %236 {strides = array<i32>} : memref<1x1408xf32, #tpu.memory_space<vmem>>, vector<1x22xf32>,
    %238 = vector.extract_strided_slice %149 {offsets = [44, 0], sizes = [1, 22], strides = [1, 1]} : vector<64x22xf32> to vector<1x22xf32>
    %c0_117 = arith.constant 0 : index
    %c968 = arith.constant 968 : index
    %239 = vector.load %arg18[%c0_117, %c968] : memref<1x1408xf32, #tpu.memory_space<vmem>>, vector<1x22xf32>
    tpu.vector_store %arg18[%c0_117, %c968], %238 {strides = array<i32>} : memref<1x1408xf32, #tpu.memory_space<vmem>>, vector<1x22xf32>,
    %240 = vector.extract_strided_slice %149 {offsets = [45, 0], sizes = [1, 22], strides = [1, 1]} : vector<64x22xf32> to vector<1x22xf32>
    %c0_118 = arith.constant 0 : index
    %c990 = arith.constant 990 : index
    %241 = vector.load %arg18[%c0_118, %c990] : memref<1x1408xf32, #tpu.memory_space<vmem>>, vector<1x22xf32>
    tpu.vector_store %arg18[%c0_118, %c990], %240 {strides = array<i32>} : memref<1x1408xf32, #tpu.memory_space<vmem>>, vector<1x22xf32>,
    %242 = vector.extract_strided_slice %149 {offsets = [46, 0], sizes = [1, 22], strides = [1, 1]} : vector<64x22xf32> to vector<1x22xf32>
    %c0_119 = arith.constant 0 : index
    %c1012 = arith.constant 1012 : index
    %243 = vector.load %arg18[%c0_119, %c1012] : memref<1x1408xf32, #tpu.memory_space<vmem>>, vector<1x22xf32>
    tpu.vector_store %arg18[%c0_119, %c1012], %242 {strides = array<i32>} : memref<1x1408xf32, #tpu.memory_space<vmem>>, vector<1x22xf32>,
    %244 = vector.extract_strided_slice %149 {offsets = [47, 0], sizes = [1, 22], strides = [1, 1]} : vector<64x22xf32> to vector<1x22xf32>
    %c0_120 = arith.constant 0 : index
    %c1034 = arith.constant 1034 : index
    %245 = vector.load %arg18[%c0_120, %c1034] : memref<1x1408xf32, #tpu.memory_space<vmem>>, vector<1x22xf32>
    tpu.vector_store %arg18[%c0_120, %c1034], %244 {strides = array<i32>} : memref<1x1408xf32, #tpu.memory_space<vmem>>, vector<1x22xf32>,
    %246 = vector.extract_strided_slice %149 {offsets = [48, 0], sizes = [1, 22], strides = [1, 1]} : vector<64x22xf32> to vector<1x22xf32>
    %c0_121 = arith.constant 0 : index
    %c1056 = arith.constant 1056 : index
    %247 = vector.load %arg18[%c0_121, %c1056] : memref<1x1408xf32, #tpu.memory_space<vmem>>, vector<1x22xf32>
    tpu.vector_store %arg18[%c0_121, %c1056], %246 {strides = array<i32>} : memref<1x1408xf32, #tpu.memory_space<vmem>>, vector<1x22xf32>,
    %248 = vector.extract_strided_slice %149 {offsets = [49, 0], sizes = [1, 22], strides = [1, 1]} : vector<64x22xf32> to vector<1x22xf32>
    %c0_122 = arith.constant 0 : index
    %c1078 = arith.constant 1078 : index
    %249 = vector.load %arg18[%c0_122, %c1078] : memref<1x1408xf32, #tpu.memory_space<vmem>>, vector<1x22xf32>
    tpu.vector_store %arg18[%c0_122, %c1078], %248 {strides = array<i32>} : memref<1x1408xf32, #tpu.memory_space<vmem>>, vector<1x22xf32>,
    %250 = vector.extract_strided_slice %149 {offsets = [50, 0], sizes = [1, 22], strides = [1, 1]} : vector<64x22xf32> to vector<1x22xf32>
    %c0_123 = arith.constant 0 : index
    %c1100 = arith.constant 1100 : index
    %251 = vector.load %arg18[%c0_123, %c1100] : memref<1x1408xf32, #tpu.memory_space<vmem>>, vector<1x22xf32>
    tpu.vector_store %arg18[%c0_123, %c1100], %250 {strides = array<i32>} : memref<1x1408xf32, #tpu.memory_space<vmem>>, vector<1x22xf32>,
    %252 = vector.extract_strided_slice %149 {offsets = [51, 0], sizes = [1, 22], strides = [1, 1]} : vector<64x22xf32> to vector<1x22xf32>
    %c0_124 = arith.constant 0 : index
    %c1122 = arith.constant 1122 : index
    %253 = vector.load %arg18[%c0_124, %c1122] : memref<1x1408xf32, #tpu.memory_space<vmem>>, vector<1x22xf32>
    tpu.vector_store %arg18[%c0_124, %c1122], %252 {strides = array<i32>} : memref<1x1408xf32, #tpu.memory_space<vmem>>, vector<1x22xf32>,
    %254 = vector.extract_strided_slice %149 {offsets = [52, 0], sizes = [1, 22], strides = [1, 1]} : vector<64x22xf32> to vector<1x22xf32>
    %c0_125 = arith.constant 0 : index
    %c1144 = arith.constant 1144 : index
    %255 = vector.load %arg18[%c0_125, %c1144] : memref<1x1408xf32, #tpu.memory_space<vmem>>, vector<1x22xf32>
    tpu.vector_store %arg18[%c0_125, %c1144], %254 {strides = array<i32>} : memref<1x1408xf32, #tpu.memory_space<vmem>>, vector<1x22xf32>,
    %256 = vector.extract_strided_slice %149 {offsets = [53, 0], sizes = [1, 22], strides = [1, 1]} : vector<64x22xf32> to vector<1x22xf32>
    %c0_126 = arith.constant 0 : index
    %c1166 = arith.constant 1166 : index
    %257 = vector.load %arg18[%c0_126, %c1166] : memref<1x1408xf32, #tpu.memory_space<vmem>>, vector<1x22xf32>
    tpu.vector_store %arg18[%c0_126, %c1166], %256 {strides = array<i32>} : memref<1x1408xf32, #tpu.memory_space<vmem>>, vector<1x22xf32>,
    %258 = vector.extract_strided_slice %149 {offsets = [54, 0], sizes = [1, 22], strides = [1, 1]} : vector<64x22xf32> to vector<1x22xf32>
    %c0_127 = arith.constant 0 : index
    %c1188 = arith.constant 1188 : index
    %259 = vector.load %arg18[%c0_127, %c1188] : memref<1x1408xf32, #tpu.memory_space<vmem>>, vector<1x22xf32>
    tpu.vector_store %arg18[%c0_127, %c1188], %258 {strides = array<i32>} : memref<1x1408xf32, #tpu.memory_space<vmem>>, vector<1x22xf32>,
    %260 = vector.extract_strided_slice %149 {offsets = [55, 0], sizes = [1, 22], strides = [1, 1]} : vector<64x22xf32> to vector<1x22xf32>
    %c0_128 = arith.constant 0 : index
    %c1210 = arith.constant 1210 : index
    %261 = vector.load %arg18[%c0_128, %c1210] : memref<1x1408xf32, #tpu.memory_space<vmem>>, vector<1x22xf32>
    tpu.vector_store %arg18[%c0_128, %c1210], %260 {strides = array<i32>} : memref<1x1408xf32, #tpu.memory_space<vmem>>, vector<1x22xf32>,
    %262 = vector.extract_strided_slice %149 {offsets = [56, 0], sizes = [1, 22], strides = [1, 1]} : vector<64x22xf32> to vector<1x22xf32>
    %c0_129 = arith.constant 0 : index
    %c1232 = arith.constant 1232 : index
    %263 = vector.load %arg18[%c0_129, %c1232] : memref<1x1408xf32, #tpu.memory_space<vmem>>, vector<1x22xf32>
    tpu.vector_store %arg18[%c0_129, %c1232], %262 {strides = array<i32>} : memref<1x1408xf32, #tpu.memory_space<vmem>>, vector<1x22xf32>,
    %264 = vector.extract_strided_slice %149 {offsets = [57, 0], sizes = [1, 22], strides = [1, 1]} : vector<64x22xf32> to vector<1x22xf32>
    %c0_130 = arith.constant 0 : index
    %c1254 = arith.constant 1254 : index
    %265 = vector.load %arg18[%c0_130, %c1254] : memref<1x1408xf32, #tpu.memory_space<vmem>>, vector<1x22xf32>
    tpu.vector_store %arg18[%c0_130, %c1254], %264 {strides = array<i32>} : memref<1x1408xf32, #tpu.memory_space<vmem>>, vector<1x22xf32>,
    %266 = vector.extract_strided_slice %149 {offsets = [58, 0], sizes = [1, 22], strides = [1, 1]} : vector<64x22xf32> to vector<1x22xf32>
    %c0_131 = arith.constant 0 : index
    %c1276 = arith.constant 1276 : index
    %267 = vector.load %arg18[%c0_131, %c1276] : memref<1x1408xf32, #tpu.memory_space<vmem>>, vector<1x22xf32>
    tpu.vector_store %arg18[%c0_131, %c1276], %266 {strides = array<i32>} : memref<1x1408xf32, #tpu.memory_space<vmem>>, vector<1x22xf32>,
    %268 = vector.extract_strided_slice %149 {offsets = [59, 0], sizes = [1, 22], strides = [1, 1]} : vector<64x22xf32> to vector<1x22xf32>
    %c0_132 = arith.constant 0 : index
    %c1298 = arith.constant 1298 : index
    %269 = vector.load %arg18[%c0_132, %c1298] : memref<1x1408xf32, #tpu.memory_space<vmem>>, vector<1x22xf32>
    tpu.vector_store %arg18[%c0_132, %c1298], %268 {strides = array<i32>} : memref<1x1408xf32, #tpu.memory_space<vmem>>, vector<1x22xf32>,
    %270 = vector.extract_strided_slice %149 {offsets = [60, 0], sizes = [1, 22], strides = [1, 1]} : vector<64x22xf32> to vector<1x22xf32>
    %c0_133 = arith.constant 0 : index
    %c1320 = arith.constant 1320 : index
    %271 = vector.load %arg18[%c0_133, %c1320] : memref<1x1408xf32, #tpu.memory_space<vmem>>, vector<1x22xf32>
    tpu.vector_store %arg18[%c0_133, %c1320], %270 {strides = array<i32>} : memref<1x1408xf32, #tpu.memory_space<vmem>>, vector<1x22xf32>,
    %272 = vector.extract_strided_slice %149 {offsets = [61, 0], sizes = [1, 22], strides = [1, 1]} : vector<64x22xf32> to vector<1x22xf32>
    %c0_134 = arith.constant 0 : index
    %c1342 = arith.constant 1342 : index
    %273 = vector.load %arg18[%c0_134, %c1342] : memref<1x1408xf32, #tpu.memory_space<vmem>>, vector<1x22xf32>
    tpu.vector_store %arg18[%c0_134, %c1342], %272 {strides = array<i32>} : memref<1x1408xf32, #tpu.memory_space<vmem>>, vector<1x22xf32>,
    %274 = vector.extract_strided_slice %149 {offsets = [62, 0], sizes = [1, 22], strides = [1, 1]} : vector<64x22xf32> to vector<1x22xf32>
    %c0_135 = arith.constant 0 : index
    %c1364 = arith.constant 1364 : index
    %275 = vector.load %arg18[%c0_135, %c1364] : memref<1x1408xf32, #tpu.memory_space<vmem>>, vector<1x22xf32>
    tpu.vector_store %arg18[%c0_135, %c1364], %274 {strides = array<i32>} : memref<1x1408xf32, #tpu.memory_space<vmem>>, vector<1x22xf32>,
    %276 = vector.extract_strided_slice %149 {offsets = [63, 0], sizes = [1, 22], strides = [1, 1]} : vector<64x22xf32> to vector<1x22xf32>
    %c0_136 = arith.constant 0 : index
    %c1386 = arith.constant 1386 : index
    %277 = vector.load %arg18[%c0_136, %c1386] : memref<1x1408xf32, #tpu.memory_space<vmem>>, vector<1x22xf32>
    tpu.vector_store %arg18[%c0_136, %c1386], %276 {strides = array<i32>} : memref<1x1408xf32, #tpu.memory_space<vmem>>, vector<1x22xf32>,
    %c0_137 = arith.constant 0 : index
    %c0_138 = arith.constant 0 : index
    %278 = vector.load %arg18[%c0_137, %c0_138] : memref<1x1408xf32, #tpu.memory_space<vmem>>, vector<1x1408xf32>
    %279 = arith.truncf %278 : vector<1x1408xf32> to vector<1x1408xbf16>
    %c0_139 = arith.constant 0 : index
    %c0_140 = arith.constant 0 : index
    %280 = vector.load %arg10[%c0_139, %c0_140] : memref<1408x64xbf16, #tpu.memory_space<vmem>>, vector<1408x64xbf16>
    %cst_141 = arith.constant dense<0.000000e+00> : vector<1x64xf32>
    %281 = tpu.matmul %279, %280, %cst_141 {dimension_numbers = #tpu.dot_dimension_numbers<[1], [0], [0], [1], [0, 0, 1, 1], [], []>} : vector<1x1408xbf16>, vector<1408x64xbf16>, vector<1x64xf32> -> vector<1x64xf32>
    %c0_142 = arith.constant 0 : index
    %c0_143 = arith.constant 0 : index
    %282 = vector.load %arg11[%c0_142, %c0_143] : memref<1x64xf32, #tpu.memory_space<vmem>>, vector<1x64xf32>
    %283 = arith.addf %281, %282 : vector<1x64xf32>
    %cst_144 = arith.constant 0.000000e+00 : f32
    %284 = vector.broadcast %cst_144 : f32 to vector<1x64xf32>
    %285 = arith.maximumf %283, %284 : vector<1x64xf32>
    %286 = arith.truncf %285 : vector<1x64xf32> to vector<1x64xbf16>
    %c0_145 = arith.constant 0 : index
    %c0_146 = arith.constant 0 : index
    %287 = vector.load %arg12[%c0_145, %c0_146] : memref<64x10xbf16, #tpu.memory_space<vmem>>, vector<64x10xbf16>
    %cst_147 = arith.constant dense<0.000000e+00> : vector<1x10xf32>
    %288 = tpu.matmul %286, %287, %cst_147 {dimension_numbers = #tpu.dot_dimension_numbers<[1], [0], [0], [1], [0, 0, 1, 1], [], []>} : vector<1x64xbf16>, vector<64x10xbf16>, vector<1x10xf32> -> vector<1x10xf32>
    %c0_148 = arith.constant 0 : index
    %c0_149 = arith.constant 0 : index
    %289 = vector.load %arg13[%c0_148, %c0_149] : memref<1x10xf32, #tpu.memory_space<vmem>>, vector<1x10xf32>
    %290 = arith.addf %288, %289 : vector<1x10xf32>
    %c0_150 = arith.constant 0 : index
    %c0_151 = arith.constant 0 : index
    %c0_152 = arith.constant 0 : index
    %291 = vector.load %arg14[%c0_150, %c0_151, %c0_152] : memref<1x1x10xf32, #tpu.memory_space<vmem>>, vector<1x1x10xf32>
    %292 = vector.shape_cast %291 : vector<1x1x10xf32> to vector<1x10xf32>
    %293 = vector.shape_cast %290 : vector<1x10xf32> to vector<1x1x10xf32>
    tpu.vector_store %arg14[%c0_150, %c0_151, %c0_152], %293 {strides = array<i32>} : memref<1x1x10xf32, #tpu.memory_space<vmem>>, vector<1x1x10xf32>,
    return
  }
  func.func @transform_0(%arg0: i32) -> (i32, i32, i32) {
    %c0_i32 = arith.constant 0 : i32
    %c0_i32_0 = arith.constant 0 : i32
    %c0_i32_1 = arith.constant 0 : i32
    return %arg0, %c0_i32, %c0_i32_0 : i32, i32, i32
  }
  func.func @transform_1(%arg0: i32) -> (i32, i32) {
    %c0_i32 = arith.constant 0 : i32
    %c0_i32_0 = arith.constant 0 : i32
    %c0_i32_1 = arith.constant 0 : i32
    return %c0_i32, %c0_i32_0 : i32, i32
  }
  func.func @transform_2(%arg0: i32) -> (i32, i32) {
    %c0_i32 = arith.constant 0 : i32
    %c0_i32_0 = arith.constant 0 : i32
    %c0_i32_1 = arith.constant 0 : i32
    return %c0_i32, %c0_i32_0 : i32, i32
  }
  func.func @transform_3(%arg0: i32) -> (i32, i32) {
    %c0_i32 = arith.constant 0 : i32
    %c0_i32_0 = arith.constant 0 : i32
    %c0_i32_1 = arith.constant 0 : i32
    return %c0_i32, %c0_i32_0 : i32, i32
  }
  func.func @transform_4(%arg0: i32) -> (i32, i32) {
    %c0_i32 = arith.constant 0 : i32
    %c0_i32_0 = arith.constant 0 : i32
    %c0_i32_1 = arith.constant 0 : i32
    return %c0_i32, %c0_i32_0 : i32, i32
  }
  func.func @transform_5(%arg0: i32) -> (i32, i32) {
    %c0_i32 = arith.constant 0 : i32
    %c0_i32_0 = arith.constant 0 : i32
    %c0_i32_1 = arith.constant 0 : i32
    return %c0_i32, %c0_i32_0 : i32, i32
  }
  func.func @transform_6(%arg0: i32) -> (i32, i32) {
    %c0_i32 = arith.constant 0 : i32
    %c0_i32_0 = arith.constant 0 : i32
    %c0_i32_1 = arith.constant 0 : i32
    return %c0_i32, %c0_i32_0 : i32, i32
  }
  func.func @transform_7(%arg0: i32) -> (i32, i32) {
    %c0_i32 = arith.constant 0 : i32
    %c0_i32_0 = arith.constant 0 : i32
    %c0_i32_1 = arith.constant 0 : i32
    return %c0_i32, %c0_i32_0 : i32, i32
  }
  func.func @transform_8(%arg0: i32) -> (i32, i32) {
    %c0_i32 = arith.constant 0 : i32
    %c0_i32_0 = arith.constant 0 : i32
    %c0_i32_1 = arith.constant 0 : i32
    return %c0_i32, %c0_i32_0 : i32, i32
  }
  func.func @transform_9(%arg0: i32) -> (i32, i32) {
    %c0_i32 = arith.constant 0 : i32
    %c0_i32_0 = arith.constant 0 : i32
    %c0_i32_1 = arith.constant 0 : i32
    return %c0_i32, %c0_i32_0 : i32, i32
  }
  func.func @transform_10(%arg0: i32) -> (i32, i32) {
    %c0_i32 = arith.constant 0 : i32
    %c0_i32_0 = arith.constant 0 : i32
    %c0_i32_1 = arith.constant 0 : i32
    return %c0_i32, %c0_i32_0 : i32, i32
  }
  func.func @transform_11(%arg0: i32) -> (i32, i32) {
    %c0_i32 = arith.constant 0 : i32
    %c0_i32_0 = arith.constant 0 : i32
    %c0_i32_1 = arith.constant 0 : i32
    return %c0_i32, %c0_i32_0 : i32, i32
  }
  func.func @transform_12(%arg0: i32) -> (i32, i32) {
    %c0_i32 = arith.constant 0 : i32
    %c0_i32_0 = arith.constant 0 : i32
    %c0_i32_1 = arith.constant 0 : i32
    return %c0_i32, %c0_i32_0 : i32, i32
  }
  func.func @transform_13(%arg0: i32) -> (i32, i32, i32) {
    %c0_i32 = arith.constant 0 : i32
    %c0_i32_0 = arith.constant 0 : i32
    %c0_i32_1 = arith.constant 0 : i32
    return %arg0, %c0_i32, %c0_i32_0 : i32, i32, i32
  }
}

</mosaic_0001>

<llo_original>
// kernel: forward.1
$region0: #{forward.1}
  #allocation0 [shape = 'u32[]', space=smem, size = 0x4, offset = 0x4, fixed_abs, tag = 'smem constant byte address 0x4 - core index']
  #allocation1 [shape = 'u32[144,128]{1,0:T(1,128)}', space=vmem, size = 0x12000, scoped, tag = 'internal scratch']
  #allocation2 [shape = 'f32[27,958]{1,0:T(8,128)}', space=vmem, size = 0x20000, scoped, tag = 'scratch operand']
  #allocation3 [shape = 'bf16[288,193]{1,0:T(8,128)(2,1)}', space=vmem, size = 0x24000, scoped, tag = 'scratch operand']
  #allocation4 [shape = 'bf16[576,22]{1,0:T(8,128)(2,1)}', space=vmem, size = 0x24000, scoped, tag = 'scratch operand']
  #allocation5 [shape = 'f32[1,1408]{1,0:T(1,128)}', space=vmem, size = 0x1600, scoped, tag = 'scratch operand']
  %s0 = inlined_call_operand.vmem [shape: f32[2,3,1024], index: 0, kind: input, shape index: {}]
  %s1 = inlined_call_operand.vmem [shape: bf16[32,27], index: 1, kind: input, shape index: {}]
  %s2 = inlined_call_operand.vmem [shape: f32[32,1], index: 2, kind: input, shape index: {}]
  %s3 = inlined_call_operand.hbm [shape: bf16[64,288], index: 3, kind: input, shape index: {}]
  %s4 = inlined_call_operand.vmem [shape: f32[64,1], index: 4, kind: input, shape index: {}]
  %s5 = inlined_call_operand.vmem [shape: bf16[64,576], index: 5, kind: input, shape index: {}]
  %s6 = inlined_call_operand.vmem [shape: f32[64,1], index: 6, kind: input, shape index: {}]
  %s7 = inlined_call_operand.vmem [shape: bf16[925,225], index: 7, kind: input, shape index: {}]
  %s8 = inlined_call_operand.vmem [shape: bf16[161,36], index: 8, kind: input, shape index: {}]
  %s9 = inlined_call_operand.vmem [shape: bf16[1408,64], index: 9, kind: input, shape index: {}]
  %s10 = inlined_call_operand.vmem [shape: f32[1,64], index: 10, kind: input, shape index: {}]
  %s11 = inlined_call_operand.vmem [shape: bf16[64,10], index: 11, kind: input, shape index: {}]
  %s12 = inlined_call_operand.vmem [shape: f32[1,10], index: 12, kind: input, shape index: {}]
  %s13 = inlined_call_operand.hbm [shape: f32[2,1,10], index: 13, kind: output, shape index: {}]
  %s14 = sld [smem:[#allocation0]]
  $region89: #{forward.1} parent=0
    _
  %s16 = ssub.s32 1, %s14
  %s17 = scalar_select 0, %s16, %s14
  $region1: #{forward.1} parent=0
    #allocation6 [shape = 'u8[49152]{0}', space=vmem, size = 0xc000, scoped, tag = 'input window, operand 3, single buffered']
    #allocation7 [shape = 's32[2]{0}', space=sflag, size = 0x8, scoped, tag = 'scoped memory for forward.1']
    #allocation8 [shape = 's32[2]{0}', space=sflag, size = 0x8, scoped, tag = 'scoped memory for forward.1']
    #allocation9 [shape = 'u8[1024]{0}', space=vmem, size = 0x400, scoped, tag = 'output window, operand 0']
    %18 = vsyncpa [#allocation7], 0
    %19 = vsyncpa [#allocation8], 0
    %s20 = scalar_lea.sflag [#allocation8], 1
    %21 = vsyncpa %s20, 0
    loop: start=0, step=1, limit=4
    $region2: #{forward.1} parent=1 // loop_pre_header
      _
    $region3: #{forward.1} parent=1 // loop_header
      %s23 = sphi 0, %s27
      %p24 = scmp.ge.s32.totalorder %s23, 4
      %s33 = sphi 0, %s35
      %s36 = sphi 0, %s33
      %s37 = sphi 0, %s36
      %s53 = sphi 0, %s37
      %s57 = sphi 0, %s57
      %s59 = sphi 0, %s57
      %s60 = sphi 0, %s59
      %s74 = sphi 0, %s60
      %s78 = sphi 0, %s78
      %s80 = sphi 0, %s78
      %s81 = sphi 0, %s80
      %s95 = sphi 0, %s81
      %s99 = sphi 0, %s99
      %s101 = sphi 0, %s99
      %s102 = sphi 0, %s101
      %s116 = sphi 0, %s102
      %s120 = sphi 0, %s120
      %s122 = sphi 0, %s120
      %s123 = sphi 0, %s122
      %s137 = sphi 0, %s123
      %s141 = sphi 0, %s141
      %s143 = sphi 0, %s141
      %s144 = sphi 0, %s143
      %s158 = sphi 0, %s144
      %s162 = sphi 0, %s162
      %s164 = sphi 0, %s162
      %s165 = sphi 0, %s164
      %s179 = sphi 0, %s165
      %s183 = sphi 0, %s183
      %s185 = sphi 0, %s183
      %s186 = sphi 0, %s185
      %s200 = sphi 0, %s186
      %s204 = sphi 0, %s204
      %s206 = sphi 0, %s204
      %s207 = sphi 0, %s206
      %s221 = sphi 0, %s207
      %s225 = sphi 0, %s225
      %s227 = sphi 0, %s225
      %s228 = sphi 0, %s227
      %s242 = sphi 0, %s228
      %s246 = sphi 0, %s246
      %s248 = sphi 0, %s246
      %s249 = sphi 0, %s248
      %s263 = sphi 0, %s249
      %s267 = sphi 0, %s267
      %s269 = sphi 0, %s267
      %s270 = sphi 0, %s269
      %s284 = sphi 0, %s270
      %s288 = sphi 0, %s288
      %s290 = sphi 0, %s288
      %s291 = sphi 0, %s290
      %s305 = sphi 0, %s291
      %s311 = sphi 0, %s313
      %s314 = sphi 0, %s311
      %s315 = sphi 0, %s314
      %s331 = sphi 0, %s315
    $region4: #{forward.1} parent=1 // loop_header_branch
      %26 = sbr.rel (%p24) target = $region8
    $region5: #{forward.1} parent=1 // loop_body
      %s28 = ssub.s32 %s23, 1
      %s29 = ssub.s32 %s23, 2
      %s30 = sadd.s32 %s23, 1
      %s31 = ssub.s32 %s23, %s30
      %p32 = scmp.eq.s32.totalorder %s31, 0
      %s34 = sadd.s32 %s33, 1
      %s35 = scalar_select %p32, %s33, %s34
      %p38 = pneg %p32
      %p39 = scmp.eq.s32.totalorder %s23, 1
      %p40 = por %p38, %p39
      %p41 = scmp.ne.s32.totalorder %s33, %s36
      %p42 = scmp.eq.s32.totalorder %s23, 0
      %p43 = por %p41, %p42
      %p44 = scmp.ne.s32.totalorder %s33, %s36
      %p45 = scmp.eq.s32.totalorder %s28, 1
      %p46 = por %p44, %p45
      %p47 = scmp.ne.s32.totalorder %s36, %s37
      %p48 = scmp.eq.s32.totalorder %s28, 0
      %p49 = por %p47, %p48
      %p50 = scmp.ne.s32.totalorder %s36, %s37
      %p51 = scmp.eq.s32.totalorder %s29, 1
      %p52 = por %p50, %p51
      %p54 = scmp.ne.s32.totalorder %s37, %s53
      %p55 = scmp.eq.s32.totalorder %s29, 0
      %p56 = por %p54, %p55
      %s58 = sadd.s32 %s57, 1
      %p61 = scmp.eq.s32.totalorder %s23, 1
      %p62 = scmp.ne.s32.totalorder %s57, %s59
      %p63 = scmp.eq.s32.totalorder %s23, 0
      %p64 = por %p62, %p63
      %p65 = scmp.ne.s32.totalorder %s57, %s59
      %p66 = scmp.eq.s32.totalorder %s28, 1
      %p67 = por %p65, %p66
      %p68 = scmp.ne.s32.totalorder %s59, %s60
      %p69 = scmp.eq.s32.totalorder %s28, 0
      %p70 = por %p68, %p69
      %p71 = scmp.ne.s32.totalorder %s59, %s60
      %p72 = scmp.eq.s32.totalorder %s29, 1
      %p73 = por %p71, %p72
      %p75 = scmp.ne.s32.totalorder %s60, %s74
      %p76 = scmp.eq.s32.totalorder %s29, 0
      %p77 = por %p75, %p76
      %s79 = sadd.s32 %s78, 1
      %p82 = scmp.eq.s32.totalorder %s23, 1
      %p83 = scmp.ne.s32.totalorder %s78, %s80
      %p84 = scmp.eq.s32.totalorder %s23, 0
      %p85 = por %p83, %p84
      %p86 = scmp.ne.s32.totalorder %s78, %s80
      %p87 = scmp.eq.s32.totalorder %s28, 1
      %p88 = por %p86, %p87
      %p89 = scmp.ne.s32.totalorder %s80, %s81
      %p90 = scmp.eq.s32.totalorder %s28, 0
      %p91 = por %p89, %p90
      %p92 = scmp.ne.s32.totalorder %s80, %s81
      %p93 = scmp.eq.s32.totalorder %s29, 1
      %p94 = por %p92, %p93
      %p96 = scmp.ne.s32.totalorder %s81, %s95
      %p97 = scmp.eq.s32.totalorder %s29, 0
      %p98 = por %p96, %p97
      %s100 = sadd.s32 %s99, 1
      %p103 = scmp.eq.s32.totalorder %s23, 1
      %p104 = scmp.ne.s32.totalorder %s99, %s101
      %p105 = scmp.eq.s32.totalorder %s23, 0
      %p106 = por %p104, %p105
      %p107 = scmp.ne.s32.totalorder %s99, %s101
      %p108 = scmp.eq.s32.totalorder %s28, 1
      %p109 = por %p107, %p108
      %p110 = scmp.ne.s32.totalorder %s101, %s102
      %p111 = scmp.eq.s32.totalorder %s28, 0
      %p112 = por %p110, %p111
      %p113 = scmp.ne.s32.totalorder %s101, %s102
      %p114 = scmp.eq.s32.totalorder %s29, 1
      %p115 = por %p113, %p114
      %p117 = scmp.ne.s32.totalorder %s102, %s116
      %p118 = scmp.eq.s32.totalorder %s29, 0
      %p119 = por %p117, %p118
      %s121 = sadd.s32 %s120, 1
      %p124 = scmp.eq.s32.totalorder %s23, 1
      %p125 = scmp.ne.s32.totalorder %s120, %s122
      %p126 = scmp.eq.s32.totalorder %s23, 0
      %p127 = por %p125, %p126
      %p128 = scmp.ne.s32.totalorder %s120, %s122
      %p129 = scmp.eq.s32.totalorder %s28, 1
      %p130 = por %p128, %p129
      %p131 = scmp.ne.s32.totalorder %s122, %s123
      %p132 = scmp.eq.s32.totalorder %s28, 0
      %p133 = por %p131, %p132
      %p134 = scmp.ne.s32.totalorder %s122, %s123
      %p135 = scmp.eq.s32.totalorder %s29, 1
      %p136 = por %p134, %p135
      %p138 = scmp.ne.s32.totalorder %s123, %s137
      %p139 = scmp.eq.s32.totalorder %s29, 0
      %p140 = por %p138, %p139
      %s142 = sadd.s32 %s141, 1
      %p145 = scmp.eq.s32.totalorder %s23, 1
      %p146 = scmp.ne.s32.totalorder %s141, %s143
      %p147 = scmp.eq.s32.totalorder %s23, 0
      %p148 = por %p146, %p147
      %p149 = scmp.ne.s32.totalorder %s141, %s143
      %p150 = scmp.eq.s32.totalorder %s28, 1
      %p151 = por %p149, %p150
      %p152 = scmp.ne.s32.totalorder %s143, %s144
      %p153 = scmp.eq.s32.totalorder %s28, 0
      %p154 = por %p152, %p153
      %p155 = scmp.ne.s32.totalorder %s143, %s144
      %p156 = scmp.eq.s32.totalorder %s29, 1
      %p157 = por %p155, %p156
      %p159 = scmp.ne.s32.totalorder %s144, %s158
      %p160 = scmp.eq.s32.totalorder %s29, 0
      %p161 = por %p159, %p160
      %s163 = sadd.s32 %s162, 1
      %p166 = scmp.eq.s32.totalorder %s23, 1
      %p167 = scmp.ne.s32.totalorder %s162, %s164
      %p168 = scmp.eq.s32.totalorder %s23, 0
      %p169 = por %p167, %p168
      %p170 = scmp.ne.s32.totalorder %s162, %s164
      %p171 = scmp.eq.s32.totalorder %s28, 1
      %p172 = por %p170, %p171
      %p173 = scmp.ne.s32.totalorder %s164, %s165
      %p174 = scmp.eq.s32.totalorder %s28, 0
      %p175 = por %p173, %p174
      %p176 = scmp.ne.s32.totalorder %s164, %s165
      %p177 = scmp.eq.s32.totalorder %s29, 1
      %p178 = por %p176, %p177
      %p180 = scmp.ne.s32.totalorder %s165, %s179
      %p181 = scmp.eq.s32.totalorder %s29, 0
      %p182 = por %p180, %p181
      %s184 = sadd.s32 %s183, 1
      %p187 = scmp.eq.s32.totalorder %s23, 1
      %p188 = scmp.ne.s32.totalorder %s183, %s185
      %p189 = scmp.eq.s32.totalorder %s23, 0
      %p190 = por %p188, %p189
      %p191 = scmp.ne.s32.totalorder %s183, %s185
      %p192 = scmp.eq.s32.totalorder %s28, 1
      %p193 = por %p191, %p192
      %p194 = scmp.ne.s32.totalorder %s185, %s186
      %p195 = scmp.eq.s32.totalorder %s28, 0
      %p196 = por %p194, %p195
      %p197 = scmp.ne.s32.totalorder %s185, %s186
      %p198 = scmp.eq.s32.totalorder %s29, 1
      %p199 = por %p197, %p198
      %p201 = scmp.ne.s32.totalorder %s186, %s200
      %p202 = scmp.eq.s32.totalorder %s29, 0
      %p203 = por %p201, %p202
      %s205 = sadd.s32 %s204, 1
      %p208 = scmp.eq.s32.totalorder %s23, 1
      %p209 = scmp.ne.s32.totalorder %s204, %s206
      %p210 = scmp.eq.s32.totalorder %s23, 0
      %p211 = por %p209, %p210
      %p212 = scmp.ne.s32.totalorder %s204, %s206
      %p213 = scmp.eq.s32.totalorder %s28, 1
      %p214 = por %p212, %p213
      %p215 = scmp.ne.s32.totalorder %s206, %s207
      %p216 = scmp.eq.s32.totalorder %s28, 0
      %p217 = por %p215, %p216
      %p218 = scmp.ne.s32.totalorder %s206, %s207
      %p219 = scmp.eq.s32.totalorder %s29, 1
      %p220 = por %p218, %p219
      %p222 = scmp.ne.s32.totalorder %s207, %s221
      %p223 = scmp.eq.s32.totalorder %s29, 0
      %p224 = por %p222, %p223
      %s226 = sadd.s32 %s225, 1
      %p229 = scmp.eq.s32.totalorder %s23, 1
      %p230 = scmp.ne.s32.totalorder %s225, %s227
      %p231 = scmp.eq.s32.totalorder %s23, 0
      %p232 = por %p230, %p231
      %p233 = scmp.ne.s32.totalorder %s225, %s227
      %p234 = scmp.eq.s32.totalorder %s28, 1
      %p235 = por %p233, %p234
      %p236 = scmp.ne.s32.totalorder %s227, %s228
      %p237 = scmp.eq.s32.totalorder %s28, 0
      %p238 = por %p236, %p237
      %p239 = scmp.ne.s32.totalorder %s227, %s228
      %p240 = scmp.eq.s32.totalorder %s29, 1
      %p241 = por %p239, %p240
      %p243 = scmp.ne.s32.totalorder %s228, %s242
      %p244 = scmp.eq.s32.totalorder %s29, 0
      %p245 = por %p243, %p244
      %s247 = sadd.s32 %s246, 1
      %p250 = scmp.eq.s32.totalorder %s23, 1
      %p251 = scmp.ne.s32.totalorder %s246, %s248
      %p252 = scmp.eq.s32.totalorder %s23, 0
      %p253 = por %p251, %p252
      %p254 = scmp.ne.s32.totalorder %s246, %s248
      %p255 = scmp.eq.s32.totalorder %s28, 1
      %p256 = por %p254, %p255
      %p257 = scmp.ne.s32.totalorder %s248, %s249
      %p258 = scmp.eq.s32.totalorder %s28, 0
      %p259 = por %p257, %p258
      %p260 = scmp.ne.s32.totalorder %s248, %s249
      %p261 = scmp.eq.s32.totalorder %s29, 1
      %p262 = por %p260, %p261
      %p264 = scmp.ne.s32.totalorder %s249, %s263
      %p265 = scmp.eq.s32.totalorder %s29, 0
      %p266 = por %p264, %p265
      %s268 = sadd.s32 %s267, 1
      %p271 = scmp.eq.s32.totalorder %s23, 1
      %p272 = scmp.ne.s32.totalorder %s267, %s269
      %p273 = scmp.eq.s32.totalorder %s23, 0
      %p274 = por %p272, %p273
      %p275 = scmp.ne.s32.totalorder %s267, %s269
      %p276 = scmp.eq.s32.totalorder %s28, 1
      %p277 = por %p275, %p276
      %p278 = scmp.ne.s32.totalorder %s269, %s270
      %p279 = scmp.eq.s32.totalorder %s28, 0
      %p280 = por %p278, %p279
      %p281 = scmp.ne.s32.totalorder %s269, %s270
      %p282 = scmp.eq.s32.totalorder %s29, 1
      %p283 = por %p281, %p282
      %p285 = scmp.ne.s32.totalorder %s270, %s284
      %p286 = scmp.eq.s32.totalorder %s29, 0
      %p287 = por %p285, %p286
      %s289 = sadd.s32 %s288, 1
      %p292 = scmp.eq.s32.totalorder %s23, 1
      %p293 = scmp.ne.s32.totalorder %s288, %s290
      %p294 = scmp.eq.s32.totalorder %s23, 0
      %p295 = por %p293, %p294
      %p296 = scmp.ne.s32.totalorder %s288, %s290
      %p297 = scmp.eq.s32.totalorder %s28, 1
      %p298 = por %p296, %p297
      %p299 = scmp.ne.s32.totalorder %s290, %s291
      %p300 = scmp.eq.s32.totalorder %s28, 0
      %p301 = por %p299, %p300
      %p302 = scmp.ne.s32.totalorder %s290, %s291
      %p303 = scmp.eq.s32.totalorder %s29, 1
      %p304 = por %p302, %p303
      %p306 = scmp.ne.s32.totalorder %s291, %s305
      %p307 = scmp.eq.s32.totalorder %s29, 0
      %p308 = por %p306, %p307
      %s309 = ssub.s32 %s23, %s30
      %p310 = scmp.eq.s32.totalorder %s309, 0
      %s312 = sadd.s32 %s311, 1
      %s313 = scalar_select %p310, %s311, %s312
      %p316 = pneg %p310
      %p317 = scmp.eq.s32.totalorder %s23, 1
      %p318 = por %p316, %p317
      %p319 = scmp.ne.s32.totalorder %s311, %s314
      %p320 = scmp.eq.s32.totalorder %s23, 0
      %p321 = por %p319, %p320
      %p322 = scmp.ne.s32.totalorder %s311, %s314
      %p323 = scmp.eq.s32.totalorder %s28, 1
      %p324 = por %p322, %p323
      %p325 = scmp.ne.s32.totalorder %s314, %s315
      %p326 = scmp.eq.s32.totalorder %s28, 0
      %p327 = por %p325, %p326
      %p328 = scmp.ne.s32.totalorder %s314, %s315
      %p329 = scmp.eq.s32.totalorder %s29, 1
      %p330 = por %p328, %p329
      %p332 = scmp.ne.s32.totalorder %s315, %s331
      %p333 = scmp.eq.s32.totalorder %s29, 0
      %p334 = por %p332, %p333
      %p335 = scmp.le.s32.totalorder 1, %s23
      %p336 = scmp.lt.s32.totalorder %s23, 3
      %p337 = pnand %p335, %p336
      %p338 = pneg %p337
      // Predicated region
      $region9: #{forward.1} parent=5 // pred_check
        _
      $region10: #{forward.1} parent=5 // pred_check_branch
        %340 = sbr.rel (%p337) target = $region12
      $region11: #{forward.1} parent=5 // pred_region
        %s341 = ssub.s32 %s23, 1
        // Predicated region
        $region13: #{forward.1} parent=11 // pred_check
          %p342 = pneg %p70
        $region14: #{forward.1} parent=11 // pred_check_branch
          %344 = sbr.rel (%p342) target = $region16
        $region15: #{forward.1} parent=11 // pred_region
          _
        $region16: #{forward.1} parent=11 // pred_fallthru
          _
        // Predicated region
        $region17: #{forward.1} parent=11 // pred_check
          %p345 = pneg %p91
        $region18: #{forward.1} parent=11 // pred_check_branch
          %347 = sbr.rel (%p345) target = $region20
        $region19: #{forward.1} parent=11 // pred_region
          _
        $region20: #{forward.1} parent=11 // pred_fallthru
          _
        // Predicated region
        $region21: #{forward.1} parent=11 // pred_check
          %p348 = pneg %p112
        $region22: #{forward.1} parent=11 // pred_check_branch
          %350 = sbr.rel (%p348) target = $region24
        $region23: #{forward.1} parent=11 // pred_region
          %s352 = ssub.s32 1536, 1536
          %353 = vsyncadd [#allocation7], %s352
          %s354 = sshll.u32 [#allocation6], 4
          %s355 = int_to_ptr.vmem [resolvable:$true] %s354
          %360 = dma.hbm_to_vmem [thread:$0]  %s3, 1536, %s355, [#allocation7], 192, 192, 12
        $region24: #{forward.1} parent=11 // pred_fallthru
          _
        // Predicated region
        $region25: #{forward.1} parent=11 // pred_check
          %p361 = pneg %p133
        $region26: #{forward.1} parent=11 // pred_check_branch
          %363 = sbr.rel (%p361) target = $region28
        $region27: #{forward.1} parent=11 // pred_region
          _
        $region28: #{forward.1} parent=11 // pred_fallthru
          _
        // Predicated region
        $region29: #{forward.1} parent=11 // pred_check
          %p364 = pneg %p154
        $region30: #{forward.1} parent=11 // pred_check_branch
          %366 = sbr.rel (%p364) target = $region32
        $region31: #{forward.1} parent=11 // pred_region
          _
        $region32: #{forward.1} parent=11 // pred_fallthru
          _
        // Predicated region
        $region33: #{forward.1} parent=11 // pred_check
          %p367 = pneg %p175
        $region34: #{forward.1} parent=11 // pred_check_branch
          %369 = sbr.rel (%p367) target = $region36
        $region35: #{forward.1} parent=11 // pred_region
          _
        $region36: #{forward.1} parent=11 // pred_fallthru
          _
        // Predicated region
        $region37: #{forward.1} parent=11 // pred_check
          %p370 = pneg %p196
        $region38: #{forward.1} parent=11 // pred_check_branch
          %372 = sbr.rel (%p370) target = $region40
        $region39: #{forward.1} parent=11 // pred_region
          _
        $region40: #{forward.1} parent=11 // pred_fallthru
          _
        // Predicated region
        $region41: #{forward.1} parent=11 // pred_check
          %p373 = pneg %p217
        $region42: #{forward.1} parent=11 // pred_check_branch
          %375 = sbr.rel (%p373) target = $region44
        $region43: #{forward.1} parent=11 // pred_region
          _
        $region44: #{forward.1} parent=11 // pred_fallthru
          _
        // Predicated region
        $region45: #{forward.1} parent=11 // pred_check
          %p376 = pneg %p238
        $region46: #{forward.1} parent=11 // pred_check_branch
          %378 = sbr.rel (%p376) target = $region48
        $region47: #{forward.1} parent=11 // pred_region
          _
        $region48: #{forward.1} parent=11 // pred_fallthru
          _
        // Predicated region
        $region49: #{forward.1} parent=11 // pred_check
          %p379 = pneg %p259
        $region50: #{forward.1} parent=11 // pred_check_branch
          %381 = sbr.rel (%p379) target = $region52
        $region51: #{forward.1} parent=11 // pred_region
          _
        $region52: #{forward.1} parent=11 // pred_fallthru
          _
        // Predicated region
        $region53: #{forward.1} parent=11 // pred_check
          %p382 = pneg %p280
        $region54: #{forward.1} parent=11 // pred_check_branch
          %384 = sbr.rel (%p382) target = $region56
        $region55: #{forward.1} parent=11 // pred_region
          _
        $region56: #{forward.1} parent=11 // pred_fallthru
          _
        // Predicated region
        $region57: #{forward.1} parent=11 // pred_check
          %p385 = pneg %p301
        $region58: #{forward.1} parent=11 // pred_check_branch
          %387 = sbr.rel (%p385) target = $region60
        $region59: #{forward.1} parent=11 // pred_region
          _
        $region60: #{forward.1} parent=11 // pred_fallthru
          _
      $region12: #{forward.1} parent=5 // pred_fallthru
        _
      %p388 = scmp.lt.s32.totalorder %s23, 2
      // Predicated region
      $region61: #{forward.1} parent=5 // pred_check
        %p389 = pneg %p388
      $region62: #{forward.1} parent=5 // pred_check_branch
        %391 = sbr.rel (%p389) target = $region64
      $region63: #{forward.1} parent=5 // pred_region
        // Predicated region
        $region65: #{forward.1} parent=63 // pred_check
          %p392 = pneg %p43
        $region66: #{forward.1} parent=63 // pred_check_branch
          %394 = sbr.rel (%p392) target = $region68
        $region67: #{forward.1} parent=63 // pred_region
          %p395 = scmp.lt.s32.totalorder %s23, 1
          %s396 = scalar_select %p395, %s23, 1
          %s397 = smul.addr %s396, 8
          %s398 = smul.addr %s397, 4
          %s399 = scalar_lea.vmem %s0, %s398
        $region68: #{forward.1} parent=63 // pred_fallthru
          _
      $region64: #{forward.1} parent=5 // pred_fallthru
        _
      %p400 = scmp.le.s32.totalorder 1, %s23
      %p401 = scmp.lt.s32.totalorder %s23, 3
      %p402 = pnand %p400, %p401
      %p403 = pneg %p402
      // Predicated region
      $region69: #{forward.1} parent=5 // pred_check
        _
      $region70: #{forward.1} parent=5 // pred_check_branch
        %405 = sbr.rel (%p402) target = $region72
      $region71: #{forward.1} parent=5 // pred_region
        %s406 = ssub.s32 %s23, 1
        // Predicated region
        $region73: #{forward.1} parent=71 // pred_check
          %p407 = pneg %p112
        $region74: #{forward.1} parent=71 // pred_check_branch
          %409 = sbr.rel (%p407) target = $region76
        $region75: #{forward.1} parent=71 // pred_region
          %410 = dma.done [#allocation7], 1536
        $region76: #{forward.1} parent=71 // pred_fallthru
          _
        %p411 = scmp.lt.s32.totalorder %s28, 1
        %s412 = scalar_select %p411, %s28, 1
        %s413 = smul.addr %s412, 8
        %s414 = smul.addr %s413, 4
        %s415 = scalar_lea.vmem %s0, %s414
        %p416 = pneg %p49
        %p417 = pneg %p46
        %p418 = pneg %p70
        %p419 = pneg %p67
        %p420 = pneg %p91
        %p421 = pneg %p88
        %p422 = pneg %p112
        %p423 = pneg %p109
        %p424 = pneg %p133
        %p425 = pneg %p130
        %p426 = pneg %p154
        %p427 = pneg %p151
        %p428 = pneg %p175
        %p429 = pneg %p172
        %p430 = pneg %p196
        %p431 = pneg %p193
        %p432 = pneg %p217
        %p433 = pneg %p214
        %p434 = pneg %p238
        %p435 = pneg %p235
        %p436 = pneg %p259
        %p437 = pneg %p256
        %p438 = pneg %p280
        %p439 = pneg %p277
        %p440 = pneg %p301
        %p441 = pneg %p298
        %p442 = pneg %p327
        %p443 = pneg %p324
        %s444 = sand.u32 %s314, 1
        %s445 = scalar_lea.sflag [#allocation8], %s444
        %s446 = sand.u32 %s314, 1
        %s447 = scalar_lea.vmem [#allocation9], %s446
        %p448 = scmp.lt.s32.totalorder %s28, 1
        %s449 = scalar_select %p448, %s28, 1
        %s450 = smul.addr %s449, 8
        %s451 = smul.addr %s450, 4
        %s452 = scalar_lea.vmem %s0, %s451
        %v454 = vld [vmem:[%s452] sm:$0x77]
        %v455 = vld [vmem:[%s452 + $0x8] sm:$0x77]
        %v456 = vld [vmem:[%s452 + $0x10] sm:$0x77]
        %v457 = vld [vmem:[%s452 + $0x18] sm:$0x77]
        %v462 = vcombine.high %v454, %v454
        %v463 = vcombine.high %v455, %v455
        %v464 = vcombine.high %v456, %v456
        %v465 = vcombine.high %v457, %v457
        %470 = vst [vmem:[#allocation2] sm:$0x7] %v454
        %471 = vst [vmem:[#allocation2 + $0x8] sm:$0x7] %v462
        %472 = vst [vmem:[#allocation2 + $0x10] sm:$0x7] %v455
        %473 = vst [vmem:[#allocation2 + $0x18] sm:$0x7] %v463
        %474 = vst [vmem:[#allocation2 + $0x20] sm:$0x7] %v456
        %475 = vst [vmem:[#allocation2 + $0x28] sm:$0x7] %v464
        %476 = vst [vmem:[#allocation2 + $0x30] sm:$0x7] %v457
        %vm477 = vcmask 501760
        %478 = vst.msk [vmem:[#allocation2 + $0x38] sm:$0x7] %vm477, %v465
        %v479 = vrot.slane %v454, 5
        %v480 = vrot.slane %v462, 5
        %v481 = vrot.slane %v455, 5
        %v482 = vrot.slane %v463, 5
        %v483 = vrot.slane %v456, 5
        %v484 = vrot.slane %v464, 5
        %v485 = vrot.slane %v457, 5
        %v486 = vrot.slane %v465, 5
        %487 = vrot.lane.b32.xlu0 %v479, 127
        %v488 = vpop.permute.xlu0 %487
        %489 = vrot.lane.b32.xlu0 %v480, 127
        %v490 = vpop.permute.xlu0 %489
        %491 = vrot.lane.b32.xlu0 %v481, 127
        %v492 = vpop.permute.xlu0 %491
        %493 = vrot.lane.b32.xlu0 %v482, 127
        %v494 = vpop.permute.xlu0 %493
        %495 = vrot.lane.b32.xlu0 %v483, 127
        %v496 = vpop.permute.xlu0 %495
        %497 = vrot.lane.b32.xlu0 %v484, 127
        %v498 = vpop.permute.xlu0 %497
        %499 = vrot.lane.b32.xlu0 %v485, 127
        %v500 = vpop.permute.xlu0 %499
        %501 = vrot.lane.b32.xlu0 %v486, 127
        %v502 = vpop.permute.xlu0 %501
        %vm503 = vcmask 1039360
        %v504 = vsel %vm503, %v488, %v490
        %v505 = vsel %vm503, %v490, %v492
        %v506 = vsel %vm503, %v492, %v494
        %v507 = vsel %vm503, %v494, %v496
        %v508 = vsel %vm503, %v496, %v498
        %v509 = vsel %vm503, %v498, %v500
        %v510 = vsel %vm503, %v500, %v502
        %519 = vst [vmem:[#allocation2] sm:$0x38] %v504
        %520 = vst [vmem:[#allocation2 + $0x8] sm:$0x38] %v505
        %521 = vst [vmem:[#allocation2 + $0x10] sm:$0x38] %v506
        %522 = vst [vmem:[#allocation2 + $0x18] sm:$0x38] %v507
        %523 = vst [vmem:[#allocation2 + $0x20] sm:$0x38] %v508
        %524 = vst [vmem:[#allocation2 + $0x28] sm:$0x38] %v509
        %525 = vst [vmem:[#allocation2 + $0x30] sm:$0x38] %v510
        %vm526 = vcmask 504835
        %527 = vst.msk [vmem:[#allocation2 + $0x38] sm:$0x38] %vm526, %v502
        %v528 = vrot.slane %v454, 2
        %v529 = vrot.slane %v462, 2
        %v530 = vrot.slane %v455, 2
        %v531 = vrot.slane %v463, 2
        %v532 = vrot.slane %v456, 2
        %v533 = vrot.slane %v464, 2
        %v534 = vrot.slane %v457, 2
        %v535 = vrot.slane %v465, 2
        %536 = vrot.lane.b32.xlu0 %v528, 126
        %v537 = vpop.permute.xlu0 %536
        %538 = vrot.lane.b32.xlu0 %v529, 126
        %v539 = vpop.permute.xlu0 %538
        %540 = vrot.lane.b32.xlu0 %v530, 126
        %v541 = vpop.permute.xlu0 %540
        %542 = vrot.lane.b32.xlu0 %v531, 126
        %v543 = vpop.permute.xlu0 %542
        %544 = vrot.lane.b32.xlu0 %v532, 126
        %v545 = vpop.permute.xlu0 %544
        %546 = vrot.lane.b32.xlu0 %v533, 126
        %v547 = vpop.permute.xlu0 %546
        %548 = vrot.lane.b32.xlu0 %v534, 126
        %v549 = vpop.permute.xlu0 %548
        %550 = vrot.lane.b32.xlu0 %v535, 126
        %v551 = vpop.permute.xlu0 %550
        %vm552 = vcmask 1031168
        %v553 = vsel %vm552, %v537, %v539
        %v554 = vsel %vm552, %v539, %v541
        %v555 = vsel %vm552, %v541, %v543
        %v556 = vsel %vm552, %v543, %v545
        %v557 = vsel %vm552, %v545, %v547
        %v558 = vsel %vm552, %v547, %v549
        %v559 = vsel %vm552, %v549, %v551
        %568 = vst [vmem:[#allocation2] sm:$0xc0] %v553
        %569 = vst [vmem:[#allocation2 + $0x8] sm:$0xc0] %v554
        %570 = vst [vmem:[#allocation2 + $0x10] sm:$0xc0] %v555
        %571 = vst [vmem:[#allocation2 + $0x18] sm:$0xc0] %v556
        %572 = vst [vmem:[#allocation2 + $0x20] sm:$0xc0] %v557
        %573 = vst [vmem:[#allocation2 + $0x28] sm:$0xc0] %v558
        %574 = vst [vmem:[#allocation2 + $0x30] sm:$0xc0] %v559
        %vm575 = vcmask 506886
        %576 = vst.msk [vmem:[#allocation2 + $0x38] sm:$0xc0] %vm575, %v551
        %577 = vst [vmem:[#allocation2 + $0x40] sm:$0x1] %v553
        %578 = vst [vmem:[#allocation2 + $0x48] sm:$0x1] %v554
        %579 = vst [vmem:[#allocation2 + $0x50] sm:$0x1] %v555
        %580 = vst [vmem:[#allocation2 + $0x58] sm:$0x1] %v556
        %581 = vst [vmem:[#allocation2 + $0x60] sm:$0x1] %v557
        %582 = vst [vmem:[#allocation2 + $0x68] sm:$0x1] %v558
        %583 = vst [vmem:[#allocation2 + $0x70] sm:$0x1] %v559
        %vm584 = vcmask 499712
        %585 = vst.msk [vmem:[#allocation2 + $0x78] sm:$0x1] %vm584, %v551
        %v586 = vrot.slane %v454, 7
        %v587 = vrot.slane %v462, 7
        %v588 = vrot.slane %v455, 7
        %v589 = vrot.slane %v463, 7
        %v590 = vrot.slane %v456, 7
        %v591 = vrot.slane %v464, 7
        %v592 = vrot.slane %v457, 7
        %v593 = vrot.slane %v465, 7
        %594 = vrot.lane.b32.xlu0 %v586, 96
        %v595 = vpop.permute.xlu0 %594
        %596 = vrot.lane.b32.xlu0 %v587, 96
        %v597 = vpop.permute.xlu0 %596
        %598 = vrot.lane.b32.xlu0 %v588, 96
        %v599 = vpop.permute.xlu0 %598
        %600 = vrot.lane.b32.xlu0 %v589, 96
        %v601 = vpop.permute.xlu0 %600
        %602 = vrot.lane.b32.xlu0 %v590, 96
        %v603 = vpop.permute.xlu0 %602
        %604 = vrot.lane.b32.xlu0 %v591, 96
        %v605 = vpop.permute.xlu0 %604
        %606 = vrot.lane.b32.xlu0 %v592, 96
        %v607 = vpop.permute.xlu0 %606
        %608 = vrot.lane.b32.xlu0 %v593, 96
        %v609 = vpop.permute.xlu0 %608
        %vm610 = vcmask 785408
        %v611 = vsel %vm610, %v595, %v597
        %v612 = vsel %vm610, %v597, %v599
        %v613 = vsel %vm610, %v599, %v601
        %v614 = vsel %vm610, %v601, %v603
        %v615 = vsel %vm610, %v603, %v605
        %v616 = vsel %vm610, %v605, %v607
        %v617 = vsel %vm610, %v607, %v609
        %626 = vst [vmem:[#allocation2 + $0x40] sm:$0xe] %v611
        %627 = vst [vmem:[#allocation2 + $0x48] sm:$0xe] %v612
        %628 = vst [vmem:[#allocation2 + $0x50] sm:$0xe] %v613
        %629 = vst [vmem:[#allocation2 + $0x58] sm:$0xe] %v614
        %630 = vst [vmem:[#allocation2 + $0x60] sm:$0xe] %v615
        %631 = vst [vmem:[#allocation2 + $0x68] sm:$0xe] %v616
        %632 = vst [vmem:[#allocation2 + $0x70] sm:$0xe] %v617
        %vm633 = vcmask 502785
        %634 = vst.msk [vmem:[#allocation2 + $0x78] sm:$0xe] %vm633, %v609
        %v635 = vcombine.low %v454, %v454
        %v636 = vcombine.low %v455, %v455
        %v637 = vcombine.low %v456, %v456
        %v638 = vcombine.low %v457, %v457
        %639 = vrot.lane.b32.xlu0 %v635, 95
        %v640 = vpop.permute.xlu0 %639
        %641 = vrot.lane.b32.xlu0 %v454, 95
        %v642 = vpop.permute.xlu0 %641
        %643 = vrot.lane.b32.xlu0 %v636, 95
        %v644 = vpop.permute.xlu0 %643
        %645 = vrot.lane.b32.xlu0 %v455, 95
        %v646 = vpop.permute.xlu0 %645
        %647 = vrot.lane.b32.xlu0 %v637, 95
        %v648 = vpop.permute.xlu0 %647
        %649 = vrot.lane.b32.xlu0 %v456, 95
        %v650 = vpop.permute.xlu0 %649
        %651 = vrot.lane.b32.xlu0 %v638, 95
        %v652 = vpop.permute.xlu0 %651
        %653 = vrot.lane.b32.xlu0 %v457, 95
        %v654 = vpop.permute.xlu0 %653
        %vm655 = vcmask 777216
        %v656 = vsel %vm655, %v640, %v642
        %v657 = vsel %vm655, %v642, %v644
        %v658 = vsel %vm655, %v644, %v646
        %v659 = vsel %vm655, %v646, %v648
        %v660 = vsel %vm655, %v648, %v650
        %v661 = vsel %vm655, %v650, %v652
        %v662 = vsel %vm655, %v652, %v654
        %671 = vst [vmem:[#allocation2 + $0x40] sm:$0x70] %v656
        %672 = vst [vmem:[#allocation2 + $0x48] sm:$0x70] %v657
        %673 = vst [vmem:[#allocation2 + $0x50] sm:$0x70] %v658
        %674 = vst [vmem:[#allocation2 + $0x58] sm:$0x70] %v659
        %675 = vst [vmem:[#allocation2 + $0x60] sm:$0x70] %v660
        %676 = vst [vmem:[#allocation2 + $0x68] sm:$0x70] %v661
        %677 = vst [vmem:[#allocation2 + $0x70] sm:$0x70] %v662
        %vm678 = vcmask 505860
        %679 = vst.msk [vmem:[#allocation2 + $0x78] sm:$0x70] %vm678, %v654
        %v680 = vrot.slane %v454, 1
        %v681 = vrot.slane %v462, 1
        %v682 = vrot.slane %v455, 1
        %v683 = vrot.slane %v463, 1
        %v684 = vrot.slane %v456, 1
        %v685 = vrot.slane %v464, 1
        %v686 = vrot.slane %v457, 1
        %v687 = vrot.slane %v465, 1
        %688 = vrot.lane.b32.xlu0 %v680, 94
        %v689 = vpop.permute.xlu0 %688
        %690 = vrot.lane.b32.xlu0 %v681, 94
        %v691 = vpop.permute.xlu0 %690
        %692 = vrot.lane.b32.xlu0 %v682, 94
        %v693 = vpop.permute.xlu0 %692
        %694 = vrot.lane.b32.xlu0 %v683, 94
        %v695 = vpop.permute.xlu0 %694
        %696 = vrot.lane.b32.xlu0 %v684, 94
        %v697 = vpop.permute.xlu0 %696
        %698 = vrot.lane.b32.xlu0 %v685, 94
        %v699 = vpop.permute.xlu0 %698
        %700 = vrot.lane.b32.xlu0 %v686, 94
        %v701 = vpop.permute.xlu0 %700
        %702 = vrot.lane.b32.xlu0 %v687, 94
        %v703 = vpop.permute.xlu0 %702
        %vm704 = vcmask 769024
        %v705 = vsel %vm704, %v689, %v691
        %v706 = vsel %vm704, %v691, %v693
        %v707 = vsel %vm704, %v693, %v695
        %v708 = vsel %vm704, %v695, %v697
        %v709 = vsel %vm704, %v697, %v699
        %v710 = vsel %vm704, %v699, %v701
        %v711 = vsel %vm704, %v701, %v703
        %720 = vst [vmem:[#allocation2 + $0x40] sm:$0x80] %v705
        %721 = vst [vmem:[#allocation2 + $0x48] sm:$0x80] %v706
        %722 = vst [vmem:[#allocation2 + $0x50] sm:$0x80] %v707
        %723 = vst [vmem:[#allocation2 + $0x58] sm:$0x80] %v708
        %724 = vst [vmem:[#allocation2 + $0x60] sm:$0x80] %v709
        %725 = vst [vmem:[#allocation2 + $0x68] sm:$0x80] %v710
        %726 = vst [vmem:[#allocation2 + $0x70] sm:$0x80] %v711
        %vm727 = vcmask 506887
        %728 = vst.msk [vmem:[#allocation2 + $0x78] sm:$0x80] %vm727, %v703
        %729 = vst [vmem:[#allocation2 + $0x80] sm:$0x3] %v705
        %730 = vst [vmem:[#allocation2 + $0x88] sm:$0x3] %v706
        %731 = vst [vmem:[#allocation2 + $0x90] sm:$0x3] %v707
        %732 = vst [vmem:[#allocation2 + $0x98] sm:$0x3] %v708
        %733 = vst [vmem:[#allocation2 + $0xa0] sm:$0x3] %v709
        %734 = vst [vmem:[#allocation2 + $0xa8] sm:$0x3] %v710
        %735 = vst [vmem:[#allocation2 + $0xb0] sm:$0x3] %v711
        %vm736 = vcmask 500736
        %737 = vst.msk [vmem:[#allocation2 + $0xb8] sm:$0x3] %vm736, %v703
        %v738 = vrot.slane %v454, 6
        %v739 = vrot.slane %v462, 6
        %v740 = vrot.slane %v455, 6
        %v741 = vrot.slane %v463, 6
        %v742 = vrot.slane %v456, 6
        %v743 = vrot.slane %v464, 6
        %v744 = vrot.slane %v457, 6
        %v745 = vrot.slane %v465, 6
        %746 = vrot.lane.b32.xlu0 %v738, 64
        %v747 = vpop.permute.xlu0 %746
        %748 = vrot.lane.b32.xlu0 %v739, 64
        %v749 = vpop.permute.xlu0 %748
        %750 = vrot.lane.b32.xlu0 %v740, 64
        %v751 = vpop.permute.xlu0 %750
        %752 = vrot.lane.b32.xlu0 %v741, 64
        %v753 = vpop.permute.xlu0 %752
        %754 = vrot.lane.b32.xlu0 %v742, 64
        %v755 = vpop.permute.xlu0 %754
        %756 = vrot.lane.b32.xlu0 %v743, 64
        %v757 = vpop.permute.xlu0 %756
        %758 = vrot.lane.b32.xlu0 %v744, 64
        %v759 = vpop.permute.xlu0 %758
        %760 = vrot.lane.b32.xlu0 %v745, 64
        %v761 = vpop.permute.xlu0 %760
        %vm762 = vcmask 523264
        %v763 = vsel %vm762, %v747, %v749
        %v764 = vsel %vm762, %v749, %v751
        %v765 = vsel %vm762, %v751, %v753
        %v766 = vsel %vm762, %v753, %v755
        %v767 = vsel %vm762, %v755, %v757
        %v768 = vsel %vm762, %v757, %v759
        %v769 = vsel %vm762, %v759, %v761
        %778 = vst [vmem:[#allocation2 + $0x80] sm:$0x1c] %v763
        %779 = vst [vmem:[#allocation2 + $0x88] sm:$0x1c] %v764
        %780 = vst [vmem:[#allocation2 + $0x90] sm:$0x1c] %v765
        %781 = vst [vmem:[#allocation2 + $0x98] sm:$0x1c] %v766
        %782 = vst [vmem:[#allocation2 + $0xa0] sm:$0x1c] %v767
        %783 = vst [vmem:[#allocation2 + $0xa8] sm:$0x1c] %v768
        %784 = vst [vmem:[#allocation2 + $0xb0] sm:$0x1c] %v769
        %vm785 = vcmask 503810
        %786 = vst.msk [vmem:[#allocation2 + $0xb8] sm:$0x1c] %vm785, %v761
        %v787 = vrot.slane %v454, 3
        %v788 = vrot.slane %v462, 3
        %v789 = vrot.slane %v455, 3
        %v790 = vrot.slane %v463, 3
        %v791 = vrot.slane %v456, 3
        %v792 = vrot.slane %v464, 3
        %v793 = vrot.slane %v457, 3
        %v794 = vrot.slane %v465, 3
        %795 = vrot.lane.b32.xlu0 %v787, 63
        %v796 = vpop.permute.xlu0 %795
        %797 = vrot.lane.b32.xlu0 %v788, 63
        %v798 = vpop.permute.xlu0 %797
        %799 = vrot.lane.b32.xlu0 %v789, 63
        %v800 = vpop.permute.xlu0 %799
        %801 = vrot.lane.b32.xlu0 %v790, 63
        %v802 = vpop.permute.xlu0 %801
        %803 = vrot.lane.b32.xlu0 %v791, 63
        %v804 = vpop.permute.xlu0 %803
        %805 = vrot.lane.b32.xlu0 %v792, 63
        %v806 = vpop.permute.xlu0 %805
        %807 = vrot.lane.b32.xlu0 %v793, 63
        %v808 = vpop.permute.xlu0 %807
        %809 = vrot.lane.b32.xlu0 %v794, 63
        %v810 = vpop.permute.xlu0 %809
        %vm811 = vcmask 515072
        %v812 = vsel %vm811, %v796, %v798
        %v813 = vsel %vm811, %v798, %v800
        %v814 = vsel %vm811, %v800, %v802
        %v815 = vsel %vm811, %v802, %v804
        %v816 = vsel %vm811, %v804, %v806
        %v817 = vsel %vm811, %v806, %v808
        %v818 = vsel %vm811, %v808, %v810
        %827 = vst [vmem:[#allocation2 + $0x80] sm:$0xe0] %v812
        %828 = vst [vmem:[#allocation2 + $0x88] sm:$0xe0] %v813
        %829 = vst [vmem:[#allocation2 + $0x90] sm:$0xe0] %v814
        %830 = vst [vmem:[#allocation2 + $0x98] sm:$0xe0] %v815
        %831 = vst [vmem:[#allocation2 + $0xa0] sm:$0xe0] %v816
        %832 = vst [vmem:[#allocation2 + $0xa8] sm:$0xe0] %v817
        %833 = vst [vmem:[#allocation2 + $0xb0] sm:$0xe0] %v818
        %vm834 = vcmask 506885
        %835 = vst.msk [vmem:[#allocation2 + $0xb8] sm:$0xe0] %vm834, %v810
        %836 = vrot.lane.b32.xlu0 %v454, 62
        %v837 = vpop.permute.xlu0 %836
        %838 = vrot.lane.b32.xlu0 %v462, 62
        %v839 = vpop.permute.xlu0 %838
        %840 = vrot.lane.b32.xlu0 %v455, 62
        %v841 = vpop.permute.xlu0 %840
        %842 = vrot.lane.b32.xlu0 %v463, 62
        %v843 = vpop.permute.xlu0 %842
        %844 = vrot.lane.b32.xlu0 %v456, 62
        %v845 = vpop.permute.xlu0 %844
        %846 = vrot.lane.b32.xlu0 %v464, 62
        %v847 = vpop.permute.xlu0 %846
        %848 = vrot.lane.b32.xlu0 %v457, 62
        %v849 = vpop.permute.xlu0 %848
        %850 = vrot.lane.b32.xlu0 %v465, 62
        %v851 = vpop.permute.xlu0 %850
        %vm852 = vcmask 506880
        %v853 = vsel %vm852, %v837, %v839
        %v854 = vsel %vm852, %v839, %v841
        %v855 = vsel %vm852, %v841, %v843
        %v856 = vsel %vm852, %v843, %v845
        %v857 = vsel %vm852, %v845, %v847
        %v858 = vsel %vm852, %v847, %v849
        %v859 = vsel %vm852, %v849, %v851
        %868 = vst [vmem:[#allocation2 + $0xc0] sm:$0x7] %v853
        %869 = vst [vmem:[#allocation2 + $0xc8] sm:$0x7] %v854
        %870 = vst [vmem:[#allocation2 + $0xd0] sm:$0x7] %v855
        %871 = vst [vmem:[#allocation2 + $0xd8] sm:$0x7] %v856
        %872 = vst [vmem:[#allocation2 + $0xe0] sm:$0x7] %v857
        %873 = vst [vmem:[#allocation2 + $0xe8] sm:$0x7] %v858
        %874 = vst [vmem:[#allocation2 + $0xf0] sm:$0x7] %v859
        %875 = vst.msk [vmem:[#allocation2 + $0xf8] sm:$0x7] %vm477, %v851
        %v876 = vld [vmem:[%s1] sm:$0xf]
        %v877 = vld [vmem:[%s1 + $0x4] sm:$0xf]
        %v878 = vld [vmem:[%s1 + $0x8] sm:$0xf]
        %v879 = vld [vmem:[%s1 + $0xc] sm:$0xf]
        %v880 = vld [vmem:[#allocation2] sm:$0xff]
        %v881 = vld [vmem:[#allocation2 + $0x8] sm:$0xff]
        %v882 = vld [vmem:[#allocation2 + $0x10] sm:$0xff]
        %v883 = vld [vmem:[#allocation2 + $0x18] sm:$0xff]
        %v884 = vld [vmem:[#allocation2 + $0x20] sm:$0xff]
        %v885 = vld [vmem:[#allocation2 + $0x28] sm:$0xff]
        %v886 = vld [vmem:[#allocation2 + $0x30] sm:$0xff]
        %v887 = vld [vmem:[#allocation2 + $0x38] sm:$0xff]
        %v888 = vld [vmem:[#allocation2 + $0x40] sm:$0xff]
        %v889 = vld [vmem:[#allocation2 + $0x48] sm:$0xff]
        %v890 = vld [vmem:[#allocation2 + $0x50] sm:$0xff]
        %v891 = vld [vmem:[#allocation2 + $0x58] sm:$0xff]
        %v892 = vld [vmem:[#allocation2 + $0x60] sm:$0xff]
        %v893 = vld [vmem:[#allocation2 + $0x68] sm:$0xff]
        %v894 = vld [vmem:[#allocation2 + $0x70] sm:$0xff]
        %v895 = vld [vmem:[#allocation2 + $0x78] sm:$0xff]
        %v896 = vld [vmem:[#allocation2 + $0x80] sm:$0xff]
        %v897 = vld [vmem:[#allocation2 + $0x88] sm:$0xff]
        %v898 = vld [vmem:[#allocation2 + $0x90] sm:$0xff]
        %v899 = vld [vmem:[#allocation2 + $0x98] sm:$0xff]
        %v900 = vld [vmem:[#allocation2 + $0xa0] sm:$0xff]
        %v901 = vld [vmem:[#allocation2 + $0xa8] sm:$0xff]
        %v902 = vld [vmem:[#allocation2 + $0xb0] sm:$0xff]
        %v903 = vld [vmem:[#allocation2 + $0xb8] sm:$0xff]
        %v904 = vld [vmem:[#allocation2 + $0xc0] sm:$0x7]
        %v905 = vld [vmem:[#allocation2 + $0xc8] sm:$0x7]
        %v906 = vld [vmem:[#allocation2 + $0xd0] sm:$0x7]
        %v907 = vld [vmem:[#allocation2 + $0xd8] sm:$0x7]
        %v908 = vld [vmem:[#allocation2 + $0xe0] sm:$0x7]
        %v909 = vld [vmem:[#allocation2 + $0xe8] sm:$0x7]
        %v910 = vld [vmem:[#allocation2 + $0xf0] sm:$0x7]
        %v911 = vld [vmem:[#allocation2 + $0xf8] sm:$0x7]
        %v912 = vpack.c.bf16 %v888, %v880
        %v913 = vpack.c.bf16 %v889, %v881
        %v914 = vpack.c.bf16 %v890, %v882
        %v915 = vpack.c.bf16 %v891, %v883
        %v916 = vpack.c.bf16 %v892, %v884
        %v917 = vpack.c.bf16 %v893, %v885
        %v918 = vpack.c.bf16 %v894, %v886
        %v919 = vpack.c.bf16 %v895, %v887
        %v920 = vpack.c.bf16 %v904, %v896
        %v921 = vpack.c.bf16 %v905, %v897
        %v922 = vpack.c.bf16 %v906, %v898
        %v923 = vpack.c.bf16 %v907, %v899
        %v924 = vpack.c.bf16 %v908, %v900
        %v925 = vpack.c.bf16 %v909, %v901
        %v926 = vpack.c.bf16 %v910, %v902
        %v927 = vpack.c.bf16 %v911, %v903
        %v928 = vld [vmem:[%s2] sm:$0xff]
        %v929 = vld [vmem:[%s2 + $0x8] sm:$0xff]
        %v930 = vld [vmem:[%s2 + $0x10] sm:$0xff]
        %v931 = vld [vmem:[%s2 + $0x18] sm:$0xff]
        %933 = vset.pattern.permute.xlu0 0
        %934 = vperm.xlu0 %933, %v928
        %v935 = vpop.permute.xlu0 %934
        %938 = vset.pattern.permute.xlu0 0
        %939 = vperm.xlu0 %938, %v929
        %v940 = vpop.permute.xlu0 %939
        %943 = vset.pattern.permute.xlu0 0
        %944 = vperm.xlu0 %943, %v930
        %v945 = vpop.permute.xlu0 %944
        %948 = vset.pattern.permute.xlu0 0
        %949 = vperm.xlu0 %948, %v931
        %v950 = vpop.permute.xlu0 %949
        %v956 = vunpack.c.l.b16 %v876
        %v957 = vunpack.c.l.b16 %v877
        %v958 = vunpack.c.l.b16 %v878
        %v959 = vunpack.c.l.b16 %v879
        %v960 = vpack.c.b16 %v957, %v956
        %v961 = vpack.c.b16 %v959, %v958
        %vm962 = vcmask 220160
        %v964 = vsel %vm962, %v960, 0
        %v967 = vsel %vm962, %v961, 0
        %vm969 = vcmask 1044480
        %vm970 = vcmask 1045504
        %v971 = vsel %vm969, 4294967295, 65535
        %v972 = vsel %vm970, %v971, 0
        %v974 = vand.u32 %v920, %v972
        %v977 = vand.u32 %v921, %v972
        %v980 = vand.u32 %v922, %v972
        %v983 = vand.u32 %v923, %v972
        %v986 = vand.u32 %v924, %v972
        %v989 = vand.u32 %v925, %v972
        %v992 = vand.u32 %v926, %v972
        %v995 = vand.u32 %v927, %v972
        %997 = vmatprep.subr.bf16.mxu0 0
        %998 = vmatpush1.bf16.msra.mxu0 0
        %999 = vmatprep.subr.bf16.mxu0 0
        %1000 = vmatpush1.bf16.msra.mxu0 0
        %1001 = vmatprep.subr.bf16.mxu0 0
        %1002 = vmatpush1.bf16.msra.mxu0 0
        %1003 = vmatprep.subr.bf16.mxu0 0
        %1004 = vmatpush1.bf16.msra.mxu0 0
        %1005 = vmatprep.subr.bf16.mxu0 0
        %1006 = vmatpush1.bf16.msra.mxu0 0
        %1007 = vmatprep.subr.bf16.mxu0 0
        %1008 = vmatpush1.bf16.msra.mxu0 0
        %1009 = vmatprep.subr.bf16.mxu0 %v977
        %1010 = vmatpush1.bf16.msra.mxu0 %v974
        %1011 = vmatprep.subr.bf16.mxu0 %v913
        %1012 = vmatpush1.bf16.msra.mxu0 %v912
        %1013 = vmatprep.subr.bf16.mxu0 0
        %1014 = vmatpush2.bf16.msra.mxu0 0
        %1015 = vmatprep.subr.bf16.mxu0 0
        %1016 = vmatpush2.bf16.msra.mxu0 0
        %1017 = vmatprep.subr.bf16.mxu0 0
        %1018 = vmatpush2.bf16.msra.mxu0 0
        %1019 = vmatprep.subr.bf16.mxu0 0
        %1020 = vmatpush2.bf16.msra.mxu0 0
        %1021 = vmatprep.subr.bf16.mxu0 0
        %1022 = vmatpush2.bf16.msra.mxu0 0
        %1023 = vmatprep.subr.bf16.mxu0 0
        %1024 = vmatpush2.bf16.msra.mxu0 0
        %1025 = vmatprep.subr.bf16.mxu0 0
        %1026 = vmatpush2.bf16.msra.mxu0 0
        %1027 = vmatprep.subr.bf16.mxu0 0
        %1028 = vmatpush2.bf16.msra.mxu0 0
        %1029 = vmatprep.mubr.bf16.mxu0 0
        %1030 = vmatmul.mubr.bf16.gmra.mxu0 %v964
        %v1031 = vpop.f32.mrf.mxu0
        %v1032 = vadd.f32 %v935, %v1031
        %v1033 = vpop.f32.mrf.mxu0
        %v1034 = vadd.f32 %v935, %v1033
        %v1035 = vpop.f32.mrf.mxu0
        %v1036 = vadd.f32 %v940, %v1035
        %v1037 = vpop.f32.mrf.mxu0
        %v1038 = vadd.f32 %v940, %v1037
        %1039 = vmatprep.mubr.bf16.mxu0 0
        %1040 = vmatmul.mubr.bf16.gmra.mxu0 %v967
        %v1041 = vpop.f32.mrf.mxu0
        %v1042 = vadd.f32 %v945, %v1041
        %v1043 = vpop.f32.mrf.mxu0
        %v1044 = vadd.f32 %v945, %v1043
        %v1045 = vpop.f32.mrf.mxu0
        %v1046 = vadd.f32 %v950, %v1045
        %v1047 = vpop.f32.mrf.mxu0
        %v1048 = vadd.f32 %v950, %v1047
        %1049 = vdwg.mxu0
        %1050 = vmatprep.subr.bf16.mxu0 0
        %1051 = vmatpush1.bf16.msra.mxu0 0
        %1052 = vmatprep.subr.bf16.mxu0 0
        %1053 = vmatpush1.bf16.msra.mxu0 0
        %1054 = vmatprep.subr.bf16.mxu0 0
        %1055 = vmatpush1.bf16.msra.mxu0 0
        %1056 = vmatprep.subr.bf16.mxu0 0
        %1057 = vmatpush1.bf16.msra.mxu0 0
        %1058 = vmatprep.subr.bf16.mxu0 0
        %1059 = vmatpush1.bf16.msra.mxu0 0
        %1060 = vmatprep.subr.bf16.mxu0 0
        %1061 = vmatpush1.bf16.msra.mxu0 0
        %1062 = vmatprep.subr.bf16.mxu0 %v983
        %1063 = vmatpush1.bf16.msra.mxu0 %v980
        %1064 = vmatprep.subr.bf16.mxu0 %v915
        %1065 = vmatpush1.bf16.msra.mxu0 %v914
        %1066 = vmatprep.subr.bf16.mxu0 0
        %1067 = vmatpush2.bf16.msra.mxu0 0
        %1068 = vmatprep.subr.bf16.mxu0 0
        %1069 = vmatpush2.bf16.msra.mxu0 0
        %1070 = vmatprep.subr.bf16.mxu0 0
        %1071 = vmatpush2.bf16.msra.mxu0 0
        %1072 = vmatprep.subr.bf16.mxu0 0
        %1073 = vmatpush2.bf16.msra.mxu0 0
        %1074 = vmatprep.subr.bf16.mxu0 0
        %1075 = vmatpush2.bf16.msra.mxu0 0
        %1076 = vmatprep.subr.bf16.mxu0 0
        %1077 = vmatpush2.bf16.msra.mxu0 0
        %1078 = vmatprep.subr.bf16.mxu0 0
        %1079 = vmatpush2.bf16.msra.mxu0 0
        %1080 = vmatprep.subr.bf16.mxu0 0
        %1081 = vmatpush2.bf16.msra.mxu0 0
        %1082 = vmatprep.mubr.bf16.mxu0 0
        %1083 = vmatmul.mubr.bf16.gmra.mxu0 %v964
        %v1084 = vpop.f32.mrf.mxu0
        %v1085 = vadd.f32 %v935, %v1084
        %v1086 = vpop.f32.mrf.mxu0
        %v1087 = vadd.f32 %v935, %v1086
        %v1088 = vpop.f32.mrf.mxu0
        %v1089 = vadd.f32 %v940, %v1088
        %v1090 = vpop.f32.mrf.mxu0
        %v1091 = vadd.f32 %v940, %v1090
        %1092 = vmatprep.mubr.bf16.mxu0 0
        %1093 = vmatmul.mubr.bf16.gmra.mxu0 %v967
        %v1094 = vpop.f32.mrf.mxu0
        %v1095 = vadd.f32 %v945, %v1094
        %v1096 = vpop.f32.mrf.mxu0
        %v1097 = vadd.f32 %v945, %v1096
        %v1098 = vpop.f32.mrf.mxu0
        %v1099 = vadd.f32 %v950, %v1098
        %v1100 = vpop.f32.mrf.mxu0
        %v1101 = vadd.f32 %v950, %v1100
        %1102 = vdwg.mxu0
        %1103 = vmatprep.subr.bf16.mxu0 0
        %1104 = vmatpush1.bf16.msra.mxu0 0
        %1105 = vmatprep.subr.bf16.mxu0 0
        %1106 = vmatpush1.bf16.msra.mxu0 0
        %1107 = vmatprep.subr.bf16.mxu0 0
        %1108 = vmatpush1.bf16.msra.mxu0 0
        %1109 = vmatprep.subr.bf16.mxu0 0
        %1110 = vmatpush1.bf16.msra.mxu0 0
        %1111 = vmatprep.subr.bf16.mxu0 0
        %1112 = vmatpush1.bf16.msra.mxu0 0
        %1113 = vmatprep.subr.bf16.mxu0 0
        %1114 = vmatpush1.bf16.msra.mxu0 0
        %1115 = vmatprep.subr.bf16.mxu0 %v989
        %1116 = vmatpush1.bf16.msra.mxu0 %v986
        %1117 = vmatprep.subr.bf16.mxu0 %v917
        %1118 = vmatpush1.bf16.msra.mxu0 %v916
        %1119 = vmatprep.subr.bf16.mxu0 0
        %1120 = vmatpush2.bf16.msra.mxu0 0
        %1121 = vmatprep.subr.bf16.mxu0 0
        %1122 = vmatpush2.bf16.msra.mxu0 0
        %1123 = vmatprep.subr.bf16.mxu0 0
        %1124 = vmatpush2.bf16.msra.mxu0 0
        %1125 = vmatprep.subr.bf16.mxu0 0
        %1126 = vmatpush2.bf16.msra.mxu0 0
        %1127 = vmatprep.subr.bf16.mxu0 0
        %1128 = vmatpush2.bf16.msra.mxu0 0
        %1129 = vmatprep.subr.bf16.mxu0 0
        %1130 = vmatpush2.bf16.msra.mxu0 0
        %1131 = vmatprep.subr.bf16.mxu0 0
        %1132 = vmatpush2.bf16.msra.mxu0 0
        %1133 = vmatprep.subr.bf16.mxu0 0
        %1134 = vmatpush2.bf16.msra.mxu0 0
        %1135 = vmatprep.mubr.bf16.mxu0 0
        %1136 = vmatmul.mubr.bf16.gmra.mxu0 %v964
        %v1137 = vpop.f32.mrf.mxu0
        %v1138 = vadd.f32 %v935, %v1137
        %v1139 = vpop.f32.mrf.mxu0
        %v1140 = vadd.f32 %v935, %v1139
        %v1141 = vpop.f32.mrf.mxu0
        %v1142 = vadd.f32 %v940, %v1141
        %v1143 = vpop.f32.mrf.mxu0
        %v1144 = vadd.f32 %v940, %v1143
        %1145 = vmatprep.mubr.bf16.mxu0 0
        %1146 = vmatmul.mubr.bf16.gmra.mxu0 %v967
        %v1147 = vpop.f32.mrf.mxu0
        %v1148 = vadd.f32 %v945, %v1147
        %v1149 = vpop.f32.mrf.mxu0
        %v1150 = vadd.f32 %v945, %v1149
        %v1151 = vpop.f32.mrf.mxu0
        %v1152 = vadd.f32 %v950, %v1151
        %v1153 = vpop.f32.mrf.mxu0
        %v1154 = vadd.f32 %v950, %v1153
        %1155 = vdwg.mxu0
        %1156 = vmatprep.subr.bf16.mxu0 0
        %1157 = vmatpush1.bf16.msra.mxu0 0
        %1158 = vmatprep.subr.bf16.mxu0 0
        %1159 = vmatpush1.bf16.msra.mxu0 0
        %1160 = vmatprep.subr.bf16.mxu0 0
        %1161 = vmatpush1.bf16.msra.mxu0 0
        %1162 = vmatprep.subr.bf16.mxu0 0
        %1163 = vmatpush1.bf16.msra.mxu0 0
        %1164 = vmatprep.subr.bf16.mxu0 0
        %1165 = vmatpush1.bf16.msra.mxu0 0
        %1166 = vmatprep.subr.bf16.mxu0 0
        %1167 = vmatpush1.bf16.msra.mxu0 0
        %1168 = vmatprep.subr.bf16.mxu0 %v995
        %1169 = vmatpush1.bf16.msra.mxu0 %v992
        %1170 = vmatprep.subr.bf16.mxu0 %v919
        %1171 = vmatpush1.bf16.msra.mxu0 %v918
        %1172 = vmatprep.subr.bf16.mxu0 0
        %1173 = vmatpush2.bf16.msra.mxu0 0
        %1174 = vmatprep.subr.bf16.mxu0 0
        %1175 = vmatpush2.bf16.msra.mxu0 0
        %1176 = vmatprep.subr.bf16.mxu0 0
        %1177 = vmatpush2.bf16.msra.mxu0 0
        %1178 = vmatprep.subr.bf16.mxu0 0
        %1179 = vmatpush2.bf16.msra.mxu0 0
        %1180 = vmatprep.subr.bf16.mxu0 0
        %1181 = vmatpush2.bf16.msra.mxu0 0
        %1182 = vmatprep.subr.bf16.mxu0 0
        %1183 = vmatpush2.bf16.msra.mxu0 0
        %1184 = vmatprep.subr.bf16.mxu0 0
        %1185 = vmatpush2.bf16.msra.mxu0 0
        %1186 = vmatprep.subr.bf16.mxu0 0
        %1187 = vmatpush2.bf16.msra.mxu0 0
        %1188 = vmatprep.mubr.bf16.mxu0 0
        %1189 = vmatmul.mubr.bf16.gmra.mxu0 %v964
        %v1190 = vpop.f32.mrf.mxu0
        %v1191 = vadd.f32 %v935, %v1190
        %v1192 = vpop.f32.mrf.mxu0
        %v1193 = vadd.f32 %v935, %v1192
        %v1194 = vpop.f32.mrf.mxu0
        %v1195 = vadd.f32 %v940, %v1194
        %v1196 = vpop.f32.mrf.mxu0
        %v1197 = vadd.f32 %v940, %v1196
        %1198 = vmatprep.mubr.bf16.mxu0 0
        %1199 = vmatmul.mubr.bf16.gmra.mxu0 %v967
        %v1200 = vpop.f32.mrf.mxu0
        %v1201 = vadd.f32 %v945, %v1200
        %v1202 = vpop.f32.mrf.mxu0
        %v1203 = vadd.f32 %v945, %v1202
        %v1204 = vpop.f32.mrf.mxu0
        %v1205 = vadd.f32 %v950, %v1204
        %v1206 = vpop.f32.mrf.mxu0
        %v1207 = vadd.f32 %v950, %v1206
        %1208 = vdwg.mxu0
        %v1209 = vmax.f32 %v1032, 0.0
        %v1210 = vmax.f32 %v1034, 0.0
        %v1211 = vmax.f32 %v1085, 0.0
        %v1212 = vmax.f32 %v1087, 0.0
        %v1213 = vmax.f32 %v1138, 0.0
        %v1214 = vmax.f32 %v1140, 0.0
        %v1215 = vmax.f32 %v1191, 0.0
        %v1216 = vmax.f32 %v1193, 0.0
        %v1217 = vmax.f32 %v1036, 0.0
        %v1218 = vmax.f32 %v1038, 0.0
        %v1219 = vmax.f32 %v1089, 0.0
        %v1220 = vmax.f32 %v1091, 0.0
        %v1221 = vmax.f32 %v1142, 0.0
        %v1222 = vmax.f32 %v1144, 0.0
        %v1223 = vmax.f32 %v1195, 0.0
        %v1224 = vmax.f32 %v1197, 0.0
        %v1225 = vmax.f32 %v1042, 0.0
        %v1226 = vmax.f32 %v1044, 0.0
        %v1227 = vmax.f32 %v1095, 0.0
        %v1228 = vmax.f32 %v1097, 0.0
        %v1229 = vmax.f32 %v1148, 0.0
        %v1230 = vmax.f32 %v1150, 0.0
        %v1231 = vmax.f32 %v1201, 0.0
        %v1232 = vmax.f32 %v1203, 0.0
        %v1233 = vmax.f32 %v1046, 0.0
        %v1234 = vmax.f32 %v1048, 0.0
        %v1235 = vmax.f32 %v1099, 0.0
        %v1236 = vmax.f32 %v1101, 0.0
        %v1237 = vmax.f32 %v1152, 0.0
        %v1238 = vmax.f32 %v1154, 0.0
        %v1239 = vmax.f32 %v1205, 0.0
        %v1240 = vmax.f32 %v1207, 0.0
        %1253 = vrot.lane.b32.xlu0 %v1209, 127
        %v1254 = vpop.permute.xlu0 %1253
        %1255 = vrot.lane.b32.xlu0 %v1210, 127
        %v1256 = vpop.permute.xlu0 %1255
        %1257 = vrot.lane.b32.xlu0 %v1211, 127
        %v1258 = vpop.permute.xlu0 %1257
        %1259 = vrot.lane.b32.xlu0 %v1217, 127
        %v1260 = vpop.permute.xlu0 %1259
        %1261 = vrot.lane.b32.xlu0 %v1218, 127
        %v1262 = vpop.permute.xlu0 %1261
        %1263 = vrot.lane.b32.xlu0 %v1219, 127
        %v1264 = vpop.permute.xlu0 %1263
        %1265 = vrot.lane.b32.xlu0 %v1225, 127
        %v1266 = vpop.permute.xlu0 %1265
        %1267 = vrot.lane.b32.xlu0 %v1226, 127
        %v1268 = vpop.permute.xlu0 %1267
        %1269 = vrot.lane.b32.xlu0 %v1227, 127
        %v1270 = vpop.permute.xlu0 %1269
        %1271 = vrot.lane.b32.xlu0 %v1233, 127
        %v1272 = vpop.permute.xlu0 %1271
        %1273 = vrot.lane.b32.xlu0 %v1234, 127
        %v1274 = vpop.permute.xlu0 %1273
        %1275 = vrot.lane.b32.xlu0 %v1235, 127
        %v1276 = vpop.permute.xlu0 %1275
        %v1277 = vsel %vm503, %v1254, %v1256
        %v1278 = vsel %vm503, %v1256, %v1258
        %v1279 = vsel %vm503, %v1260, %v1262
        %v1280 = vsel %vm503, %v1262, %v1264
        %v1281 = vsel %vm503, %v1266, %v1268
        %v1282 = vsel %vm503, %v1268, %v1270
        %v1283 = vsel %vm503, %v1272, %v1274
        %v1284 = vsel %vm503, %v1274, %v1276
        %v1293 = vmax.f32 %v1209, %v1277
        %v1294 = vmax.f32 %v1210, %v1278
        %v1295 = vmax.f32 %v1217, %v1279
        %v1296 = vmax.f32 %v1218, %v1280
        %v1297 = vmax.f32 %v1225, %v1281
        %v1298 = vmax.f32 %v1226, %v1282
        %v1299 = vmax.f32 %v1233, %v1283
        %v1300 = vmax.f32 %v1234, %v1284
        %v1305 = vmax.f32 %v1211, %v1258
        %v1306 = vmax.f32 %v1219, %v1264
        %v1307 = vmax.f32 %v1227, %v1270
        %v1308 = vmax.f32 %v1235, %v1276
        %1321 = vrot.lane.b32.xlu0 %v1293, 96
        %v1322 = vpop.permute.xlu0 %1321
        %1323 = vrot.lane.b32.xlu0 %v1294, 96
        %v1324 = vpop.permute.xlu0 %1323
        %1325 = vrot.lane.b32.xlu0 %v1305, 96
        %v1326 = vpop.permute.xlu0 %1325
        %1327 = vrot.lane.b32.xlu0 %v1295, 96
        %v1328 = vpop.permute.xlu0 %1327
        %1329 = vrot.lane.b32.xlu0 %v1296, 96
        %v1330 = vpop.permute.xlu0 %1329
        %1331 = vrot.lane.b32.xlu0 %v1306, 96
        %v1332 = vpop.permute.xlu0 %1331
        %1333 = vrot.lane.b32.xlu0 %v1297, 96
        %v1334 = vpop.permute.xlu0 %1333
        %1335 = vrot.lane.b32.xlu0 %v1298, 96
        %v1336 = vpop.permute.xlu0 %1335
        %1337 = vrot.lane.b32.xlu0 %v1307, 96
        %v1338 = vpop.permute.xlu0 %1337
        %1339 = vrot.lane.b32.xlu0 %v1299, 96
        %v1340 = vpop.permute.xlu0 %1339
        %1341 = vrot.lane.b32.xlu0 %v1300, 96
        %v1342 = vpop.permute.xlu0 %1341
        %1343 = vrot.lane.b32.xlu0 %v1308, 96
        %v1344 = vpop.permute.xlu0 %1343
        %v1345 = vsel %vm610, %v1322, %v1324
        %v1346 = vsel %vm610, %v1324, %v1326
        %v1347 = vsel %vm610, %v1328, %v1330
        %v1348 = vsel %vm610, %v1330, %v1332
        %v1349 = vsel %vm610, %v1334, %v1336
        %v1350 = vsel %vm610, %v1336, %v1338
        %v1351 = vsel %vm610, %v1340, %v1342
        %v1352 = vsel %vm610, %v1342, %v1344
        %v1361 = vmax.f32 %v1293, %v1345
        %v1362 = vmax.f32 %v1294, %v1346
        %v1363 = vmax.f32 %v1295, %v1347
        %v1364 = vmax.f32 %v1296, %v1348
        %v1365 = vmax.f32 %v1297, %v1349
        %v1366 = vmax.f32 %v1298, %v1350
        %v1367 = vmax.f32 %v1299, %v1351
        %v1368 = vmax.f32 %v1300, %v1352
        %v1369 = vpack.c.bf16 %v1363, %v1361
        %v1370 = vpack.c.bf16 %v1364, %v1362
        %v1371 = vpack.c.bf16 %v1367, %v1365
        %v1372 = vpack.c.bf16 %v1368, %v1366
        %v1373 = vld [vmem:[%s7] sm:$0xff]
        %v1374 = vld [vmem:[%s7 + $0x8] sm:$0xff]
        %v1375 = vld [vmem:[%s7 + $0x10] sm:$0xff]
        %v1376 = vld [vmem:[%s7 + $0x18] sm:$0xff]
        %v1377 = vld [vmem:[%s7 + $0x20] sm:$0xff]
        %v1378 = vld [vmem:[%s7 + $0x28] sm:$0xff]
        %v1379 = vld [vmem:[%s7 + $0x30] sm:$0xff]
        %v1380 = vld [vmem:[%s7 + $0x38] sm:$0xff]
        %v1381 = vld [vmem:[%s7 + $0x40] sm:$0xff]
        %v1382 = vld [vmem:[%s7 + $0x48] sm:$0xff]
        %v1383 = vld [vmem:[%s7 + $0x50] sm:$0xff]
        %v1384 = vld [vmem:[%s7 + $0x58] sm:$0xff]
        %v1385 = vld [vmem:[%s7 + $0x60] sm:$0xff]
        %v1386 = vld [vmem:[%s7 + $0x68] sm:$0xff]
        %v1387 = vld [vmem:[%s7 + $0x70] sm:$0xff]
        %v1388 = vld [vmem:[%s7 + $0x78] sm:$0xff]
        %v1389 = vld [vmem:[%s7 + $0x80] sm:$0xff]
        %v1390 = vld [vmem:[%s7 + $0x88] sm:$0xff]
        %v1391 = vld [vmem:[%s7 + $0x90] sm:$0xff]
        %v1392 = vld [vmem:[%s7 + $0x98] sm:$0xff]
        %v1393 = vld [vmem:[%s7 + $0xa0] sm:$0xff]
        %v1394 = vld [vmem:[%s7 + $0xa8] sm:$0xff]
        %v1395 = vld [vmem:[%s7 + $0xb0] sm:$0xff]
        %v1396 = vld [vmem:[%s7 + $0xb8] sm:$0xff]
        %v1397 = vld [vmem:[%s7 + $0xc0] sm:$0xff]
        %v1398 = vld [vmem:[%s7 + $0xc8] sm:$0xff]
        %v1399 = vld [vmem:[%s7 + $0xd0] sm:$0xff]
        %v1400 = vld [vmem:[%s7 + $0xd8] sm:$0xff]
        %v1401 = vld [vmem:[%s7 + $0xe0] sm:$0xff]
        %v1402 = vld [vmem:[%s7 + $0xe8] sm:$0xff]
        %v1403 = vld [vmem:[%s7 + $0xf0] sm:$0xff]
        %v1404 = vld [vmem:[%s7 + $0xf8] sm:$0xff]
        %1413 = vrot.lane.b32.xlu0 %v1212, 127
        %v1414 = vpop.permute.xlu0 %1413
        %1415 = vrot.lane.b32.xlu0 %v1213, 127
        %v1416 = vpop.permute.xlu0 %1415
        %1417 = vrot.lane.b32.xlu0 %v1220, 127
        %v1418 = vpop.permute.xlu0 %1417
        %1419 = vrot.lane.b32.xlu0 %v1221, 127
        %v1420 = vpop.permute.xlu0 %1419
        %1421 = vrot.lane.b32.xlu0 %v1228, 127
        %v1422 = vpop.permute.xlu0 %1421
        %1423 = vrot.lane.b32.xlu0 %v1229, 127
        %v1424 = vpop.permute.xlu0 %1423
        %1425 = vrot.lane.b32.xlu0 %v1236, 127
        %v1426 = vpop.permute.xlu0 %1425
        %1427 = vrot.lane.b32.xlu0 %v1237, 127
        %v1428 = vpop.permute.xlu0 %1427
        %v1429 = vsel %vm503, %v1258, %v1414
        %v1430 = vsel %vm503, %v1414, %v1416
        %v1431 = vsel %vm503, %v1264, %v1418
        %v1432 = vsel %vm503, %v1418, %v1420
        %v1433 = vsel %vm503, %v1270, %v1422
        %v1434 = vsel %vm503, %v1422, %v1424
        %v1435 = vsel %vm503, %v1276, %v1426
        %v1436 = vsel %vm503, %v1426, %v1428
        %v1445 = vmax.f32 %v1211, %v1429
        %v1446 = vmax.f32 %v1212, %v1430
        %v1447 = vmax.f32 %v1219, %v1431
        %v1448 = vmax.f32 %v1220, %v1432
        %v1449 = vmax.f32 %v1227, %v1433
        %v1450 = vmax.f32 %v1228, %v1434
        %v1451 = vmax.f32 %v1235, %v1435
        %v1452 = vmax.f32 %v1236, %v1436
        %v1457 = vmax.f32 %v1213, %v1416
        %v1458 = vmax.f32 %v1221, %v1420
        %v1459 = vmax.f32 %v1229, %v1424
        %v1460 = vmax.f32 %v1237, %v1428
        %1473 = vrot.lane.b32.xlu0 %v1445, 96
        %v1474 = vpop.permute.xlu0 %1473
        %1475 = vrot.lane.b32.xlu0 %v1446, 96
        %v1476 = vpop.permute.xlu0 %1475
        %1477 = vrot.lane.b32.xlu0 %v1457, 96
        %v1478 = vpop.permute.xlu0 %1477
        %1479 = vrot.lane.b32.xlu0 %v1447, 96
        %v1480 = vpop.permute.xlu0 %1479
        %1481 = vrot.lane.b32.xlu0 %v1448, 96
        %v1482 = vpop.permute.xlu0 %1481
        %1483 = vrot.lane.b32.xlu0 %v1458, 96
        %v1484 = vpop.permute.xlu0 %1483
        %1485 = vrot.lane.b32.xlu0 %v1449, 96
        %v1486 = vpop.permute.xlu0 %1485
        %1487 = vrot.lane.b32.xlu0 %v1450, 96
        %v1488 = vpop.permute.xlu0 %1487
        %1489 = vrot.lane.b32.xlu0 %v1459, 96
        %v1490 = vpop.permute.xlu0 %1489
        %1491 = vrot.lane.b32.xlu0 %v1451, 96
        %v1492 = vpop.permute.xlu0 %1491
        %1493 = vrot.lane.b32.xlu0 %v1452, 96
        %v1494 = vpop.permute.xlu0 %1493
        %1495 = vrot.lane.b32.xlu0 %v1460, 96
        %v1496 = vpop.permute.xlu0 %1495
        %v1497 = vsel %vm610, %v1474, %v1476
        %v1498 = vsel %vm610, %v1476, %v1478
        %v1499 = vsel %vm610, %v1480, %v1482
        %v1500 = vsel %vm610, %v1482, %v1484
        %v1501 = vsel %vm610, %v1486, %v1488
        %v1502 = vsel %vm610, %v1488, %v1490
        %v1503 = vsel %vm610, %v1492, %v1494
        %v1504 = vsel %vm610, %v1494, %v1496
        %v1513 = vmax.f32 %v1445, %v1497
        %v1514 = vmax.f32 %v1446, %v1498
        %v1515 = vmax.f32 %v1447, %v1499
        %v1516 = vmax.f32 %v1448, %v1500
        %v1517 = vmax.f32 %v1449, %v1501
        %v1518 = vmax.f32 %v1450, %v1502
        %v1519 = vmax.f32 %v1451, %v1503
        %v1520 = vmax.f32 %v1452, %v1504
        %v1521 = vpack.c.bf16 %v1515, %v1513
        %v1522 = vpack.c.bf16 %v1516, %v1514
        %v1523 = vpack.c.bf16 %v1519, %v1517
        %v1524 = vpack.c.bf16 %v1520, %v1518
        %v1525 = vld [vmem:[%s7 + $0x100] sm:$0xff]
        %v1526 = vld [vmem:[%s7 + $0x108] sm:$0xff]
        %v1527 = vld [vmem:[%s7 + $0x110] sm:$0xff]
        %v1528 = vld [vmem:[%s7 + $0x118] sm:$0xff]
        %v1529 = vld [vmem:[%s7 + $0x120] sm:$0xff]
        %v1530 = vld [vmem:[%s7 + $0x128] sm:$0xff]
        %v1531 = vld [vmem:[%s7 + $0x130] sm:$0xff]
        %v1532 = vld [vmem:[%s7 + $0x138] sm:$0xff]
        %v1533 = vld [vmem:[%s7 + $0x140] sm:$0xff]
        %v1534 = vld [vmem:[%s7 + $0x148] sm:$0xff]
        %v1535 = vld [vmem:[%s7 + $0x150] sm:$0xff]
        %v1536 = vld [vmem:[%s7 + $0x158] sm:$0xff]
        %v1537 = vld [vmem:[%s7 + $0x160] sm:$0xff]
        %v1538 = vld [vmem:[%s7 + $0x168] sm:$0xff]
        %v1539 = vld [vmem:[%s7 + $0x170] sm:$0xff]
        %v1540 = vld [vmem:[%s7 + $0x178] sm:$0xff]
        %v1541 = vld [vmem:[%s7 + $0x180] sm:$0xff]
        %v1542 = vld [vmem:[%s7 + $0x188] sm:$0xff]
        %v1543 = vld [vmem:[%s7 + $0x190] sm:$0xff]
        %v1544 = vld [vmem:[%s7 + $0x198] sm:$0xff]
        %v1545 = vld [vmem:[%s7 + $0x1a0] sm:$0xff]
        %v1546 = vld [vmem:[%s7 + $0x1a8] sm:$0xff]
        %v1547 = vld [vmem:[%s7 + $0x1b0] sm:$0xff]
        %v1548 = vld [vmem:[%s7 + $0x1b8] sm:$0xff]
        %v1549 = vld [vmem:[%s7 + $0x1c0] sm:$0xff]
        %v1550 = vld [vmem:[%s7 + $0x1c8] sm:$0xff]
        %v1551 = vld [vmem:[%s7 + $0x1d0] sm:$0xff]
        %v1552 = vld [vmem:[%s7 + $0x1d8] sm:$0xff]
        %v1553 = vld [vmem:[%s7 + $0x1e0] sm:$0xff]
        %v1554 = vld [vmem:[%s7 + $0x1e8] sm:$0xff]
        %v1555 = vld [vmem:[%s7 + $0x1f0] sm:$0xff]
        %v1556 = vld [vmem:[%s7 + $0x1f8] sm:$0xff]
        %v1589 = vunpack.c.l.b16 %v1525
        %v1590 = vunpack.c.h.b16 %v1525
        %v1591 = vunpack.c.l.b16 %v1526
        %v1592 = vunpack.c.h.b16 %v1526
        %v1593 = vunpack.c.l.b16 %v1527
        %v1594 = vunpack.c.h.b16 %v1527
        %v1595 = vunpack.c.l.b16 %v1528
        %v1596 = vunpack.c.h.b16 %v1528
        %v1597 = vunpack.c.l.b16 %v1529
        %v1598 = vunpack.c.h.b16 %v1529
        %v1599 = vunpack.c.l.b16 %v1530
        %v1600 = vunpack.c.h.b16 %v1530
        %v1601 = vunpack.c.l.b16 %v1531
        %v1602 = vunpack.c.h.b16 %v1531
        %v1603 = vunpack.c.l.b16 %v1532
        %v1604 = vunpack.c.h.b16 %v1532
        %v1605 = vunpack.c.l.b16 %v1533
        %v1606 = vunpack.c.h.b16 %v1533
        %v1607 = vunpack.c.l.b16 %v1534
        %v1608 = vunpack.c.h.b16 %v1534
        %v1609 = vunpack.c.l.b16 %v1535
        %v1610 = vunpack.c.h.b16 %v1535
        %v1611 = vunpack.c.l.b16 %v1536
        %v1612 = vunpack.c.h.b16 %v1536
        %v1613 = vunpack.c.l.b16 %v1537
        %v1614 = vunpack.c.h.b16 %v1537
        %v1615 = vunpack.c.l.b16 %v1538
        %v1616 = vunpack.c.h.b16 %v1538
        %v1617 = vunpack.c.l.b16 %v1539
        %v1618 = vunpack.c.h.b16 %v1539
        %v1619 = vunpack.c.l.b16 %v1540
        %v1620 = vunpack.c.h.b16 %v1540
        %v1621 = vunpack.c.l.b16 %v1541
        %v1622 = vunpack.c.h.b16 %v1541
        %v1623 = vunpack.c.l.b16 %v1542
        %v1624 = vunpack.c.h.b16 %v1542
        %v1625 = vunpack.c.l.b16 %v1543
        %v1626 = vunpack.c.h.b16 %v1543
        %v1627 = vunpack.c.l.b16 %v1544
        %v1628 = vunpack.c.h.b16 %v1544
        %v1629 = vunpack.c.l.b16 %v1545
        %v1630 = vunpack.c.h.b16 %v1545
        %v1631 = vunpack.c.l.b16 %v1546
        %v1632 = vunpack.c.h.b16 %v1546
        %v1633 = vunpack.c.l.b16 %v1547
        %v1634 = vunpack.c.h.b16 %v1547
        %v1635 = vunpack.c.l.b16 %v1548
        %v1636 = vunpack.c.h.b16 %v1548
        %v1637 = vunpack.c.l.b16 %v1549
        %v1638 = vunpack.c.h.b16 %v1549
        %v1639 = vunpack.c.l.b16 %v1550
        %v1640 = vunpack.c.h.b16 %v1550
        %v1641 = vunpack.c.l.b16 %v1551
        %v1642 = vunpack.c.h.b16 %v1551
        %v1643 = vunpack.c.l.b16 %v1552
        %v1644 = vunpack.c.h.b16 %v1552
        %v1645 = vunpack.c.l.b16 %v1553
        %v1646 = vunpack.c.h.b16 %v1553
        %v1647 = vunpack.c.l.b16 %v1554
        %v1648 = vunpack.c.h.b16 %v1554
        %v1649 = vunpack.c.l.b16 %v1555
        %v1650 = vunpack.c.h.b16 %v1555
        %v1651 = vunpack.c.l.b16 %v1556
        %v1652 = vunpack.c.h.b16 %v1556
        %v1653 = vpack.c.b16 %v1591, %v1589
        %v1654 = vpack.c.b16 %v1592, %v1590
        %v1655 = vpack.c.b16 %v1595, %v1593
        %v1656 = vpack.c.b16 %v1596, %v1594
        %v1657 = vpack.c.b16 %v1599, %v1597
        %v1658 = vpack.c.b16 %v1600, %v1598
        %v1659 = vpack.c.b16 %v1603, %v1601
        %v1660 = vpack.c.b16 %v1604, %v1602
        %v1661 = vpack.c.b16 %v1607, %v1605
        %v1662 = vpack.c.b16 %v1608, %v1606
        %v1663 = vpack.c.b16 %v1611, %v1609
        %v1664 = vpack.c.b16 %v1612, %v1610
        %v1665 = vpack.c.b16 %v1615, %v1613
        %v1666 = vpack.c.b16 %v1616, %v1614
        %v1667 = vpack.c.b16 %v1619, %v1617
        %v1668 = vpack.c.b16 %v1620, %v1618
        %v1669 = vpack.c.b16 %v1623, %v1621
        %v1670 = vpack.c.b16 %v1624, %v1622
        %v1671 = vpack.c.b16 %v1627, %v1625
        %v1672 = vpack.c.b16 %v1628, %v1626
        %v1673 = vpack.c.b16 %v1631, %v1629
        %v1674 = vpack.c.b16 %v1632, %v1630
        %v1675 = vpack.c.b16 %v1635, %v1633
        %v1676 = vpack.c.b16 %v1636, %v1634
        %v1677 = vpack.c.b16 %v1639, %v1637
        %v1678 = vpack.c.b16 %v1640, %v1638
        %v1679 = vpack.c.b16 %v1643, %v1641
        %v1680 = vpack.c.b16 %v1644, %v1642
        %v1681 = vpack.c.b16 %v1647, %v1645
        %v1682 = vpack.c.b16 %v1648, %v1646
        %v1683 = vpack.c.b16 %v1651, %v1649
        %v1684 = vpack.c.b16 %v1652, %v1650
        %1717 = vmatprep.subr.bf16.mxu0 %v1668
        %1718 = vmatpush1.bf16.msra.mxu0 %v1667
        %1719 = vmatprep.subr.bf16.mxu0 %v1666
        %1720 = vmatpush1.bf16.msra.mxu0 %v1665
        %1721 = vmatprep.subr.bf16.mxu0 %v1664
        %1722 = vmatpush1.bf16.msra.mxu0 %v1663
        %1723 = vmatprep.subr.bf16.mxu0 %v1662
        %1724 = vmatpush1.bf16.msra.mxu0 %v1661
        %1725 = vmatprep.subr.bf16.mxu0 %v1660
        %1726 = vmatpush1.bf16.msra.mxu0 %v1659
        %1727 = vmatprep.subr.bf16.mxu0 %v1658
        %1728 = vmatpush1.bf16.msra.mxu0 %v1657
        %1729 = vmatprep.subr.bf16.mxu0 %v1656
        %1730 = vmatpush1.bf16.msra.mxu0 %v1655
        %1731 = vmatprep.subr.bf16.mxu0 %v1654
        %1732 = vmatpush1.bf16.msra.mxu0 %v1653
        %1733 = vmatprep.subr.bf16.mxu0 %v1684
        %1734 = vmatpush2.bf16.msra.mxu0 %v1683
        %1735 = vmatprep.subr.bf16.mxu0 %v1682
        %1736 = vmatpush2.bf16.msra.mxu0 %v1681
        %1737 = vmatprep.subr.bf16.mxu0 %v1680
        %1738 = vmatpush2.bf16.msra.mxu0 %v1679
        %1739 = vmatprep.subr.bf16.mxu0 %v1678
        %1740 = vmatpush2.bf16.msra.mxu0 %v1677
        %1741 = vmatprep.subr.bf16.mxu0 %v1676
        %1742 = vmatpush2.bf16.msra.mxu0 %v1675
        %1743 = vmatprep.subr.bf16.mxu0 %v1674
        %1744 = vmatpush2.bf16.msra.mxu0 %v1673
        %1745 = vmatprep.subr.bf16.mxu0 %v1672
        %1746 = vmatpush2.bf16.msra.mxu0 %v1671
        %1747 = vmatprep.subr.bf16.mxu0 %v1670
        %1748 = vmatpush2.bf16.msra.mxu0 %v1669
        %1749 = vmatprep.mubr.bf16.mxu0 %v1522
        %1750 = vmatmul.mubr.bf16.gmra.mxu0 %v1521
        %v1751 = vpop.f32.mrf.mxu0
        %v1752 = vadd.f32 0.0, %v1751
        %v1753 = vpop.f32.mrf.mxu0
        %v1754 = vadd.f32 0.0, %v1753
        %v1755 = vpop.f32.mrf.mxu0
        %v1756 = vadd.f32 0.0, %v1755
        %v1757 = vpop.f32.mrf.mxu0
        %v1758 = vadd.f32 0.0, %v1757
        %1759 = vmatprep.mubr.bf16.mxu0 %v1524
        %1760 = vmatmul.mubr.bf16.gmra.mxu0 %v1523
        %v1761 = vpop.f32.mrf.mxu0
        %v1762 = vadd.f32 0.0, %v1761
        %v1763 = vpop.f32.mrf.mxu0
        %v1764 = vadd.f32 0.0, %v1763
        %v1765 = vpop.f32.mrf.mxu0
        %v1766 = vadd.f32 0.0, %v1765
        %v1767 = vpop.f32.mrf.mxu0
        %v1768 = vadd.f32 0.0, %v1767
        %1769 = vdwg.mxu0
        %v1802 = vunpack.c.l.b16 %v1373
        %v1803 = vunpack.c.h.b16 %v1373
        %v1804 = vunpack.c.l.b16 %v1374
        %v1805 = vunpack.c.h.b16 %v1374
        %v1806 = vunpack.c.l.b16 %v1375
        %v1807 = vunpack.c.h.b16 %v1375
        %v1808 = vunpack.c.l.b16 %v1376
        %v1809 = vunpack.c.h.b16 %v1376
        %v1810 = vunpack.c.l.b16 %v1377
        %v1811 = vunpack.c.h.b16 %v1377
        %v1812 = vunpack.c.l.b16 %v1378
        %v1813 = vunpack.c.h.b16 %v1378
        %v1814 = vunpack.c.l.b16 %v1379
        %v1815 = vunpack.c.h.b16 %v1379
        %v1816 = vunpack.c.l.b16 %v1380
        %v1817 = vunpack.c.h.b16 %v1380
        %v1818 = vunpack.c.l.b16 %v1381
        %v1819 = vunpack.c.h.b16 %v1381
        %v1820 = vunpack.c.l.b16 %v1382
        %v1821 = vunpack.c.h.b16 %v1382
        %v1822 = vunpack.c.l.b16 %v1383
        %v1823 = vunpack.c.h.b16 %v1383
        %v1824 = vunpack.c.l.b16 %v1384
        %v1825 = vunpack.c.h.b16 %v1384
        %v1826 = vunpack.c.l.b16 %v1385
        %v1827 = vunpack.c.h.b16 %v1385
        %v1828 = vunpack.c.l.b16 %v1386
        %v1829 = vunpack.c.h.b16 %v1386
        %v1830 = vunpack.c.l.b16 %v1387
        %v1831 = vunpack.c.h.b16 %v1387
        %v1832 = vunpack.c.l.b16 %v1388
        %v1833 = vunpack.c.h.b16 %v1388
        %v1834 = vunpack.c.l.b16 %v1389
        %v1835 = vunpack.c.h.b16 %v1389
        %v1836 = vunpack.c.l.b16 %v1390
        %v1837 = vunpack.c.h.b16 %v1390
        %v1838 = vunpack.c.l.b16 %v1391
        %v1839 = vunpack.c.h.b16 %v1391
        %v1840 = vunpack.c.l.b16 %v1392
        %v1841 = vunpack.c.h.b16 %v1392
        %v1842 = vunpack.c.l.b16 %v1393
        %v1843 = vunpack.c.h.b16 %v1393
        %v1844 = vunpack.c.l.b16 %v1394
        %v1845 = vunpack.c.h.b16 %v1394
        %v1846 = vunpack.c.l.b16 %v1395
        %v1847 = vunpack.c.h.b16 %v1395
        %v1848 = vunpack.c.l.b16 %v1396
        %v1849 = vunpack.c.h.b16 %v1396
        %v1850 = vunpack.c.l.b16 %v1397
        %v1851 = vunpack.c.h.b16 %v1397
        %v1852 = vunpack.c.l.b16 %v1398
        %v1853 = vunpack.c.h.b16 %v1398
        %v1854 = vunpack.c.l.b16 %v1399
        %v1855 = vunpack.c.h.b16 %v1399
        %v1856 = vunpack.c.l.b16 %v1400
        %v1857 = vunpack.c.h.b16 %v1400
        %v1858 = vunpack.c.l.b16 %v1401
        %v1859 = vunpack.c.h.b16 %v1401
        %v1860 = vunpack.c.l.b16 %v1402
        %v1861 = vunpack.c.h.b16 %v1402
        %v1862 = vunpack.c.l.b16 %v1403
        %v1863 = vunpack.c.h.b16 %v1403
        %v1864 = vunpack.c.l.b16 %v1404
        %v1865 = vunpack.c.h.b16 %v1404
        %v1866 = vpack.c.b16 %v1804, %v1802
        %v1867 = vpack.c.b16 %v1805, %v1803
        %v1868 = vpack.c.b16 %v1808, %v1806
        %v1869 = vpack.c.b16 %v1809, %v1807
        %v1870 = vpack.c.b16 %v1812, %v1810
        %v1871 = vpack.c.b16 %v1813, %v1811
        %v1872 = vpack.c.b16 %v1816, %v1814
        %v1873 = vpack.c.b16 %v1817, %v1815
        %v1874 = vpack.c.b16 %v1820, %v1818
        %v1875 = vpack.c.b16 %v1821, %v1819
        %v1876 = vpack.c.b16 %v1824, %v1822
        %v1877 = vpack.c.b16 %v1825, %v1823
        %v1878 = vpack.c.b16 %v1828, %v1826
        %v1879 = vpack.c.b16 %v1829, %v1827
        %v1880 = vpack.c.b16 %v1832, %v1830
        %v1881 = vpack.c.b16 %v1833, %v1831
        %v1882 = vpack.c.b16 %v1836, %v1834
        %v1883 = vpack.c.b16 %v1837, %v1835
        %v1884 = vpack.c.b16 %v1840, %v1838
        %v1885 = vpack.c.b16 %v1841, %v1839
        %v1886 = vpack.c.b16 %v1844, %v1842
        %v1887 = vpack.c.b16 %v1845, %v1843
        %v1888 = vpack.c.b16 %v1848, %v1846
        %v1889 = vpack.c.b16 %v1849, %v1847
        %v1890 = vpack.c.b16 %v1852, %v1850
        %v1891 = vpack.c.b16 %v1853, %v1851
        %v1892 = vpack.c.b16 %v1856, %v1854
        %v1893 = vpack.c.b16 %v1857, %v1855
        %v1894 = vpack.c.b16 %v1860, %v1858
        %v1895 = vpack.c.b16 %v1861, %v1859
        %v1896 = vpack.c.b16 %v1864, %v1862
        %v1897 = vpack.c.b16 %v1865, %v1863
        %1930 = vmatprep.subr.bf16.mxu0 %v1881
        %1931 = vmatpush1.bf16.msra.mxu0 %v1880
        %1932 = vmatprep.subr.bf16.mxu0 %v1879
        %1933 = vmatpush1.bf16.msra.mxu0 %v1878
        %1934 = vmatprep.subr.bf16.mxu0 %v1877
        %1935 = vmatpush1.bf16.msra.mxu0 %v1876
        %1936 = vmatprep.subr.bf16.mxu0 %v1875
        %1937 = vmatpush1.bf16.msra.mxu0 %v1874
        %1938 = vmatprep.subr.bf16.mxu0 %v1873
        %1939 = vmatpush1.bf16.msra.mxu0 %v1872
        %1940 = vmatprep.subr.bf16.mxu0 %v1871
        %1941 = vmatpush1.bf16.msra.mxu0 %v1870
        %1942 = vmatprep.subr.bf16.mxu0 %v1869
        %1943 = vmatpush1.bf16.msra.mxu0 %v1868
        %1944 = vmatprep.subr.bf16.mxu0 %v1867
        %1945 = vmatpush1.bf16.msra.mxu0 %v1866
        %1946 = vmatprep.subr.bf16.mxu0 %v1897
        %1947 = vmatpush2.bf16.msra.mxu0 %v1896
        %1948 = vmatprep.subr.bf16.mxu0 %v1895
        %1949 = vmatpush2.bf16.msra.mxu0 %v1894
        %1950 = vmatprep.subr.bf16.mxu0 %v1893
        %1951 = vmatpush2.bf16.msra.mxu0 %v1892
        %1952 = vmatprep.subr.bf16.mxu0 %v1891
        %1953 = vmatpush2.bf16.msra.mxu0 %v1890
        %1954 = vmatprep.subr.bf16.mxu0 %v1889
        %1955 = vmatpush2.bf16.msra.mxu0 %v1888
        %1956 = vmatprep.subr.bf16.mxu0 %v1887
        %1957 = vmatpush2.bf16.msra.mxu0 %v1886
        %1958 = vmatprep.subr.bf16.mxu0 %v1885
        %1959 = vmatpush2.bf16.msra.mxu0 %v1884
        %1960 = vmatprep.subr.bf16.mxu0 %v1883
        %1961 = vmatpush2.bf16.msra.mxu0 %v1882
        %1962 = vmatprep.mubr.bf16.mxu0 %v1370
        %1963 = vmatmul.mubr.bf16.gmra.mxu0 %v1369
        %v1964 = vpop.f32.mrf.mxu0
        %v1965 = vadd.f32 %v1752, %v1964
        %v1966 = vpop.f32.mrf.mxu0
        %v1967 = vadd.f32 %v1754, %v1966
        %v1968 = vpop.f32.mrf.mxu0
        %v1969 = vadd.f32 %v1756, %v1968
        %v1970 = vpop.f32.mrf.mxu0
        %v1971 = vadd.f32 %v1758, %v1970
        %1972 = vmatprep.mubr.bf16.mxu0 %v1372
        %1973 = vmatmul.mubr.bf16.gmra.mxu0 %v1371
        %v1974 = vpop.f32.mrf.mxu0
        %v1975 = vadd.f32 %v1762, %v1974
        %v1976 = vpop.f32.mrf.mxu0
        %v1977 = vadd.f32 %v1764, %v1976
        %v1978 = vpop.f32.mrf.mxu0
        %v1979 = vadd.f32 %v1766, %v1978
        %v1980 = vpop.f32.mrf.mxu0
        %v1981 = vadd.f32 %v1768, %v1980
        %1982 = vdwg.mxu0
        %1991 = vrot.lane.b32.xlu0 %v1214, 127
        %v1992 = vpop.permute.xlu0 %1991
        %1993 = vrot.lane.b32.xlu0 %v1215, 127
        %v1994 = vpop.permute.xlu0 %1993
        %1995 = vrot.lane.b32.xlu0 %v1222, 127
        %v1996 = vpop.permute.xlu0 %1995
        %1997 = vrot.lane.b32.xlu0 %v1223, 127
        %v1998 = vpop.permute.xlu0 %1997
        %1999 = vrot.lane.b32.xlu0 %v1230, 127
        %v2000 = vpop.permute.xlu0 %1999
        %2001 = vrot.lane.b32.xlu0 %v1231, 127
        %v2002 = vpop.permute.xlu0 %2001
        %2003 = vrot.lane.b32.xlu0 %v1238, 127
        %v2004 = vpop.permute.xlu0 %2003
        %2005 = vrot.lane.b32.xlu0 %v1239, 127
        %v2006 = vpop.permute.xlu0 %2005
        %v2007 = vsel %vm503, %v1416, %v1992
        %v2008 = vsel %vm503, %v1992, %v1994
        %v2009 = vsel %vm503, %v1420, %v1996
        %v2010 = vsel %vm503, %v1996, %v1998
        %v2011 = vsel %vm503, %v1424, %v2000
        %v2012 = vsel %vm503, %v2000, %v2002
        %v2013 = vsel %vm503, %v1428, %v2004
        %v2014 = vsel %vm503, %v2004, %v2006
        %v2023 = vmax.f32 %v1213, %v2007
        %v2024 = vmax.f32 %v1214, %v2008
        %v2025 = vmax.f32 %v1221, %v2009
        %v2026 = vmax.f32 %v1222, %v2010
        %v2027 = vmax.f32 %v1229, %v2011
        %v2028 = vmax.f32 %v1230, %v2012
        %v2029 = vmax.f32 %v1237, %v2013
        %v2030 = vmax.f32 %v1238, %v2014
        %v2035 = vmax.f32 %v1215, %v1994
        %v2036 = vmax.f32 %v1223, %v1998
        %v2037 = vmax.f32 %v1231, %v2002
        %v2038 = vmax.f32 %v1239, %v2006
        %2051 = vrot.lane.b32.xlu0 %v2023, 96
        %v2052 = vpop.permute.xlu0 %2051
        %2053 = vrot.lane.b32.xlu0 %v2024, 96
        %v2054 = vpop.permute.xlu0 %2053
        %2055 = vrot.lane.b32.xlu0 %v2035, 96
        %v2056 = vpop.permute.xlu0 %2055
        %2057 = vrot.lane.b32.xlu0 %v2025, 96
        %v2058 = vpop.permute.xlu0 %2057
        %2059 = vrot.lane.b32.xlu0 %v2026, 96
        %v2060 = vpop.permute.xlu0 %2059
        %2061 = vrot.lane.b32.xlu0 %v2036, 96
        %v2062 = vpop.permute.xlu0 %2061
        %2063 = vrot.lane.b32.xlu0 %v2027, 96
        %v2064 = vpop.permute.xlu0 %2063
        %2065 = vrot.lane.b32.xlu0 %v2028, 96
        %v2066 = vpop.permute.xlu0 %2065
        %2067 = vrot.lane.b32.xlu0 %v2037, 96
        %v2068 = vpop.permute.xlu0 %2067
        %2069 = vrot.lane.b32.xlu0 %v2029, 96
        %v2070 = vpop.permute.xlu0 %2069
        %2071 = vrot.lane.b32.xlu0 %v2030, 96
        %v2072 = vpop.permute.xlu0 %2071
        %2073 = vrot.lane.b32.xlu0 %v2038, 96
        %v2074 = vpop.permute.xlu0 %2073
        %v2075 = vsel %vm610, %v2052, %v2054
        %v2076 = vsel %vm610, %v2054, %v2056
        %v2077 = vsel %vm610, %v2058, %v2060
        %v2078 = vsel %vm610, %v2060, %v2062
        %v2079 = vsel %vm610, %v2064, %v2066
        %v2080 = vsel %vm610, %v2066, %v2068
        %v2081 = vsel %vm610, %v2070, %v2072
        %v2082 = vsel %vm610, %v2072, %v2074
        %v2091 = vmax.f32 %v2023, %v2075
        %v2092 = vmax.f32 %v2024, %v2076
        %v2093 = vmax.f32 %v2025, %v2077
        %v2094 = vmax.f32 %v2026, %v2078
        %v2095 = vmax.f32 %v2027, %v2079
        %v2096 = vmax.f32 %v2028, %v2080
        %v2097 = vmax.f32 %v2029, %v2081
        %v2098 = vmax.f32 %v2030, %v2082
        %v2099 = vpack.c.bf16 %v2093, %v2091
        %v2100 = vpack.c.bf16 %v2094, %v2092
        %v2101 = vpack.c.bf16 %v2097, %v2095
        %v2102 = vpack.c.bf16 %v2098, %v2096
        %v2103 = vld [vmem:[%s7 + $0x200] sm:$0xff]
        %v2104 = vld [vmem:[%s7 + $0x208] sm:$0xff]
        %v2105 = vld [vmem:[%s7 + $0x210] sm:$0xff]
        %v2106 = vld [vmem:[%s7 + $0x218] sm:$0xff]
        %v2107 = vld [vmem:[%s7 + $0x220] sm:$0xff]
        %v2108 = vld [vmem:[%s7 + $0x228] sm:$0xff]
        %v2109 = vld [vmem:[%s7 + $0x230] sm:$0xff]
        %v2110 = vld [vmem:[%s7 + $0x238] sm:$0xff]
        %v2111 = vld [vmem:[%s7 + $0x240] sm:$0xff]
        %v2112 = vld [vmem:[%s7 + $0x248] sm:$0xff]
        %v2113 = vld [vmem:[%s7 + $0x250] sm:$0xff]
        %v2114 = vld [vmem:[%s7 + $0x258] sm:$0xff]
        %v2115 = vld [vmem:[%s7 + $0x260] sm:$0xff]
        %v2116 = vld [vmem:[%s7 + $0x268] sm:$0xff]
        %v2117 = vld [vmem:[%s7 + $0x270] sm:$0xff]
        %v2118 = vld [vmem:[%s7 + $0x278] sm:$0xff]
        %v2119 = vld [vmem:[%s7 + $0x280] sm:$0xff]
        %v2120 = vld [vmem:[%s7 + $0x288] sm:$0xff]
        %v2121 = vld [vmem:[%s7 + $0x290] sm:$0xff]
        %v2122 = vld [vmem:[%s7 + $0x298] sm:$0xff]
        %v2123 = vld [vmem:[%s7 + $0x2a0] sm:$0xff]
        %v2124 = vld [vmem:[%s7 + $0x2a8] sm:$0xff]
        %v2125 = vld [vmem:[%s7 + $0x2b0] sm:$0xff]
        %v2126 = vld [vmem:[%s7 + $0x2b8] sm:$0xff]
        %v2127 = vld [vmem:[%s7 + $0x2c0] sm:$0xff]
        %v2128 = vld [vmem:[%s7 + $0x2c8] sm:$0xff]
        %v2129 = vld [vmem:[%s7 + $0x2d0] sm:$0xff]
        %v2130 = vld [vmem:[%s7 + $0x2d8] sm:$0xff]
        %v2131 = vld [vmem:[%s7 + $0x2e0] sm:$0xff]
        %v2132 = vld [vmem:[%s7 + $0x2e8] sm:$0xff]
        %v2133 = vld [vmem:[%s7 + $0x2f0] sm:$0xff]
        %v2134 = vld [vmem:[%s7 + $0x2f8] sm:$0xff]
        %v2167 = vunpack.c.l.b16 %v2103
        %v2168 = vunpack.c.h.b16 %v2103
        %v2169 = vunpack.c.l.b16 %v2104
        %v2170 = vunpack.c.h.b16 %v2104
        %v2171 = vunpack.c.l.b16 %v2105
        %v2172 = vunpack.c.h.b16 %v2105
        %v2173 = vunpack.c.l.b16 %v2106
        %v2174 = vunpack.c.h.b16 %v2106
        %v2175 = vunpack.c.l.b16 %v2107
        %v2176 = vunpack.c.h.b16 %v2107
        %v2177 = vunpack.c.l.b16 %v2108
        %v2178 = vunpack.c.h.b16 %v2108
        %v2179 = vunpack.c.l.b16 %v2109
        %v2180 = vunpack.c.h.b16 %v2109
        %v2181 = vunpack.c.l.b16 %v2110
        %v2182 = vunpack.c.h.b16 %v2110
        %v2183 = vunpack.c.l.b16 %v2111
        %v2184 = vunpack.c.h.b16 %v2111
        %v2185 = vunpack.c.l.b16 %v2112
        %v2186 = vunpack.c.h.b16 %v2112
        %v2187 = vunpack.c.l.b16 %v2113
        %v2188 = vunpack.c.h.b16 %v2113
        %v2189 = vunpack.c.l.b16 %v2114
        %v2190 = vunpack.c.h.b16 %v2114
        %v2191 = vunpack.c.l.b16 %v2115
        %v2192 = vunpack.c.h.b16 %v2115
        %v2193 = vunpack.c.l.b16 %v2116
        %v2194 = vunpack.c.h.b16 %v2116
        %v2195 = vunpack.c.l.b16 %v2117
        %v2196 = vunpack.c.h.b16 %v2117
        %v2197 = vunpack.c.l.b16 %v2118
        %v2198 = vunpack.c.h.b16 %v2118
        %v2199 = vunpack.c.l.b16 %v2119
        %v2200 = vunpack.c.h.b16 %v2119
        %v2201 = vunpack.c.l.b16 %v2120
        %v2202 = vunpack.c.h.b16 %v2120
        %v2203 = vunpack.c.l.b16 %v2121
        %v2204 = vunpack.c.h.b16 %v2121
        %v2205 = vunpack.c.l.b16 %v2122
        %v2206 = vunpack.c.h.b16 %v2122
        %v2207 = vunpack.c.l.b16 %v2123
        %v2208 = vunpack.c.h.b16 %v2123
        %v2209 = vunpack.c.l.b16 %v2124
        %v2210 = vunpack.c.h.b16 %v2124
        %v2211 = vunpack.c.l.b16 %v2125
        %v2212 = vunpack.c.h.b16 %v2125
        %v2213 = vunpack.c.l.b16 %v2126
        %v2214 = vunpack.c.h.b16 %v2126
        %v2215 = vunpack.c.l.b16 %v2127
        %v2216 = vunpack.c.h.b16 %v2127
        %v2217 = vunpack.c.l.b16 %v2128
        %v2218 = vunpack.c.h.b16 %v2128
        %v2219 = vunpack.c.l.b16 %v2129
        %v2220 = vunpack.c.h.b16 %v2129
        %v2221 = vunpack.c.l.b16 %v2130
        %v2222 = vunpack.c.h.b16 %v2130
        %v2223 = vunpack.c.l.b16 %v2131
        %v2224 = vunpack.c.h.b16 %v2131
        %v2225 = vunpack.c.l.b16 %v2132
        %v2226 = vunpack.c.h.b16 %v2132
        %v2227 = vunpack.c.l.b16 %v2133
        %v2228 = vunpack.c.h.b16 %v2133
        %v2229 = vunpack.c.l.b16 %v2134
        %v2230 = vunpack.c.h.b16 %v2134
        %v2231 = vpack.c.b16 %v2169, %v2167
        %v2232 = vpack.c.b16 %v2170, %v2168
        %v2233 = vpack.c.b16 %v2173, %v2171
        %v2234 = vpack.c.b16 %v2174, %v2172
        %v2235 = vpack.c.b16 %v2177, %v2175
        %v2236 = vpack.c.b16 %v2178, %v2176
        %v2237 = vpack.c.b16 %v2181, %v2179
        %v2238 = vpack.c.b16 %v2182, %v2180
        %v2239 = vpack.c.b16 %v2185, %v2183
        %v2240 = vpack.c.b16 %v2186, %v2184
        %v2241 = vpack.c.b16 %v2189, %v2187
        %v2242 = vpack.c.b16 %v2190, %v2188
        %v2243 = vpack.c.b16 %v2193, %v2191
        %v2244 = vpack.c.b16 %v2194, %v2192
        %v2245 = vpack.c.b16 %v2197, %v2195
        %v2246 = vpack.c.b16 %v2198, %v2196
        %v2247 = vpack.c.b16 %v2201, %v2199
        %v2248 = vpack.c.b16 %v2202, %v2200
        %v2249 = vpack.c.b16 %v2205, %v2203
        %v2250 = vpack.c.b16 %v2206, %v2204
        %v2251 = vpack.c.b16 %v2209, %v2207
        %v2252 = vpack.c.b16 %v2210, %v2208
        %v2253 = vpack.c.b16 %v2213, %v2211
        %v2254 = vpack.c.b16 %v2214, %v2212
        %v2255 = vpack.c.b16 %v2217, %v2215
        %v2256 = vpack.c.b16 %v2218, %v2216
        %v2257 = vpack.c.b16 %v2221, %v2219
        %v2258 = vpack.c.b16 %v2222, %v2220
        %v2259 = vpack.c.b16 %v2225, %v2223
        %v2260 = vpack.c.b16 %v2226, %v2224
        %v2261 = vpack.c.b16 %v2229, %v2227
        %v2262 = vpack.c.b16 %v2230, %v2228
        %2295 = vmatprep.subr.bf16.mxu0 %v2246
        %2296 = vmatpush1.bf16.msra.mxu0 %v2245
        %2297 = vmatprep.subr.bf16.mxu0 %v2244
        %2298 = vmatpush1.bf16.msra.mxu0 %v2243
        %2299 = vmatprep.subr.bf16.mxu0 %v2242
        %2300 = vmatpush1.bf16.msra.mxu0 %v2241
        %2301 = vmatprep.subr.bf16.mxu0 %v2240
        %2302 = vmatpush1.bf16.msra.mxu0 %v2239
        %2303 = vmatprep.subr.bf16.mxu0 %v2238
        %2304 = vmatpush1.bf16.msra.mxu0 %v2237
        %2305 = vmatprep.subr.bf16.mxu0 %v2236
        %2306 = vmatpush1.bf16.msra.mxu0 %v2235
        %2307 = vmatprep.subr.bf16.mxu0 %v2234
        %2308 = vmatpush1.bf16.msra.mxu0 %v2233
        %2309 = vmatprep.subr.bf16.mxu0 %v2232
        %2310 = vmatpush1.bf16.msra.mxu0 %v2231
        %2311 = vmatprep.subr.bf16.mxu0 %v2262
        %2312 = vmatpush2.bf16.msra.mxu0 %v2261
        %2313 = vmatprep.subr.bf16.mxu0 %v2260
        %2314 = vmatpush2.bf16.msra.mxu0 %v2259
        %2315 = vmatprep.subr.bf16.mxu0 %v2258
        %2316 = vmatpush2.bf16.msra.mxu0 %v2257
        %2317 = vmatprep.subr.bf16.mxu0 %v2256
        %2318 = vmatpush2.bf16.msra.mxu0 %v2255
        %2319 = vmatprep.subr.bf16.mxu0 %v2254
        %2320 = vmatpush2.bf16.msra.mxu0 %v2253
        %2321 = vmatprep.subr.bf16.mxu0 %v2252
        %2322 = vmatpush2.bf16.msra.mxu0 %v2251
        %2323 = vmatprep.subr.bf16.mxu0 %v2250
        %2324 = vmatpush2.bf16.msra.mxu0 %v2249
        %2325 = vmatprep.subr.bf16.mxu0 %v2248
        %2326 = vmatpush2.bf16.msra.mxu0 %v2247
        %2327 = vmatprep.mubr.bf16.mxu0 %v2100
        %2328 = vmatmul.mubr.bf16.gmra.mxu0 %v2099
        %v2329 = vpop.f32.mrf.mxu0
        %v2330 = vadd.f32 0.0, %v2329
        %v2331 = vpop.f32.mrf.mxu0
        %v2332 = vadd.f32 0.0, %v2331
        %v2333 = vpop.f32.mrf.mxu0
        %v2334 = vadd.f32 0.0, %v2333
        %v2335 = vpop.f32.mrf.mxu0
        %v2336 = vadd.f32 0.0, %v2335
        %2337 = vmatprep.mubr.bf16.mxu0 %v2102
        %2338 = vmatmul.mubr.bf16.gmra.mxu0 %v2101
        %v2339 = vpop.f32.mrf.mxu0
        %v2340 = vadd.f32 0.0, %v2339
        %v2341 = vpop.f32.mrf.mxu0
        %v2342 = vadd.f32 0.0, %v2341
        %v2343 = vpop.f32.mrf.mxu0
        %v2344 = vadd.f32 0.0, %v2343
        %v2345 = vpop.f32.mrf.mxu0
        %v2346 = vadd.f32 0.0, %v2345
        %2347 = vdwg.mxu0
        %v2348 = vadd.f32 %v1965, %v2330
        %v2349 = vadd.f32 %v1967, %v2332
        %v2350 = vadd.f32 %v1969, %v2334
        %v2351 = vadd.f32 %v1971, %v2336
        %v2352 = vadd.f32 %v1975, %v2340
        %v2353 = vadd.f32 %v1977, %v2342
        %v2354 = vadd.f32 %v1979, %v2344
        %v2355 = vadd.f32 %v1981, %v2346
        %2360 = vrot.lane.b32.xlu0 %v1216, 127
        %v2361 = vpop.permute.xlu0 %2360
        %2362 = vrot.lane.b32.xlu0 %v1224, 127
        %v2363 = vpop.permute.xlu0 %2362
        %2364 = vrot.lane.b32.xlu0 %v1232, 127
        %v2365 = vpop.permute.xlu0 %2364
        %2366 = vrot.lane.b32.xlu0 %v1240, 127
        %v2367 = vpop.permute.xlu0 %2366
        %v2368 = vsel %vm503, %v1994, %v2361
        %v2369 = vsel %vm503, %v1998, %v2363
        %v2370 = vsel %vm503, %v2002, %v2365
        %v2371 = vsel %vm503, %v2006, %v2367
        %v2380 = vmax.f32 %v1215, %v2368
        %v2381 = vmax.f32 %v1216, %v2361
        %v2382 = vmax.f32 %v1223, %v2369
        %v2383 = vmax.f32 %v1224, %v2363
        %v2384 = vmax.f32 %v1231, %v2370
        %v2385 = vmax.f32 %v1232, %v2365
        %v2386 = vmax.f32 %v1239, %v2371
        %v2387 = vmax.f32 %v1240, %v2367
        %2396 = vrot.lane.b32.xlu0 %v2380, 96
        %v2397 = vpop.permute.xlu0 %2396
        %2398 = vrot.lane.b32.xlu0 %v2381, 96
        %v2399 = vpop.permute.xlu0 %2398
        %2400 = vrot.lane.b32.xlu0 %v2382, 96
        %v2401 = vpop.permute.xlu0 %2400
        %2402 = vrot.lane.b32.xlu0 %v2383, 96
        %v2403 = vpop.permute.xlu0 %2402
        %2404 = vrot.lane.b32.xlu0 %v2384, 96
        %v2405 = vpop.permute.xlu0 %2404
        %2406 = vrot.lane.b32.xlu0 %v2385, 96
        %v2407 = vpop.permute.xlu0 %2406
        %2408 = vrot.lane.b32.xlu0 %v2386, 96
        %v2409 = vpop.permute.xlu0 %2408
        %2410 = vrot.lane.b32.xlu0 %v2387, 96
        %v2411 = vpop.permute.xlu0 %2410
        %v2412 = vsel %vm610, %v2397, %v2399
        %v2413 = vsel %vm610, %v2401, %v2403
        %v2414 = vsel %vm610, %v2405, %v2407
        %v2415 = vsel %vm610, %v2409, %v2411
        %v2424 = vmax.f32 %v2380, %v2412
        %v2425 = vmax.f32 %v2381, %v2399
        %v2426 = vmax.f32 %v2382, %v2413
        %v2427 = vmax.f32 %v2383, %v2403
        %v2428 = vmax.f32 %v2384, %v2414
        %v2429 = vmax.f32 %v2385, %v2407
        %v2430 = vmax.f32 %v2386, %v2415
        %v2431 = vmax.f32 %v2387, %v2411
        %v2432 = vpack.c.bf16 %v2426, %v2424
        %v2433 = vpack.c.bf16 %v2427, %v2425
        %v2434 = vpack.c.bf16 %v2430, %v2428
        %v2435 = vpack.c.bf16 %v2431, %v2429
        %v2436 = vld [vmem:[%s7 + $0x300] sm:$0xff]
        %v2437 = vld [vmem:[%s7 + $0x308] sm:$0xff]
        %v2438 = vld [vmem:[%s7 + $0x310] sm:$0xff]
        %v2439 = vld [vmem:[%s7 + $0x318] sm:$0xff]
        %v2440 = vld [vmem:[%s7 + $0x320] sm:$0xff]
        %v2441 = vld [vmem:[%s7 + $0x328] sm:$0xff]
        %v2442 = vld [vmem:[%s7 + $0x330] sm:$0xff]
        %v2443 = vld [vmem:[%s7 + $0x338] sm:$0xff]
        %v2444 = vld [vmem:[%s7 + $0x340] sm:$0xff]
        %v2445 = vld [vmem:[%s7 + $0x348] sm:$0xff]
        %v2446 = vld [vmem:[%s7 + $0x350] sm:$0xff]
        %v2447 = vld [vmem:[%s7 + $0x358] sm:$0xff]
        %v2448 = vld [vmem:[%s7 + $0x360] sm:$0xff]
        %v2449 = vld [vmem:[%s7 + $0x368] sm:$0xff]
        %v2450 = vld [vmem:[%s7 + $0x370] sm:$0xff]
        %v2451 = vld [vmem:[%s7 + $0x378] sm:$0xff]
        %v2452 = vld [vmem:[%s7 + $0x380] sm:$0xff]
        %v2453 = vld [vmem:[%s7 + $0x388] sm:$0xff]
        %v2454 = vld [vmem:[%s7 + $0x390] sm:$0xff]
        %v2455 = vld [vmem:[%s7 + $0x398] sm:$0x77]
        %v2476 = vunpack.c.l.b16 %v2436
        %v2477 = vunpack.c.h.b16 %v2436
        %v2478 = vunpack.c.l.b16 %v2437
        %v2479 = vunpack.c.h.b16 %v2437
        %v2480 = vunpack.c.l.b16 %v2438
        %v2481 = vunpack.c.h.b16 %v2438
        %v2482 = vunpack.c.l.b16 %v2439
        %v2483 = vunpack.c.h.b16 %v2439
        %v2484 = vunpack.c.l.b16 %v2440
        %v2485 = vunpack.c.h.b16 %v2440
        %v2486 = vunpack.c.l.b16 %v2441
        %v2487 = vunpack.c.h.b16 %v2441
        %v2488 = vunpack.c.l.b16 %v2442
        %v2489 = vunpack.c.h.b16 %v2442
        %v2490 = vunpack.c.l.b16 %v2443
        %v2491 = vunpack.c.h.b16 %v2443
        %v2492 = vunpack.c.l.b16 %v2444
        %v2493 = vunpack.c.h.b16 %v2444
        %v2494 = vunpack.c.l.b16 %v2445
        %v2495 = vunpack.c.h.b16 %v2445
        %v2496 = vunpack.c.l.b16 %v2446
        %v2497 = vunpack.c.h.b16 %v2446
        %v2498 = vunpack.c.l.b16 %v2447
        %v2499 = vunpack.c.h.b16 %v2447
        %v2500 = vunpack.c.l.b16 %v2448
        %v2501 = vunpack.c.h.b16 %v2448
        %v2502 = vunpack.c.l.b16 %v2449
        %v2503 = vunpack.c.h.b16 %v2449
        %v2504 = vunpack.c.l.b16 %v2450
        %v2505 = vunpack.c.h.b16 %v2450
        %v2506 = vunpack.c.l.b16 %v2451
        %v2507 = vunpack.c.h.b16 %v2451
        %v2508 = vunpack.c.l.b16 %v2452
        %v2509 = vunpack.c.h.b16 %v2452
        %v2510 = vunpack.c.l.b16 %v2453
        %v2511 = vunpack.c.h.b16 %v2453
        %v2512 = vunpack.c.l.b16 %v2454
        %v2513 = vunpack.c.h.b16 %v2454
        %v2514 = vunpack.c.l.b16 %v2455
        %v2515 = vunpack.c.h.b16 %v2455
        %v2516 = vpack.c.b16 %v2478, %v2476
        %v2517 = vpack.c.b16 %v2479, %v2477
        %v2518 = vpack.c.b16 %v2482, %v2480
        %v2519 = vpack.c.b16 %v2483, %v2481
        %v2520 = vpack.c.b16 %v2486, %v2484
        %v2521 = vpack.c.b16 %v2487, %v2485
        %v2522 = vpack.c.b16 %v2490, %v2488
        %v2523 = vpack.c.b16 %v2491, %v2489
        %v2524 = vpack.c.b16 %v2494, %v2492
        %v2525 = vpack.c.b16 %v2495, %v2493
        %v2526 = vpack.c.b16 %v2498, %v2496
        %v2527 = vpack.c.b16 %v2499, %v2497
        %v2528 = vpack.c.b16 %v2502, %v2500
        %v2529 = vpack.c.b16 %v2503, %v2501
        %v2530 = vpack.c.b16 %v2506, %v2504
        %v2531 = vpack.c.b16 %v2507, %v2505
        %v2532 = vpack.c.b16 %v2510, %v2508
        %v2533 = vpack.c.b16 %v2511, %v2509
        %v2534 = vpack.c.b16 %v2514, %v2512
        %v2535 = vpack.c.b16 %v2515, %v2513
        %vm2554 = vcmask 236544
        %v2556 = vsel %vm2554, %v2433, 0
        %v2559 = vsel %vm2554, %v2435, 0
        %vm2561 = vcmask 1046528
        %v2562 = vsel %vm970, 4294967295, 65535
        %v2563 = vsel %vm2561, %v2562, 0
        %v2565 = vand.u32 %v2534, %v2563
        %v2568 = vand.u32 %v2535, %v2563
        %2570 = vmatprep.subr.bf16.mxu0 %v2531
        %2571 = vmatpush1.bf16.msra.mxu0 %v2530
        %2572 = vmatprep.subr.bf16.mxu0 %v2529
        %2573 = vmatpush1.bf16.msra.mxu0 %v2528
        %2574 = vmatprep.subr.bf16.mxu0 %v2527
        %2575 = vmatpush1.bf16.msra.mxu0 %v2526
        %2576 = vmatprep.subr.bf16.mxu0 %v2525
        %2577 = vmatpush1.bf16.msra.mxu0 %v2524
        %2578 = vmatprep.subr.bf16.mxu0 %v2523
        %2579 = vmatpush1.bf16.msra.mxu0 %v2522
        %2580 = vmatprep.subr.bf16.mxu0 %v2521
        %2581 = vmatpush1.bf16.msra.mxu0 %v2520
        %2582 = vmatprep.subr.bf16.mxu0 %v2519
        %2583 = vmatpush1.bf16.msra.mxu0 %v2518
        %2584 = vmatprep.subr.bf16.mxu0 %v2517
        %2585 = vmatpush1.bf16.msra.mxu0 %v2516
        %2586 = vmatprep.subr.bf16.mxu0 0
        %2587 = vmatpush2.bf16.msra.mxu0 0
        %2588 = vmatprep.subr.bf16.mxu0 0
        %2589 = vmatpush2.bf16.msra.mxu0 0
        %2590 = vmatprep.subr.bf16.mxu0 0
        %2591 = vmatpush2.bf16.msra.mxu0 0
        %2592 = vmatprep.subr.bf16.mxu0 0
        %2593 = vmatpush2.bf16.msra.mxu0 0
        %2594 = vmatprep.subr.bf16.mxu0 0
        %2595 = vmatpush2.bf16.msra.mxu0 0
        %2596 = vmatprep.subr.bf16.mxu0 0
        %2597 = vmatpush2.bf16.msra.mxu0 0
        %2598 = vmatprep.subr.bf16.mxu0 %v2568
        %2599 = vmatpush2.bf16.msra.mxu0 %v2565
        %2600 = vmatprep.subr.bf16.mxu0 %v2533
        %2601 = vmatpush2.bf16.msra.mxu0 %v2532
        %2602 = vmatprep.mubr.bf16.mxu0 %v2556
        %2603 = vmatmul.mubr.bf16.gmra.mxu0 %v2432
        %v2604 = vpop.f32.mrf.mxu0
        %v2605 = vadd.f32 0.0, %v2604
        %v2606 = vpop.f32.mrf.mxu0
        %v2607 = vadd.f32 0.0, %v2606
        %v2608 = vpop.f32.mrf.mxu0
        %v2609 = vadd.f32 0.0, %v2608
        %v2610 = vpop.f32.mrf.mxu0
        %v2611 = vadd.f32 0.0, %v2610
        %2612 = vmatprep.mubr.bf16.mxu0 %v2559
        %2613 = vmatmul.mubr.bf16.gmra.mxu0 %v2434
        %v2614 = vpop.f32.mrf.mxu0
        %v2615 = vadd.f32 0.0, %v2614
        %v2616 = vpop.f32.mrf.mxu0
        %v2617 = vadd.f32 0.0, %v2616
        %v2618 = vpop.f32.mrf.mxu0
        %v2619 = vadd.f32 0.0, %v2618
        %v2620 = vpop.f32.mrf.mxu0
        %v2621 = vadd.f32 0.0, %v2620
        %2622 = vdwg.mxu0
        %v2623 = vadd.f32 %v2348, %v2605
        %v2624 = vadd.f32 %v2349, %v2607
        %v2625 = vadd.f32 %v2350, %v2609
        %v2626 = vadd.f32 %v2351, %v2611
        %v2627 = vadd.f32 %v2352, %v2615
        %v2628 = vadd.f32 %v2353, %v2617
        %v2629 = vadd.f32 %v2354, %v2619
        %v2630 = vadd.f32 %v2355, %v2621
        %v2631 = vpack.c.bf16 %v2625, %v2623
        %v2632 = vpack.c.bf16 %v2626, %v2624
        %v2633 = vpack.c.bf16 %v2629, %v2627
        %v2634 = vpack.c.bf16 %v2630, %v2628
        %v2639 = vunpack.c.l.b16 %v2631
        %v2640 = vunpack.c.l.b16 %v2632
        %v2641 = vunpack.c.h.b16 %v2631
        %v2642 = vunpack.c.h.b16 %v2632
        %v2643 = vunpack.c.l.b16 %v2633
        %v2644 = vunpack.c.l.b16 %v2634
        %v2645 = vunpack.c.h.b16 %v2633
        %v2646 = vunpack.c.h.b16 %v2634
        %v2647 = vpack.c.b16 %v2640, %v2639
        %v2648 = vpack.c.b16 %v2642, %v2641
        %v2649 = vpack.c.b16 %v2644, %v2643
        %v2650 = vpack.c.b16 %v2646, %v2645
        %vm2655 = vcmask 1043456
        %vm2656 = vcmask 531460
        %vm2657 = vmor %vm2656, %vm2655
        %2658 = vst.msk [vmem:[#allocation3] sm:$0xff] %vm2657, %v2647
        %2659 = vst.msk [vmem:[#allocation3 + $0x8] sm:$0xff] %vm2657, %v2648
        %2660 = vst.msk [vmem:[#allocation3 + $0x10] sm:$0xff] %vm2657, %v2649
        %2661 = vst.msk [vmem:[#allocation3 + $0x18] sm:$0xff] %vm2657, %v2650
        %2662 = vrot.lane.b32.xlu0 %v2647, 127
        %v2663 = vpop.permute.xlu0 %2662
        %2664 = vrot.lane.b32.xlu0 %v2648, 127
        %v2665 = vpop.permute.xlu0 %2664
        %2666 = vrot.lane.b32.xlu0 %v2649, 127
        %v2667 = vpop.permute.xlu0 %2666
        %2668 = vrot.lane.b32.xlu0 %v2650, 127
        %v2669 = vpop.permute.xlu0 %2668
        %v2670 = vrot.slane %v2663, 4
        %v2671 = vrot.slane %v2665, 4
        %v2672 = vrot.slane %v2667, 4
        %v2673 = vrot.slane %v2669, 4
        %vm2674 = vcmask 1039360
        %v2675 = vsel %vm2674, %v2663, %v2670
        %v2676 = vsel %vm2674, %v2665, %v2671
        %v2677 = vsel %vm2674, %v2667, %v2672
        %v2678 = vsel %vm2674, %v2669, %v2673
        %2683 = vst.msk [vmem:[#allocation3 + $0x20] sm:$0xff] %vm2657, %v2675
        %2684 = vst.msk [vmem:[#allocation3 + $0x28] sm:$0xff] %vm2657, %v2676
        %2685 = vst.msk [vmem:[#allocation3 + $0x30] sm:$0xff] %vm2657, %v2677
        %2686 = vst.msk [vmem:[#allocation3 + $0x38] sm:$0xff] %vm2657, %v2678
        %2687 = vrot.lane.b32.xlu0 %v2647, 126
        %v2688 = vpop.permute.xlu0 %2687
        %2689 = vrot.lane.b32.xlu0 %v2648, 126
        %v2690 = vpop.permute.xlu0 %2689
        %2691 = vrot.lane.b32.xlu0 %v2649, 126
        %v2692 = vpop.permute.xlu0 %2691
        %2693 = vrot.lane.b32.xlu0 %v2650, 126
        %v2694 = vpop.permute.xlu0 %2693
        %v2695 = vrot.slane %v2688, 4
        %v2696 = vrot.slane %v2690, 4
        %v2697 = vrot.slane %v2692, 4
        %v2698 = vrot.slane %v2694, 4
        %vm2699 = vcmask 1031168
        %v2700 = vsel %vm2699, %v2688, %v2695
        %v2701 = vsel %vm2699, %v2690, %v2696
        %v2702 = vsel %vm2699, %v2692, %v2697
        %v2703 = vsel %vm2699, %v2694, %v2698
        %2708 = vst.msk [vmem:[#allocation3 + $0x40] sm:$0xff] %vm2657, %v2700
        %2709 = vst.msk [vmem:[#allocation3 + $0x48] sm:$0xff] %vm2657, %v2701
        %2710 = vst.msk [vmem:[#allocation3 + $0x50] sm:$0xff] %vm2657, %v2702
        %2711 = vst.msk [vmem:[#allocation3 + $0x58] sm:$0xff] %vm2657, %v2703
        %2712 = vrot.lane.b32.xlu0 %v2647, 113
        %v2713 = vpop.permute.xlu0 %2712
        %2714 = vrot.lane.b32.xlu0 %v2648, 113
        %v2715 = vpop.permute.xlu0 %2714
        %2716 = vrot.lane.b32.xlu0 %v2649, 113
        %v2717 = vpop.permute.xlu0 %2716
        %2718 = vrot.lane.b32.xlu0 %v2650, 113
        %v2719 = vpop.permute.xlu0 %2718
        %v2720 = vrot.slane %v2713, 4
        %v2721 = vrot.slane %v2715, 4
        %v2722 = vrot.slane %v2717, 4
        %v2723 = vrot.slane %v2719, 4
        %vm2724 = vcmask 924672
        %v2725 = vsel %vm2724, %v2713, %v2720
        %v2726 = vsel %vm2724, %v2715, %v2721
        %v2727 = vsel %vm2724, %v2717, %v2722
        %v2728 = vsel %vm2724, %v2719, %v2723
        %2733 = vst.msk [vmem:[#allocation3 + $0x60] sm:$0xff] %vm2657, %v2725
        %2734 = vst.msk [vmem:[#allocation3 + $0x68] sm:$0xff] %vm2657, %v2726
        %2735 = vst.msk [vmem:[#allocation3 + $0x70] sm:$0xff] %vm2657, %v2727
        %2736 = vst.msk [vmem:[#allocation3 + $0x78] sm:$0xff] %vm2657, %v2728
        %2737 = vrot.lane.b32.xlu0 %v2647, 112
        %v2738 = vpop.permute.xlu0 %2737
        %2739 = vrot.lane.b32.xlu0 %v2648, 112
        %v2740 = vpop.permute.xlu0 %2739
        %2741 = vrot.lane.b32.xlu0 %v2649, 112
        %v2742 = vpop.permute.xlu0 %2741
        %2743 = vrot.lane.b32.xlu0 %v2650, 112
        %v2744 = vpop.permute.xlu0 %2743
        %v2745 = vrot.slane %v2738, 4
        %v2746 = vrot.slane %v2740, 4
        %v2747 = vrot.slane %v2742, 4
        %v2748 = vrot.slane %v2744, 4
        %vm2749 = vcmask 916480
        %v2750 = vsel %vm2749, %v2738, %v2745
        %v2751 = vsel %vm2749, %v2740, %v2746
        %v2752 = vsel %vm2749, %v2742, %v2747
        %v2753 = vsel %vm2749, %v2744, %v2748
        %2758 = vst.msk [vmem:[#allocation3 + $0x80] sm:$0xff] %vm2657, %v2750
        %2759 = vst.msk [vmem:[#allocation3 + $0x88] sm:$0xff] %vm2657, %v2751
        %2760 = vst.msk [vmem:[#allocation3 + $0x90] sm:$0xff] %vm2657, %v2752
        %2761 = vst.msk [vmem:[#allocation3 + $0x98] sm:$0xff] %vm2657, %v2753
        %2762 = vrot.lane.b32.xlu0 %v2647, 111
        %v2763 = vpop.permute.xlu0 %2762
        %2764 = vrot.lane.b32.xlu0 %v2648, 111
        %v2765 = vpop.permute.xlu0 %2764
        %2766 = vrot.lane.b32.xlu0 %v2649, 111
        %v2767 = vpop.permute.xlu0 %2766
        %2768 = vrot.lane.b32.xlu0 %v2650, 111
        %v2769 = vpop.permute.xlu0 %2768
        %v2770 = vrot.slane %v2763, 4
        %v2771 = vrot.slane %v2765, 4
        %v2772 = vrot.slane %v2767, 4
        %v2773 = vrot.slane %v2769, 4
        %vm2774 = vcmask 908288
        %v2775 = vsel %vm2774, %v2763, %v2770
        %v2776 = vsel %vm2774, %v2765, %v2771
        %v2777 = vsel %vm2774, %v2767, %v2772
        %v2778 = vsel %vm2774, %v2769, %v2773
        %2783 = vst.msk [vmem:[#allocation3 + $0xa0] sm:$0xff] %vm2657, %v2775
        %2784 = vst.msk [vmem:[#allocation3 + $0xa8] sm:$0xff] %vm2657, %v2776
        %2785 = vst.msk [vmem:[#allocation3 + $0xb0] sm:$0xff] %vm2657, %v2777
        %2786 = vst.msk [vmem:[#allocation3 + $0xb8] sm:$0xff] %vm2657, %v2778
        %2787 = vrot.lane.b32.xlu0 %v2647, 98
        %v2788 = vpop.permute.xlu0 %2787
        %2789 = vrot.lane.b32.xlu0 %v2648, 98
        %v2790 = vpop.permute.xlu0 %2789
        %2791 = vrot.lane.b32.xlu0 %v2649, 98
        %v2792 = vpop.permute.xlu0 %2791
        %2793 = vrot.lane.b32.xlu0 %v2650, 98
        %v2794 = vpop.permute.xlu0 %2793
        %v2795 = vrot.slane %v2788, 4
        %v2796 = vrot.slane %v2790, 4
        %v2797 = vrot.slane %v2792, 4
        %v2798 = vrot.slane %v2794, 4
        %vm2799 = vcmask 801792
        %v2800 = vsel %vm2799, %v2788, %v2795
        %v2801 = vsel %vm2799, %v2790, %v2796
        %v2802 = vsel %vm2799, %v2792, %v2797
        %v2803 = vsel %vm2799, %v2794, %v2798
        %2808 = vst.msk [vmem:[#allocation3 + $0xc0] sm:$0xff] %vm2657, %v2800
        %2809 = vst.msk [vmem:[#allocation3 + $0xc8] sm:$0xff] %vm2657, %v2801
        %2810 = vst.msk [vmem:[#allocation3 + $0xd0] sm:$0xff] %vm2657, %v2802
        %2811 = vst.msk [vmem:[#allocation3 + $0xd8] sm:$0xff] %vm2657, %v2803
        %2812 = vrot.lane.b32.xlu0 %v2647, 97
        %v2813 = vpop.permute.xlu0 %2812
        %2814 = vrot.lane.b32.xlu0 %v2648, 97
        %v2815 = vpop.permute.xlu0 %2814
        %2816 = vrot.lane.b32.xlu0 %v2649, 97
        %v2817 = vpop.permute.xlu0 %2816
        %2818 = vrot.lane.b32.xlu0 %v2650, 97
        %v2819 = vpop.permute.xlu0 %2818
        %v2820 = vrot.slane %v2813, 4
        %v2821 = vrot.slane %v2815, 4
        %v2822 = vrot.slane %v2817, 4
        %v2823 = vrot.slane %v2819, 4
        %vm2824 = vcmask 793600
        %v2825 = vsel %vm2824, %v2813, %v2820
        %v2826 = vsel %vm2824, %v2815, %v2821
        %v2827 = vsel %vm2824, %v2817, %v2822
        %v2828 = vsel %vm2824, %v2819, %v2823
        %2833 = vst.msk [vmem:[#allocation3 + $0xe0] sm:$0xff] %vm2657, %v2825
        %2834 = vst.msk [vmem:[#allocation3 + $0xe8] sm:$0xff] %vm2657, %v2826
        %2835 = vst.msk [vmem:[#allocation3 + $0xf0] sm:$0xff] %vm2657, %v2827
        %2836 = vst.msk [vmem:[#allocation3 + $0xf8] sm:$0xff] %vm2657, %v2828
        %2837 = vrot.lane.b32.xlu0 %v2647, 96
        %v2838 = vpop.permute.xlu0 %2837
        %2839 = vrot.lane.b32.xlu0 %v2648, 96
        %v2840 = vpop.permute.xlu0 %2839
        %2841 = vrot.lane.b32.xlu0 %v2649, 96
        %v2842 = vpop.permute.xlu0 %2841
        %2843 = vrot.lane.b32.xlu0 %v2650, 96
        %v2844 = vpop.permute.xlu0 %2843
        %v2845 = vrot.slane %v2838, 4
        %v2846 = vrot.slane %v2840, 4
        %v2847 = vrot.slane %v2842, 4
        %v2848 = vrot.slane %v2844, 4
        %vm2849 = vcmask 785408
        %v2850 = vsel %vm2849, %v2838, %v2845
        %v2851 = vsel %vm2849, %v2840, %v2846
        %v2852 = vsel %vm2849, %v2842, %v2847
        %v2853 = vsel %vm2849, %v2844, %v2848
        %2858 = vst.msk [vmem:[#allocation3 + $0x100] sm:$0xff] %vm2657, %v2850
        %2859 = vst.msk [vmem:[#allocation3 + $0x108] sm:$0xff] %vm2657, %v2851
        %2860 = vst.msk [vmem:[#allocation3 + $0x110] sm:$0xff] %vm2657, %v2852
        %2861 = vst.msk [vmem:[#allocation3 + $0x118] sm:$0xff] %vm2657, %v2853
        %v2862 = vld [vmem:[#allocation6] sm:$0xff]
        %v2863 = vld [vmem:[#allocation6 + $0x8] sm:$0xf]
        %v2864 = vld [vmem:[#allocation6 + $0xc] sm:$0xff]
        %v2865 = vld [vmem:[#allocation6 + $0x14] sm:$0xf]
        %v2866 = vld [vmem:[#allocation6 + $0x18] sm:$0xff]
        %v2867 = vld [vmem:[#allocation6 + $0x20] sm:$0xf]
        %v2868 = vld [vmem:[#allocation6 + $0x24] sm:$0xff]
        %v2869 = vld [vmem:[#allocation6 + $0x2c] sm:$0xf]
        %v2870 = vld [vmem:[#allocation6 + $0x30] sm:$0xff]
        %v2871 = vld [vmem:[#allocation6 + $0x38] sm:$0xf]
        %v2872 = vld [vmem:[#allocation6 + $0x3c] sm:$0xff]
        %v2873 = vld [vmem:[#allocation6 + $0x44] sm:$0xf]
        %v2874 = vld [vmem:[#allocation6 + $0x48] sm:$0xff]
        %v2875 = vld [vmem:[#allocation6 + $0x50] sm:$0xf]
        %v2876 = vld [vmem:[#allocation6 + $0x54] sm:$0xff]
        %v2877 = vld [vmem:[#allocation6 + $0x5c] sm:$0xf]
        %v2878 = vld [vmem:[#allocation3] sm:$0xff]
        %v2879 = vld [vmem:[#allocation3 + $0x8] sm:$0xff]
        %v2880 = vld [vmem:[#allocation3 + $0x10] sm:$0xff]
        %v2881 = vld [vmem:[#allocation3 + $0x18] sm:$0xff]
        %v2882 = vld [vmem:[#allocation3 + $0x20] sm:$0xff]
        %v2883 = vld [vmem:[#allocation3 + $0x28] sm:$0xff]
        %v2884 = vld [vmem:[#allocation3 + $0x30] sm:$0xff]
        %v2885 = vld [vmem:[#allocation3 + $0x38] sm:$0xff]
        %v2886 = vld [vmem:[#allocation3 + $0x40] sm:$0xff]
        %v2887 = vld [vmem:[#allocation3 + $0x48] sm:$0xff]
        %v2888 = vld [vmem:[#allocation3 + $0x50] sm:$0xff]
        %v2889 = vld [vmem:[#allocation3 + $0x58] sm:$0xff]
        %v2890 = vld [vmem:[#allocation3 + $0x60] sm:$0xff]
        %v2891 = vld [vmem:[#allocation3 + $0x68] sm:$0xff]
        %v2892 = vld [vmem:[#allocation3 + $0x70] sm:$0xff]
        %v2893 = vld [vmem:[#allocation3 + $0x78] sm:$0xff]
        %v2894 = vld [vmem:[#allocation3 + $0x80] sm:$0xff]
        %v2895 = vld [vmem:[#allocation3 + $0x88] sm:$0xff]
        %v2896 = vld [vmem:[#allocation3 + $0x90] sm:$0xff]
        %v2897 = vld [vmem:[#allocation3 + $0x98] sm:$0xff]
        %v2898 = vld [vmem:[#allocation3 + $0xa0] sm:$0xff]
        %v2899 = vld [vmem:[#allocation3 + $0xa8] sm:$0xff]
        %v2900 = vld [vmem:[#allocation3 + $0xb0] sm:$0xff]
        %v2901 = vld [vmem:[#allocation3 + $0xb8] sm:$0xff]
        %v2902 = vld [vmem:[#allocation3 + $0xc0] sm:$0xff]
        %v2903 = vld [vmem:[#allocation3 + $0xc8] sm:$0xff]
        %v2904 = vld [vmem:[#allocation3 + $0xd0] sm:$0xff]
        %v2905 = vld [vmem:[#allocation3 + $0xd8] sm:$0xff]
        %v2906 = vld [vmem:[#allocation3 + $0xe0] sm:$0xff]
        %v2907 = vld [vmem:[#allocation3 + $0xe8] sm:$0xff]
        %v2908 = vld [vmem:[#allocation3 + $0xf0] sm:$0xff]
        %v2909 = vld [vmem:[#allocation3 + $0xf8] sm:$0xff]
        %v2910 = vld [vmem:[#allocation3 + $0x100] sm:$0xff]
        %v2911 = vld [vmem:[#allocation3 + $0x108] sm:$0xff]
        %v2912 = vld [vmem:[#allocation3 + $0x110] sm:$0xff]
        %v2913 = vld [vmem:[#allocation3 + $0x118] sm:$0xff]
        %v2914 = vld [vmem:[%s4] sm:$0xff]
        %v2915 = vld [vmem:[%s4 + $0x8] sm:$0xff]
        %v2916 = vld [vmem:[%s4 + $0x10] sm:$0xff]
        %v2917 = vld [vmem:[%s4 + $0x18] sm:$0xff]
        %v2918 = vld [vmem:[%s4 + $0x20] sm:$0xff]
        %v2919 = vld [vmem:[%s4 + $0x28] sm:$0xff]
        %v2920 = vld [vmem:[%s4 + $0x30] sm:$0xff]
        %v2921 = vld [vmem:[%s4 + $0x38] sm:$0xff]
        %2923 = vset.pattern.permute.xlu0 0
        %2924 = vperm.xlu0 %2923, %v2914
        %v2925 = vpop.permute.xlu0 %2924
        %2928 = vset.pattern.permute.xlu0 0
        %2929 = vperm.xlu0 %2928, %v2915
        %v2930 = vpop.permute.xlu0 %2929
        %2933 = vset.pattern.permute.xlu0 0
        %2934 = vperm.xlu0 %2933, %v2916
        %v2935 = vpop.permute.xlu0 %2934
        %2938 = vset.pattern.permute.xlu0 0
        %2939 = vperm.xlu0 %2938, %v2917
        %v2940 = vpop.permute.xlu0 %2939
        %2943 = vset.pattern.permute.xlu0 0
        %2944 = vperm.xlu0 %2943, %v2918
        %v2945 = vpop.permute.xlu0 %2944
        %2948 = vset.pattern.permute.xlu0 0
        %2949 = vperm.xlu0 %2948, %v2919
        %v2950 = vpop.permute.xlu0 %2949
        %2953 = vset.pattern.permute.xlu0 0
        %2954 = vperm.xlu0 %2953, %v2920
        %v2955 = vpop.permute.xlu0 %2954
        %2958 = vset.pattern.permute.xlu0 0
        %2959 = vperm.xlu0 %2958, %v2921
        %v2960 = vpop.permute.xlu0 %2959
        %v2978 = vunpack.c.l.b16 %v2862
        %v2979 = vunpack.c.h.b16 %v2862
        %v2980 = vunpack.c.l.b16 %v2863
        %v2981 = vunpack.c.l.b16 %v2864
        %v2982 = vunpack.c.h.b16 %v2864
        %v2983 = vunpack.c.l.b16 %v2865
        %v2984 = vunpack.c.l.b16 %v2866
        %v2985 = vunpack.c.h.b16 %v2866
        %v2986 = vunpack.c.l.b16 %v2867
        %v2987 = vunpack.c.l.b16 %v2868
        %v2988 = vunpack.c.h.b16 %v2868
        %v2989 = vunpack.c.l.b16 %v2869
        %v2990 = vunpack.c.l.b16 %v2870
        %v2991 = vunpack.c.h.b16 %v2870
        %v2992 = vunpack.c.l.b16 %v2871
        %v2993 = vunpack.c.l.b16 %v2872
        %v2994 = vunpack.c.h.b16 %v2872
        %v2995 = vunpack.c.l.b16 %v2873
        %v2996 = vunpack.c.l.b16 %v2874
        %v2997 = vunpack.c.h.b16 %v2874
        %v2998 = vunpack.c.l.b16 %v2875
        %v2999 = vunpack.c.l.b16 %v2876
        %v3000 = vunpack.c.h.b16 %v2876
        %v3001 = vunpack.c.l.b16 %v2877
        %v3002 = vpack.c.b16 %v2981, %v2978
        %v3003 = vpack.c.b16 %v2982, %v2979
        %v3004 = vpack.c.b16 %v2983, %v2980
        %v3005 = vpack.c.b16 %v2987, %v2984
        %v3006 = vpack.c.b16 %v2988, %v2985
        %v3007 = vpack.c.b16 %v2989, %v2986
        %v3008 = vpack.c.b16 %v2993, %v2990
        %v3009 = vpack.c.b16 %v2994, %v2991
        %v3010 = vpack.c.b16 %v2995, %v2992
        %v3011 = vpack.c.b16 %v2999, %v2996
        %v3012 = vpack.c.b16 %v3000, %v2997
        %v3013 = vpack.c.b16 %v3001, %v2998
        %v3058 = vunpack.c.l.b16 %v2878
        %v3059 = vunpack.c.h.b16 %v2878
        %v3060 = vunpack.c.l.b16 %v2879
        %v3061 = vunpack.c.h.b16 %v2879
        %v3062 = vunpack.c.l.b16 %v2880
        %v3063 = vunpack.c.h.b16 %v2880
        %v3064 = vunpack.c.l.b16 %v2881
        %v3065 = vunpack.c.h.b16 %v2881
        %v3066 = vunpack.c.l.b16 %v2882
        %v3067 = vunpack.c.h.b16 %v2882
        %v3068 = vunpack.c.l.b16 %v2883
        %v3069 = vunpack.c.h.b16 %v2883
        %v3070 = vunpack.c.l.b16 %v2884
        %v3071 = vunpack.c.h.b16 %v2884
        %v3072 = vunpack.c.l.b16 %v2885
        %v3073 = vunpack.c.h.b16 %v2885
        %v3074 = vunpack.c.l.b16 %v2886
        %v3075 = vunpack.c.h.b16 %v2886
        %v3076 = vunpack.c.l.b16 %v2887
        %v3077 = vunpack.c.h.b16 %v2887
        %v3078 = vunpack.c.l.b16 %v2888
        %v3079 = vunpack.c.h.b16 %v2888
        %v3080 = vunpack.c.l.b16 %v2889
        %v3081 = vunpack.c.h.b16 %v2889
        %v3082 = vunpack.c.l.b16 %v2890
        %v3083 = vunpack.c.h.b16 %v2890
        %v3084 = vunpack.c.l.b16 %v2891
        %v3085 = vunpack.c.h.b16 %v2891
        %v3086 = vunpack.c.l.b16 %v2892
        %v3087 = vunpack.c.h.b16 %v2892
        %v3088 = vunpack.c.l.b16 %v2893
        %v3089 = vunpack.c.h.b16 %v2893
        %v3090 = vunpack.c.l.b16 %v2894
        %v3091 = vunpack.c.h.b16 %v2894
        %v3092 = vunpack.c.l.b16 %v2895
        %v3093 = vunpack.c.h.b16 %v2895
        %v3094 = vunpack.c.l.b16 %v2896
        %v3095 = vunpack.c.h.b16 %v2896
        %v3096 = vunpack.c.l.b16 %v2897
        %v3097 = vunpack.c.h.b16 %v2897
        %v3098 = vunpack.c.l.b16 %v2898
        %v3099 = vunpack.c.h.b16 %v2898
        %v3100 = vunpack.c.l.b16 %v2899
        %v3101 = vunpack.c.h.b16 %v2899
        %v3102 = vunpack.c.l.b16 %v2900
        %v3103 = vunpack.c.h.b16 %v2900
        %v3104 = vunpack.c.l.b16 %v2901
        %v3105 = vunpack.c.h.b16 %v2901
        %v3106 = vunpack.c.l.b16 %v2902
        %v3107 = vunpack.c.h.b16 %v2902
        %v3108 = vunpack.c.l.b16 %v2903
        %v3109 = vunpack.c.h.b16 %v2903
        %v3110 = vunpack.c.l.b16 %v2904
        %v3111 = vunpack.c.h.b16 %v2904
        %v3112 = vunpack.c.l.b16 %v2905
        %v3113 = vunpack.c.h.b16 %v2905
        %v3114 = vunpack.c.l.b16 %v2906
        %v3115 = vunpack.c.h.b16 %v2906
        %v3116 = vunpack.c.l.b16 %v2907
        %v3117 = vunpack.c.h.b16 %v2907
        %v3118 = vunpack.c.l.b16 %v2908
        %v3119 = vunpack.c.h.b16 %v2908
        %v3120 = vunpack.c.l.b16 %v2909
        %v3121 = vunpack.c.h.b16 %v2909
        %v3122 = vunpack.c.l.b16 %v2910
        %v3123 = vunpack.c.h.b16 %v2910
        %v3124 = vunpack.c.l.b16 %v2911
        %v3125 = vunpack.c.h.b16 %v2911
        %v3126 = vunpack.c.l.b16 %v2912
        %v3127 = vunpack.c.h.b16 %v2912
        %v3128 = vunpack.c.l.b16 %v2913
        %v3129 = vunpack.c.h.b16 %v2913
        %v3130 = vpack.c.b16 %v3060, %v3058
        %v3131 = vpack.c.b16 %v3061, %v3059
        %v3132 = vpack.c.b16 %v3064, %v3062
        %v3133 = vpack.c.b16 %v3065, %v3063
        %v3134 = vpack.c.b16 %v3068, %v3066
        %v3135 = vpack.c.b16 %v3069, %v3067
        %v3136 = vpack.c.b16 %v3072, %v3070
        %v3137 = vpack.c.b16 %v3073, %v3071
        %v3138 = vpack.c.b16 %v3076, %v3074
        %v3139 = vpack.c.b16 %v3077, %v3075
        %v3140 = vpack.c.b16 %v3080, %v3078
        %v3141 = vpack.c.b16 %v3081, %v3079
        %v3142 = vpack.c.b16 %v3084, %v3082
        %v3143 = vpack.c.b16 %v3085, %v3083
        %v3144 = vpack.c.b16 %v3088, %v3086
        %v3145 = vpack.c.b16 %v3089, %v3087
        %v3146 = vpack.c.b16 %v3092, %v3090
        %v3147 = vpack.c.b16 %v3093, %v3091
        %v3148 = vpack.c.b16 %v3096, %v3094
        %v3149 = vpack.c.b16 %v3097, %v3095
        %v3150 = vpack.c.b16 %v3100, %v3098
        %v3151 = vpack.c.b16 %v3101, %v3099
        %v3152 = vpack.c.b16 %v3104, %v3102
        %v3153 = vpack.c.b16 %v3105, %v3103
        %v3154 = vpack.c.b16 %v3108, %v3106
        %v3155 = vpack.c.b16 %v3109, %v3107
        %v3156 = vpack.c.b16 %v3112, %v3110
        %v3157 = vpack.c.b16 %v3113, %v3111
        %v3158 = vpack.c.b16 %v3116, %v3114
        %v3159 = vpack.c.b16 %v3117, %v3115
        %v3160 = vpack.c.b16 %v3120, %v3118
        %v3161 = vpack.c.b16 %v3121, %v3119
        %v3162 = vpack.c.b16 %v3124, %v3122
        %v3163 = vpack.c.b16 %v3125, %v3123
        %v3164 = vpack.c.b16 %v3128, %v3126
        %v3165 = vpack.c.b16 %v3129, %v3127
        %vm3202 = vcmask 261120
        %v3204 = vsel %vm3202, %v3004, 0
        %v3207 = vsel %vm3202, %v3007, 0
        %v3210 = vsel %vm3202, %v3010, 0
        %v3213 = vsel %vm3202, %v3013, 0
        %3215 = vmatprep.subr.bf16.mxu0 %v3145
        %3216 = vmatpush1.bf16.msra.mxu0 %v3144
        %3217 = vmatprep.subr.bf16.mxu0 %v3143
        %3218 = vmatpush1.bf16.msra.mxu0 %v3142
        %3219 = vmatprep.subr.bf16.mxu0 %v3141
        %3220 = vmatpush1.bf16.msra.mxu0 %v3140
        %3221 = vmatprep.subr.bf16.mxu0 %v3139
        %3222 = vmatpush1.bf16.msra.mxu0 %v3138
        %3223 = vmatprep.subr.bf16.mxu0 %v3137
        %3224 = vmatpush1.bf16.msra.mxu0 %v3136
        %3225 = vmatprep.subr.bf16.mxu0 %v3135
        %3226 = vmatpush1.bf16.msra.mxu0 %v3134
        %3227 = vmatprep.subr.bf16.mxu0 %v3133
        %3228 = vmatpush1.bf16.msra.mxu0 %v3132
        %3229 = vmatprep.subr.bf16.mxu0 %v3131
        %3230 = vmatpush1.bf16.msra.mxu0 %v3130
        %3231 = vmatprep.subr.bf16.mxu0 %v3161
        %3232 = vmatpush2.bf16.msra.mxu0 %v3160
        %3233 = vmatprep.subr.bf16.mxu0 %v3159
        %3234 = vmatpush2.bf16.msra.mxu0 %v3158
        %3235 = vmatprep.subr.bf16.mxu0 %v3157
        %3236 = vmatpush2.bf16.msra.mxu0 %v3156
        %3237 = vmatprep.subr.bf16.mxu0 %v3155
        %3238 = vmatpush2.bf16.msra.mxu0 %v3154
        %3239 = vmatprep.subr.bf16.mxu0 %v3153
        %3240 = vmatpush2.bf16.msra.mxu0 %v3152
        %3241 = vmatprep.subr.bf16.mxu0 %v3151
        %3242 = vmatpush2.bf16.msra.mxu0 %v3150
        %3243 = vmatprep.subr.bf16.mxu0 %v3149
        %3244 = vmatpush2.bf16.msra.mxu0 %v3148
        %3245 = vmatprep.subr.bf16.mxu0 %v3147
        %3246 = vmatpush2.bf16.msra.mxu0 %v3146
        %3247 = vmatprep.mubr.bf16.mxu0 %v3003
        %3248 = vmatmul.mubr.bf16.gmra.mxu0 %v3002
        %v3249 = vpop.f32.mrf.mxu0
        %v3250 = vadd.f32 %v2925, %v3249
        %v3251 = vpop.f32.mrf.mxu0
        %v3252 = vadd.f32 %v2925, %v3251
        %v3253 = vpop.f32.mrf.mxu0
        %v3254 = vadd.f32 %v2930, %v3253
        %v3255 = vpop.f32.mrf.mxu0
        %v3256 = vadd.f32 %v2930, %v3255
        %3257 = vmatprep.mubr.bf16.mxu0 %v3006
        %3258 = vmatmul.mubr.bf16.gmra.mxu0 %v3005
        %v3259 = vpop.f32.mrf.mxu0
        %v3260 = vadd.f32 %v2935, %v3259
        %v3261 = vpop.f32.mrf.mxu0
        %v3262 = vadd.f32 %v2935, %v3261
        %v3263 = vpop.f32.mrf.mxu0
        %v3264 = vadd.f32 %v2940, %v3263
        %v3265 = vpop.f32.mrf.mxu0
        %v3266 = vadd.f32 %v2940, %v3265
        %3267 = vmatprep.mubr.bf16.mxu0 %v3009
        %3268 = vmatmul.mubr.bf16.gmra.mxu0 %v3008
        %v3269 = vpop.f32.mrf.mxu0
        %v3270 = vadd.f32 %v2945, %v3269
        %v3271 = vpop.f32.mrf.mxu0
        %v3272 = vadd.f32 %v2945, %v3271
        %v3273 = vpop.f32.mrf.mxu0
        %v3274 = vadd.f32 %v2950, %v3273
        %v3275 = vpop.f32.mrf.mxu0
        %v3276 = vadd.f32 %v2950, %v3275
        %3277 = vmatprep.mubr.bf16.mxu0 %v3012
        %3278 = vmatmul.mubr.bf16.gmra.mxu0 %v3011
        %v3279 = vpop.f32.mrf.mxu0
        %v3280 = vadd.f32 %v2955, %v3279
        %v3281 = vpop.f32.mrf.mxu0
        %v3282 = vadd.f32 %v2955, %v3281
        %v3283 = vpop.f32.mrf.mxu0
        %v3284 = vadd.f32 %v2960, %v3283
        %v3285 = vpop.f32.mrf.mxu0
        %v3286 = vadd.f32 %v2960, %v3285
        %3287 = vdwg.mxu0
        %3288 = vmatprep.subr.bf16.mxu0 0
        %3289 = vmatpush1.bf16.msra.mxu0 0
        %3290 = vmatprep.subr.bf16.mxu0 0
        %3291 = vmatpush1.bf16.msra.mxu0 0
        %3292 = vmatprep.subr.bf16.mxu0 0
        %3293 = vmatpush1.bf16.msra.mxu0 0
        %3294 = vmatprep.subr.bf16.mxu0 0
        %3295 = vmatpush1.bf16.msra.mxu0 0
        %3296 = vmatprep.subr.bf16.mxu0 0
        %3297 = vmatpush1.bf16.msra.mxu0 0
        %3298 = vmatprep.subr.bf16.mxu0 0
        %3299 = vmatpush1.bf16.msra.mxu0 0
        %3300 = vmatprep.subr.bf16.mxu0 %v3165
        %3301 = vmatpush1.bf16.msra.mxu0 %v3164
        %3302 = vmatprep.subr.bf16.mxu0 %v3163
        %3303 = vmatpush1.bf16.msra.mxu0 %v3162
        %3304 = vmatprep.subr.bf16.mxu0 0
        %3305 = vmatpush2.bf16.msra.mxu0 0
        %3306 = vmatprep.subr.bf16.mxu0 0
        %3307 = vmatpush2.bf16.msra.mxu0 0
        %3308 = vmatprep.subr.bf16.mxu0 0
        %3309 = vmatpush2.bf16.msra.mxu0 0
        %3310 = vmatprep.subr.bf16.mxu0 0
        %3311 = vmatpush2.bf16.msra.mxu0 0
        %3312 = vmatprep.subr.bf16.mxu0 0
        %3313 = vmatpush2.bf16.msra.mxu0 0
        %3314 = vmatprep.subr.bf16.mxu0 0
        %3315 = vmatpush2.bf16.msra.mxu0 0
        %3316 = vmatprep.subr.bf16.mxu0 0
        %3317 = vmatpush2.bf16.msra.mxu0 0
        %3318 = vmatprep.subr.bf16.mxu0 0
        %3319 = vmatpush2.bf16.msra.mxu0 0
        %3320 = vmatprep.mubr.bf16.mxu0 0
        %3321 = vmatmul.mubr.bf16.gmra.mxu0 %v3204
        %v3322 = vpop.f32.mrf.mxu0
        %v3323 = vadd.f32 %v3250, %v3322
        %v3324 = vpop.f32.mrf.mxu0
        %v3325 = vadd.f32 %v3252, %v3324
        %v3326 = vpop.f32.mrf.mxu0
        %v3327 = vadd.f32 %v3254, %v3326
        %v3328 = vpop.f32.mrf.mxu0
        %v3329 = vadd.f32 %v3256, %v3328
        %3330 = vmatprep.mubr.bf16.mxu0 0
        %3331 = vmatmul.mubr.bf16.gmra.mxu0 %v3207
        %v3332 = vpop.f32.mrf.mxu0
        %v3333 = vadd.f32 %v3260, %v3332
        %v3334 = vpop.f32.mrf.mxu0
        %v3335 = vadd.f32 %v3262, %v3334
        %v3336 = vpop.f32.mrf.mxu0
        %v3337 = vadd.f32 %v3264, %v3336
        %v3338 = vpop.f32.mrf.mxu0
        %v3339 = vadd.f32 %v3266, %v3338
        %3340 = vmatprep.mubr.bf16.mxu0 0
        %3341 = vmatmul.mubr.bf16.gmra.mxu0 %v3210
        %v3342 = vpop.f32.mrf.mxu0
        %v3343 = vadd.f32 %v3270, %v3342
        %v3344 = vpop.f32.mrf.mxu0
        %v3345 = vadd.f32 %v3272, %v3344
        %v3346 = vpop.f32.mrf.mxu0
        %v3347 = vadd.f32 %v3274, %v3346
        %v3348 = vpop.f32.mrf.mxu0
        %v3349 = vadd.f32 %v3276, %v3348
        %3350 = vmatprep.mubr.bf16.mxu0 0
        %3351 = vmatmul.mubr.bf16.gmra.mxu0 %v3213
        %v3352 = vpop.f32.mrf.mxu0
        %v3353 = vadd.f32 %v3280, %v3352
        %v3354 = vpop.f32.mrf.mxu0
        %v3355 = vadd.f32 %v3282, %v3354
        %v3356 = vpop.f32.mrf.mxu0
        %v3357 = vadd.f32 %v3284, %v3356
        %v3358 = vpop.f32.mrf.mxu0
        %v3359 = vadd.f32 %v3286, %v3358
        %3360 = vdwg.mxu0
        %v3361 = vmax.f32 %v3323, 0.0
        %v3362 = vmax.f32 %v3325, 0.0
        %v3363 = vmax.f32 %v3327, 0.0
        %v3364 = vmax.f32 %v3329, 0.0
        %v3365 = vmax.f32 %v3333, 0.0
        %v3366 = vmax.f32 %v3335, 0.0
        %v3367 = vmax.f32 %v3337, 0.0
        %v3368 = vmax.f32 %v3339, 0.0
        %v3369 = vmax.f32 %v3343, 0.0
        %v3370 = vmax.f32 %v3345, 0.0
        %v3371 = vmax.f32 %v3347, 0.0
        %v3372 = vmax.f32 %v3349, 0.0
        %v3373 = vmax.f32 %v3353, 0.0
        %v3374 = vmax.f32 %v3355, 0.0
        %v3375 = vmax.f32 %v3357, 0.0
        %v3376 = vmax.f32 %v3359, 0.0
        %3393 = vrot.lane.b32.xlu0 %v3361, 127
        %v3394 = vpop.permute.xlu0 %3393
        %3395 = vrot.lane.b32.xlu0 %v3362, 127
        %v3396 = vpop.permute.xlu0 %3395
        %3397 = vrot.lane.b32.xlu0 %v3363, 127
        %v3398 = vpop.permute.xlu0 %3397
        %3399 = vrot.lane.b32.xlu0 %v3364, 127
        %v3400 = vpop.permute.xlu0 %3399
        %3401 = vrot.lane.b32.xlu0 %v3365, 127
        %v3402 = vpop.permute.xlu0 %3401
        %3403 = vrot.lane.b32.xlu0 %v3366, 127
        %v3404 = vpop.permute.xlu0 %3403
        %3405 = vrot.lane.b32.xlu0 %v3367, 127
        %v3406 = vpop.permute.xlu0 %3405
        %3407 = vrot.lane.b32.xlu0 %v3368, 127
        %v3408 = vpop.permute.xlu0 %3407
        %3409 = vrot.lane.b32.xlu0 %v3369, 127
        %v3410 = vpop.permute.xlu0 %3409
        %3411 = vrot.lane.b32.xlu0 %v3370, 127
        %v3412 = vpop.permute.xlu0 %3411
        %3413 = vrot.lane.b32.xlu0 %v3371, 127
        %v3414 = vpop.permute.xlu0 %3413
        %3415 = vrot.lane.b32.xlu0 %v3372, 127
        %v3416 = vpop.permute.xlu0 %3415
        %3417 = vrot.lane.b32.xlu0 %v3373, 127
        %v3418 = vpop.permute.xlu0 %3417
        %3419 = vrot.lane.b32.xlu0 %v3374, 127
        %v3420 = vpop.permute.xlu0 %3419
        %3421 = vrot.lane.b32.xlu0 %v3375, 127
        %v3422 = vpop.permute.xlu0 %3421
        %3423 = vrot.lane.b32.xlu0 %v3376, 127
        %v3424 = vpop.permute.xlu0 %3423
        %v3425 = vsel %vm503, %v3394, %v3396
        %v3426 = vsel %vm503, %v3398, %v3400
        %v3427 = vsel %vm503, %v3402, %v3404
        %v3428 = vsel %vm503, %v3406, %v3408
        %v3429 = vsel %vm503, %v3410, %v3412
        %v3430 = vsel %vm503, %v3414, %v3416
        %v3431 = vsel %vm503, %v3418, %v3420
        %v3432 = vsel %vm503, %v3422, %v3424
        %v3449 = vmax.f32 %v3361, %v3425
        %v3450 = vmax.f32 %v3362, %v3396
        %v3451 = vmax.f32 %v3363, %v3426
        %v3452 = vmax.f32 %v3364, %v3400
        %v3453 = vmax.f32 %v3365, %v3427
        %v3454 = vmax.f32 %v3366, %v3404
        %v3455 = vmax.f32 %v3367, %v3428
        %v3456 = vmax.f32 %v3368, %v3408
        %v3457 = vmax.f32 %v3369, %v3429
        %v3458 = vmax.f32 %v3370, %v3412
        %v3459 = vmax.f32 %v3371, %v3430
        %v3460 = vmax.f32 %v3372, %v3416
        %v3461 = vmax.f32 %v3373, %v3431
        %v3462 = vmax.f32 %v3374, %v3420
        %v3463 = vmax.f32 %v3375, %v3432
        %v3464 = vmax.f32 %v3376, %v3424
        %3481 = vrot.lane.b32.xlu0 %v3449, 113
        %v3482 = vpop.permute.xlu0 %3481
        %3483 = vrot.lane.b32.xlu0 %v3450, 113
        %v3484 = vpop.permute.xlu0 %3483
        %3485 = vrot.lane.b32.xlu0 %v3451, 113
        %v3486 = vpop.permute.xlu0 %3485
        %3487 = vrot.lane.b32.xlu0 %v3452, 113
        %v3488 = vpop.permute.xlu0 %3487
        %3489 = vrot.lane.b32.xlu0 %v3453, 113
        %v3490 = vpop.permute.xlu0 %3489
        %3491 = vrot.lane.b32.xlu0 %v3454, 113
        %v3492 = vpop.permute.xlu0 %3491
        %3493 = vrot.lane.b32.xlu0 %v3455, 113
        %v3494 = vpop.permute.xlu0 %3493
        %3495 = vrot.lane.b32.xlu0 %v3456, 113
        %v3496 = vpop.permute.xlu0 %3495
        %3497 = vrot.lane.b32.xlu0 %v3457, 113
        %v3498 = vpop.permute.xlu0 %3497
        %3499 = vrot.lane.b32.xlu0 %v3458, 113
        %v3500 = vpop.permute.xlu0 %3499
        %3501 = vrot.lane.b32.xlu0 %v3459, 113
        %v3502 = vpop.permute.xlu0 %3501
        %3503 = vrot.lane.b32.xlu0 %v3460, 113
        %v3504 = vpop.permute.xlu0 %3503
        %3505 = vrot.lane.b32.xlu0 %v3461, 113
        %v3506 = vpop.permute.xlu0 %3505
        %3507 = vrot.lane.b32.xlu0 %v3462, 113
        %v3508 = vpop.permute.xlu0 %3507
        %3509 = vrot.lane.b32.xlu0 %v3463, 113
        %v3510 = vpop.permute.xlu0 %3509
        %3511 = vrot.lane.b32.xlu0 %v3464, 113
        %v3512 = vpop.permute.xlu0 %3511
        %vm3513 = vcmask 924672
        %v3514 = vsel %vm3513, %v3482, %v3484
        %v3515 = vsel %vm3513, %v3486, %v3488
        %v3516 = vsel %vm3513, %v3490, %v3492
        %v3517 = vsel %vm3513, %v3494, %v3496
        %v3518 = vsel %vm3513, %v3498, %v3500
        %v3519 = vsel %vm3513, %v3502, %v3504
        %v3520 = vsel %vm3513, %v3506, %v3508
        %v3521 = vsel %vm3513, %v3510, %v3512
        %v3538 = vmax.f32 %v3449, %v3514
        %v3539 = vmax.f32 %v3450, %v3484
        %v3540 = vmax.f32 %v3451, %v3515
        %v3541 = vmax.f32 %v3452, %v3488
        %v3542 = vmax.f32 %v3453, %v3516
        %v3543 = vmax.f32 %v3454, %v3492
        %v3544 = vmax.f32 %v3455, %v3517
        %v3545 = vmax.f32 %v3456, %v3496
        %v3546 = vmax.f32 %v3457, %v3518
        %v3547 = vmax.f32 %v3458, %v3500
        %v3548 = vmax.f32 %v3459, %v3519
        %v3549 = vmax.f32 %v3460, %v3504
        %v3550 = vmax.f32 %v3461, %v3520
        %v3551 = vmax.f32 %v3462, %v3508
        %v3552 = vmax.f32 %v3463, %v3521
        %v3553 = vmax.f32 %v3464, %v3512
        %v3554 = vpack.c.bf16 %v3540, %v3538
        %v3555 = vpack.c.bf16 %v3541, %v3539
        %v3556 = vpack.c.bf16 %v3544, %v3542
        %v3557 = vpack.c.bf16 %v3545, %v3543
        %v3558 = vpack.c.bf16 %v3548, %v3546
        %v3559 = vpack.c.bf16 %v3549, %v3547
        %v3560 = vpack.c.bf16 %v3552, %v3550
        %v3561 = vpack.c.bf16 %v3553, %v3551
        %v3562 = vld [vmem:[%s8] sm:$0xf]
        %v3563 = vld [vmem:[%s8 + $0x4] sm:$0xf]
        %v3564 = vld [vmem:[%s8 + $0x8] sm:$0xf]
        %v3565 = vld [vmem:[%s8 + $0xc] sm:$0xf]
        %v3566 = vld [vmem:[%s8 + $0x10] sm:$0xf]
        %v3567 = vld [vmem:[%s8 + $0x14] sm:$0xf]
        %v3568 = vld [vmem:[%s8 + $0x18] sm:$0xf]
        %v3569 = vld [vmem:[%s8 + $0x1c] sm:$0xf]
        %v3570 = vld [vmem:[%s8 + $0x20] sm:$0xf]
        %v3571 = vld [vmem:[%s8 + $0x24] sm:$0xf]
        %v3572 = vld [vmem:[%s8 + $0x28] sm:$0xf]
        %v3573 = vld [vmem:[%s8 + $0x2c] sm:$0xf]
        %v3574 = vld [vmem:[%s8 + $0x30] sm:$0xf]
        %v3575 = vld [vmem:[%s8 + $0x34] sm:$0xf]
        %v3576 = vld [vmem:[%s8 + $0x38] sm:$0xf]
        %v3577 = vld [vmem:[%s8 + $0x3c] sm:$0xf]
        %v3578 = vld [vmem:[%s8 + $0x40] sm:$0xf]
        %v3579 = vld [vmem:[%s8 + $0x44] sm:$0xf]
        %v3580 = vld [vmem:[%s8 + $0x48] sm:$0xf]
        %v3581 = vld [vmem:[%s8 + $0x4c] sm:$0xf]
        %v3582 = vld [vmem:[%s8 + $0x50] sm:$0x1]
        %v3604 = vunpack.c.l.b16 %v3562
        %v3605 = vunpack.c.l.b16 %v3563
        %v3606 = vunpack.c.l.b16 %v3564
        %v3607 = vunpack.c.l.b16 %v3565
        %v3608 = vunpack.c.l.b16 %v3566
        %v3609 = vunpack.c.l.b16 %v3567
        %v3610 = vunpack.c.l.b16 %v3568
        %v3611 = vunpack.c.l.b16 %v3569
        %v3612 = vunpack.c.l.b16 %v3570
        %v3613 = vunpack.c.l.b16 %v3571
        %v3614 = vunpack.c.l.b16 %v3572
        %v3615 = vunpack.c.l.b16 %v3573
        %v3616 = vunpack.c.l.b16 %v3574
        %v3617 = vunpack.c.l.b16 %v3575
        %v3618 = vunpack.c.l.b16 %v3576
        %v3619 = vunpack.c.l.b16 %v3577
        %v3620 = vunpack.c.l.b16 %v3578
        %v3621 = vunpack.c.l.b16 %v3579
        %v3622 = vunpack.c.l.b16 %v3580
        %v3623 = vunpack.c.l.b16 %v3581
        %v3624 = vunpack.c.l.b16 %v3582
        %v3625 = vpack.c.b16 %v3605, %v3604
        %v3626 = vpack.c.b16 %v3607, %v3606
        %v3627 = vpack.c.b16 %v3609, %v3608
        %v3628 = vpack.c.b16 %v3611, %v3610
        %v3629 = vpack.c.b16 %v3613, %v3612
        %v3630 = vpack.c.b16 %v3615, %v3614
        %v3631 = vpack.c.b16 %v3617, %v3616
        %v3632 = vpack.c.b16 %v3619, %v3618
        %v3633 = vpack.c.b16 %v3621, %v3620
        %v3634 = vpack.c.b16 %v3623, %v3622
        %v3635 = vpack.c.b16 %v3624, %v3624
        %vm3646 = vcmask 269312
        %v3648 = vsel %vm3646, %v3555, 0
        %v3651 = vsel %vm3646, %v3557, 0
        %v3654 = vsel %vm3646, %v3559, 0
        %v3657 = vsel %vm3646, %v3561, 0
        %vm3659 = vcmask 1040384
        %v3660 = vsel 0, 4294967295, 65535
        %v3661 = vsel %vm3659, %v3660, 0
        %v3663 = vand.u32 %v3635, %v3661
        %3665 = vmatprep.subr.bf16.mxu0 0
        %3666 = vmatpush1.bf16.msra.mxu0 %v3632
        %3667 = vmatprep.subr.bf16.mxu0 0
        %3668 = vmatpush1.bf16.msra.mxu0 %v3631
        %3669 = vmatprep.subr.bf16.mxu0 0
        %3670 = vmatpush1.bf16.msra.mxu0 %v3630
        %3671 = vmatprep.subr.bf16.mxu0 0
        %3672 = vmatpush1.bf16.msra.mxu0 %v3629
        %3673 = vmatprep.subr.bf16.mxu0 0
        %3674 = vmatpush1.bf16.msra.mxu0 %v3628
        %3675 = vmatprep.subr.bf16.mxu0 0
        %3676 = vmatpush1.bf16.msra.mxu0 %v3627
        %3677 = vmatprep.subr.bf16.mxu0 0
        %3678 = vmatpush1.bf16.msra.mxu0 %v3626
        %3679 = vmatprep.subr.bf16.mxu0 0
        %3680 = vmatpush1.bf16.msra.mxu0 %v3625
        %3681 = vmatprep.subr.bf16.mxu0 0
        %3682 = vmatpush2.bf16.msra.mxu0 0
        %3683 = vmatprep.subr.bf16.mxu0 0
        %3684 = vmatpush2.bf16.msra.mxu0 0
        %3685 = vmatprep.subr.bf16.mxu0 0
        %3686 = vmatpush2.bf16.msra.mxu0 0
        %3687 = vmatprep.subr.bf16.mxu0 0
        %3688 = vmatpush2.bf16.msra.mxu0 0
        %3689 = vmatprep.subr.bf16.mxu0 0
        %3690 = vmatpush2.bf16.msra.mxu0 0
        %3691 = vmatprep.subr.bf16.mxu0 0
        %3692 = vmatpush2.bf16.msra.mxu0 %v3663
        %3693 = vmatprep.subr.bf16.mxu0 0
        %3694 = vmatpush2.bf16.msra.mxu0 %v3634
        %3695 = vmatprep.subr.bf16.mxu0 0
        %3696 = vmatpush2.bf16.msra.mxu0 %v3633
        %3697 = vmatprep.mubr.bf16.mxu0 %v3648
        %3698 = vmatmul.mubr.bf16.gmra.mxu0 %v3554
        %v3699 = vpop.f32.mrf.mxu0
        %v3700 = vadd.f32 0.0, %v3699
        %v3701 = vpop.f32.mrf.mxu0
        %v3702 = vpop.f32.mrf.mxu0
        %v3703 = vadd.f32 0.0, %v3702
        %v3704 = vpop.f32.mrf.mxu0
        %3705 = vmatprep.mubr.bf16.mxu0 %v3651
        %3706 = vmatmul.mubr.bf16.gmra.mxu0 %v3556
        %v3707 = vpop.f32.mrf.mxu0
        %v3708 = vadd.f32 0.0, %v3707
        %v3709 = vpop.f32.mrf.mxu0
        %v3710 = vpop.f32.mrf.mxu0
        %v3711 = vadd.f32 0.0, %v3710
        %v3712 = vpop.f32.mrf.mxu0
        %3713 = vmatprep.mubr.bf16.mxu0 %v3654
        %3714 = vmatmul.mubr.bf16.gmra.mxu0 %v3558
        %v3715 = vpop.f32.mrf.mxu0
        %v3716 = vadd.f32 0.0, %v3715
        %v3717 = vpop.f32.mrf.mxu0
        %v3718 = vpop.f32.mrf.mxu0
        %v3719 = vadd.f32 0.0, %v3718
        %v3720 = vpop.f32.mrf.mxu0
        %3721 = vmatprep.mubr.bf16.mxu0 %v3657
        %3722 = vmatmul.mubr.bf16.gmra.mxu0 %v3560
        %v3723 = vpop.f32.mrf.mxu0
        %v3724 = vadd.f32 0.0, %v3723
        %v3725 = vpop.f32.mrf.mxu0
        %v3726 = vpop.f32.mrf.mxu0
        %v3727 = vadd.f32 0.0, %v3726
        %v3728 = vpop.f32.mrf.mxu0
        %3729 = vdwg.mxu0
        %v3730 = vpack.c.bf16 %v3703, %v3700
        %v3731 = vpack.c.bf16 %v3711, %v3708
        %v3732 = vpack.c.bf16 %v3719, %v3716
        %v3733 = vpack.c.bf16 %v3727, %v3724
        %v3738 = vunpack.c.l.b16 %v3730
        %v3739 = vunpack.c.h.b16 %v3730
        %v3740 = vunpack.c.l.b16 %v3731
        %v3741 = vunpack.c.h.b16 %v3731
        %v3742 = vunpack.c.l.b16 %v3732
        %v3743 = vunpack.c.h.b16 %v3732
        %v3744 = vunpack.c.l.b16 %v3733
        %v3745 = vunpack.c.h.b16 %v3733
        %v3746 = vpack.c.b16 %v3738, %v3738
        %v3747 = vpack.c.b16 %v3739, %v3739
        %v3748 = vpack.c.b16 %v3740, %v3740
        %v3749 = vpack.c.b16 %v3741, %v3741
        %v3750 = vpack.c.b16 %v3742, %v3742
        %v3751 = vpack.c.b16 %v3743, %v3743
        %v3752 = vpack.c.b16 %v3744, %v3744
        %v3753 = vpack.c.b16 %v3745, %v3745
        %vm3762 = vcmask 175104
        %3763 = vst.msk [vmem:[#allocation4] sm:$0xf] %vm3762, %v3746
        %3764 = vst.msk [vmem:[#allocation4 + $0x4] sm:$0xf] %vm3762, %v3747
        %3765 = vst.msk [vmem:[#allocation4 + $0x8] sm:$0xf] %vm3762, %v3748
        %3766 = vst.msk [vmem:[#allocation4 + $0xc] sm:$0xf] %vm3762, %v3749
        %3767 = vst.msk [vmem:[#allocation4 + $0x10] sm:$0xf] %vm3762, %v3750
        %3768 = vst.msk [vmem:[#allocation4 + $0x14] sm:$0xf] %vm3762, %v3751
        %3769 = vst.msk [vmem:[#allocation4 + $0x18] sm:$0xf] %vm3762, %v3752
        %3770 = vst.msk [vmem:[#allocation4 + $0x1c] sm:$0xf] %vm3762, %v3753
        %3771 = vrot.lane.b32.xlu0 %v3746, 127
        %v3772 = vpop.permute.xlu0 %3771
        %3773 = vrot.lane.b32.xlu0 %v3747, 127
        %v3774 = vpop.permute.xlu0 %3773
        %3775 = vrot.lane.b32.xlu0 %v3748, 127
        %v3776 = vpop.permute.xlu0 %3775
        %3777 = vrot.lane.b32.xlu0 %v3749, 127
        %v3778 = vpop.permute.xlu0 %3777
        %3779 = vrot.lane.b32.xlu0 %v3750, 127
        %v3780 = vpop.permute.xlu0 %3779
        %3781 = vrot.lane.b32.xlu0 %v3751, 127
        %v3782 = vpop.permute.xlu0 %3781
        %3783 = vrot.lane.b32.xlu0 %v3752, 127
        %v3784 = vpop.permute.xlu0 %3783
        %3785 = vrot.lane.b32.xlu0 %v3753, 127
        %v3786 = vpop.permute.xlu0 %3785
        %3795 = vst.msk [vmem:[#allocation4 + $0x20] sm:$0xf] %vm3762, %v3772
        %3796 = vst.msk [vmem:[#allocation4 + $0x24] sm:$0xf] %vm3762, %v3774
        %3797 = vst.msk [vmem:[#allocation4 + $0x28] sm:$0xf] %vm3762, %v3776
        %3798 = vst.msk [vmem:[#allocation4 + $0x2c] sm:$0xf] %vm3762, %v3778
        %3799 = vst.msk [vmem:[#allocation4 + $0x30] sm:$0xf] %vm3762, %v3780
        %3800 = vst.msk [vmem:[#allocation4 + $0x34] sm:$0xf] %vm3762, %v3782
        %3801 = vst.msk [vmem:[#allocation4 + $0x38] sm:$0xf] %vm3762, %v3784
        %3802 = vst.msk [vmem:[#allocation4 + $0x3c] sm:$0xf] %vm3762, %v3786
        %3803 = vrot.lane.b32.xlu0 %v3746, 126
        %v3804 = vpop.permute.xlu0 %3803
        %3805 = vrot.lane.b32.xlu0 %v3747, 126
        %v3806 = vpop.permute.xlu0 %3805
        %3807 = vrot.lane.b32.xlu0 %v3748, 126
        %v3808 = vpop.permute.xlu0 %3807
        %3809 = vrot.lane.b32.xlu0 %v3749, 126
        %v3810 = vpop.permute.xlu0 %3809
        %3811 = vrot.lane.b32.xlu0 %v3750, 126
        %v3812 = vpop.permute.xlu0 %3811
        %3813 = vrot.lane.b32.xlu0 %v3751, 126
        %v3814 = vpop.permute.xlu0 %3813
        %3815 = vrot.lane.b32.xlu0 %v3752, 126
        %v3816 = vpop.permute.xlu0 %3815
        %3817 = vrot.lane.b32.xlu0 %v3753, 126
        %v3818 = vpop.permute.xlu0 %3817
        %3827 = vst.msk [vmem:[#allocation4 + $0x40] sm:$0xf] %vm3762, %v3804
        %3828 = vst.msk [vmem:[#allocation4 + $0x44] sm:$0xf] %vm3762, %v3806
        %3829 = vst.msk [vmem:[#allocation4 + $0x48] sm:$0xf] %vm3762, %v3808
        %3830 = vst.msk [vmem:[#allocation4 + $0x4c] sm:$0xf] %vm3762, %v3810
        %3831 = vst.msk [vmem:[#allocation4 + $0x50] sm:$0xf] %vm3762, %v3812
        %3832 = vst.msk [vmem:[#allocation4 + $0x54] sm:$0xf] %vm3762, %v3814
        %3833 = vst.msk [vmem:[#allocation4 + $0x58] sm:$0xf] %vm3762, %v3816
        %3834 = vst.msk [vmem:[#allocation4 + $0x5c] sm:$0xf] %vm3762, %v3818
        %3835 = vrot.lane.b32.xlu0 %v3746, 122
        %v3836 = vpop.permute.xlu0 %3835
        %3837 = vrot.lane.b32.xlu0 %v3747, 122
        %v3838 = vpop.permute.xlu0 %3837
        %3839 = vrot.lane.b32.xlu0 %v3748, 122
        %v3840 = vpop.permute.xlu0 %3839
        %3841 = vrot.lane.b32.xlu0 %v3749, 122
        %v3842 = vpop.permute.xlu0 %3841
        %3843 = vrot.lane.b32.xlu0 %v3750, 122
        %v3844 = vpop.permute.xlu0 %3843
        %3845 = vrot.lane.b32.xlu0 %v3751, 122
        %v3846 = vpop.permute.xlu0 %3845
        %3847 = vrot.lane.b32.xlu0 %v3752, 122
        %v3848 = vpop.permute.xlu0 %3847
        %3849 = vrot.lane.b32.xlu0 %v3753, 122
        %v3850 = vpop.permute.xlu0 %3849
        %3859 = vst.msk [vmem:[#allocation4 + $0x60] sm:$0xf] %vm3762, %v3836
        %3860 = vst.msk [vmem:[#allocation4 + $0x64] sm:$0xf] %vm3762, %v3838
        %3861 = vst.msk [vmem:[#allocation4 + $0x68] sm:$0xf] %vm3762, %v3840
        %3862 = vst.msk [vmem:[#allocation4 + $0x6c] sm:$0xf] %vm3762, %v3842
        %3863 = vst.msk [vmem:[#allocation4 + $0x70] sm:$0xf] %vm3762, %v3844
        %3864 = vst.msk [vmem:[#allocation4 + $0x74] sm:$0xf] %vm3762, %v3846
        %3865 = vst.msk [vmem:[#allocation4 + $0x78] sm:$0xf] %vm3762, %v3848
        %3866 = vst.msk [vmem:[#allocation4 + $0x7c] sm:$0xf] %vm3762, %v3850
        %3867 = vrot.lane.b32.xlu0 %v3746, 121
        %v3868 = vpop.permute.xlu0 %3867
        %3869 = vrot.lane.b32.xlu0 %v3747, 121
        %v3870 = vpop.permute.xlu0 %3869
        %3871 = vrot.lane.b32.xlu0 %v3748, 121
        %v3872 = vpop.permute.xlu0 %3871
        %3873 = vrot.lane.b32.xlu0 %v3749, 121
        %v3874 = vpop.permute.xlu0 %3873
        %3875 = vrot.lane.b32.xlu0 %v3750, 121
        %v3876 = vpop.permute.xlu0 %3875
        %3877 = vrot.lane.b32.xlu0 %v3751, 121
        %v3878 = vpop.permute.xlu0 %3877
        %3879 = vrot.lane.b32.xlu0 %v3752, 121
        %v3880 = vpop.permute.xlu0 %3879
        %3881 = vrot.lane.b32.xlu0 %v3753, 121
        %v3882 = vpop.permute.xlu0 %3881
        %3891 = vst.msk [vmem:[#allocation4 + $0x80] sm:$0xf] %vm3762, %v3868
        %3892 = vst.msk [vmem:[#allocation4 + $0x84] sm:$0xf] %vm3762, %v3870
        %3893 = vst.msk [vmem:[#allocation4 + $0x88] sm:$0xf] %vm3762, %v3872
        %3894 = vst.msk [vmem:[#allocation4 + $0x8c] sm:$0xf] %vm3762, %v3874
        %3895 = vst.msk [vmem:[#allocation4 + $0x90] sm:$0xf] %vm3762, %v3876
        %3896 = vst.msk [vmem:[#allocation4 + $0x94] sm:$0xf] %vm3762, %v3878
        %3897 = vst.msk [vmem:[#allocation4 + $0x98] sm:$0xf] %vm3762, %v3880
        %3898 = vst.msk [vmem:[#allocation4 + $0x9c] sm:$0xf] %vm3762, %v3882
        %3899 = vrot.lane.b32.xlu0 %v3746, 120
        %v3900 = vpop.permute.xlu0 %3899
        %3901 = vrot.lane.b32.xlu0 %v3747, 120
        %v3902 = vpop.permute.xlu0 %3901
        %3903 = vrot.lane.b32.xlu0 %v3748, 120
        %v3904 = vpop.permute.xlu0 %3903
        %3905 = vrot.lane.b32.xlu0 %v3749, 120
        %v3906 = vpop.permute.xlu0 %3905
        %3907 = vrot.lane.b32.xlu0 %v3750, 120
        %v3908 = vpop.permute.xlu0 %3907
        %3909 = vrot.lane.b32.xlu0 %v3751, 120
        %v3910 = vpop.permute.xlu0 %3909
        %3911 = vrot.lane.b32.xlu0 %v3752, 120
        %v3912 = vpop.permute.xlu0 %3911
        %3913 = vrot.lane.b32.xlu0 %v3753, 120
        %v3914 = vpop.permute.xlu0 %3913
        %3923 = vst.msk [vmem:[#allocation4 + $0xa0] sm:$0xf] %vm3762, %v3900
        %3924 = vst.msk [vmem:[#allocation4 + $0xa4] sm:$0xf] %vm3762, %v3902
        %3925 = vst.msk [vmem:[#allocation4 + $0xa8] sm:$0xf] %vm3762, %v3904
        %3926 = vst.msk [vmem:[#allocation4 + $0xac] sm:$0xf] %vm3762, %v3906
        %3927 = vst.msk [vmem:[#allocation4 + $0xb0] sm:$0xf] %vm3762, %v3908
        %3928 = vst.msk [vmem:[#allocation4 + $0xb4] sm:$0xf] %vm3762, %v3910
        %3929 = vst.msk [vmem:[#allocation4 + $0xb8] sm:$0xf] %vm3762, %v3912
        %3930 = vst.msk [vmem:[#allocation4 + $0xbc] sm:$0xf] %vm3762, %v3914
        %3931 = vrot.lane.b32.xlu0 %v3746, 116
        %v3932 = vpop.permute.xlu0 %3931
        %3933 = vrot.lane.b32.xlu0 %v3747, 116
        %v3934 = vpop.permute.xlu0 %3933
        %3935 = vrot.lane.b32.xlu0 %v3748, 116
        %v3936 = vpop.permute.xlu0 %3935
        %3937 = vrot.lane.b32.xlu0 %v3749, 116
        %v3938 = vpop.permute.xlu0 %3937
        %3939 = vrot.lane.b32.xlu0 %v3750, 116
        %v3940 = vpop.permute.xlu0 %3939
        %3941 = vrot.lane.b32.xlu0 %v3751, 116
        %v3942 = vpop.permute.xlu0 %3941
        %3943 = vrot.lane.b32.xlu0 %v3752, 116
        %v3944 = vpop.permute.xlu0 %3943
        %3945 = vrot.lane.b32.xlu0 %v3753, 116
        %v3946 = vpop.permute.xlu0 %3945
        %3955 = vst.msk [vmem:[#allocation4 + $0xc0] sm:$0xf] %vm3762, %v3932
        %3956 = vst.msk [vmem:[#allocation4 + $0xc4] sm:$0xf] %vm3762, %v3934
        %3957 = vst.msk [vmem:[#allocation4 + $0xc8] sm:$0xf] %vm3762, %v3936
        %3958 = vst.msk [vmem:[#allocation4 + $0xcc] sm:$0xf] %vm3762, %v3938
        %3959 = vst.msk [vmem:[#allocation4 + $0xd0] sm:$0xf] %vm3762, %v3940
        %3960 = vst.msk [vmem:[#allocation4 + $0xd4] sm:$0xf] %vm3762, %v3942
        %3961 = vst.msk [vmem:[#allocation4 + $0xd8] sm:$0xf] %vm3762, %v3944
        %3962 = vst.msk [vmem:[#allocation4 + $0xdc] sm:$0xf] %vm3762, %v3946
        %3963 = vrot.lane.b32.xlu0 %v3746, 115
        %v3964 = vpop.permute.xlu0 %3963
        %3965 = vrot.lane.b32.xlu0 %v3747, 115
        %v3966 = vpop.permute.xlu0 %3965
        %3967 = vrot.lane.b32.xlu0 %v3748, 115
        %v3968 = vpop.permute.xlu0 %3967
        %3969 = vrot.lane.b32.xlu0 %v3749, 115
        %v3970 = vpop.permute.xlu0 %3969
        %3971 = vrot.lane.b32.xlu0 %v3750, 115
        %v3972 = vpop.permute.xlu0 %3971
        %3973 = vrot.lane.b32.xlu0 %v3751, 115
        %v3974 = vpop.permute.xlu0 %3973
        %3975 = vrot.lane.b32.xlu0 %v3752, 115
        %v3976 = vpop.permute.xlu0 %3975
        %3977 = vrot.lane.b32.xlu0 %v3753, 115
        %v3978 = vpop.permute.xlu0 %3977
        %3987 = vst.msk [vmem:[#allocation4 + $0xe0] sm:$0xf] %vm3762, %v3964
        %3988 = vst.msk [vmem:[#allocation4 + $0xe4] sm:$0xf] %vm3762, %v3966
        %3989 = vst.msk [vmem:[#allocation4 + $0xe8] sm:$0xf] %vm3762, %v3968
        %3990 = vst.msk [vmem:[#allocation4 + $0xec] sm:$0xf] %vm3762, %v3970
        %3991 = vst.msk [vmem:[#allocation4 + $0xf0] sm:$0xf] %vm3762, %v3972
        %3992 = vst.msk [vmem:[#allocation4 + $0xf4] sm:$0xf] %vm3762, %v3974
        %3993 = vst.msk [vmem:[#allocation4 + $0xf8] sm:$0xf] %vm3762, %v3976
        %3994 = vst.msk [vmem:[#allocation4 + $0xfc] sm:$0xf] %vm3762, %v3978
        %3995 = vrot.lane.b32.xlu0 %v3746, 114
        %v3996 = vpop.permute.xlu0 %3995
        %3997 = vrot.lane.b32.xlu0 %v3747, 114
        %v3998 = vpop.permute.xlu0 %3997
        %3999 = vrot.lane.b32.xlu0 %v3748, 114
        %v4000 = vpop.permute.xlu0 %3999
        %4001 = vrot.lane.b32.xlu0 %v3749, 114
        %v4002 = vpop.permute.xlu0 %4001
        %4003 = vrot.lane.b32.xlu0 %v3750, 114
        %v4004 = vpop.permute.xlu0 %4003
        %4005 = vrot.lane.b32.xlu0 %v3751, 114
        %v4006 = vpop.permute.xlu0 %4005
        %4007 = vrot.lane.b32.xlu0 %v3752, 114
        %v4008 = vpop.permute.xlu0 %4007
        %4009 = vrot.lane.b32.xlu0 %v3753, 114
        %v4010 = vpop.permute.xlu0 %4009
        %4019 = vst.msk [vmem:[#allocation4 + $0x100] sm:$0xf] %vm3762, %v3996
        %4020 = vst.msk [vmem:[#allocation4 + $0x104] sm:$0xf] %vm3762, %v3998
        %4021 = vst.msk [vmem:[#allocation4 + $0x108] sm:$0xf] %vm3762, %v4000
        %4022 = vst.msk [vmem:[#allocation4 + $0x10c] sm:$0xf] %vm3762, %v4002
        %4023 = vst.msk [vmem:[#allocation4 + $0x110] sm:$0xf] %vm3762, %v4004
        %4024 = vst.msk [vmem:[#allocation4 + $0x114] sm:$0xf] %vm3762, %v4006
        %4025 = vst.msk [vmem:[#allocation4 + $0x118] sm:$0xf] %vm3762, %v4008
        %4026 = vst.msk [vmem:[#allocation4 + $0x11c] sm:$0xf] %vm3762, %v4010
        %v4027 = vld [vmem:[%s5] sm:$0xff]
        %v4028 = vld [vmem:[%s5 + $0x8] sm:$0xff]
        %v4029 = vld [vmem:[%s5 + $0x10] sm:$0xf]
        %v4030 = vld [vmem:[%s5 + $0x14] sm:$0xff]
        %v4031 = vld [vmem:[%s5 + $0x1c] sm:$0xff]
        %v4032 = vld [vmem:[%s5 + $0x24] sm:$0xf]
        %v4033 = vld [vmem:[%s5 + $0x28] sm:$0xff]
        %v4034 = vld [vmem:[%s5 + $0x30] sm:$0xff]
        %v4035 = vld [vmem:[%s5 + $0x38] sm:$0xf]
        %v4036 = vld [vmem:[%s5 + $0x3c] sm:$0xff]
        %v4037 = vld [vmem:[%s5 + $0x44] sm:$0xff]
        %v4038 = vld [vmem:[%s5 + $0x4c] sm:$0xf]
        %v4039 = vld [vmem:[%s5 + $0x50] sm:$0xff]
        %v4040 = vld [vmem:[%s5 + $0x58] sm:$0xff]
        %v4041 = vld [vmem:[%s5 + $0x60] sm:$0xf]
        %v4042 = vld [vmem:[%s5 + $0x64] sm:$0xff]
        %v4043 = vld [vmem:[%s5 + $0x6c] sm:$0xff]
        %v4044 = vld [vmem:[%s5 + $0x74] sm:$0xf]
        %v4045 = vld [vmem:[%s5 + $0x78] sm:$0xff]
        %v4046 = vld [vmem:[%s5 + $0x80] sm:$0xff]
        %v4047 = vld [vmem:[%s5 + $0x88] sm:$0xf]
        %v4048 = vld [vmem:[%s5 + $0x8c] sm:$0xff]
        %v4049 = vld [vmem:[%s5 + $0x94] sm:$0xff]
        %v4050 = vld [vmem:[%s5 + $0x9c] sm:$0xf]
        %v4051 = vld [vmem:[#allocation4] sm:$0xf]
        %v4052 = vld [vmem:[#allocation4 + $0x4] sm:$0xf]
        %v4053 = vld [vmem:[#allocation4 + $0x8] sm:$0xf]
        %v4054 = vld [vmem:[#allocation4 + $0xc] sm:$0xf]
        %v4055 = vld [vmem:[#allocation4 + $0x10] sm:$0xf]
        %v4056 = vld [vmem:[#allocation4 + $0x14] sm:$0xf]
        %v4057 = vld [vmem:[#allocation4 + $0x18] sm:$0xf]
        %v4058 = vld [vmem:[#allocation4 + $0x1c] sm:$0xf]
        %v4059 = vld [vmem:[#allocation4 + $0x20] sm:$0xf]
        %v4060 = vld [vmem:[#allocation4 + $0x24] sm:$0xf]
        %v4061 = vld [vmem:[#allocation4 + $0x28] sm:$0xf]
        %v4062 = vld [vmem:[#allocation4 + $0x2c] sm:$0xf]
        %v4063 = vld [vmem:[#allocation4 + $0x30] sm:$0xf]
        %v4064 = vld [vmem:[#allocation4 + $0x34] sm:$0xf]
        %v4065 = vld [vmem:[#allocation4 + $0x38] sm:$0xf]
        %v4066 = vld [vmem:[#allocation4 + $0x3c] sm:$0xf]
        %v4067 = vld [vmem:[#allocation4 + $0x40] sm:$0xf]
        %v4068 = vld [vmem:[#allocation4 + $0x44] sm:$0xf]
        %v4069 = vld [vmem:[#allocation4 + $0x48] sm:$0xf]
        %v4070 = vld [vmem:[#allocation4 + $0x4c] sm:$0xf]
        %v4071 = vld [vmem:[#allocation4 + $0x50] sm:$0xf]
        %v4072 = vld [vmem:[#allocation4 + $0x54] sm:$0xf]
        %v4073 = vld [vmem:[#allocation4 + $0x58] sm:$0xf]
        %v4074 = vld [vmem:[#allocation4 + $0x5c] sm:$0xf]
        %v4075 = vld [vmem:[#allocation4 + $0x60] sm:$0xf]
        %v4076 = vld [vmem:[#allocation4 + $0x64] sm:$0xf]
        %v4077 = vld [vmem:[#allocation4 + $0x68] sm:$0xf]
        %v4078 = vld [vmem:[#allocation4 + $0x6c] sm:$0xf]
        %v4079 = vld [vmem:[#allocation4 + $0x70] sm:$0xf]
        %v4080 = vld [vmem:[#allocation4 + $0x74] sm:$0xf]
        %v4081 = vld [vmem:[#allocation4 + $0x78] sm:$0xf]
        %v4082 = vld [vmem:[#allocation4 + $0x7c] sm:$0xf]
        %v4083 = vld [vmem:[#allocation4 + $0x80] sm:$0xf]
        %v4084 = vld [vmem:[#allocation4 + $0x84] sm:$0xf]
        %v4085 = vld [vmem:[#allocation4 + $0x88] sm:$0xf]
        %v4086 = vld [vmem:[#allocation4 + $0x8c] sm:$0xf]
        %v4087 = vld [vmem:[#allocation4 + $0x90] sm:$0xf]
        %v4088 = vld [vmem:[#allocation4 + $0x94] sm:$0xf]
        %v4089 = vld [vmem:[#allocation4 + $0x98] sm:$0xf]
        %v4090 = vld [vmem:[#allocation4 + $0x9c] sm:$0xf]
        %v4091 = vld [vmem:[#allocation4 + $0xa0] sm:$0xf]
        %v4092 = vld [vmem:[#allocation4 + $0xa4] sm:$0xf]
        %v4093 = vld [vmem:[#allocation4 + $0xa8] sm:$0xf]
        %v4094 = vld [vmem:[#allocation4 + $0xac] sm:$0xf]
        %v4095 = vld [vmem:[#allocation4 + $0xb0] sm:$0xf]
        %v4096 = vld [vmem:[#allocation4 + $0xb4] sm:$0xf]
        %v4097 = vld [vmem:[#allocation4 + $0xb8] sm:$0xf]
        %v4098 = vld [vmem:[#allocation4 + $0xbc] sm:$0xf]
        %v4099 = vld [vmem:[#allocation4 + $0xc0] sm:$0xf]
        %v4100 = vld [vmem:[#allocation4 + $0xc4] sm:$0xf]
        %v4101 = vld [vmem:[#allocation4 + $0xc8] sm:$0xf]
        %v4102 = vld [vmem:[#allocation4 + $0xcc] sm:$0xf]
        %v4103 = vld [vmem:[#allocation4 + $0xd0] sm:$0xf]
        %v4104 = vld [vmem:[#allocation4 + $0xd4] sm:$0xf]
        %v4105 = vld [vmem:[#allocation4 + $0xd8] sm:$0xf]
        %v4106 = vld [vmem:[#allocation4 + $0xdc] sm:$0xf]
        %v4107 = vld [vmem:[#allocation4 + $0xe0] sm:$0xf]
        %v4108 = vld [vmem:[#allocation4 + $0xe4] sm:$0xf]
        %v4109 = vld [vmem:[#allocation4 + $0xe8] sm:$0xf]
        %v4110 = vld [vmem:[#allocation4 + $0xec] sm:$0xf]
        %v4111 = vld [vmem:[#allocation4 + $0xf0] sm:$0xf]
        %v4112 = vld [vmem:[#allocation4 + $0xf4] sm:$0xf]
        %v4113 = vld [vmem:[#allocation4 + $0xf8] sm:$0xf]
        %v4114 = vld [vmem:[#allocation4 + $0xfc] sm:$0xf]
        %v4115 = vld [vmem:[#allocation4 + $0x100] sm:$0xf]
        %v4116 = vld [vmem:[#allocation4 + $0x104] sm:$0xf]
        %v4117 = vld [vmem:[#allocation4 + $0x108] sm:$0xf]
        %v4118 = vld [vmem:[#allocation4 + $0x10c] sm:$0xf]
        %v4119 = vld [vmem:[#allocation4 + $0x110] sm:$0xf]
        %v4120 = vld [vmem:[#allocation4 + $0x114] sm:$0xf]
        %v4121 = vld [vmem:[#allocation4 + $0x118] sm:$0xf]
        %v4122 = vld [vmem:[#allocation4 + $0x11c] sm:$0xf]
        %v4123 = vld [vmem:[%s6] sm:$0xff]
        %v4124 = vld [vmem:[%s6 + $0x8] sm:$0xff]
        %v4125 = vld [vmem:[%s6 + $0x10] sm:$0xff]
        %v4126 = vld [vmem:[%s6 + $0x18] sm:$0xff]
        %v4127 = vld [vmem:[%s6 + $0x20] sm:$0xff]
        %v4128 = vld [vmem:[%s6 + $0x28] sm:$0xff]
        %v4129 = vld [vmem:[%s6 + $0x30] sm:$0xff]
        %v4130 = vld [vmem:[%s6 + $0x38] sm:$0xff]
        %4132 = vset.pattern.permute.xlu0 0
        %4133 = vperm.xlu0 %4132, %v4123
        %v4134 = vpop.permute.xlu0 %4133
        %4137 = vset.pattern.permute.xlu0 0
        %4138 = vperm.xlu0 %4137, %v4124
        %v4139 = vpop.permute.xlu0 %4138
        %4142 = vset.pattern.permute.xlu0 0
        %4143 = vperm.xlu0 %4142, %v4125
        %v4144 = vpop.permute.xlu0 %4143
        %4147 = vset.pattern.permute.xlu0 0
        %4148 = vperm.xlu0 %4147, %v4126
        %v4149 = vpop.permute.xlu0 %4148
        %4152 = vset.pattern.permute.xlu0 0
        %4153 = vperm.xlu0 %4152, %v4127
        %v4154 = vpop.permute.xlu0 %4153
        %4157 = vset.pattern.permute.xlu0 0
        %4158 = vperm.xlu0 %4157, %v4128
        %v4159 = vpop.permute.xlu0 %4158
        %4162 = vset.pattern.permute.xlu0 0
        %4163 = vperm.xlu0 %4162, %v4129
        %v4164 = vpop.permute.xlu0 %4163
        %4167 = vset.pattern.permute.xlu0 0
        %4168 = vperm.xlu0 %4167, %v4130
        %v4169 = vpop.permute.xlu0 %4168
        %v4195 = vunpack.c.l.b16 %v4027
        %v4196 = vunpack.c.h.b16 %v4027
        %v4197 = vunpack.c.l.b16 %v4028
        %v4198 = vunpack.c.h.b16 %v4028
        %v4199 = vunpack.c.l.b16 %v4029
        %v4200 = vunpack.c.l.b16 %v4030
        %v4201 = vunpack.c.h.b16 %v4030
        %v4202 = vunpack.c.l.b16 %v4031
        %v4203 = vunpack.c.h.b16 %v4031
        %v4204 = vunpack.c.l.b16 %v4032
        %v4205 = vunpack.c.l.b16 %v4033
        %v4206 = vunpack.c.h.b16 %v4033
        %v4207 = vunpack.c.l.b16 %v4034
        %v4208 = vunpack.c.h.b16 %v4034
        %v4209 = vunpack.c.l.b16 %v4035
        %v4210 = vunpack.c.l.b16 %v4036
        %v4211 = vunpack.c.h.b16 %v4036
        %v4212 = vunpack.c.l.b16 %v4037
        %v4213 = vunpack.c.h.b16 %v4037
        %v4214 = vunpack.c.l.b16 %v4038
        %v4215 = vunpack.c.l.b16 %v4039
        %v4216 = vunpack.c.h.b16 %v4039
        %v4217 = vunpack.c.l.b16 %v4040
        %v4218 = vunpack.c.h.b16 %v4040
        %v4219 = vunpack.c.l.b16 %v4041
        %v4220 = vunpack.c.l.b16 %v4042
        %v4221 = vunpack.c.h.b16 %v4042
        %v4222 = vunpack.c.l.b16 %v4043
        %v4223 = vunpack.c.h.b16 %v4043
        %v4224 = vunpack.c.l.b16 %v4044
        %v4225 = vunpack.c.l.b16 %v4045
        %v4226 = vunpack.c.h.b16 %v4045
        %v4227 = vunpack.c.l.b16 %v4046
        %v4228 = vunpack.c.h.b16 %v4046
        %v4229 = vunpack.c.l.b16 %v4047
        %v4230 = vunpack.c.l.b16 %v4048
        %v4231 = vunpack.c.h.b16 %v4048
        %v4232 = vunpack.c.l.b16 %v4049
        %v4233 = vunpack.c.h.b16 %v4049
        %v4234 = vunpack.c.l.b16 %v4050
        %v4235 = vpack.c.b16 %v4200, %v4195
        %v4236 = vpack.c.b16 %v4201, %v4196
        %v4237 = vpack.c.b16 %v4202, %v4197
        %v4238 = vpack.c.b16 %v4203, %v4198
        %v4239 = vpack.c.b16 %v4204, %v4199
        %v4240 = vpack.c.b16 %v4210, %v4205
        %v4241 = vpack.c.b16 %v4211, %v4206
        %v4242 = vpack.c.b16 %v4212, %v4207
        %v4243 = vpack.c.b16 %v4213, %v4208
        %v4244 = vpack.c.b16 %v4214, %v4209
        %v4245 = vpack.c.b16 %v4220, %v4215
        %v4246 = vpack.c.b16 %v4221, %v4216
        %v4247 = vpack.c.b16 %v4222, %v4217
        %v4248 = vpack.c.b16 %v4223, %v4218
        %v4249 = vpack.c.b16 %v4224, %v4219
        %v4250 = vpack.c.b16 %v4230, %v4225
        %v4251 = vpack.c.b16 %v4231, %v4226
        %v4252 = vpack.c.b16 %v4232, %v4227
        %v4253 = vpack.c.b16 %v4233, %v4228
        %v4254 = vpack.c.b16 %v4234, %v4229
        %v4343 = vunpack.c.l.b16 %v4051
        %v4344 = vunpack.c.l.b16 %v4052
        %v4345 = vunpack.c.l.b16 %v4053
        %v4346 = vunpack.c.l.b16 %v4054
        %v4347 = vunpack.c.l.b16 %v4055
        %v4348 = vunpack.c.l.b16 %v4056
        %v4349 = vunpack.c.l.b16 %v4057
        %v4350 = vunpack.c.l.b16 %v4058
        %v4351 = vunpack.c.l.b16 %v4059
        %v4352 = vunpack.c.l.b16 %v4060
        %v4353 = vunpack.c.l.b16 %v4061
        %v4354 = vunpack.c.l.b16 %v4062
        %v4355 = vunpack.c.l.b16 %v4063
        %v4356 = vunpack.c.l.b16 %v4064
        %v4357 = vunpack.c.l.b16 %v4065
        %v4358 = vunpack.c.l.b16 %v4066
        %v4359 = vunpack.c.l.b16 %v4067
        %v4360 = vunpack.c.l.b16 %v4068
        %v4361 = vunpack.c.l.b16 %v4069
        %v4362 = vunpack.c.l.b16 %v4070
        %v4363 = vunpack.c.l.b16 %v4071
        %v4364 = vunpack.c.l.b16 %v4072
        %v4365 = vunpack.c.l.b16 %v4073
        %v4366 = vunpack.c.l.b16 %v4074
        %v4367 = vunpack.c.l.b16 %v4075
        %v4368 = vunpack.c.l.b16 %v4076
        %v4369 = vunpack.c.l.b16 %v4077
        %v4370 = vunpack.c.l.b16 %v4078
        %v4371 = vunpack.c.l.b16 %v4079
        %v4372 = vunpack.c.l.b16 %v4080
        %v4373 = vunpack.c.l.b16 %v4081
        %v4374 = vunpack.c.l.b16 %v4082
        %v4375 = vunpack.c.l.b16 %v4083
        %v4376 = vunpack.c.l.b16 %v4084
        %v4377 = vunpack.c.l.b16 %v4085
        %v4378 = vunpack.c.l.b16 %v4086
        %v4379 = vunpack.c.l.b16 %v4087
        %v4380 = vunpack.c.l.b16 %v4088
        %v4381 = vunpack.c.l.b16 %v4089
        %v4382 = vunpack.c.l.b16 %v4090
        %v4383 = vunpack.c.l.b16 %v4091
        %v4384 = vunpack.c.l.b16 %v4092
        %v4385 = vunpack.c.l.b16 %v4093
        %v4386 = vunpack.c.l.b16 %v4094
        %v4387 = vunpack.c.l.b16 %v4095
        %v4388 = vunpack.c.l.b16 %v4096
        %v4389 = vunpack.c.l.b16 %v4097
        %v4390 = vunpack.c.l.b16 %v4098
        %v4391 = vunpack.c.l.b16 %v4099
        %v4392 = vunpack.c.l.b16 %v4100
        %v4393 = vunpack.c.l.b16 %v4101
        %v4394 = vunpack.c.l.b16 %v4102
        %v4395 = vunpack.c.l.b16 %v4103
        %v4396 = vunpack.c.l.b16 %v4104
        %v4397 = vunpack.c.l.b16 %v4105
        %v4398 = vunpack.c.l.b16 %v4106
        %v4399 = vunpack.c.l.b16 %v4107
        %v4400 = vunpack.c.l.b16 %v4108
        %v4401 = vunpack.c.l.b16 %v4109
        %v4402 = vunpack.c.l.b16 %v4110
        %v4403 = vunpack.c.l.b16 %v4111
        %v4404 = vunpack.c.l.b16 %v4112
        %v4405 = vunpack.c.l.b16 %v4113
        %v4406 = vunpack.c.l.b16 %v4114
        %v4407 = vunpack.c.l.b16 %v4115
        %v4408 = vunpack.c.l.b16 %v4116
        %v4409 = vunpack.c.l.b16 %v4117
        %v4410 = vunpack.c.l.b16 %v4118
        %v4411 = vunpack.c.l.b16 %v4119
        %v4412 = vunpack.c.l.b16 %v4120
        %v4413 = vunpack.c.l.b16 %v4121
        %v4414 = vunpack.c.l.b16 %v4122
        %v4415 = vpack.c.b16 %v4344, %v4343
        %v4416 = vpack.c.b16 %v4346, %v4345
        %v4417 = vpack.c.b16 %v4348, %v4347
        %v4418 = vpack.c.b16 %v4350, %v4349
        %v4419 = vpack.c.b16 %v4352, %v4351
        %v4420 = vpack.c.b16 %v4354, %v4353
        %v4421 = vpack.c.b16 %v4356, %v4355
        %v4422 = vpack.c.b16 %v4358, %v4357
        %v4423 = vpack.c.b16 %v4360, %v4359
        %v4424 = vpack.c.b16 %v4362, %v4361
        %v4425 = vpack.c.b16 %v4364, %v4363
        %v4426 = vpack.c.b16 %v4366, %v4365
        %v4427 = vpack.c.b16 %v4368, %v4367
        %v4428 = vpack.c.b16 %v4370, %v4369
        %v4429 = vpack.c.b16 %v4372, %v4371
        %v4430 = vpack.c.b16 %v4374, %v4373
        %v4431 = vpack.c.b16 %v4376, %v4375
        %v4432 = vpack.c.b16 %v4378, %v4377
        %v4433 = vpack.c.b16 %v4380, %v4379
        %v4434 = vpack.c.b16 %v4382, %v4381
        %v4435 = vpack.c.b16 %v4384, %v4383
        %v4436 = vpack.c.b16 %v4386, %v4385
        %v4437 = vpack.c.b16 %v4388, %v4387
        %v4438 = vpack.c.b16 %v4390, %v4389
        %v4439 = vpack.c.b16 %v4392, %v4391
        %v4440 = vpack.c.b16 %v4394, %v4393
        %v4441 = vpack.c.b16 %v4396, %v4395
        %v4442 = vpack.c.b16 %v4398, %v4397
        %v4443 = vpack.c.b16 %v4400, %v4399
        %v4444 = vpack.c.b16 %v4402, %v4401
        %v4445 = vpack.c.b16 %v4404, %v4403
        %v4446 = vpack.c.b16 %v4406, %v4405
        %v4447 = vpack.c.b16 %v4408, %v4407
        %v4448 = vpack.c.b16 %v4410, %v4409
        %v4449 = vpack.c.b16 %v4412, %v4411
        %v4450 = vpack.c.b16 %v4414, %v4413
        %v4488 = vsel %vm762, %v4239, 0
        %v4491 = vsel %vm762, %v4244, 0
        %v4494 = vsel %vm762, %v4249, 0
        %v4497 = vsel %vm762, %v4254, 0
        %4499 = vmatprep.subr.bf16.mxu0 0
        %4500 = vmatpush1.bf16.msra.mxu0 %v4422
        %4501 = vmatprep.subr.bf16.mxu0 0
        %4502 = vmatpush1.bf16.msra.mxu0 %v4421
        %4503 = vmatprep.subr.bf16.mxu0 0
        %4504 = vmatpush1.bf16.msra.mxu0 %v4420
        %4505 = vmatprep.subr.bf16.mxu0 0
        %4506 = vmatpush1.bf16.msra.mxu0 %v4419
        %4507 = vmatprep.subr.bf16.mxu0 0
        %4508 = vmatpush1.bf16.msra.mxu0 %v4418
        %4509 = vmatprep.subr.bf16.mxu0 0
        %4510 = vmatpush1.bf16.msra.mxu0 %v4417
        %4511 = vmatprep.subr.bf16.mxu0 0
        %4512 = vmatpush1.bf16.msra.mxu0 %v4416
        %4513 = vmatprep.subr.bf16.mxu0 0
        %4514 = vmatpush1.bf16.msra.mxu0 %v4415
        %4515 = vmatprep.subr.bf16.mxu0 0
        %4516 = vmatpush2.bf16.msra.mxu0 %v4430
        %4517 = vmatprep.subr.bf16.mxu0 0
        %4518 = vmatpush2.bf16.msra.mxu0 %v4429
        %4519 = vmatprep.subr.bf16.mxu0 0
        %4520 = vmatpush2.bf16.msra.mxu0 %v4428
        %4521 = vmatprep.subr.bf16.mxu0 0
        %4522 = vmatpush2.bf16.msra.mxu0 %v4427
        %4523 = vmatprep.subr.bf16.mxu0 0
        %4524 = vmatpush2.bf16.msra.mxu0 %v4426
        %4525 = vmatprep.subr.bf16.mxu0 0
        %4526 = vmatpush2.bf16.msra.mxu0 %v4425
        %4527 = vmatprep.subr.bf16.mxu0 0
        %4528 = vmatpush2.bf16.msra.mxu0 %v4424
        %4529 = vmatprep.subr.bf16.mxu0 0
        %4530 = vmatpush2.bf16.msra.mxu0 %v4423
        %4531 = vmatprep.mubr.bf16.mxu0 %v4236
        %4532 = vmatmul.mubr.bf16.gmra.mxu0 %v4235
        %v4533 = vpop.f32.mrf.mxu0
        %v4534 = vadd.f32 %v4134, %v4533
        %v4535 = vpop.f32.mrf.mxu0
        %v4536 = vpop.f32.mrf.mxu0
        %v4537 = vadd.f32 %v4139, %v4536
        %v4538 = vpop.f32.mrf.mxu0
        %4539 = vmatprep.mubr.bf16.mxu0 %v4241
        %4540 = vmatmul.mubr.bf16.gmra.mxu0 %v4240
        %v4541 = vpop.f32.mrf.mxu0
        %v4542 = vadd.f32 %v4144, %v4541
        %v4543 = vpop.f32.mrf.mxu0
        %v4544 = vpop.f32.mrf.mxu0
        %v4545 = vadd.f32 %v4149, %v4544
        %v4546 = vpop.f32.mrf.mxu0
        %4547 = vmatprep.mubr.bf16.mxu0 %v4246
        %4548 = vmatmul.mubr.bf16.gmra.mxu0 %v4245
        %v4549 = vpop.f32.mrf.mxu0
        %v4550 = vadd.f32 %v4154, %v4549
        %v4551 = vpop.f32.mrf.mxu0
        %v4552 = vpop.f32.mrf.mxu0
        %v4553 = vadd.f32 %v4159, %v4552
        %v4554 = vpop.f32.mrf.mxu0
        %4555 = vmatprep.mubr.bf16.mxu0 %v4251
        %4556 = vmatmul.mubr.bf16.gmra.mxu0 %v4250
        %v4557 = vpop.f32.mrf.mxu0
        %v4558 = vadd.f32 %v4164, %v4557
        %v4559 = vpop.f32.mrf.mxu0
        %v4560 = vpop.f32.mrf.mxu0
        %v4561 = vadd.f32 %v4169, %v4560
        %v4562 = vpop.f32.mrf.mxu0
        %4563 = vdwg.mxu0
        %4564 = vmatprep.subr.bf16.mxu0 0
        %4565 = vmatpush1.bf16.msra.mxu0 %v4438
        %4566 = vmatprep.subr.bf16.mxu0 0
        %4567 = vmatpush1.bf16.msra.mxu0 %v4437
        %4568 = vmatprep.subr.bf16.mxu0 0
        %4569 = vmatpush1.bf16.msra.mxu0 %v4436
        %4570 = vmatprep.subr.bf16.mxu0 0
        %4571 = vmatpush1.bf16.msra.mxu0 %v4435
        %4572 = vmatprep.subr.bf16.mxu0 0
        %4573 = vmatpush1.bf16.msra.mxu0 %v4434
        %4574 = vmatprep.subr.bf16.mxu0 0
        %4575 = vmatpush1.bf16.msra.mxu0 %v4433
        %4576 = vmatprep.subr.bf16.mxu0 0
        %4577 = vmatpush1.bf16.msra.mxu0 %v4432
        %4578 = vmatprep.subr.bf16.mxu0 0
        %4579 = vmatpush1.bf16.msra.mxu0 %v4431
        %4580 = vmatprep.subr.bf16.mxu0 0
        %4581 = vmatpush2.bf16.msra.mxu0 %v4446
        %4582 = vmatprep.subr.bf16.mxu0 0
        %4583 = vmatpush2.bf16.msra.mxu0 %v4445
        %4584 = vmatprep.subr.bf16.mxu0 0
        %4585 = vmatpush2.bf16.msra.mxu0 %v4444
        %4586 = vmatprep.subr.bf16.mxu0 0
        %4587 = vmatpush2.bf16.msra.mxu0 %v4443
        %4588 = vmatprep.subr.bf16.mxu0 0
        %4589 = vmatpush2.bf16.msra.mxu0 %v4442
        %4590 = vmatprep.subr.bf16.mxu0 0
        %4591 = vmatpush2.bf16.msra.mxu0 %v4441
        %4592 = vmatprep.subr.bf16.mxu0 0
        %4593 = vmatpush2.bf16.msra.mxu0 %v4440
        %4594 = vmatprep.subr.bf16.mxu0 0
        %4595 = vmatpush2.bf16.msra.mxu0 %v4439
        %4596 = vmatprep.mubr.bf16.mxu0 %v4238
        %4597 = vmatmul.mubr.bf16.gmra.mxu0 %v4237
        %v4598 = vpop.f32.mrf.mxu0
        %v4599 = vadd.f32 %v4534, %v4598
        %v4600 = vpop.f32.mrf.mxu0
        %v4601 = vpop.f32.mrf.mxu0
        %v4602 = vadd.f32 %v4537, %v4601
        %v4603 = vpop.f32.mrf.mxu0
        %4604 = vmatprep.mubr.bf16.mxu0 %v4243
        %4605 = vmatmul.mubr.bf16.gmra.mxu0 %v4242
        %v4606 = vpop.f32.mrf.mxu0
        %v4607 = vadd.f32 %v4542, %v4606
        %v4608 = vpop.f32.mrf.mxu0
        %v4609 = vpop.f32.mrf.mxu0
        %v4610 = vadd.f32 %v4545, %v4609
        %v4611 = vpop.f32.mrf.mxu0
        %4612 = vmatprep.mubr.bf16.mxu0 %v4248
        %4613 = vmatmul.mubr.bf16.gmra.mxu0 %v4247
        %v4614 = vpop.f32.mrf.mxu0
        %v4615 = vadd.f32 %v4550, %v4614
        %v4616 = vpop.f32.mrf.mxu0
        %v4617 = vpop.f32.mrf.mxu0
        %v4618 = vadd.f32 %v4553, %v4617
        %v4619 = vpop.f32.mrf.mxu0
        %4620 = vmatprep.mubr.bf16.mxu0 %v4253
        %4621 = vmatmul.mubr.bf16.gmra.mxu0 %v4252
        %v4622 = vpop.f32.mrf.mxu0
        %v4623 = vadd.f32 %v4558, %v4622
        %v4624 = vpop.f32.mrf.mxu0
        %v4625 = vpop.f32.mrf.mxu0
        %v4626 = vadd.f32 %v4561, %v4625
        %v4627 = vpop.f32.mrf.mxu0
        %4628 = vdwg.mxu0
        %4629 = vmatprep.subr.bf16.mxu0 0
        %4630 = vmatpush1.bf16.msra.mxu0 0
        %4631 = vmatprep.subr.bf16.mxu0 0
        %4632 = vmatpush1.bf16.msra.mxu0 0
        %4633 = vmatprep.subr.bf16.mxu0 0
        %4634 = vmatpush1.bf16.msra.mxu0 0
        %4635 = vmatprep.subr.bf16.mxu0 0
        %4636 = vmatpush1.bf16.msra.mxu0 0
        %4637 = vmatprep.subr.bf16.mxu0 0
        %4638 = vmatpush1.bf16.msra.mxu0 %v4450
        %4639 = vmatprep.subr.bf16.mxu0 0
        %4640 = vmatpush1.bf16.msra.mxu0 %v4449
        %4641 = vmatprep.subr.bf16.mxu0 0
        %4642 = vmatpush1.bf16.msra.mxu0 %v4448
        %4643 = vmatprep.subr.bf16.mxu0 0
        %4644 = vmatpush1.bf16.msra.mxu0 %v4447
        %4645 = vmatprep.subr.bf16.mxu0 0
        %4646 = vmatpush2.bf16.msra.mxu0 0
        %4647 = vmatprep.subr.bf16.mxu0 0
        %4648 = vmatpush2.bf16.msra.mxu0 0
        %4649 = vmatprep.subr.bf16.mxu0 0
        %4650 = vmatpush2.bf16.msra.mxu0 0
        %4651 = vmatprep.subr.bf16.mxu0 0
        %4652 = vmatpush2.bf16.msra.mxu0 0
        %4653 = vmatprep.subr.bf16.mxu0 0
        %4654 = vmatpush2.bf16.msra.mxu0 0
        %4655 = vmatprep.subr.bf16.mxu0 0
        %4656 = vmatpush2.bf16.msra.mxu0 0
        %4657 = vmatprep.subr.bf16.mxu0 0
        %4658 = vmatpush2.bf16.msra.mxu0 0
        %4659 = vmatprep.subr.bf16.mxu0 0
        %4660 = vmatpush2.bf16.msra.mxu0 0
        %4661 = vmatprep.mubr.bf16.mxu0 0
        %4662 = vmatmul.mubr.bf16.gmra.mxu0 %v4488
        %v4663 = vpop.f32.mrf.mxu0
        %v4664 = vadd.f32 %v4599, %v4663
        %v4665 = vpop.f32.mrf.mxu0
        %v4666 = vpop.f32.mrf.mxu0
        %v4667 = vadd.f32 %v4602, %v4666
        %v4668 = vpop.f32.mrf.mxu0
        %4669 = vmatprep.mubr.bf16.mxu0 0
        %4670 = vmatmul.mubr.bf16.gmra.mxu0 %v4491
        %v4671 = vpop.f32.mrf.mxu0
        %v4672 = vadd.f32 %v4607, %v4671
        %v4673 = vpop.f32.mrf.mxu0
        %v4674 = vpop.f32.mrf.mxu0
        %v4675 = vadd.f32 %v4610, %v4674
        %v4676 = vpop.f32.mrf.mxu0
        %4677 = vmatprep.mubr.bf16.mxu0 0
        %4678 = vmatmul.mubr.bf16.gmra.mxu0 %v4494
        %v4679 = vpop.f32.mrf.mxu0
        %v4680 = vadd.f32 %v4615, %v4679
        %v4681 = vpop.f32.mrf.mxu0
        %v4682 = vpop.f32.mrf.mxu0
        %v4683 = vadd.f32 %v4618, %v4682
        %v4684 = vpop.f32.mrf.mxu0
        %4685 = vmatprep.mubr.bf16.mxu0 0
        %4686 = vmatmul.mubr.bf16.gmra.mxu0 %v4497
        %v4687 = vpop.f32.mrf.mxu0
        %v4688 = vadd.f32 %v4623, %v4687
        %v4689 = vpop.f32.mrf.mxu0
        %v4690 = vpop.f32.mrf.mxu0
        %v4691 = vadd.f32 %v4626, %v4690
        %v4692 = vpop.f32.mrf.mxu0
        %4693 = vdwg.mxu0
        %v4694 = vlaneseq
        %vm4695 = vcmp.ge.s32.totalorder %v4694, 0
        %vm4696 = vcmp.lt.s32.totalorder %v4694, 22
        %vm4697 = vmand %vm4695, %vm4696
        %4698 = vst.msk [vmem:[#allocation5] sm:$0x1] %vm4697, %v4664
        %v4701 = vunpack.c.l.s4 1966171168
        %v4702 = vunpack.c.0.s8 %v4701
        %v4703 = vlaneseq
        %v4704 = vshrl.u32 %v4703, 7
        %v4705 = vsub.s32 %v4702, %v4704
        %v4706 = vrot.slane %v4664, %v4705
        %v4707 = vcombine.high %v4706, %v4706
        %v4709 = vunpack.c.l.s4 1966171168
        %v4710 = vunpack.c.0.s8 %v4709
        %v4711 = vlaneseq
        %v4712 = vshrl.u32 %v4711, 7
        %v4713 = vsub.s32 %v4710, %v4712
        %v4714 = vrot.slane %v4706, %v4713
        %v4716 = vunpack.c.l.s4 1966171168
        %v4717 = vunpack.c.0.s8 %v4716
        %v4718 = vlaneseq
        %v4719 = vshrl.u32 %v4718, 7
        %v4720 = vsub.s32 %v4717, %v4719
        %v4721 = vrot.slane %v4707, %v4720
        %4722 = vrot.lane.b32.xlu0 %v4721, 22
        %v4723 = vpop.permute.xlu0 %4722
        %vm4725 = vcmp.ge.s32.totalorder %v4694, 22
        %vm4726 = vcmp.lt.s32.totalorder %v4694, 44
        %vm4727 = vmand %vm4725, %vm4726
        %4728 = vst.msk [vmem:[#allocation5] sm:$0x1] %vm4727, %v4723
        %v4729 = vcombine.high %v4714, %v4714
        %4730 = vrot.lane.b32.xlu0 %v4729, 44
        %v4731 = vpop.permute.xlu0 %4730
        %vm4733 = vcmp.ge.s32.totalorder %v4694, 44
        %vm4734 = vcmp.lt.s32.totalorder %v4694, 66
        %vm4735 = vmand %vm4733, %vm4734
        %4736 = vst.msk [vmem:[#allocation5] sm:$0x1] %vm4735, %v4731
        %v4737 = vcombine.high %v4721, %v4721
        %4738 = vrot.lane.b32.xlu0 %v4737, 66
        %v4739 = vpop.permute.xlu0 %4738
        %vm4741 = vcmp.ge.s32.totalorder %v4694, 66
        %vm4742 = vcmp.lt.s32.totalorder %v4694, 88
        %vm4743 = vmand %vm4741, %vm4742
        %4744 = vst.msk [vmem:[#allocation5] sm:$0x1] %vm4743, %v4739
        %v4745 = vcombine.high %v4664, %v4664
        %v4747 = vunpack.c.l.s4 1966171168
        %v4748 = vunpack.c.0.s8 %v4747
        %v4749 = vlaneseq
        %v4750 = vshrl.u32 %v4749, 7
        %v4751 = vsub.s32 %v4748, %v4750
        %v4752 = vrot.slane %v4745, %v4751
        %v4754 = vunpack.c.l.s4 1966171168
        %v4755 = vunpack.c.0.s8 %v4754
        %v4756 = vlaneseq
        %v4757 = vshrl.u32 %v4756, 7
        %v4758 = vsub.s32 %v4755, %v4757
        %v4759 = vrot.slane %v4752, %v4758
        %4760 = vrot.lane.b32.xlu0 %v4759, 88
        %v4761 = vpop.permute.xlu0 %4760
        %vm4763 = vcmp.ge.s32.totalorder %v4694, 88
        %vm4764 = vcmp.lt.s32.totalorder %v4694, 110
        %vm4765 = vmand %vm4763, %vm4764
        %4766 = vst.msk [vmem:[#allocation5] sm:$0x1] %vm4765, %v4761
        %v4767 = vcombine.high %v4752, %v4752
        %v4769 = vunpack.c.l.s4 1966171168
        %v4770 = vunpack.c.0.s8 %v4769
        %v4771 = vlaneseq
        %v4772 = vshrl.u32 %v4771, 7
        %v4773 = vsub.s32 %v4770, %v4772
        %v4774 = vrot.slane %v4767, %v4773
        %4775 = vrot.lane.b32.xlu0 %v4774, 110
        %v4776 = vpop.permute.xlu0 %4775
        %v4777 = vrot.slane %v4776, 7
        %vm4778 = vcmask 900096
        %v4779 = vsel %vm4778, %v4777, %v4776
        %vm4781 = vcmp.ge.s32.totalorder %v4694, 110
        %vm4782 = vcmp.lt.s32.totalorder %v4694, 132
        %vm4783 = vmand %vm4781, %vm4782
        %4784 = vst.msk [vmem:[#allocation5] sm:$0x3] %vm4783, %v4779
        %v4785 = vcombine.high %v4759, %v4759
        %4786 = vrot.lane.b32.xlu0 %v4785, 4
        %v4787 = vpop.permute.xlu0 %4786
        %vm4789 = vcmp.ge.s32.totalorder %v4694, 4
        %vm4790 = vcmp.lt.s32.totalorder %v4694, 26
        %vm4791 = vmand %vm4789, %vm4790
        %4792 = vst.msk [vmem:[#allocation5 + $0x1] sm:$0x1] %vm4791, %v4787
        %v4793 = vcombine.high %v4774, %v4774
        %4794 = vrot.lane.b32.xlu0 %v4793, 26
        %v4795 = vpop.permute.xlu0 %4794
        %vm4797 = vcmp.ge.s32.totalorder %v4694, 26
        %vm4798 = vcmp.lt.s32.totalorder %v4694, 48
        %vm4799 = vmand %vm4797, %vm4798
        %4800 = vst.msk [vmem:[#allocation5 + $0x1] sm:$0x1] %vm4799, %v4795
        %v4803 = vunpack.c.l.s4 1966171168
        %v4804 = vunpack.c.0.s8 %v4803
        %v4805 = vlaneseq
        %v4806 = vshrl.u32 %v4805, 7
        %v4807 = vsub.s32 %v4804, %v4806
        %v4808 = vrot.slane %v4667, %v4807
        %v4810 = vunpack.c.l.s4 1966171168
        %v4811 = vunpack.c.0.s8 %v4810
        %v4812 = vlaneseq
        %v4813 = vshrl.u32 %v4812, 7
        %v4814 = vsub.s32 %v4811, %v4813
        %v4815 = vrot.slane %v4808, %v4814
        %4816 = vrot.lane.b32.xlu0 %v4815, 48
        %v4817 = vpop.permute.xlu0 %4816
        %vm4819 = vcmp.ge.s32.totalorder %v4694, 48
        %vm4820 = vcmp.lt.s32.totalorder %v4694, 70
        %vm4821 = vmand %vm4819, %vm4820
        %4822 = vst.msk [vmem:[#allocation5 + $0x1] sm:$0x1] %vm4821, %v4817
        %v4823 = vcombine.high %v4808, %v4808
        %v4825 = vunpack.c.l.s4 1966171168
        %v4826 = vunpack.c.0.s8 %v4825
        %v4827 = vlaneseq
        %v4828 = vshrl.u32 %v4827, 7
        %v4829 = vsub.s32 %v4826, %v4828
        %v4830 = vrot.slane %v4823, %v4829
        %4831 = vrot.lane.b32.xlu0 %v4830, 70
        %v4832 = vpop.permute.xlu0 %4831
        %vm4834 = vcmp.ge.s32.totalorder %v4694, 70
        %vm4835 = vcmp.lt.s32.totalorder %v4694, 92
        %vm4836 = vmand %vm4834, %vm4835
        %4837 = vst.msk [vmem:[#allocation5 + $0x1] sm:$0x1] %vm4836, %v4832
        %v4838 = vcombine.high %v4815, %v4815
        %4839 = vrot.lane.b32.xlu0 %v4838, 92
        %v4840 = vpop.permute.xlu0 %4839
        %vm4842 = vcmp.ge.s32.totalorder %v4694, 92
        %vm4843 = vcmp.lt.s32.totalorder %v4694, 114
        %vm4844 = vmand %vm4842, %vm4843
        %4845 = vst.msk [vmem:[#allocation5 + $0x1] sm:$0x1] %vm4844, %v4840
        %v4846 = vcombine.high %v4830, %v4830
        %4847 = vrot.lane.b32.xlu0 %v4846, 114
        %v4848 = vpop.permute.xlu0 %4847
        %v4849 = vrot.slane %v4848, 7
        %vm4850 = vcmask 932864
        %v4851 = vsel %vm4850, %v4849, %v4848
        %vm4853 = vcmp.ge.s32.totalorder %v4694, 114
        %vm4854 = vcmp.lt.s32.totalorder %v4694, 136
        %vm4855 = vmand %vm4853, %vm4854
        %4856 = vst.msk [vmem:[#allocation5 + $0x1] sm:$0x3] %vm4855, %v4851
        %v4857 = vcombine.high %v4667, %v4667
        %v4859 = vunpack.c.l.s4 1966171168
        %v4860 = vunpack.c.0.s8 %v4859
        %v4861 = vlaneseq
        %v4862 = vshrl.u32 %v4861, 7
        %v4863 = vsub.s32 %v4860, %v4862
        %v4864 = vrot.slane %v4857, %v4863
        %v4866 = vunpack.c.l.s4 1966171168
        %v4867 = vunpack.c.0.s8 %v4866
        %v4868 = vlaneseq
        %v4869 = vshrl.u32 %v4868, 7
        %v4870 = vsub.s32 %v4867, %v4869
        %v4871 = vrot.slane %v4864, %v4870
        %4872 = vrot.lane.b32.xlu0 %v4871, 8
        %v4873 = vpop.permute.xlu0 %4872
        %vm4875 = vcmp.ge.s32.totalorder %v4694, 8
        %vm4876 = vcmp.lt.s32.totalorder %v4694, 30
        %vm4877 = vmand %vm4875, %vm4876
        %4878 = vst.msk [vmem:[#allocation5 + $0x2] sm:$0x1] %vm4877, %v4873
        %v4879 = vcombine.high %v4864, %v4864
        %v4881 = vunpack.c.l.s4 1966171168
        %v4882 = vunpack.c.0.s8 %v4881
        %v4883 = vlaneseq
        %v4884 = vshrl.u32 %v4883, 7
        %v4885 = vsub.s32 %v4882, %v4884
        %v4886 = vrot.slane %v4879, %v4885
        %4887 = vrot.lane.b32.xlu0 %v4886, 30
        %v4888 = vpop.permute.xlu0 %4887
        %vm4890 = vcmp.ge.s32.totalorder %v4694, 30
        %vm4891 = vcmp.lt.s32.totalorder %v4694, 52
        %vm4892 = vmand %vm4890, %vm4891
        %4893 = vst.msk [vmem:[#allocation5 + $0x2] sm:$0x1] %vm4892, %v4888
        %v4894 = vcombine.high %v4871, %v4871
        %4895 = vrot.lane.b32.xlu0 %v4894, 52
        %v4896 = vpop.permute.xlu0 %4895
        %vm4898 = vcmp.ge.s32.totalorder %v4694, 52
        %vm4899 = vcmp.lt.s32.totalorder %v4694, 74
        %vm4900 = vmand %vm4898, %vm4899
        %4901 = vst.msk [vmem:[#allocation5 + $0x2] sm:$0x1] %vm4900, %v4896
        %v4902 = vcombine.high %v4886, %v4886
        %4903 = vrot.lane.b32.xlu0 %v4902, 74
        %v4904 = vpop.permute.xlu0 %4903
        %vm4906 = vcmp.ge.s32.totalorder %v4694, 74
        %vm4907 = vcmp.lt.s32.totalorder %v4694, 96
        %vm4908 = vmand %vm4906, %vm4907
        %4909 = vst.msk [vmem:[#allocation5 + $0x2] sm:$0x1] %vm4908, %v4904
        %v4912 = vunpack.c.l.s4 1966171168
        %v4913 = vunpack.c.0.s8 %v4912
        %v4914 = vlaneseq
        %v4915 = vshrl.u32 %v4914, 7
        %v4916 = vsub.s32 %v4913, %v4915
        %v4917 = vrot.slane %v4672, %v4916
        %v4919 = vunpack.c.l.s4 1966171168
        %v4920 = vunpack.c.0.s8 %v4919
        %v4921 = vlaneseq
        %v4922 = vshrl.u32 %v4921, 7
        %v4923 = vsub.s32 %v4920, %v4922
        %v4924 = vrot.slane %v4917, %v4923
        %4925 = vrot.lane.b32.xlu0 %v4924, 96
        %v4926 = vpop.permute.xlu0 %4925
        %vm4928 = vcmp.ge.s32.totalorder %v4694, 96
        %vm4929 = vcmp.lt.s32.totalorder %v4694, 118
        %vm4930 = vmand %vm4928, %vm4929
        %4931 = vst.msk [vmem:[#allocation5 + $0x2] sm:$0x1] %vm4930, %v4926
        %v4932 = vcombine.high %v4917, %v4917
        %v4934 = vunpack.c.l.s4 1966171168
        %v4935 = vunpack.c.0.s8 %v4934
        %v4936 = vlaneseq
        %v4937 = vshrl.u32 %v4936, 7
        %v4938 = vsub.s32 %v4935, %v4937
        %v4939 = vrot.slane %v4932, %v4938
        %4940 = vrot.lane.b32.xlu0 %v4939, 118
        %v4941 = vpop.permute.xlu0 %4940
        %v4942 = vrot.slane %v4941, 7
        %vm4943 = vcmask 965632
        %v4944 = vsel %vm4943, %v4942, %v4941
        %vm4946 = vcmp.ge.s32.totalorder %v4694, 118
        %vm4947 = vcmp.lt.s32.totalorder %v4694, 140
        %vm4948 = vmand %vm4946, %vm4947
        %4949 = vst.msk [vmem:[#allocation5 + $0x2] sm:$0x3] %vm4948, %v4944
        %v4950 = vcombine.high %v4924, %v4924
        %4951 = vrot.lane.b32.xlu0 %v4950, 12
        %v4952 = vpop.permute.xlu0 %4951
        %vm4954 = vcmp.ge.s32.totalorder %v4694, 12
        %vm4955 = vcmp.lt.s32.totalorder %v4694, 34
        %vm4956 = vmand %vm4954, %vm4955
        %4957 = vst.msk [vmem:[#allocation5 + $0x3] sm:$0x1] %vm4956, %v4952
        %v4958 = vcombine.high %v4939, %v4939
        %4959 = vrot.lane.b32.xlu0 %v4958, 34
        %v4960 = vpop.permute.xlu0 %4959
        %vm4962 = vcmp.ge.s32.totalorder %v4694, 34
        %vm4963 = vcmp.lt.s32.totalorder %v4694, 56
        %vm4964 = vmand %vm4962, %vm4963
        %4965 = vst.msk [vmem:[#allocation5 + $0x3] sm:$0x1] %vm4964, %v4960
        %v4966 = vcombine.high %v4672, %v4672
        %v4968 = vunpack.c.l.s4 1966171168
        %v4969 = vunpack.c.0.s8 %v4968
        %v4970 = vlaneseq
        %v4971 = vshrl.u32 %v4970, 7
        %v4972 = vsub.s32 %v4969, %v4971
        %v4973 = vrot.slane %v4966, %v4972
        %v4975 = vunpack.c.l.s4 1966171168
        %v4976 = vunpack.c.0.s8 %v4975
        %v4977 = vlaneseq
        %v4978 = vshrl.u32 %v4977, 7
        %v4979 = vsub.s32 %v4976, %v4978
        %v4980 = vrot.slane %v4973, %v4979
        %4981 = vrot.lane.b32.xlu0 %v4980, 56
        %v4982 = vpop.permute.xlu0 %4981
        %vm4984 = vcmp.ge.s32.totalorder %v4694, 56
        %vm4985 = vcmp.lt.s32.totalorder %v4694, 78
        %vm4986 = vmand %vm4984, %vm4985
        %4987 = vst.msk [vmem:[#allocation5 + $0x3] sm:$0x1] %vm4986, %v4982
        %v4988 = vcombine.high %v4973, %v4973
        %v4990 = vunpack.c.l.s4 1966171168
        %v4991 = vunpack.c.0.s8 %v4990
        %v4992 = vlaneseq
        %v4993 = vshrl.u32 %v4992, 7
        %v4994 = vsub.s32 %v4991, %v4993
        %v4995 = vrot.slane %v4988, %v4994
        %4996 = vrot.lane.b32.xlu0 %v4995, 78
        %v4997 = vpop.permute.xlu0 %4996
        %vm4999 = vcmp.ge.s32.totalorder %v4694, 78
        %vm5000 = vcmp.lt.s32.totalorder %v4694, 100
        %vm5001 = vmand %vm4999, %vm5000
        %5002 = vst.msk [vmem:[#allocation5 + $0x3] sm:$0x1] %vm5001, %v4997
        %v5003 = vcombine.high %v4980, %v4980
        %5004 = vrot.lane.b32.xlu0 %v5003, 100
        %v5005 = vpop.permute.xlu0 %5004
        %vm5007 = vcmp.ge.s32.totalorder %v4694, 100
        %vm5008 = vcmp.lt.s32.totalorder %v4694, 122
        %vm5009 = vmand %vm5007, %vm5008
        %5010 = vst.msk [vmem:[#allocation5 + $0x3] sm:$0x1] %vm5009, %v5005
        %v5011 = vcombine.high %v4995, %v4995
        %5012 = vrot.lane.b32.xlu0 %v5011, 122
        %v5013 = vpop.permute.xlu0 %5012
        %v5014 = vrot.slane %v5013, 7
        %vm5015 = vcmask 998400
        %v5016 = vsel %vm5015, %v5014, %v5013
        %vm5018 = vcmp.ge.s32.totalorder %v4694, 122
        %vm5019 = vcmp.lt.s32.totalorder %v4694, 144
        %vm5020 = vmand %vm5018, %vm5019
        %5021 = vst.msk [vmem:[#allocation5 + $0x3] sm:$0x3] %vm5020, %v5016
        %v5024 = vunpack.c.l.s4 1966171168
        %v5025 = vunpack.c.0.s8 %v5024
        %v5026 = vlaneseq
        %v5027 = vshrl.u32 %v5026, 7
        %v5028 = vsub.s32 %v5025, %v5027
        %v5029 = vrot.slane %v4675, %v5028
        %v5031 = vunpack.c.l.s4 1966171168
        %v5032 = vunpack.c.0.s8 %v5031
        %v5033 = vlaneseq
        %v5034 = vshrl.u32 %v5033, 7
        %v5035 = vsub.s32 %v5032, %v5034
        %v5036 = vrot.slane %v5029, %v5035
        %5037 = vrot.lane.b32.xlu0 %v5036, 16
        %v5038 = vpop.permute.xlu0 %5037
        %vm5040 = vcmp.ge.s32.totalorder %v4694, 16
        %vm5041 = vcmp.lt.s32.totalorder %v4694, 38
        %vm5042 = vmand %vm5040, %vm5041
        %5043 = vst.msk [vmem:[#allocation5 + $0x4] sm:$0x1] %vm5042, %v5038
        %v5044 = vcombine.high %v5029, %v5029
        %v5046 = vunpack.c.l.s4 1966171168
        %v5047 = vunpack.c.0.s8 %v5046
        %v5048 = vlaneseq
        %v5049 = vshrl.u32 %v5048, 7
        %v5050 = vsub.s32 %v5047, %v5049
        %v5051 = vrot.slane %v5044, %v5050
        %5052 = vrot.lane.b32.xlu0 %v5051, 38
        %v5053 = vpop.permute.xlu0 %5052
        %vm5055 = vcmp.ge.s32.totalorder %v4694, 38
        %vm5056 = vcmp.lt.s32.totalorder %v4694, 60
        %vm5057 = vmand %vm5055, %vm5056
        %5058 = vst.msk [vmem:[#allocation5 + $0x4] sm:$0x1] %vm5057, %v5053
        %v5059 = vcombine.high %v5036, %v5036
        %5060 = vrot.lane.b32.xlu0 %v5059, 60
        %v5061 = vpop.permute.xlu0 %5060
        %vm5063 = vcmp.ge.s32.totalorder %v4694, 60
        %vm5064 = vcmp.lt.s32.totalorder %v4694, 82
        %vm5065 = vmand %vm5063, %vm5064
        %5066 = vst.msk [vmem:[#allocation5 + $0x4] sm:$0x1] %vm5065, %v5061
        %v5067 = vcombine.high %v5051, %v5051
        %5068 = vrot.lane.b32.xlu0 %v5067, 82
        %v5069 = vpop.permute.xlu0 %5068
        %vm5071 = vcmp.ge.s32.totalorder %v4694, 82
        %vm5072 = vcmp.lt.s32.totalorder %v4694, 104
        %vm5073 = vmand %vm5071, %vm5072
        %5074 = vst.msk [vmem:[#allocation5 + $0x4] sm:$0x1] %vm5073, %v5069
        %v5075 = vcombine.high %v4675, %v4675
        %v5077 = vunpack.c.l.s4 1966171168
        %v5078 = vunpack.c.0.s8 %v5077
        %v5079 = vlaneseq
        %v5080 = vshrl.u32 %v5079, 7
        %v5081 = vsub.s32 %v5078, %v5080
        %v5082 = vrot.slane %v5075, %v5081
        %v5084 = vunpack.c.l.s4 1966171168
        %v5085 = vunpack.c.0.s8 %v5084
        %v5086 = vlaneseq
        %v5087 = vshrl.u32 %v5086, 7
        %v5088 = vsub.s32 %v5085, %v5087
        %v5089 = vrot.slane %v5082, %v5088
        %5090 = vrot.lane.b32.xlu0 %v5089, 104
        %v5091 = vpop.permute.xlu0 %5090
        %vm5093 = vcmp.ge.s32.totalorder %v4694, 104
        %vm5094 = vcmp.lt.s32.totalorder %v4694, 126
        %vm5095 = vmand %vm5093, %vm5094
        %5096 = vst.msk [vmem:[#allocation5 + $0x4] sm:$0x1] %vm5095, %v5091
        %v5097 = vcombine.high %v5082, %v5082
        %v5099 = vunpack.c.l.s4 1966171168
        %v5100 = vunpack.c.0.s8 %v5099
        %v5101 = vlaneseq
        %v5102 = vshrl.u32 %v5101, 7
        %v5103 = vsub.s32 %v5100, %v5102
        %v5104 = vrot.slane %v5097, %v5103
        %5105 = vrot.lane.b32.xlu0 %v5104, 126
        %v5106 = vpop.permute.xlu0 %5105
        %v5107 = vrot.slane %v5106, 7
        %v5108 = vsel %vm552, %v5107, %v5106
        %vm5110 = vcmp.ge.s32.totalorder %v4694, 126
        %vm5111 = vcmp.lt.s32.totalorder %v4694, 148
        %vm5112 = vmand %vm5110, %vm5111
        %5113 = vst.msk [vmem:[#allocation5 + $0x4] sm:$0x3] %vm5112, %v5108
        %v5114 = vcombine.high %v5089, %v5089
        %5115 = vrot.lane.b32.xlu0 %v5114, 20
        %v5116 = vpop.permute.xlu0 %5115
        %vm5118 = vcmp.ge.s32.totalorder %v4694, 20
        %vm5119 = vcmp.lt.s32.totalorder %v4694, 42
        %vm5120 = vmand %vm5118, %vm5119
        %5121 = vst.msk [vmem:[#allocation5 + $0x5] sm:$0x1] %vm5120, %v5116
        %v5122 = vcombine.high %v5104, %v5104
        %5123 = vrot.lane.b32.xlu0 %v5122, 42
        %v5124 = vpop.permute.xlu0 %5123
        %vm5126 = vcmp.ge.s32.totalorder %v4694, 42
        %vm5127 = vcmp.lt.s32.totalorder %v4694, 64
        %vm5128 = vmand %vm5126, %vm5127
        %5129 = vst.msk [vmem:[#allocation5 + $0x5] sm:$0x1] %vm5128, %v5124
        %v5132 = vunpack.c.l.s4 1966171168
        %v5133 = vunpack.c.0.s8 %v5132
        %v5134 = vlaneseq
        %v5135 = vshrl.u32 %v5134, 7
        %v5136 = vsub.s32 %v5133, %v5135
        %v5137 = vrot.slane %v4680, %v5136
        %v5139 = vunpack.c.l.s4 1966171168
        %v5140 = vunpack.c.0.s8 %v5139
        %v5141 = vlaneseq
        %v5142 = vshrl.u32 %v5141, 7
        %v5143 = vsub.s32 %v5140, %v5142
        %v5144 = vrot.slane %v5137, %v5143
        %5145 = vrot.lane.b32.xlu0 %v5144, 64
        %v5146 = vpop.permute.xlu0 %5145
        %vm5148 = vcmp.ge.s32.totalorder %v4694, 64
        %vm5149 = vcmp.lt.s32.totalorder %v4694, 86
        %vm5150 = vmand %vm5148, %vm5149
        %5151 = vst.msk [vmem:[#allocation5 + $0x5] sm:$0x1] %vm5150, %v5146
        %v5152 = vcombine.high %v5137, %v5137
        %v5154 = vunpack.c.l.s4 1966171168
        %v5155 = vunpack.c.0.s8 %v5154
        %v5156 = vlaneseq
        %v5157 = vshrl.u32 %v5156, 7
        %v5158 = vsub.s32 %v5155, %v5157
        %v5159 = vrot.slane %v5152, %v5158
        %5160 = vrot.lane.b32.xlu0 %v5159, 86
        %v5161 = vpop.permute.xlu0 %5160
        %vm5163 = vcmp.ge.s32.totalorder %v4694, 86
        %vm5164 = vcmp.lt.s32.totalorder %v4694, 108
        %vm5165 = vmand %vm5163, %vm5164
        %5166 = vst.msk [vmem:[#allocation5 + $0x5] sm:$0x1] %vm5165, %v5161
        %v5167 = vcombine.high %v5144, %v5144
        %5168 = vrot.lane.b32.xlu0 %v5167, 108
        %v5169 = vpop.permute.xlu0 %5168
        %v5170 = vrot.slane %v5169, 7
        %vm5171 = vcmask 883712
        %v5172 = vsel %vm5171, %v5170, %v5169
        %vm5174 = vcmp.ge.s32.totalorder %v4694, 108
        %vm5175 = vcmp.lt.s32.totalorder %v4694, 130
        %vm5176 = vmand %vm5174, %vm5175
        %5177 = vst.msk [vmem:[#allocation5 + $0x5] sm:$0x3] %vm5176, %v5172
        %v5178 = vcombine.high %v5159, %v5159
        %5179 = vrot.lane.b32.xlu0 %v5178, 2
        %v5180 = vpop.permute.xlu0 %5179
        %vm5182 = vcmp.ge.s32.totalorder %v4694, 2
        %vm5183 = vcmp.lt.s32.totalorder %v4694, 24
        %vm5184 = vmand %vm5182, %vm5183
        %5185 = vst.msk [vmem:[#allocation5 + $0x6] sm:$0x1] %vm5184, %v5180
        %v5186 = vcombine.high %v4680, %v4680
        %v5188 = vunpack.c.l.s4 1966171168
        %v5189 = vunpack.c.0.s8 %v5188
        %v5190 = vlaneseq
        %v5191 = vshrl.u32 %v5190, 7
        %v5192 = vsub.s32 %v5189, %v5191
        %v5193 = vrot.slane %v5186, %v5192
        %v5195 = vunpack.c.l.s4 1966171168
        %v5196 = vunpack.c.0.s8 %v5195
        %v5197 = vlaneseq
        %v5198 = vshrl.u32 %v5197, 7
        %v5199 = vsub.s32 %v5196, %v5198
        %v5200 = vrot.slane %v5193, %v5199
        %5201 = vrot.lane.b32.xlu0 %v5200, 24
        %v5202 = vpop.permute.xlu0 %5201
        %vm5204 = vcmp.ge.s32.totalorder %v4694, 24
        %vm5205 = vcmp.lt.s32.totalorder %v4694, 46
        %vm5206 = vmand %vm5204, %vm5205
        %5207 = vst.msk [vmem:[#allocation5 + $0x6] sm:$0x1] %vm5206, %v5202
        %v5208 = vcombine.high %v5193, %v5193
        %v5210 = vunpack.c.l.s4 1966171168
        %v5211 = vunpack.c.0.s8 %v5210
        %v5212 = vlaneseq
        %v5213 = vshrl.u32 %v5212, 7
        %v5214 = vsub.s32 %v5211, %v5213
        %v5215 = vrot.slane %v5208, %v5214
        %5216 = vrot.lane.b32.xlu0 %v5215, 46
        %v5217 = vpop.permute.xlu0 %5216
        %vm5219 = vcmp.ge.s32.totalorder %v4694, 46
        %vm5220 = vcmp.lt.s32.totalorder %v4694, 68
        %vm5221 = vmand %vm5219, %vm5220
        %5222 = vst.msk [vmem:[#allocation5 + $0x6] sm:$0x1] %vm5221, %v5217
        %v5223 = vcombine.high %v5200, %v5200
        %5224 = vrot.lane.b32.xlu0 %v5223, 68
        %v5225 = vpop.permute.xlu0 %5224
        %vm5227 = vcmp.ge.s32.totalorder %v4694, 68
        %vm5228 = vcmp.lt.s32.totalorder %v4694, 90
        %vm5229 = vmand %vm5227, %vm5228
        %5230 = vst.msk [vmem:[#allocation5 + $0x6] sm:$0x1] %vm5229, %v5225
        %v5231 = vcombine.high %v5215, %v5215
        %5232 = vrot.lane.b32.xlu0 %v5231, 90
        %v5233 = vpop.permute.xlu0 %5232
        %vm5235 = vcmp.ge.s32.totalorder %v4694, 90
        %vm5236 = vcmp.lt.s32.totalorder %v4694, 112
        %vm5237 = vmand %vm5235, %vm5236
        %5238 = vst.msk [vmem:[#allocation5 + $0x6] sm:$0x1] %vm5237, %v5233
        %v5241 = vunpack.c.l.s4 1966171168
        %v5242 = vunpack.c.0.s8 %v5241
        %v5243 = vlaneseq
        %v5244 = vshrl.u32 %v5243, 7
        %v5245 = vsub.s32 %v5242, %v5244
        %v5246 = vrot.slane %v4683, %v5245
        %v5248 = vunpack.c.l.s4 1966171168
        %v5249 = vunpack.c.0.s8 %v5248
        %v5250 = vlaneseq
        %v5251 = vshrl.u32 %v5250, 7
        %v5252 = vsub.s32 %v5249, %v5251
        %v5253 = vrot.slane %v5246, %v5252
        %5254 = vrot.lane.b32.xlu0 %v5253, 112
        %v5255 = vpop.permute.xlu0 %5254
        %v5256 = vrot.slane %v5255, 7
        %vm5257 = vcmask 916480
        %v5258 = vsel %vm5257, %v5256, %v5255
        %vm5260 = vcmp.ge.s32.totalorder %v4694, 112
        %vm5261 = vcmp.lt.s32.totalorder %v4694, 134
        %vm5262 = vmand %vm5260, %vm5261
        %5263 = vst.msk [vmem:[#allocation5 + $0x6] sm:$0x3] %vm5262, %v5258
        %v5264 = vcombine.high %v5246, %v5246
        %v5266 = vunpack.c.l.s4 1966171168
        %v5267 = vunpack.c.0.s8 %v5266
        %v5268 = vlaneseq
        %v5269 = vshrl.u32 %v5268, 7
        %v5270 = vsub.s32 %v5267, %v5269
        %v5271 = vrot.slane %v5264, %v5270
        %5272 = vrot.lane.b32.xlu0 %v5271, 6
        %v5273 = vpop.permute.xlu0 %5272
        %vm5275 = vcmp.ge.s32.totalorder %v4694, 6
        %vm5276 = vcmp.lt.s32.totalorder %v4694, 28
        %vm5277 = vmand %vm5275, %vm5276
        %5278 = vst.msk [vmem:[#allocation5 + $0x7] sm:$0x1] %vm5277, %v5273
        %v5279 = vcombine.high %v5253, %v5253
        %5280 = vrot.lane.b32.xlu0 %v5279, 28
        %v5281 = vpop.permute.xlu0 %5280
        %vm5283 = vcmp.ge.s32.totalorder %v4694, 28
        %vm5284 = vcmp.lt.s32.totalorder %v4694, 50
        %vm5285 = vmand %vm5283, %vm5284
        %5286 = vst.msk [vmem:[#allocation5 + $0x7] sm:$0x1] %vm5285, %v5281
        %v5287 = vcombine.high %v5271, %v5271
        %5288 = vrot.lane.b32.xlu0 %v5287, 50
        %v5289 = vpop.permute.xlu0 %5288
        %vm5291 = vcmp.ge.s32.totalorder %v4694, 50
        %vm5292 = vcmp.lt.s32.totalorder %v4694, 72
        %vm5293 = vmand %vm5291, %vm5292
        %5294 = vst.msk [vmem:[#allocation5 + $0x7] sm:$0x1] %vm5293, %v5289
        %v5295 = vcombine.high %v4683, %v4683
        %v5297 = vunpack.c.l.s4 1966171168
        %v5298 = vunpack.c.0.s8 %v5297
        %v5299 = vlaneseq
        %v5300 = vshrl.u32 %v5299, 7
        %v5301 = vsub.s32 %v5298, %v5300
        %v5302 = vrot.slane %v5295, %v5301
        %v5304 = vunpack.c.l.s4 1966171168
        %v5305 = vunpack.c.0.s8 %v5304
        %v5306 = vlaneseq
        %v5307 = vshrl.u32 %v5306, 7
        %v5308 = vsub.s32 %v5305, %v5307
        %v5309 = vrot.slane %v5302, %v5308
        %5310 = vrot.lane.b32.xlu0 %v5309, 72
        %v5311 = vpop.permute.xlu0 %5310
        %vm5313 = vcmp.ge.s32.totalorder %v4694, 72
        %vm5314 = vcmp.lt.s32.totalorder %v4694, 94
        %vm5315 = vmand %vm5313, %vm5314
        %5316 = vst.msk [vmem:[#allocation5 + $0x7] sm:$0x1] %vm5315, %v5311
        %v5317 = vcombine.high %v5302, %v5302
        %v5319 = vunpack.c.l.s4 1966171168
        %v5320 = vunpack.c.0.s8 %v5319
        %v5321 = vlaneseq
        %v5322 = vshrl.u32 %v5321, 7
        %v5323 = vsub.s32 %v5320, %v5322
        %v5324 = vrot.slane %v5317, %v5323
        %5325 = vrot.lane.b32.xlu0 %v5324, 94
        %v5326 = vpop.permute.xlu0 %5325
        %vm5328 = vcmp.ge.s32.totalorder %v4694, 94
        %vm5329 = vcmp.lt.s32.totalorder %v4694, 116
        %vm5330 = vmand %vm5328, %vm5329
        %5331 = vst.msk [vmem:[#allocation5 + $0x7] sm:$0x1] %vm5330, %v5326
        %v5332 = vcombine.high %v5309, %v5309
        %5333 = vrot.lane.b32.xlu0 %v5332, 116
        %v5334 = vpop.permute.xlu0 %5333
        %v5335 = vrot.slane %v5334, 7
        %vm5336 = vcmask 949248
        %v5337 = vsel %vm5336, %v5335, %v5334
        %vm5339 = vcmp.ge.s32.totalorder %v4694, 116
        %vm5340 = vcmp.lt.s32.totalorder %v4694, 138
        %vm5341 = vmand %vm5339, %vm5340
        %5342 = vst.msk [vmem:[#allocation5 + $0x7] sm:$0x3] %vm5341, %v5337
        %v5343 = vcombine.high %v5324, %v5324
        %5344 = vrot.lane.b32.xlu0 %v5343, 10
        %v5345 = vpop.permute.xlu0 %5344
        %vm5347 = vcmp.ge.s32.totalorder %v4694, 10
        %vm5348 = vcmp.lt.s32.totalorder %v4694, 32
        %vm5349 = vmand %vm5347, %vm5348
        %5350 = vst.msk [vmem:[#allocation5 + $0x8] sm:$0x1] %vm5349, %v5345
        %v5353 = vunpack.c.l.s4 1966171168
        %v5354 = vunpack.c.0.s8 %v5353
        %v5355 = vlaneseq
        %v5356 = vshrl.u32 %v5355, 7
        %v5357 = vsub.s32 %v5354, %v5356
        %v5358 = vrot.slane %v4688, %v5357
        %v5360 = vunpack.c.l.s4 1966171168
        %v5361 = vunpack.c.0.s8 %v5360
        %v5362 = vlaneseq
        %v5363 = vshrl.u32 %v5362, 7
        %v5364 = vsub.s32 %v5361, %v5363
        %v5365 = vrot.slane %v5358, %v5364
        %5366 = vrot.lane.b32.xlu0 %v5365, 32
        %v5367 = vpop.permute.xlu0 %5366
        %vm5369 = vcmp.ge.s32.totalorder %v4694, 32
        %vm5370 = vcmp.lt.s32.totalorder %v4694, 54
        %vm5371 = vmand %vm5369, %vm5370
        %5372 = vst.msk [vmem:[#allocation5 + $0x8] sm:$0x1] %vm5371, %v5367
        %v5373 = vcombine.high %v5358, %v5358
        %v5375 = vunpack.c.l.s4 1966171168
        %v5376 = vunpack.c.0.s8 %v5375
        %v5377 = vlaneseq
        %v5378 = vshrl.u32 %v5377, 7
        %v5379 = vsub.s32 %v5376, %v5378
        %v5380 = vrot.slane %v5373, %v5379
        %5381 = vrot.lane.b32.xlu0 %v5380, 54
        %v5382 = vpop.permute.xlu0 %5381
        %vm5384 = vcmp.ge.s32.totalorder %v4694, 54
        %vm5385 = vcmp.lt.s32.totalorder %v4694, 76
        %vm5386 = vmand %vm5384, %vm5385
        %5387 = vst.msk [vmem:[#allocation5 + $0x8] sm:$0x1] %vm5386, %v5382
        %v5388 = vcombine.high %v5365, %v5365
        %5389 = vrot.lane.b32.xlu0 %v5388, 76
        %v5390 = vpop.permute.xlu0 %5389
        %vm5392 = vcmp.ge.s32.totalorder %v4694, 76
        %vm5393 = vcmp.lt.s32.totalorder %v4694, 98
        %vm5394 = vmand %vm5392, %vm5393
        %5395 = vst.msk [vmem:[#allocation5 + $0x8] sm:$0x1] %vm5394, %v5390
        %v5396 = vcombine.high %v5380, %v5380
        %5397 = vrot.lane.b32.xlu0 %v5396, 98
        %v5398 = vpop.permute.xlu0 %5397
        %vm5400 = vcmp.ge.s32.totalorder %v4694, 98
        %vm5401 = vcmp.lt.s32.totalorder %v4694, 120
        %vm5402 = vmand %vm5400, %vm5401
        %5403 = vst.msk [vmem:[#allocation5 + $0x8] sm:$0x1] %vm5402, %v5398
        %v5404 = vcombine.high %v4688, %v4688
        %v5406 = vunpack.c.l.s4 1966171168
        %v5407 = vunpack.c.0.s8 %v5406
        %v5408 = vlaneseq
        %v5409 = vshrl.u32 %v5408, 7
        %v5410 = vsub.s32 %v5407, %v5409
        %v5411 = vrot.slane %v5404, %v5410
        %v5413 = vunpack.c.l.s4 1966171168
        %v5414 = vunpack.c.0.s8 %v5413
        %v5415 = vlaneseq
        %v5416 = vshrl.u32 %v5415, 7
        %v5417 = vsub.s32 %v5414, %v5416
        %v5418 = vrot.slane %v5411, %v5417
        %5419 = vrot.lane.b32.xlu0 %v5418, 120
        %v5420 = vpop.permute.xlu0 %5419
        %v5421 = vrot.slane %v5420, 7
        %vm5422 = vcmask 982016
        %v5423 = vsel %vm5422, %v5421, %v5420
        %vm5425 = vcmp.ge.s32.totalorder %v4694, 120
        %vm5426 = vcmp.lt.s32.totalorder %v4694, 142
        %vm5427 = vmand %vm5425, %vm5426
        %5428 = vst.msk [vmem:[#allocation5 + $0x8] sm:$0x3] %vm5427, %v5423
        %v5429 = vcombine.high %v5411, %v5411
        %v5431 = vunpack.c.l.s4 1966171168
        %v5432 = vunpack.c.0.s8 %v5431
        %v5433 = vlaneseq
        %v5434 = vshrl.u32 %v5433, 7
        %v5435 = vsub.s32 %v5432, %v5434
        %v5436 = vrot.slane %v5429, %v5435
        %5437 = vrot.lane.b32.xlu0 %v5436, 14
        %v5438 = vpop.permute.xlu0 %5437
        %vm5440 = vcmp.ge.s32.totalorder %v4694, 14
        %vm5441 = vcmp.lt.s32.totalorder %v4694, 36
        %vm5442 = vmand %vm5440, %vm5441
        %5443 = vst.msk [vmem:[#allocation5 + $0x9] sm:$0x1] %vm5442, %v5438
        %v5444 = vcombine.high %v5418, %v5418
        %5445 = vrot.lane.b32.xlu0 %v5444, 36
        %v5446 = vpop.permute.xlu0 %5445
        %vm5448 = vcmp.ge.s32.totalorder %v4694, 36
        %vm5449 = vcmp.lt.s32.totalorder %v4694, 58
        %vm5450 = vmand %vm5448, %vm5449
        %5451 = vst.msk [vmem:[#allocation5 + $0x9] sm:$0x1] %vm5450, %v5446
        %v5452 = vcombine.high %v5436, %v5436
        %5453 = vrot.lane.b32.xlu0 %v5452, 58
        %v5454 = vpop.permute.xlu0 %5453
        %vm5456 = vcmp.ge.s32.totalorder %v4694, 58
        %vm5457 = vcmp.lt.s32.totalorder %v4694, 80
        %vm5458 = vmand %vm5456, %vm5457
        %5459 = vst.msk [vmem:[#allocation5 + $0x9] sm:$0x1] %vm5458, %v5454
        %v5462 = vunpack.c.l.s4 1966171168
        %v5463 = vunpack.c.0.s8 %v5462
        %v5464 = vlaneseq
        %v5465 = vshrl.u32 %v5464, 7
        %v5466 = vsub.s32 %v5463, %v5465
        %v5467 = vrot.slane %v4691, %v5466
        %v5469 = vunpack.c.l.s4 1966171168
        %v5470 = vunpack.c.0.s8 %v5469
        %v5471 = vlaneseq
        %v5472 = vshrl.u32 %v5471, 7
        %v5473 = vsub.s32 %v5470, %v5472
        %v5474 = vrot.slane %v5467, %v5473
        %5475 = vrot.lane.b32.xlu0 %v5474, 80
        %v5476 = vpop.permute.xlu0 %5475
        %vm5478 = vcmp.ge.s32.totalorder %v4694, 80
        %vm5479 = vcmp.lt.s32.totalorder %v4694, 102
        %vm5480 = vmand %vm5478, %vm5479
        %5481 = vst.msk [vmem:[#allocation5 + $0x9] sm:$0x1] %vm5480, %v5476
        %v5482 = vcombine.high %v5467, %v5467
        %v5484 = vunpack.c.l.s4 1966171168
        %v5485 = vunpack.c.0.s8 %v5484
        %v5486 = vlaneseq
        %v5487 = vshrl.u32 %v5486, 7
        %v5488 = vsub.s32 %v5485, %v5487
        %v5489 = vrot.slane %v5482, %v5488
        %5490 = vrot.lane.b32.xlu0 %v5489, 102
        %v5491 = vpop.permute.xlu0 %5490
        %vm5493 = vcmp.ge.s32.totalorder %v4694, 102
        %vm5494 = vcmp.lt.s32.totalorder %v4694, 124
        %vm5495 = vmand %vm5493, %vm5494
        %5496 = vst.msk [vmem:[#allocation5 + $0x9] sm:$0x1] %vm5495, %v5491
        %v5497 = vcombine.high %v5474, %v5474
        %5498 = vrot.lane.b32.xlu0 %v5497, 124
        %v5499 = vpop.permute.xlu0 %5498
        %v5500 = vrot.slane %v5499, 7
        %vm5501 = vcmask 1014784
        %v5502 = vsel %vm5501, %v5500, %v5499
        %vm5504 = vcmp.ge.s32.totalorder %v4694, 124
        %vm5505 = vcmp.lt.s32.totalorder %v4694, 146
        %vm5506 = vmand %vm5504, %vm5505
        %5507 = vst.msk [vmem:[#allocation5 + $0x9] sm:$0x3] %vm5506, %v5502
        %v5508 = vcombine.high %v5489, %v5489
        %5509 = vrot.lane.b32.xlu0 %v5508, 18
        %v5510 = vpop.permute.xlu0 %5509
        %vm5512 = vcmp.ge.s32.totalorder %v4694, 18
        %vm5513 = vcmp.lt.s32.totalorder %v4694, 40
        %vm5514 = vmand %vm5512, %vm5513
        %5515 = vst.msk [vmem:[#allocation5 + $0xa] sm:$0x1] %vm5514, %v5510
        %v5516 = vcombine.high %v4691, %v4691
        %v5518 = vunpack.c.l.s4 1966171168
        %v5519 = vunpack.c.0.s8 %v5518
        %v5520 = vlaneseq
        %v5521 = vshrl.u32 %v5520, 7
        %v5522 = vsub.s32 %v5519, %v5521
        %v5523 = vrot.slane %v5516, %v5522
        %v5525 = vunpack.c.l.s4 1966171168
        %v5526 = vunpack.c.0.s8 %v5525
        %v5527 = vlaneseq
        %v5528 = vshrl.u32 %v5527, 7
        %v5529 = vsub.s32 %v5526, %v5528
        %v5530 = vrot.slane %v5523, %v5529
        %5531 = vrot.lane.b32.xlu0 %v5530, 40
        %v5532 = vpop.permute.xlu0 %5531
        %vm5534 = vcmp.ge.s32.totalorder %v4694, 40
        %vm5535 = vcmp.lt.s32.totalorder %v4694, 62
        %vm5536 = vmand %vm5534, %vm5535
        %5537 = vst.msk [vmem:[#allocation5 + $0xa] sm:$0x1] %vm5536, %v5532
        %v5538 = vcombine.high %v5523, %v5523
        %v5540 = vunpack.c.l.s4 1966171168
        %v5541 = vunpack.c.0.s8 %v5540
        %v5542 = vlaneseq
        %v5543 = vshrl.u32 %v5542, 7
        %v5544 = vsub.s32 %v5541, %v5543
        %v5545 = vrot.slane %v5538, %v5544
        %5546 = vrot.lane.b32.xlu0 %v5545, 62
        %v5547 = vpop.permute.xlu0 %5546
        %vm5549 = vcmp.ge.s32.totalorder %v4694, 62
        %vm5550 = vcmp.lt.s32.totalorder %v4694, 84
        %vm5551 = vmand %vm5549, %vm5550
        %5552 = vst.msk [vmem:[#allocation5 + $0xa] sm:$0x1] %vm5551, %v5547
        %v5553 = vcombine.high %v5530, %v5530
        %5554 = vrot.lane.b32.xlu0 %v5553, 84
        %v5555 = vpop.permute.xlu0 %5554
        %vm5557 = vcmp.ge.s32.totalorder %v4694, 84
        %vm5558 = vcmp.lt.s32.totalorder %v4694, 106
        %vm5559 = vmand %vm5557, %vm5558
        %5560 = vst.msk [vmem:[#allocation5 + $0xa] sm:$0x1] %vm5559, %v5555
        %v5561 = vcombine.high %v5545, %v5545
        %5562 = vrot.lane.b32.xlu0 %v5561, 106
        %v5563 = vpop.permute.xlu0 %5562
        %vm5565 = vcmp.ge.s32.totalorder %v4694, 106
        %vm5566 = vcmp.lt.s32.totalorder %v4694, 128
        %vm5567 = vmand %vm5565, %vm5566
        %5568 = vst.msk [vmem:[#allocation5 + $0xa] sm:$0x1] %vm5567, %v5563
        %v5569 = vld [vmem:[#allocation5] sm:$0xff]
        %v5570 = vld [vmem:[#allocation5 + $0x8] sm:$0x7]
        %v5573 = vlaneseq
        %v5574 = vshrl.u32 %v5573, 7
        %v5575 = vsub.s32 0, %v5574
        %v5576 = vrot.slane %v5569, %v5575
        %v5577 = vlaneseq
        %v5578 = vshrl.u32 %v5577, 7
        %v5579 = vsub.s32 1, %v5578
        %v5580 = vrot.slane %v5569, %v5579
        %v5581 = vlaneseq
        %v5582 = vshrl.u32 %v5581, 7
        %v5583 = vsub.s32 2, %v5582
        %v5584 = vrot.slane %v5569, %v5583
        %v5585 = vlaneseq
        %v5586 = vshrl.u32 %v5585, 7
        %v5587 = vsub.s32 3, %v5586
        %v5588 = vrot.slane %v5569, %v5587
        %v5589 = vlaneseq
        %v5590 = vshrl.u32 %v5589, 7
        %v5591 = vsub.s32 4, %v5590
        %v5592 = vrot.slane %v5569, %v5591
        %v5593 = vlaneseq
        %v5594 = vshrl.u32 %v5593, 7
        %v5595 = vsub.s32 5, %v5594
        %v5596 = vrot.slane %v5569, %v5595
        %v5597 = vlaneseq
        %v5598 = vshrl.u32 %v5597, 7
        %v5599 = vsub.s32 6, %v5598
        %v5600 = vrot.slane %v5569, %v5599
        %v5601 = vlaneseq
        %v5602 = vshrl.u32 %v5601, 7
        %v5603 = vsub.s32 7, %v5602
        %v5604 = vrot.slane %v5569, %v5603
        %v5605 = vlaneseq
        %v5606 = vshrl.u32 %v5605, 7
        %v5607 = vsub.s32 0, %v5606
        %v5608 = vrot.slane %v5570, %v5607
        %v5609 = vlaneseq
        %v5610 = vshrl.u32 %v5609, 7
        %v5611 = vsub.s32 1, %v5610
        %v5612 = vrot.slane %v5570, %v5611
        %v5613 = vlaneseq
        %v5614 = vshrl.u32 %v5613, 7
        %v5615 = vsub.s32 2, %v5614
        %v5616 = vrot.slane %v5570, %v5615
        %v5628 = vpack.c.bf16 %v5576, %v5576
        %v5629 = vpack.c.bf16 %v5580, %v5580
        %v5630 = vpack.c.bf16 %v5584, %v5584
        %v5631 = vpack.c.bf16 %v5588, %v5588
        %v5632 = vpack.c.bf16 %v5592, %v5592
        %v5633 = vpack.c.bf16 %v5596, %v5596
        %v5634 = vpack.c.bf16 %v5600, %v5600
        %v5635 = vpack.c.bf16 %v5604, %v5604
        %v5636 = vpack.c.bf16 %v5608, %v5608
        %v5637 = vpack.c.bf16 %v5612, %v5612
        %v5638 = vpack.c.bf16 %v5616, %v5616
        %v5639 = vld [vmem:[%s9] sm:$0xf]
        %v5640 = vld [vmem:[%s9 + $0x4] sm:$0xf]
        %v5641 = vld [vmem:[%s9 + $0x8] sm:$0xf]
        %v5642 = vld [vmem:[%s9 + $0xc] sm:$0xf]
        %v5643 = vld [vmem:[%s9 + $0x10] sm:$0xf]
        %v5644 = vld [vmem:[%s9 + $0x14] sm:$0xf]
        %v5645 = vld [vmem:[%s9 + $0x18] sm:$0xf]
        %v5646 = vld [vmem:[%s9 + $0x1c] sm:$0xf]
        %v5647 = vld [vmem:[%s9 + $0x20] sm:$0xf]
        %v5648 = vld [vmem:[%s9 + $0x24] sm:$0xf]
        %v5649 = vld [vmem:[%s9 + $0x28] sm:$0xf]
        %v5650 = vld [vmem:[%s9 + $0x2c] sm:$0xf]
        %v5651 = vld [vmem:[%s9 + $0x30] sm:$0xf]
        %v5652 = vld [vmem:[%s9 + $0x34] sm:$0xf]
        %v5653 = vld [vmem:[%s9 + $0x38] sm:$0xf]
        %v5654 = vld [vmem:[%s9 + $0x3c] sm:$0xf]
        %v5655 = vld [vmem:[%s9 + $0x40] sm:$0xf]
        %v5656 = vld [vmem:[%s9 + $0x44] sm:$0xf]
        %v5657 = vld [vmem:[%s9 + $0x48] sm:$0xf]
        %v5658 = vld [vmem:[%s9 + $0x4c] sm:$0xf]
        %v5659 = vld [vmem:[%s9 + $0x50] sm:$0xf]
        %v5660 = vld [vmem:[%s9 + $0x54] sm:$0xf]
        %v5661 = vld [vmem:[%s9 + $0x58] sm:$0xf]
        %v5662 = vld [vmem:[%s9 + $0x5c] sm:$0xf]
        %v5663 = vld [vmem:[%s9 + $0x60] sm:$0xf]
        %v5664 = vld [vmem:[%s9 + $0x64] sm:$0xf]
        %v5665 = vld [vmem:[%s9 + $0x68] sm:$0xf]
        %v5666 = vld [vmem:[%s9 + $0x6c] sm:$0xf]
        %v5667 = vld [vmem:[%s9 + $0x70] sm:$0xf]
        %v5668 = vld [vmem:[%s9 + $0x74] sm:$0xf]
        %v5669 = vld [vmem:[%s9 + $0x78] sm:$0xf]
        %v5670 = vld [vmem:[%s9 + $0x7c] sm:$0xf]
        %v5671 = vld [vmem:[%s9 + $0x80] sm:$0xf]
        %v5672 = vld [vmem:[%s9 + $0x84] sm:$0xf]
        %v5673 = vld [vmem:[%s9 + $0x88] sm:$0xf]
        %v5674 = vld [vmem:[%s9 + $0x8c] sm:$0xf]
        %v5675 = vld [vmem:[%s9 + $0x90] sm:$0xf]
        %v5676 = vld [vmem:[%s9 + $0x94] sm:$0xf]
        %v5677 = vld [vmem:[%s9 + $0x98] sm:$0xf]
        %v5678 = vld [vmem:[%s9 + $0x9c] sm:$0xf]
        %v5679 = vld [vmem:[%s9 + $0xa0] sm:$0xf]
        %v5680 = vld [vmem:[%s9 + $0xa4] sm:$0xf]
        %v5681 = vld [vmem:[%s9 + $0xa8] sm:$0xf]
        %v5682 = vld [vmem:[%s9 + $0xac] sm:$0xf]
        %v5683 = vld [vmem:[%s9 + $0xb0] sm:$0xf]
        %v5684 = vld [vmem:[%s9 + $0xb4] sm:$0xf]
        %v5685 = vld [vmem:[%s9 + $0xb8] sm:$0xf]
        %v5686 = vld [vmem:[%s9 + $0xbc] sm:$0xf]
        %v5687 = vld [vmem:[%s9 + $0xc0] sm:$0xf]
        %v5688 = vld [vmem:[%s9 + $0xc4] sm:$0xf]
        %v5689 = vld [vmem:[%s9 + $0xc8] sm:$0xf]
        %v5690 = vld [vmem:[%s9 + $0xcc] sm:$0xf]
        %v5691 = vld [vmem:[%s9 + $0xd0] sm:$0xf]
        %v5692 = vld [vmem:[%s9 + $0xd4] sm:$0xf]
        %v5693 = vld [vmem:[%s9 + $0xd8] sm:$0xf]
        %v5694 = vld [vmem:[%s9 + $0xdc] sm:$0xf]
        %v5695 = vld [vmem:[%s9 + $0xe0] sm:$0xf]
        %v5696 = vld [vmem:[%s9 + $0xe4] sm:$0xf]
        %v5697 = vld [vmem:[%s9 + $0xe8] sm:$0xf]
        %v5698 = vld [vmem:[%s9 + $0xec] sm:$0xf]
        %v5699 = vld [vmem:[%s9 + $0xf0] sm:$0xf]
        %v5700 = vld [vmem:[%s9 + $0xf4] sm:$0xf]
        %v5701 = vld [vmem:[%s9 + $0xf8] sm:$0xf]
        %v5702 = vld [vmem:[%s9 + $0xfc] sm:$0xf]
        %v5703 = vld [vmem:[%s9 + $0x100] sm:$0xf]
        %v5704 = vld [vmem:[%s9 + $0x104] sm:$0xf]
        %v5705 = vld [vmem:[%s9 + $0x108] sm:$0xf]
        %v5706 = vld [vmem:[%s9 + $0x10c] sm:$0xf]
        %v5707 = vld [vmem:[%s9 + $0x110] sm:$0xf]
        %v5708 = vld [vmem:[%s9 + $0x114] sm:$0xf]
        %v5709 = vld [vmem:[%s9 + $0x118] sm:$0xf]
        %v5710 = vld [vmem:[%s9 + $0x11c] sm:$0xf]
        %v5711 = vld [vmem:[%s9 + $0x120] sm:$0xf]
        %v5712 = vld [vmem:[%s9 + $0x124] sm:$0xf]
        %v5713 = vld [vmem:[%s9 + $0x128] sm:$0xf]
        %v5714 = vld [vmem:[%s9 + $0x12c] sm:$0xf]
        %v5715 = vld [vmem:[%s9 + $0x130] sm:$0xf]
        %v5716 = vld [vmem:[%s9 + $0x134] sm:$0xf]
        %v5717 = vld [vmem:[%s9 + $0x138] sm:$0xf]
        %v5718 = vld [vmem:[%s9 + $0x13c] sm:$0xf]
        %v5719 = vld [vmem:[%s9 + $0x140] sm:$0xf]
        %v5720 = vld [vmem:[%s9 + $0x144] sm:$0xf]
        %v5721 = vld [vmem:[%s9 + $0x148] sm:$0xf]
        %v5722 = vld [vmem:[%s9 + $0x14c] sm:$0xf]
        %v5723 = vld [vmem:[%s9 + $0x150] sm:$0xf]
        %v5724 = vld [vmem:[%s9 + $0x154] sm:$0xf]
        %v5725 = vld [vmem:[%s9 + $0x158] sm:$0xf]
        %v5726 = vld [vmem:[%s9 + $0x15c] sm:$0xf]
        %v5727 = vld [vmem:[%s9 + $0x160] sm:$0xf]
        %v5728 = vld [vmem:[%s9 + $0x164] sm:$0xf]
        %v5729 = vld [vmem:[%s9 + $0x168] sm:$0xf]
        %v5730 = vld [vmem:[%s9 + $0x16c] sm:$0xf]
        %v5731 = vld [vmem:[%s9 + $0x170] sm:$0xf]
        %v5732 = vld [vmem:[%s9 + $0x174] sm:$0xf]
        %v5733 = vld [vmem:[%s9 + $0x178] sm:$0xf]
        %v5734 = vld [vmem:[%s9 + $0x17c] sm:$0xf]
        %v5735 = vld [vmem:[%s9 + $0x180] sm:$0xf]
        %v5736 = vld [vmem:[%s9 + $0x184] sm:$0xf]
        %v5737 = vld [vmem:[%s9 + $0x188] sm:$0xf]
        %v5738 = vld [vmem:[%s9 + $0x18c] sm:$0xf]
        %v5739 = vld [vmem:[%s9 + $0x190] sm:$0xf]
        %v5740 = vld [vmem:[%s9 + $0x194] sm:$0xf]
        %v5741 = vld [vmem:[%s9 + $0x198] sm:$0xf]
        %v5742 = vld [vmem:[%s9 + $0x19c] sm:$0xf]
        %v5743 = vld [vmem:[%s9 + $0x1a0] sm:$0xf]
        %v5744 = vld [vmem:[%s9 + $0x1a4] sm:$0xf]
        %v5745 = vld [vmem:[%s9 + $0x1a8] sm:$0xf]
        %v5746 = vld [vmem:[%s9 + $0x1ac] sm:$0xf]
        %v5747 = vld [vmem:[%s9 + $0x1b0] sm:$0xf]
        %v5748 = vld [vmem:[%s9 + $0x1b4] sm:$0xf]
        %v5749 = vld [vmem:[%s9 + $0x1b8] sm:$0xf]
        %v5750 = vld [vmem:[%s9 + $0x1bc] sm:$0xf]
        %v5751 = vld [vmem:[%s9 + $0x1c0] sm:$0xf]
        %v5752 = vld [vmem:[%s9 + $0x1c4] sm:$0xf]
        %v5753 = vld [vmem:[%s9 + $0x1c8] sm:$0xf]
        %v5754 = vld [vmem:[%s9 + $0x1cc] sm:$0xf]
        %v5755 = vld [vmem:[%s9 + $0x1d0] sm:$0xf]
        %v5756 = vld [vmem:[%s9 + $0x1d4] sm:$0xf]
        %v5757 = vld [vmem:[%s9 + $0x1d8] sm:$0xf]
        %v5758 = vld [vmem:[%s9 + $0x1dc] sm:$0xf]
        %v5759 = vld [vmem:[%s9 + $0x1e0] sm:$0xf]
        %v5760 = vld [vmem:[%s9 + $0x1e4] sm:$0xf]
        %v5761 = vld [vmem:[%s9 + $0x1e8] sm:$0xf]
        %v5762 = vld [vmem:[%s9 + $0x1ec] sm:$0xf]
        %v5763 = vld [vmem:[%s9 + $0x1f0] sm:$0xf]
        %v5764 = vld [vmem:[%s9 + $0x1f4] sm:$0xf]
        %v5765 = vld [vmem:[%s9 + $0x1f8] sm:$0xf]
        %v5766 = vld [vmem:[%s9 + $0x1fc] sm:$0xf]
        %v5767 = vld [vmem:[%s9 + $0x200] sm:$0xf]
        %v5768 = vld [vmem:[%s9 + $0x204] sm:$0xf]
        %v5769 = vld [vmem:[%s9 + $0x208] sm:$0xf]
        %v5770 = vld [vmem:[%s9 + $0x20c] sm:$0xf]
        %v5771 = vld [vmem:[%s9 + $0x210] sm:$0xf]
        %v5772 = vld [vmem:[%s9 + $0x214] sm:$0xf]
        %v5773 = vld [vmem:[%s9 + $0x218] sm:$0xf]
        %v5774 = vld [vmem:[%s9 + $0x21c] sm:$0xf]
        %v5775 = vld [vmem:[%s9 + $0x220] sm:$0xf]
        %v5776 = vld [vmem:[%s9 + $0x224] sm:$0xf]
        %v5777 = vld [vmem:[%s9 + $0x228] sm:$0xf]
        %v5778 = vld [vmem:[%s9 + $0x22c] sm:$0xf]
        %v5779 = vld [vmem:[%s9 + $0x230] sm:$0xf]
        %v5780 = vld [vmem:[%s9 + $0x234] sm:$0xf]
        %v5781 = vld [vmem:[%s9 + $0x238] sm:$0xf]
        %v5782 = vld [vmem:[%s9 + $0x23c] sm:$0xf]
        %v5783 = vld [vmem:[%s9 + $0x240] sm:$0xf]
        %v5784 = vld [vmem:[%s9 + $0x244] sm:$0xf]
        %v5785 = vld [vmem:[%s9 + $0x248] sm:$0xf]
        %v5786 = vld [vmem:[%s9 + $0x24c] sm:$0xf]
        %v5787 = vld [vmem:[%s9 + $0x250] sm:$0xf]
        %v5788 = vld [vmem:[%s9 + $0x254] sm:$0xf]
        %v5789 = vld [vmem:[%s9 + $0x258] sm:$0xf]
        %v5790 = vld [vmem:[%s9 + $0x25c] sm:$0xf]
        %v5791 = vld [vmem:[%s9 + $0x260] sm:$0xf]
        %v5792 = vld [vmem:[%s9 + $0x264] sm:$0xf]
        %v5793 = vld [vmem:[%s9 + $0x268] sm:$0xf]
        %v5794 = vld [vmem:[%s9 + $0x26c] sm:$0xf]
        %v5795 = vld [vmem:[%s9 + $0x270] sm:$0xf]
        %v5796 = vld [vmem:[%s9 + $0x274] sm:$0xf]
        %v5797 = vld [vmem:[%s9 + $0x278] sm:$0xf]
        %v5798 = vld [vmem:[%s9 + $0x27c] sm:$0xf]
        %v5799 = vld [vmem:[%s9 + $0x280] sm:$0xf]
        %v5800 = vld [vmem:[%s9 + $0x284] sm:$0xf]
        %v5801 = vld [vmem:[%s9 + $0x288] sm:$0xf]
        %v5802 = vld [vmem:[%s9 + $0x28c] sm:$0xf]
        %v5803 = vld [vmem:[%s9 + $0x290] sm:$0xf]
        %v5804 = vld [vmem:[%s9 + $0x294] sm:$0xf]
        %v5805 = vld [vmem:[%s9 + $0x298] sm:$0xf]
        %v5806 = vld [vmem:[%s9 + $0x29c] sm:$0xf]
        %v5807 = vld [vmem:[%s9 + $0x2a0] sm:$0xf]
        %v5808 = vld [vmem:[%s9 + $0x2a4] sm:$0xf]
        %v5809 = vld [vmem:[%s9 + $0x2a8] sm:$0xf]
        %v5810 = vld [vmem:[%s9 + $0x2ac] sm:$0xf]
        %v5811 = vld [vmem:[%s9 + $0x2b0] sm:$0xf]
        %v5812 = vld [vmem:[%s9 + $0x2b4] sm:$0xf]
        %v5813 = vld [vmem:[%s9 + $0x2b8] sm:$0xf]
        %v5814 = vld [vmem:[%s9 + $0x2bc] sm:$0xf]
        %v5815 = vld [vmem:[%s10] sm:$0x1]
        %v5992 = vunpack.c.l.b16 %v5639
        %v5993 = vunpack.c.l.b16 %v5640
        %v5994 = vunpack.c.l.b16 %v5641
        %v5995 = vunpack.c.l.b16 %v5642
        %v5996 = vunpack.c.l.b16 %v5643
        %v5997 = vunpack.c.l.b16 %v5644
        %v5998 = vunpack.c.l.b16 %v5645
        %v5999 = vunpack.c.l.b16 %v5646
        %v6000 = vunpack.c.l.b16 %v5647
        %v6001 = vunpack.c.l.b16 %v5648
        %v6002 = vunpack.c.l.b16 %v5649
        %v6003 = vunpack.c.l.b16 %v5650
        %v6004 = vunpack.c.l.b16 %v5651
        %v6005 = vunpack.c.l.b16 %v5652
        %v6006 = vunpack.c.l.b16 %v5653
        %v6007 = vunpack.c.l.b16 %v5654
        %v6008 = vunpack.c.l.b16 %v5655
        %v6009 = vunpack.c.l.b16 %v5656
        %v6010 = vunpack.c.l.b16 %v5657
        %v6011 = vunpack.c.l.b16 %v5658
        %v6012 = vunpack.c.l.b16 %v5659
        %v6013 = vunpack.c.l.b16 %v5660
        %v6014 = vunpack.c.l.b16 %v5661
        %v6015 = vunpack.c.l.b16 %v5662
        %v6016 = vunpack.c.l.b16 %v5663
        %v6017 = vunpack.c.l.b16 %v5664
        %v6018 = vunpack.c.l.b16 %v5665
        %v6019 = vunpack.c.l.b16 %v5666
        %v6020 = vunpack.c.l.b16 %v5667
        %v6021 = vunpack.c.l.b16 %v5668
        %v6022 = vunpack.c.l.b16 %v5669
        %v6023 = vunpack.c.l.b16 %v5670
        %v6024 = vunpack.c.l.b16 %v5671
        %v6025 = vunpack.c.l.b16 %v5672
        %v6026 = vunpack.c.l.b16 %v5673
        %v6027 = vunpack.c.l.b16 %v5674
        %v6028 = vunpack.c.l.b16 %v5675
        %v6029 = vunpack.c.l.b16 %v5676
        %v6030 = vunpack.c.l.b16 %v5677
        %v6031 = vunpack.c.l.b16 %v5678
        %v6032 = vunpack.c.l.b16 %v5679
        %v6033 = vunpack.c.l.b16 %v5680
        %v6034 = vunpack.c.l.b16 %v5681
        %v6035 = vunpack.c.l.b16 %v5682
        %v6036 = vunpack.c.l.b16 %v5683
        %v6037 = vunpack.c.l.b16 %v5684
        %v6038 = vunpack.c.l.b16 %v5685
        %v6039 = vunpack.c.l.b16 %v5686
        %v6040 = vunpack.c.l.b16 %v5687
        %v6041 = vunpack.c.l.b16 %v5688
        %v6042 = vunpack.c.l.b16 %v5689
        %v6043 = vunpack.c.l.b16 %v5690
        %v6044 = vunpack.c.l.b16 %v5691
        %v6045 = vunpack.c.l.b16 %v5692
        %v6046 = vunpack.c.l.b16 %v5693
        %v6047 = vunpack.c.l.b16 %v5694
        %v6048 = vunpack.c.l.b16 %v5695
        %v6049 = vunpack.c.l.b16 %v5696
        %v6050 = vunpack.c.l.b16 %v5697
        %v6051 = vunpack.c.l.b16 %v5698
        %v6052 = vunpack.c.l.b16 %v5699
        %v6053 = vunpack.c.l.b16 %v5700
        %v6054 = vunpack.c.l.b16 %v5701
        %v6055 = vunpack.c.l.b16 %v5702
        %v6056 = vunpack.c.l.b16 %v5703
        %v6057 = vunpack.c.l.b16 %v5704
        %v6058 = vunpack.c.l.b16 %v5705
        %v6059 = vunpack.c.l.b16 %v5706
        %v6060 = vunpack.c.l.b16 %v5707
        %v6061 = vunpack.c.l.b16 %v5708
        %v6062 = vunpack.c.l.b16 %v5709
        %v6063 = vunpack.c.l.b16 %v5710
        %v6064 = vunpack.c.l.b16 %v5711
        %v6065 = vunpack.c.l.b16 %v5712
        %v6066 = vunpack.c.l.b16 %v5713
        %v6067 = vunpack.c.l.b16 %v5714
        %v6068 = vunpack.c.l.b16 %v5715
        %v6069 = vunpack.c.l.b16 %v5716
        %v6070 = vunpack.c.l.b16 %v5717
        %v6071 = vunpack.c.l.b16 %v5718
        %v6072 = vunpack.c.l.b16 %v5719
        %v6073 = vunpack.c.l.b16 %v5720
        %v6074 = vunpack.c.l.b16 %v5721
        %v6075 = vunpack.c.l.b16 %v5722
        %v6076 = vunpack.c.l.b16 %v5723
        %v6077 = vunpack.c.l.b16 %v5724
        %v6078 = vunpack.c.l.b16 %v5725
        %v6079 = vunpack.c.l.b16 %v5726
        %v6080 = vunpack.c.l.b16 %v5727
        %v6081 = vunpack.c.l.b16 %v5728
        %v6082 = vunpack.c.l.b16 %v5729
        %v6083 = vunpack.c.l.b16 %v5730
        %v6084 = vunpack.c.l.b16 %v5731
        %v6085 = vunpack.c.l.b16 %v5732
        %v6086 = vunpack.c.l.b16 %v5733
        %v6087 = vunpack.c.l.b16 %v5734
        %v6088 = vunpack.c.l.b16 %v5735
        %v6089 = vunpack.c.l.b16 %v5736
        %v6090 = vunpack.c.l.b16 %v5737
        %v6091 = vunpack.c.l.b16 %v5738
        %v6092 = vunpack.c.l.b16 %v5739
        %v6093 = vunpack.c.l.b16 %v5740
        %v6094 = vunpack.c.l.b16 %v5741
        %v6095 = vunpack.c.l.b16 %v5742
        %v6096 = vunpack.c.l.b16 %v5743
        %v6097 = vunpack.c.l.b16 %v5744
        %v6098 = vunpack.c.l.b16 %v5745
        %v6099 = vunpack.c.l.b16 %v5746
        %v6100 = vunpack.c.l.b16 %v5747
        %v6101 = vunpack.c.l.b16 %v5748
        %v6102 = vunpack.c.l.b16 %v5749
        %v6103 = vunpack.c.l.b16 %v5750
        %v6104 = vunpack.c.l.b16 %v5751
        %v6105 = vunpack.c.l.b16 %v5752
        %v6106 = vunpack.c.l.b16 %v5753
        %v6107 = vunpack.c.l.b16 %v5754
        %v6108 = vunpack.c.l.b16 %v5755
        %v6109 = vunpack.c.l.b16 %v5756
        %v6110 = vunpack.c.l.b16 %v5757
        %v6111 = vunpack.c.l.b16 %v5758
        %v6112 = vunpack.c.l.b16 %v5759
        %v6113 = vunpack.c.l.b16 %v5760
        %v6114 = vunpack.c.l.b16 %v5761
        %v6115 = vunpack.c.l.b16 %v5762
        %v6116 = vunpack.c.l.b16 %v5763
        %v6117 = vunpack.c.l.b16 %v5764
        %v6118 = vunpack.c.l.b16 %v5765
        %v6119 = vunpack.c.l.b16 %v5766
        %v6120 = vunpack.c.l.b16 %v5767
        %v6121 = vunpack.c.l.b16 %v5768
        %v6122 = vunpack.c.l.b16 %v5769
        %v6123 = vunpack.c.l.b16 %v5770
        %v6124 = vunpack.c.l.b16 %v5771
        %v6125 = vunpack.c.l.b16 %v5772
        %v6126 = vunpack.c.l.b16 %v5773
        %v6127 = vunpack.c.l.b16 %v5774
        %v6128 = vunpack.c.l.b16 %v5775
        %v6129 = vunpack.c.l.b16 %v5776
        %v6130 = vunpack.c.l.b16 %v5777
        %v6131 = vunpack.c.l.b16 %v5778
        %v6132 = vunpack.c.l.b16 %v5779
        %v6133 = vunpack.c.l.b16 %v5780
        %v6134 = vunpack.c.l.b16 %v5781
        %v6135 = vunpack.c.l.b16 %v5782
        %v6136 = vunpack.c.l.b16 %v5783
        %v6137 = vunpack.c.l.b16 %v5784
        %v6138 = vunpack.c.l.b16 %v5785
        %v6139 = vunpack.c.l.b16 %v5786
        %v6140 = vunpack.c.l.b16 %v5787
        %v6141 = vunpack.c.l.b16 %v5788
        %v6142 = vunpack.c.l.b16 %v5789
        %v6143 = vunpack.c.l.b16 %v5790
        %v6144 = vunpack.c.l.b16 %v5791
        %v6145 = vunpack.c.l.b16 %v5792
        %v6146 = vunpack.c.l.b16 %v5793
        %v6147 = vunpack.c.l.b16 %v5794
        %v6148 = vunpack.c.l.b16 %v5795
        %v6149 = vunpack.c.l.b16 %v5796
        %v6150 = vunpack.c.l.b16 %v5797
        %v6151 = vunpack.c.l.b16 %v5798
        %v6152 = vunpack.c.l.b16 %v5799
        %v6153 = vunpack.c.l.b16 %v5800
        %v6154 = vunpack.c.l.b16 %v5801
        %v6155 = vunpack.c.l.b16 %v5802
        %v6156 = vunpack.c.l.b16 %v5803
        %v6157 = vunpack.c.l.b16 %v5804
        %v6158 = vunpack.c.l.b16 %v5805
        %v6159 = vunpack.c.l.b16 %v5806
        %v6160 = vunpack.c.l.b16 %v5807
        %v6161 = vunpack.c.l.b16 %v5808
        %v6162 = vunpack.c.l.b16 %v5809
        %v6163 = vunpack.c.l.b16 %v5810
        %v6164 = vunpack.c.l.b16 %v5811
        %v6165 = vunpack.c.l.b16 %v5812
        %v6166 = vunpack.c.l.b16 %v5813
        %v6167 = vunpack.c.l.b16 %v5814
        %v6168 = vpack.c.b16 %v5993, %v5992
        %v6169 = vpack.c.b16 %v5995, %v5994
        %v6170 = vpack.c.b16 %v5997, %v5996
        %v6171 = vpack.c.b16 %v5999, %v5998
        %v6172 = vpack.c.b16 %v6001, %v6000
        %v6173 = vpack.c.b16 %v6003, %v6002
        %v6174 = vpack.c.b16 %v6005, %v6004
        %v6175 = vpack.c.b16 %v6007, %v6006
        %v6176 = vpack.c.b16 %v6009, %v6008
        %v6177 = vpack.c.b16 %v6011, %v6010
        %v6178 = vpack.c.b16 %v6013, %v6012
        %v6179 = vpack.c.b16 %v6015, %v6014
        %v6180 = vpack.c.b16 %v6017, %v6016
        %v6181 = vpack.c.b16 %v6019, %v6018
        %v6182 = vpack.c.b16 %v6021, %v6020
        %v6183 = vpack.c.b16 %v6023, %v6022
        %v6184 = vpack.c.b16 %v6025, %v6024
        %v6185 = vpack.c.b16 %v6027, %v6026
        %v6186 = vpack.c.b16 %v6029, %v6028
        %v6187 = vpack.c.b16 %v6031, %v6030
        %v6188 = vpack.c.b16 %v6033, %v6032
        %v6189 = vpack.c.b16 %v6035, %v6034
        %v6190 = vpack.c.b16 %v6037, %v6036
        %v6191 = vpack.c.b16 %v6039, %v6038
        %v6192 = vpack.c.b16 %v6041, %v6040
        %v6193 = vpack.c.b16 %v6043, %v6042
        %v6194 = vpack.c.b16 %v6045, %v6044
        %v6195 = vpack.c.b16 %v6047, %v6046
        %v6196 = vpack.c.b16 %v6049, %v6048
        %v6197 = vpack.c.b16 %v6051, %v6050
        %v6198 = vpack.c.b16 %v6053, %v6052
        %v6199 = vpack.c.b16 %v6055, %v6054
        %v6200 = vpack.c.b16 %v6057, %v6056
        %v6201 = vpack.c.b16 %v6059, %v6058
        %v6202 = vpack.c.b16 %v6061, %v6060
        %v6203 = vpack.c.b16 %v6063, %v6062
        %v6204 = vpack.c.b16 %v6065, %v6064
        %v6205 = vpack.c.b16 %v6067, %v6066
        %v6206 = vpack.c.b16 %v6069, %v6068
        %v6207 = vpack.c.b16 %v6071, %v6070
        %v6208 = vpack.c.b16 %v6073, %v6072
        %v6209 = vpack.c.b16 %v6075, %v6074
        %v6210 = vpack.c.b16 %v6077, %v6076
        %v6211 = vpack.c.b16 %v6079, %v6078
        %v6212 = vpack.c.b16 %v6081, %v6080
        %v6213 = vpack.c.b16 %v6083, %v6082
        %v6214 = vpack.c.b16 %v6085, %v6084
        %v6215 = vpack.c.b16 %v6087, %v6086
        %v6216 = vpack.c.b16 %v6089, %v6088
        %v6217 = vpack.c.b16 %v6091, %v6090
        %v6218 = vpack.c.b16 %v6093, %v6092
        %v6219 = vpack.c.b16 %v6095, %v6094
        %v6220 = vpack.c.b16 %v6097, %v6096
        %v6221 = vpack.c.b16 %v6099, %v6098
        %v6222 = vpack.c.b16 %v6101, %v6100
        %v6223 = vpack.c.b16 %v6103, %v6102
        %v6224 = vpack.c.b16 %v6105, %v6104
        %v6225 = vpack.c.b16 %v6107, %v6106
        %v6226 = vpack.c.b16 %v6109, %v6108
        %v6227 = vpack.c.b16 %v6111, %v6110
        %v6228 = vpack.c.b16 %v6113, %v6112
        %v6229 = vpack.c.b16 %v6115, %v6114
        %v6230 = vpack.c.b16 %v6117, %v6116
        %v6231 = vpack.c.b16 %v6119, %v6118
        %v6232 = vpack.c.b16 %v6121, %v6120
        %v6233 = vpack.c.b16 %v6123, %v6122
        %v6234 = vpack.c.b16 %v6125, %v6124
        %v6235 = vpack.c.b16 %v6127, %v6126
        %v6236 = vpack.c.b16 %v6129, %v6128
        %v6237 = vpack.c.b16 %v6131, %v6130
        %v6238 = vpack.c.b16 %v6133, %v6132
        %v6239 = vpack.c.b16 %v6135, %v6134
        %v6240 = vpack.c.b16 %v6137, %v6136
        %v6241 = vpack.c.b16 %v6139, %v6138
        %v6242 = vpack.c.b16 %v6141, %v6140
        %v6243 = vpack.c.b16 %v6143, %v6142
        %v6244 = vpack.c.b16 %v6145, %v6144
        %v6245 = vpack.c.b16 %v6147, %v6146
        %v6246 = vpack.c.b16 %v6149, %v6148
        %v6247 = vpack.c.b16 %v6151, %v6150
        %v6248 = vpack.c.b16 %v6153, %v6152
        %v6249 = vpack.c.b16 %v6155, %v6154
        %v6250 = vpack.c.b16 %v6157, %v6156
        %v6251 = vpack.c.b16 %v6159, %v6158
        %v6252 = vpack.c.b16 %v6161, %v6160
        %v6253 = vpack.c.b16 %v6163, %v6162
        %v6254 = vpack.c.b16 %v6165, %v6164
        %v6255 = vpack.c.b16 %v6167, %v6166
        %6344 = vmatprep.subr.bf16.mxu0 0
        %6345 = vmatpush1.bf16.msra.mxu0 %v6175
        %6346 = vmatprep.subr.bf16.mxu0 0
        %6347 = vmatpush1.bf16.msra.mxu0 %v6174
        %6348 = vmatprep.subr.bf16.mxu0 0
        %6349 = vmatpush1.bf16.msra.mxu0 %v6173
        %6350 = vmatprep.subr.bf16.mxu0 0
        %6351 = vmatpush1.bf16.msra.mxu0 %v6172
        %6352 = vmatprep.subr.bf16.mxu0 0
        %6353 = vmatpush1.bf16.msra.mxu0 %v6171
        %6354 = vmatprep.subr.bf16.mxu0 0
        %6355 = vmatpush1.bf16.msra.mxu0 %v6170
        %6356 = vmatprep.subr.bf16.mxu0 0
        %6357 = vmatpush1.bf16.msra.mxu0 %v6169
        %6358 = vmatprep.subr.bf16.mxu0 0
        %6359 = vmatpush1.bf16.msra.mxu0 %v6168
        %6360 = vmatprep.subr.bf16.mxu0 0
        %6361 = vmatpush2.bf16.msra.mxu0 %v6183
        %6362 = vmatprep.subr.bf16.mxu0 0
        %6363 = vmatpush2.bf16.msra.mxu0 %v6182
        %6364 = vmatprep.subr.bf16.mxu0 0
        %6365 = vmatpush2.bf16.msra.mxu0 %v6181
        %6366 = vmatprep.subr.bf16.mxu0 0
        %6367 = vmatpush2.bf16.msra.mxu0 %v6180
        %6368 = vmatprep.subr.bf16.mxu0 0
        %6369 = vmatpush2.bf16.msra.mxu0 %v6179
        %6370 = vmatprep.subr.bf16.mxu0 0
        %6371 = vmatpush2.bf16.msra.mxu0 %v6178
        %6372 = vmatprep.subr.bf16.mxu0 0
        %6373 = vmatpush2.bf16.msra.mxu0 %v6177
        %6374 = vmatprep.subr.bf16.mxu0 0
        %6375 = vmatpush2.bf16.msra.mxu0 %v6176
        %6376 = vmatprep.mubr.bf16.mxu0 %v5629
        %6377 = vmatmul.mubr.bf16.gmra.mxu0 %v5628
        %v6378 = vpop.f32.mrf.mxu0
        %v6379 = vadd.f32 %v5815, %v6378
        %v6380 = vpop.f32.mrf.mxu0
        %v6381 = vpop.f32.mrf.mxu0
        %v6382 = vpop.f32.mrf.mxu0
        %6383 = vdwg.mxu0
        %6384 = vmatprep.subr.bf16.mxu0 0
        %6385 = vmatpush1.bf16.msra.mxu0 %v6191
        %6386 = vmatprep.subr.bf16.mxu0 0
        %6387 = vmatpush1.bf16.msra.mxu0 %v6190
        %6388 = vmatprep.subr.bf16.mxu0 0
        %6389 = vmatpush1.bf16.msra.mxu0 %v6189
        %6390 = vmatprep.subr.bf16.mxu0 0
        %6391 = vmatpush1.bf16.msra.mxu0 %v6188
        %6392 = vmatprep.subr.bf16.mxu0 0
        %6393 = vmatpush1.bf16.msra.mxu0 %v6187
        %6394 = vmatprep.subr.bf16.mxu0 0
        %6395 = vmatpush1.bf16.msra.mxu0 %v6186
        %6396 = vmatprep.subr.bf16.mxu0 0
        %6397 = vmatpush1.bf16.msra.mxu0 %v6185
        %6398 = vmatprep.subr.bf16.mxu0 0
        %6399 = vmatpush1.bf16.msra.mxu0 %v6184
        %6400 = vmatprep.subr.bf16.mxu0 0
        %6401 = vmatpush2.bf16.msra.mxu0 %v6199
        %6402 = vmatprep.subr.bf16.mxu0 0
        %6403 = vmatpush2.bf16.msra.mxu0 %v6198
        %6404 = vmatprep.subr.bf16.mxu0 0
        %6405 = vmatpush2.bf16.msra.mxu0 %v6197
        %6406 = vmatprep.subr.bf16.mxu0 0
        %6407 = vmatpush2.bf16.msra.mxu0 %v6196
        %6408 = vmatprep.subr.bf16.mxu0 0
        %6409 = vmatpush2.bf16.msra.mxu0 %v6195
        %6410 = vmatprep.subr.bf16.mxu0 0
        %6411 = vmatpush2.bf16.msra.mxu0 %v6194
        %6412 = vmatprep.subr.bf16.mxu0 0
        %6413 = vmatpush2.bf16.msra.mxu0 %v6193
        %6414 = vmatprep.subr.bf16.mxu0 0
        %6415 = vmatpush2.bf16.msra.mxu0 %v6192
        %6416 = vmatprep.mubr.bf16.mxu0 %v5631
        %6417 = vmatmul.mubr.bf16.gmra.mxu0 %v5630
        %v6418 = vpop.f32.mrf.mxu0
        %v6419 = vadd.f32 %v6379, %v6418
        %v6420 = vpop.f32.mrf.mxu0
        %v6421 = vpop.f32.mrf.mxu0
        %v6422 = vpop.f32.mrf.mxu0
        %6423 = vdwg.mxu0
        %6424 = vmatprep.subr.bf16.mxu0 0
        %6425 = vmatpush1.bf16.msra.mxu0 %v6207
        %6426 = vmatprep.subr.bf16.mxu0 0
        %6427 = vmatpush1.bf16.msra.mxu0 %v6206
        %6428 = vmatprep.subr.bf16.mxu0 0
        %6429 = vmatpush1.bf16.msra.mxu0 %v6205
        %6430 = vmatprep.subr.bf16.mxu0 0
        %6431 = vmatpush1.bf16.msra.mxu0 %v6204
        %6432 = vmatprep.subr.bf16.mxu0 0
        %6433 = vmatpush1.bf16.msra.mxu0 %v6203
        %6434 = vmatprep.subr.bf16.mxu0 0
        %6435 = vmatpush1.bf16.msra.mxu0 %v6202
        %6436 = vmatprep.subr.bf16.mxu0 0
        %6437 = vmatpush1.bf16.msra.mxu0 %v6201
        %6438 = vmatprep.subr.bf16.mxu0 0
        %6439 = vmatpush1.bf16.msra.mxu0 %v6200
        %6440 = vmatprep.subr.bf16.mxu0 0
        %6441 = vmatpush2.bf16.msra.mxu0 %v6215
        %6442 = vmatprep.subr.bf16.mxu0 0
        %6443 = vmatpush2.bf16.msra.mxu0 %v6214
        %6444 = vmatprep.subr.bf16.mxu0 0
        %6445 = vmatpush2.bf16.msra.mxu0 %v6213
        %6446 = vmatprep.subr.bf16.mxu0 0
        %6447 = vmatpush2.bf16.msra.mxu0 %v6212
        %6448 = vmatprep.subr.bf16.mxu0 0
        %6449 = vmatpush2.bf16.msra.mxu0 %v6211
        %6450 = vmatprep.subr.bf16.mxu0 0
        %6451 = vmatpush2.bf16.msra.mxu0 %v6210
        %6452 = vmatprep.subr.bf16.mxu0 0
        %6453 = vmatpush2.bf16.msra.mxu0 %v6209
        %6454 = vmatprep.subr.bf16.mxu0 0
        %6455 = vmatpush2.bf16.msra.mxu0 %v6208
        %6456 = vmatprep.mubr.bf16.mxu0 %v5633
        %6457 = vmatmul.mubr.bf16.gmra.mxu0 %v5632
        %v6458 = vpop.f32.mrf.mxu0
        %v6459 = vadd.f32 %v6419, %v6458
        %v6460 = vpop.f32.mrf.mxu0
        %v6461 = vpop.f32.mrf.mxu0
        %v6462 = vpop.f32.mrf.mxu0
        %6463 = vdwg.mxu0
        %6464 = vmatprep.subr.bf16.mxu0 0
        %6465 = vmatpush1.bf16.msra.mxu0 %v6223
        %6466 = vmatprep.subr.bf16.mxu0 0
        %6467 = vmatpush1.bf16.msra.mxu0 %v6222
        %6468 = vmatprep.subr.bf16.mxu0 0
        %6469 = vmatpush1.bf16.msra.mxu0 %v6221
        %6470 = vmatprep.subr.bf16.mxu0 0
        %6471 = vmatpush1.bf16.msra.mxu0 %v6220
        %6472 = vmatprep.subr.bf16.mxu0 0
        %6473 = vmatpush1.bf16.msra.mxu0 %v6219
        %6474 = vmatprep.subr.bf16.mxu0 0
        %6475 = vmatpush1.bf16.msra.mxu0 %v6218
        %6476 = vmatprep.subr.bf16.mxu0 0
        %6477 = vmatpush1.bf16.msra.mxu0 %v6217
        %6478 = vmatprep.subr.bf16.mxu0 0
        %6479 = vmatpush1.bf16.msra.mxu0 %v6216
        %6480 = vmatprep.subr.bf16.mxu0 0
        %6481 = vmatpush2.bf16.msra.mxu0 %v6231
        %6482 = vmatprep.subr.bf16.mxu0 0
        %6483 = vmatpush2.bf16.msra.mxu0 %v6230
        %6484 = vmatprep.subr.bf16.mxu0 0
        %6485 = vmatpush2.bf16.msra.mxu0 %v6229
        %6486 = vmatprep.subr.bf16.mxu0 0
        %6487 = vmatpush2.bf16.msra.mxu0 %v6228
        %6488 = vmatprep.subr.bf16.mxu0 0
        %6489 = vmatpush2.bf16.msra.mxu0 %v6227
        %6490 = vmatprep.subr.bf16.mxu0 0
        %6491 = vmatpush2.bf16.msra.mxu0 %v6226
        %6492 = vmatprep.subr.bf16.mxu0 0
        %6493 = vmatpush2.bf16.msra.mxu0 %v6225
        %6494 = vmatprep.subr.bf16.mxu0 0
        %6495 = vmatpush2.bf16.msra.mxu0 %v6224
        %6496 = vmatprep.mubr.bf16.mxu0 %v5635
        %6497 = vmatmul.mubr.bf16.gmra.mxu0 %v5634
        %v6498 = vpop.f32.mrf.mxu0
        %v6499 = vadd.f32 %v6459, %v6498
        %v6500 = vpop.f32.mrf.mxu0
        %v6501 = vpop.f32.mrf.mxu0
        %v6502 = vpop.f32.mrf.mxu0
        %6503 = vdwg.mxu0
        %6504 = vmatprep.subr.bf16.mxu0 0
        %6505 = vmatpush1.bf16.msra.mxu0 %v6239
        %6506 = vmatprep.subr.bf16.mxu0 0
        %6507 = vmatpush1.bf16.msra.mxu0 %v6238
        %6508 = vmatprep.subr.bf16.mxu0 0
        %6509 = vmatpush1.bf16.msra.mxu0 %v6237
        %6510 = vmatprep.subr.bf16.mxu0 0
        %6511 = vmatpush1.bf16.msra.mxu0 %v6236
        %6512 = vmatprep.subr.bf16.mxu0 0
        %6513 = vmatpush1.bf16.msra.mxu0 %v6235
        %6514 = vmatprep.subr.bf16.mxu0 0
        %6515 = vmatpush1.bf16.msra.mxu0 %v6234
        %6516 = vmatprep.subr.bf16.mxu0 0
        %6517 = vmatpush1.bf16.msra.mxu0 %v6233
        %6518 = vmatprep.subr.bf16.mxu0 0
        %6519 = vmatpush1.bf16.msra.mxu0 %v6232
        %6520 = vmatprep.subr.bf16.mxu0 0
        %6521 = vmatpush2.bf16.msra.mxu0 %v6247
        %6522 = vmatprep.subr.bf16.mxu0 0
        %6523 = vmatpush2.bf16.msra.mxu0 %v6246
        %6524 = vmatprep.subr.bf16.mxu0 0
        %6525 = vmatpush2.bf16.msra.mxu0 %v6245
        %6526 = vmatprep.subr.bf16.mxu0 0
        %6527 = vmatpush2.bf16.msra.mxu0 %v6244
        %6528 = vmatprep.subr.bf16.mxu0 0
        %6529 = vmatpush2.bf16.msra.mxu0 %v6243
        %6530 = vmatprep.subr.bf16.mxu0 0
        %6531 = vmatpush2.bf16.msra.mxu0 %v6242
        %6532 = vmatprep.subr.bf16.mxu0 0
        %6533 = vmatpush2.bf16.msra.mxu0 %v6241
        %6534 = vmatprep.subr.bf16.mxu0 0
        %6535 = vmatpush2.bf16.msra.mxu0 %v6240
        %6536 = vmatprep.mubr.bf16.mxu0 %v5637
        %6537 = vmatmul.mubr.bf16.gmra.mxu0 %v5636
        %v6538 = vpop.f32.mrf.mxu0
        %v6539 = vadd.f32 %v6499, %v6538
        %v6540 = vpop.f32.mrf.mxu0
        %v6541 = vpop.f32.mrf.mxu0
        %v6542 = vpop.f32.mrf.mxu0
        %6543 = vdwg.mxu0
        %6544 = vmatprep.subr.bf16.mxu0 0
        %6545 = vmatpush1.bf16.msra.mxu0 %v6255
        %6546 = vmatprep.subr.bf16.mxu0 0
        %6547 = vmatpush1.bf16.msra.mxu0 %v6254
        %6548 = vmatprep.subr.bf16.mxu0 0
        %6549 = vmatpush1.bf16.msra.mxu0 %v6253
        %6550 = vmatprep.subr.bf16.mxu0 0
        %6551 = vmatpush1.bf16.msra.mxu0 %v6252
        %6552 = vmatprep.subr.bf16.mxu0 0
        %6553 = vmatpush1.bf16.msra.mxu0 %v6251
        %6554 = vmatprep.subr.bf16.mxu0 0
        %6555 = vmatpush1.bf16.msra.mxu0 %v6250
        %6556 = vmatprep.subr.bf16.mxu0 0
        %6557 = vmatpush1.bf16.msra.mxu0 %v6249
        %6558 = vmatprep.subr.bf16.mxu0 0
        %6559 = vmatpush1.bf16.msra.mxu0 %v6248
        %6560 = vmatprep.subr.bf16.mxu0 0
        %6561 = vmatpush2.bf16.msra.mxu0 0
        %6562 = vmatprep.subr.bf16.mxu0 0
        %6563 = vmatpush2.bf16.msra.mxu0 0
        %6564 = vmatprep.subr.bf16.mxu0 0
        %6565 = vmatpush2.bf16.msra.mxu0 0
        %6566 = vmatprep.subr.bf16.mxu0 0
        %6567 = vmatpush2.bf16.msra.mxu0 0
        %6568 = vmatprep.subr.bf16.mxu0 0
        %6569 = vmatpush2.bf16.msra.mxu0 0
        %6570 = vmatprep.subr.bf16.mxu0 0
        %6571 = vmatpush2.bf16.msra.mxu0 0
        %6572 = vmatprep.subr.bf16.mxu0 0
        %6573 = vmatpush2.bf16.msra.mxu0 0
        %6574 = vmatprep.subr.bf16.mxu0 0
        %6575 = vmatpush2.bf16.msra.mxu0 0
        %6576 = vmatprep.mubr.bf16.mxu0 0
        %6577 = vmatmul.mubr.bf16.gmra.mxu0 %v5638
        %v6578 = vpop.f32.mrf.mxu0
        %v6579 = vadd.f32 %v6539, %v6578
        %v6580 = vpop.f32.mrf.mxu0
        %v6581 = vpop.f32.mrf.mxu0
        %v6582 = vpop.f32.mrf.mxu0
        %6583 = vdwg.mxu0
        %v6584 = vmax.f32 %v6579, 0.0
        %v6585 = vpack.c.bf16 %v6584, %v6584
        %v6586 = vld [vmem:[%s11] sm:$0xf]
        %v6587 = vld [vmem:[%s11 + $0x4] sm:$0xf]
        %v6588 = vld [vmem:[%s11 + $0x8] sm:$0xf]
        %v6589 = vld [vmem:[%s11 + $0xc] sm:$0xf]
        %v6590 = vld [vmem:[%s11 + $0x10] sm:$0xf]
        %v6591 = vld [vmem:[%s11 + $0x14] sm:$0xf]
        %v6592 = vld [vmem:[%s11 + $0x18] sm:$0xf]
        %v6593 = vld [vmem:[%s11 + $0x1c] sm:$0xf]
        %v6594 = vld [vmem:[%s12] sm:$0x1]
        %v6603 = vunpack.c.l.b16 %v6586
        %v6604 = vunpack.c.l.b16 %v6587
        %v6605 = vunpack.c.l.b16 %v6588
        %v6606 = vunpack.c.l.b16 %v6589
        %v6607 = vunpack.c.l.b16 %v6590
        %v6608 = vunpack.c.l.b16 %v6591
        %v6609 = vunpack.c.l.b16 %v6592
        %v6610 = vunpack.c.l.b16 %v6593
        %v6611 = vpack.c.b16 %v6604, %v6603
        %v6612 = vpack.c.b16 %v6606, %v6605
        %v6613 = vpack.c.b16 %v6608, %v6607
        %v6614 = vpack.c.b16 %v6610, %v6609
        %v6620 = vsel %vm762, %v6585, 0
        %6622 = vmatprep.subr.bf16.mxu0 0
        %6623 = vmatpush1.bf16.msra.mxu0 0
        %6624 = vmatprep.subr.bf16.mxu0 0
        %6625 = vmatpush1.bf16.msra.mxu0 0
        %6626 = vmatprep.subr.bf16.mxu0 0
        %6627 = vmatpush1.bf16.msra.mxu0 0
        %6628 = vmatprep.subr.bf16.mxu0 0
        %6629 = vmatpush1.bf16.msra.mxu0 0
        %6630 = vmatprep.subr.bf16.mxu0 0
        %6631 = vmatpush1.bf16.msra.mxu0 %v6614
        %6632 = vmatprep.subr.bf16.mxu0 0
        %6633 = vmatpush1.bf16.msra.mxu0 %v6613
        %6634 = vmatprep.subr.bf16.mxu0 0
        %6635 = vmatpush1.bf16.msra.mxu0 %v6612
        %6636 = vmatprep.subr.bf16.mxu0 0
        %6637 = vmatpush1.bf16.msra.mxu0 %v6611
        %6638 = vmatprep.subr.bf16.mxu0 0
        %6639 = vmatpush2.bf16.msra.mxu0 0
        %6640 = vmatprep.subr.bf16.mxu0 0
        %6641 = vmatpush2.bf16.msra.mxu0 0
        %6642 = vmatprep.subr.bf16.mxu0 0
        %6643 = vmatpush2.bf16.msra.mxu0 0
        %6644 = vmatprep.subr.bf16.mxu0 0
        %6645 = vmatpush2.bf16.msra.mxu0 0
        %6646 = vmatprep.subr.bf16.mxu0 0
        %6647 = vmatpush2.bf16.msra.mxu0 0
        %6648 = vmatprep.subr.bf16.mxu0 0
        %6649 = vmatpush2.bf16.msra.mxu0 0
        %6650 = vmatprep.subr.bf16.mxu0 0
        %6651 = vmatpush2.bf16.msra.mxu0 0
        %6652 = vmatprep.subr.bf16.mxu0 0
        %6653 = vmatpush2.bf16.msra.mxu0 0
        %6654 = vmatprep.mubr.bf16.mxu0 0
        %6655 = vmatmul.mubr.bf16.gmra.mxu0 %v6620
        %v6656 = vpop.f32.mrf.mxu0
        %v6657 = vadd.f32 %v6594, %v6656
        %v6658 = vpop.f32.mrf.mxu0
        %v6659 = vpop.f32.mrf.mxu0
        %v6660 = vpop.f32.mrf.mxu0
        %6661 = vdwg.mxu0
        %vm6662 = vcmask 73728
        %6663 = vst.msk [vmem:[%s447] sm:$0x1] %vm6662, %v6657
        %s6664 = sand.u32 %s314, 1
        %s6665 = scalar_lea.sflag [#allocation8], %s6664
        %s6666 = sand.u32 %s314, 1
        %s6667 = scalar_lea.vmem [#allocation9], %s6666
        // Predicated region
        $region77: #{forward.1} parent=71 // pred_check
          %p6668 = pneg %p324
        $region78: #{forward.1} parent=71 // pred_check_branch
          %6670 = sbr.rel (%p6668) target = $region80
        $region79: #{forward.1} parent=71 // pred_region
          %s6672 = ssub.s32 16, 16
          %6673 = vsyncadd %s6665, %s6672
          %s6674 = smul.addr %s28, 16
          %s6675 = scalar_lea.hbm %s13, %s6674
          %s6677 = sshll.u32 %s6667, 4
          %s6678 = int_to_ptr.vmem [resolvable:$true] %s6677
          %6680 = dma.vmem_to_hbm [thread:$0]  %s6678, 16, %s6675, %s6665
        $region80: #{forward.1} parent=71 // pred_fallthru
          _
      $region72: #{forward.1} parent=5 // pred_fallthru
        _
      %p6681 = scmp.le.s32.totalorder 2, %s23
      // Predicated region
      $region81: #{forward.1} parent=5 // pred_check
        %p6682 = pneg %p6681
      $region82: #{forward.1} parent=5 // pred_check_branch
        %6684 = sbr.rel (%p6682) target = $region84
      $region83: #{forward.1} parent=5 // pred_region
        %s6685 = ssub.s32 %s23, 2
        // Predicated region
        $region85: #{forward.1} parent=83 // pred_check
          %p6686 = pneg %p330
        $region86: #{forward.1} parent=83 // pred_check_branch
          %6688 = sbr.rel (%p6686) target = $region88
        $region87: #{forward.1} parent=83 // pred_region
          %s6689 = sand.u32 %s315, 1
          %s6690 = scalar_lea.sflag [#allocation8], %s6689
          %s6691 = sand.u32 %s315, 1
          %s6692 = scalar_lea.vmem [#allocation9], %s6691
          %6693 = dma.done %s6690, 16
        $region88: #{forward.1} parent=83 // pred_fallthru
          _
      $region84: #{forward.1} parent=5 // pred_fallthru
        _
    $region6: #{forward.1} parent=1 // loop_footer
      %s27 = sadd.s32 1, %s23
    $region7: #{forward.1} parent=1 // loop_footer_branch
      %22 = sbr.rel target = $region3
    $region8: #{forward.1} parent=1 // loop_exit
      _
    %6694 = vsyncpa [#allocation7], 1
    %s6695 = scalar_lea.sflag [#allocation7], 1
    %6696 = vsyncpa %s6695, 1
    %6697 = vsyncpa [#allocation8], 1
    %s6698 = scalar_lea.sflag [#allocation8], 1
    %6699 = vsyncpa %s6698, 1

</llo_original>
